<compile_context>
chip_gen: v7x
topology: tpu7x:2x2x1
jax: 0.10.0
libtpu: 0.0.40
codegen_flags: <defaults>
</compile_context>

<pallas_src>
import functools

import numpy as np
import jax
import jax.numpy as jnp
from jax import lax
from jax.experimental import pallas as pl
from jax.experimental.pallas import tpu as pltpu


OUT_LANES = 128  # lane-dense combined (policy | value | zero-pad) output width


# ----------------------------------------------------------------------------
# Pallas kernel: forward pass for one block of TB samples.
# ----------------------------------------------------------------------------
def _c4_forward_kernel(x_ref, w1_ref, b1_ref, w2_ref, b2_ref, w3_ref, b3_ref,
                       wfc1_ref, bfc1_ref, wh_ref, bh_ref, out_ref,
                       *, H, W, TB, A):
    f32 = jnp.float32
    cdt = w1_ref.dtype              # compute dtype (bf16 perf path / f32 check)
    M = H * TB                      # MXU M dim (96 for Connect-4, TB=16)

    def conv3x3_relu(src, w_ref, b_ref):
        # src: (M, W*c_in) row-position-major slab; rows [h*TB, (h+1)*TB) hold
        # board-row h of all TB samples.  "Same" column padding is folded into
        # the Toeplitz weights w_ref (3, W*c_in, W*c_out); "same" row padding
        # comes from the zero blocks in the row-shifted operands below.
        K = src.shape[1]
        zblk = jnp.zeros((TB, K), src.dtype)
        acc = jnp.dot(src, w_ref[1], preferred_element_type=f32)
        s0 = jnp.concatenate([zblk, src[:-TB]], axis=0)       # row above
        acc += jnp.dot(s0, w_ref[0], preferred_element_type=f32)
        s2 = jnp.concatenate([src[TB:], zblk], axis=0)        # row below
        acc += jnp.dot(s2, w_ref[2], preferred_element_type=f32)
        return jnp.maximum(acc + b_ref[...], 0.0).astype(cdt)

    x = x_ref[0]                                              # (M, W*C_in)
    y1 = conv3x3_relu(x, w1_ref, b1_ref)                      # (M, W*32)
    y2 = conv3x3_relu(y1, w2_ref, b2_ref)                     # (M, W*64)
    y3 = conv3x3_relu(y2, w3_ref, b3_ref)                     # (M, W*64)

    # fc1: contract over (row, col, chan) — one (TB, W*64)x(W*64, 256) dot per
    # board row (static, sublane-aligned slices thanks to row-major layout).
    feat = jnp.zeros((TB, 256), f32)
    for h in range(H):
        feat += jnp.dot(y3[h * TB:(h + 1) * TB, :], wfc1_ref[h],
                        preferred_element_type=f32)
    feat = jnp.maximum(feat + bfc1_ref[...], 0.0).astype(cdt)

    # Fused policy/value heads: one (TB,256)x(256,128) matmul.  Lanes 0..A-1
    # are policy logits, lane A is the value logit, lanes > A are zero.
    head = jnp.dot(feat, wh_ref[...], preferred_element_type=f32) + bh_ref[...]
    lane = lax.broadcasted_iota(jnp.int32, (TB, OUT_LANES), 1)
    masked = jnp.where(lane < A, head, -jnp.inf)
    m = jnp.max(masked, axis=1, keepdims=True)
    e = jnp.exp(masked - m)                    # exp(-inf)=0 on non-policy lanes
    policy = e * pl.reciprocal(jnp.sum(e, axis=1, keepdims=True), approx=True)
    out = jnp.where(lane == A, jnp.tanh(head), policy)
    out_ref[0] = out                           # single unmasked 128-lane store


# ----------------------------------------------------------------------------
# Parameter creation (PyTorch layout) and one-time packing to kernel layout.
# ----------------------------------------------------------------------------
def make_params(key, c_in, H, W, num_actions):
    ks = jax.random.split(key, 12)

    def nrm(k, shape, scale):
        return scale * jax.random.normal(k, shape, jnp.float32)

    flat = 64 * H * W
    return dict(
        w1=nrm(ks[0], (32, c_in, 3, 3), 1.0 / np.sqrt(c_in * 9)),
        b1=nrm(ks[1], (32,), 0.05),
        w2=nrm(ks[2], (64, 32, 3, 3), 1.0 / np.sqrt(32 * 9)),
        b2=nrm(ks[3], (64,), 0.05),
        w3=nrm(ks[4], (64, 64, 3, 3), 1.0 / np.sqrt(64 * 9)),
        b3=nrm(ks[5], (64,), 0.05),
        wfc1=nrm(ks[6], (256, flat), 1.0 / np.sqrt(flat)),
        bfc1=nrm(ks[7], (256,), 0.05),
        wpol=nrm(ks[8], (num_actions, 256), 1.0 / np.sqrt(256)),
        bpol=nrm(ks[9], (num_actions,), 0.05),
        wval=nrm(ks[10], (1, 256), 1.0 / np.sqrt(256)),
        bval=nrm(ks[11], (1,), 0.05),
    )


def pack_params(p, H, W, num_actions, compute_dtype=jnp.bfloat16):
    """Fold PyTorch-layout params into kernel layout.  Pure jnp (traceable),
    call ONCE and reuse the result across forward calls."""
    A = num_actions
    assert A <= OUT_LANES - 1

    def fold_conv(w_oihw):
        # (C_out, C_in, 3, 3) -> (3, W*C_in, W*C_out) Toeplitz blocks, one per
        # kernel row dy; "same" column padding is folded in as zeroed taps:
        #   big[dy, u*C_in+ci, col*C_out+co] = w[co, ci, dy, u-col+1]
        w = jnp.asarray(w_oihw, jnp.float32)
        c_out, c_in = w.shape[0], w.shape[1]
        dx = np.arange(3)[:, None, None]
        u = np.arange(W)[None, :, None]
        col = np.arange(W)[None, None, :]
        sel = jnp.asarray((u == col + dx - 1).astype(np.float32))   # (3, W, W)
        big = jnp.einsum('oidx,xuc->duico', w, sel)
        return big.reshape(3, W * c_in, W * c_out).astype(compute_dtype)

    # Fused head weight: lanes 0..A-1 = policy, lane A = value, rest zero.
    wpol = jnp.asarray(p["wpol"], jnp.float32)
    wval = jnp.asarray(p["wval"], jnp.float32)
    wh = jnp.zeros((256, OUT_LANES), jnp.float32)
    wh = wh.at[:, :A].set(wpol.T).at[:, A:A + 1].set(wval.T)
    bh = jnp.zeros((1, OUT_LANES), jnp.float32)
    bh = bh.at[0, :A].set(p["bpol"]).at[0, A].set(p["bval"][0])

    return dict(
        w1=fold_conv(p["w1"]),
        b1=jnp.tile(p["b1"], W)[None, :].astype(jnp.float32),
        w2=fold_conv(p["w2"]),
        b2=jnp.tile(p["b2"], W)[None, :].astype(jnp.float32),
        w3=fold_conv(p["w3"]),
        b3=jnp.tile(p["b3"], W)[None, :].astype(jnp.float32),
        # torch flatten order is (chan,row,col); kernel contracts per board row
        # over (col,chan) -> permute so both contractions match exactly.
        wfc1=(jnp.asarray(p["wfc1"], jnp.float32).reshape(256, 64, H, W)
              .transpose(2, 3, 1, 0).reshape(H, W * 64, 256)
              .astype(compute_dtype)),
        bfc1=p["bfc1"][None, :].astype(jnp.float32),
        wheads=wh.astype(compute_dtype),
        bheads=bh,
    )


# ----------------------------------------------------------------------------
# Jitted pallas_call wrapper.
# ----------------------------------------------------------------------------
@functools.partial(jax.jit, static_argnames=("num_actions", "tb"))
def pallas_forward(x_nchw, packed, *, num_actions, tb=16):
    N, C_in, H, W = x_nchw.shape
    A = num_actions
    M = H * tb
    cdt = packed["w1"].dtype

    # NCHW -> per-block row-position-major slabs: slab[n, h*tb + b, col*C + ch].
    # Padded batch samples (rows N..n_pad) compute finite garbage (softmax is
    # max-protected) and are sliced off below -- they are never meaningful.
    n_pad = -(-N // tb) * tb
    nb = n_pad // tb
    x_nhwc = jnp.transpose(x_nchw, (0, 2, 3, 1)).reshape(N, H, W * C_in)
    x_p = jnp.pad(x_nhwc, ((0, n_pad - N), (0, 0), (0, 0)))
    x_fold = (x_p.reshape(nb, tb, H, W * C_in)
              .transpose(0, 2, 1, 3)
              .reshape(nb, M, W * C_in)
              .astype(cdt))

    kernel = functools.partial(_c4_forward_kernel, H=H, W=W, TB=tb, A=A)
    full2 = lambda n: (0, 0)
    full3 = lambda n: (0, 0, 0)

    out = pl.pallas_call(
        kernel,
        out_shape=jax.ShapeDtypeStruct((nb, tb, OUT_LANES), jnp.float32),
        grid=(nb,),
        in_specs=[
            pl.BlockSpec((1, M, W * C_in), lambda n: (n, 0, 0)),
            # Weight blocks are grid-invariant (constant index maps) so they
            # stay VMEM resident.  pipeline_mode=pl.Buffered(1) would shave
            # the unused second buffer if VMEM ever gets tight (not needed at
            # ~3 MB of bf16 weights vs the 32 MiB limit below).
            pl.BlockSpec((3, W * C_in, W * 32), full3),
            pl.BlockSpec((1, W * 32), full2),
            pl.BlockSpec((3, W * 32, W * 64), full3),
            pl.BlockSpec((1, W * 64), full2),
            pl.BlockSpec((3, W * 64, W * 64), full3),
            pl.BlockSpec((1, W * 64), full2),
            pl.BlockSpec((H, W * 64, 256), full3),
            pl.BlockSpec((1, 256), full2),
            pl.BlockSpec((256, OUT_LANES), full2),
            pl.BlockSpec((1, OUT_LANES), full2),
        ],
        out_specs=pl.BlockSpec((1, tb, OUT_LANES), lambda n: (n, 0, 0)),
        compiler_params=pltpu.CompilerParams(
            dimension_semantics=("parallel",),        # v7x: blocks across 2 TCs
            vmem_limit_bytes=32 * 1024 * 1024),       # fits v5e/v6e/v7x
    )(x_fold, packed["w1"], packed["b1"], packed["w2"], packed["b2"],
      packed["w3"], packed["b3"], packed["wfc1"], packed["bfc1"],
      packed["wheads"], packed["bheads"])

    out2 = out.reshape(nb * tb, OUT_LANES)[:N]
    return out2[:, :A], out2[:, A:A + 1]


# ----------------------------------------------------------------------------
# Pure-JAX reference (mirrors the PyTorch forward exactly) for validation.
# ----------------------------------------------------------------------------
def reference_forward(x, p):
    def conv(h, w, b):
        y = lax.conv_general_dilated(
            h, w, window_strides=(1, 1), padding="SAME",
            dimension_numbers=("NCHW", "OIHW", "NCHW"))
        return jax.nn.relu(y + b[None, :, None, None])

    h = conv(x, p["w1"], p["b1"])
    h = conv(h, p["w2"], p["b2"])
    h = conv(h, p["w3"], p["b3"])
    h = h.reshape(x.shape[0], -1)                      # NCHW flatten
    h = jax.nn.relu(h @ p["wfc1"].T + p["bfc1"])
    policy = jax.nn.softmax(h @ p["wpol"].T + p["bpol"], axis=1)
    value = jnp.tanh(h @ p["wval"].T + p["bval"])
    return policy, value


if __name__ == "__main__":
    # Connect-4: (batch, planes, rows, cols) = (20, 3, 6, 7), 7 actions.
    # batch=20 pads to 32 -> nb=2 grid blocks of TB=16 (one per v7x TC).
    N, C_in, H, W, A = 20, 3, 6, 7, 7
    key = jax.random.PRNGKey(0)
    kx, kp = jax.random.split(key)
    x = jax.random.normal(kx, (N, C_in, H, W), jnp.float32)
    params = make_params(kp, C_in, H, W, A)

    p_ref, v_ref = reference_forward(x, params)

    # 1) f32 compute path: validates the Toeplitz fold, no-pad-row indexing,
    #    fc1 permutation and the fused heads (tolerance absorbs MXU-vs-XLA f32
    #    precision modes and the approx softmax reciprocal).
    packed32 = pack_params(params, H, W, A, compute_dtype=jnp.float32)
    p32, v32 = pallas_forward(x, packed32, num_actions=A, tb=16)
    jax.block_until_ready((p32, v32))
    assert p32.shape == (N, A) and v32.shape == (N, 1)
    assert bool(jnp.allclose(p32, p_ref, atol=1e-2, rtol=1e-2))
    assert bool(jnp.allclose(v32, v_ref, atol=1e-2, rtol=1e-2))

    # 2) bf16 weights/activations with f32 accumulation: performance path.
    packed_bf = pack_params(params, H, W, A, compute_dtype=jnp.bfloat16)
    pbf, vbf = pallas_forward(x, packed_bf, num_actions=A, tb=16)
    jax.block_until_ready((pbf, vbf))
    assert pbf.shape == (N, A) and vbf.shape == (N, 1)
    assert bool(jnp.allclose(pbf, p_ref, atol=3e-2, rtol=3e-2))
    assert bool(jnp.allclose(vbf, v_ref, atol=3e-2, rtol=3e-2))

    print("KERNEL_OK")
</pallas_src>

<mosaic_0001>
module attributes {stable_mosaic.version = 11 : i64} {
  func.func @_c4_forward_kernel(%arg0: i32, %arg1: memref<1x96x21xf32, #tpu.memory_space<vmem>>, %arg2: memref<3x21x224xf32, #tpu.memory_space<vmem>>, %arg3: memref<1x224xf32, #tpu.memory_space<vmem>>, %arg4: memref<3x224x448xf32, #tpu.memory_space<vmem>>, %arg5: memref<1x448xf32, #tpu.memory_space<vmem>>, %arg6: memref<3x448x448xf32, #tpu.memory_space<vmem>>, %arg7: memref<1x448xf32, #tpu.memory_space<vmem>>, %arg8: memref<6x448x256xf32, #tpu.memory_space<vmem>>, %arg9: memref<1x256xf32, #tpu.memory_space<vmem>>, %arg10: memref<256x128xf32, #tpu.memory_space<vmem>>, %arg11: memref<1x128xf32, #tpu.memory_space<vmem>>, %arg12: memref<1x16x128xf32, #tpu.memory_space<vmem>>) attributes {dimension_semantics = [#tpu.dimension_semantics<parallel>], iteration_bounds = array<i64: 2>, scalar_prefetch = 0 : i64, scratch_operands = 0 : i64, tpu.core_type = #tpu.core_type<tc>, window_params = [{transform_indices = @transform_0, window_bounds = array<i64: 1, 96, 21>}, {pipeline_mode = #tpu.pipeline_mode<synchronous>, transform_indices = @transform_1, window_bounds = array<i64: 3, 21, 224>}, {pipeline_mode = #tpu.pipeline_mode<synchronous>, transform_indices = @transform_2, window_bounds = array<i64: 1, 224>}, {pipeline_mode = #tpu.pipeline_mode<synchronous>, transform_indices = @transform_3, window_bounds = array<i64: 3, 224, 448>}, {pipeline_mode = #tpu.pipeline_mode<synchronous>, transform_indices = @transform_4, window_bounds = array<i64: 1, 448>}, {pipeline_mode = #tpu.pipeline_mode<synchronous>, transform_indices = @transform_5, window_bounds = array<i64: 3, 448, 448>}, {pipeline_mode = #tpu.pipeline_mode<synchronous>, transform_indices = @transform_6, window_bounds = array<i64: 1, 448>}, {pipeline_mode = #tpu.pipeline_mode<synchronous>, transform_indices = @transform_7, window_bounds = array<i64: 6, 448, 256>}, {pipeline_mode = #tpu.pipeline_mode<synchronous>, transform_indices = @transform_8, window_bounds = array<i64: 1, 256>}, {pipeline_mode = #tpu.pipeline_mode<synchronous>, transform_indices = @transform_9, window_bounds = array<i64: 256, 128>}, {pipeline_mode = #tpu.pipeline_mode<synchronous>, transform_indices = @transform_10, window_bounds = array<i64: 1, 128>}, {transform_indices = @transform_11, window_bounds = array<i64: 1, 16, 128>}]} {
    %c0 = arith.constant 0 : index
    %c0_0 = arith.constant 0 : index
    %c0_1 = arith.constant 0 : index
    %0 = vector.load %arg1[%c0, %c0_0, %c0_1] : memref<1x96x21xf32, #tpu.memory_space<vmem>>, vector<1x96x21xf32>
    %1 = vector.shape_cast %0 : vector<1x96x21xf32> to vector<96x21xf32>
    %cst = arith.constant 0.000000e+00 : f32
    %2 = vector.broadcast %cst : f32 to vector<16x21xf32>
    %c1 = arith.constant 1 : index
    %c0_2 = arith.constant 0 : index
    %c0_3 = arith.constant 0 : index
    %3 = vector.load %arg2[%c1, %c0_2, %c0_3] : memref<3x21x224xf32, #tpu.memory_space<vmem>>, vector<1x21x224xf32>
    %4 = vector.shape_cast %3 : vector<1x21x224xf32> to vector<21x224xf32>
    %cst_4 = arith.constant dense<0.000000e+00> : vector<96x224xf32>
    %5 = tpu.matmul %1, %4, %cst_4 {dimension_numbers = #tpu.dot_dimension_numbers<[1], [0], [0], [1], [0, 0, 1, 1], [], []>} : vector<96x21xf32>, vector<21x224xf32>, vector<96x224xf32> -> vector<96x224xf32>
    %6 = vector.extract_strided_slice %1 {offsets = [0, 0], sizes = [80, 21], strides = [1, 1]} : vector<96x21xf32> to vector<80x21xf32>
    %7 = tpu.concatenate %2, %6 in 0 : vector<16x21xf32>, vector<80x21xf32> -> vector<96x21xf32>
    %c0_5 = arith.constant 0 : index
    %c0_6 = arith.constant 0 : index
    %c0_7 = arith.constant 0 : index
    %8 = vector.load %arg2[%c0_5, %c0_6, %c0_7] : memref<3x21x224xf32, #tpu.memory_space<vmem>>, vector<1x21x224xf32>
    %9 = vector.shape_cast %8 : vector<1x21x224xf32> to vector<21x224xf32>
    %cst_8 = arith.constant dense<0.000000e+00> : vector<96x224xf32>
    %10 = tpu.matmul %7, %9, %cst_8 {dimension_numbers = #tpu.dot_dimension_numbers<[1], [0], [0], [1], [0, 0, 1, 1], [], []>} : vector<96x21xf32>, vector<21x224xf32>, vector<96x224xf32> -> vector<96x224xf32>
    %11 = arith.addf %5, %10 : vector<96x224xf32>
    %12 = vector.extract_strided_slice %1 {offsets = [16, 0], sizes = [80, 21], strides = [1, 1]} : vector<96x21xf32> to vector<80x21xf32>
    %13 = tpu.concatenate %12, %2 in 0 : vector<80x21xf32>, vector<16x21xf32> -> vector<96x21xf32>
    %c2 = arith.constant 2 : index
    %c0_9 = arith.constant 0 : index
    %c0_10 = arith.constant 0 : index
    %14 = vector.load %arg2[%c2, %c0_9, %c0_10] : memref<3x21x224xf32, #tpu.memory_space<vmem>>, vector<1x21x224xf32>
    %15 = vector.shape_cast %14 : vector<1x21x224xf32> to vector<21x224xf32>
    %cst_11 = arith.constant dense<0.000000e+00> : vector<96x224xf32>
    %16 = tpu.matmul %13, %15, %cst_11 {dimension_numbers = #tpu.dot_dimension_numbers<[1], [0], [0], [1], [0, 0, 1, 1], [], []>} : vector<96x21xf32>, vector<21x224xf32>, vector<96x224xf32> -> vector<96x224xf32>
    %17 = arith.addf %11, %16 : vector<96x224xf32>
    %c0_12 = arith.constant 0 : index
    %c0_13 = arith.constant 0 : index
    %18 = vector.load %arg3[%c0_12, %c0_13] : memref<1x224xf32, #tpu.memory_space<vmem>>, vector<1x224xf32>
    %19 = vector.broadcast %18 : vector<1x224xf32> to vector<96x224xf32>
    %20 = arith.addf %17, %19 : vector<96x224xf32>
    %cst_14 = arith.constant 0.000000e+00 : f32
    %21 = vector.broadcast %cst_14 : f32 to vector<96x224xf32>
    %22 = arith.maximumf %20, %21 : vector<96x224xf32>
    %cst_15 = arith.constant 0.000000e+00 : f32
    %23 = vector.broadcast %cst_15 : f32 to vector<16x224xf32>
    %c1_16 = arith.constant 1 : index
    %c0_17 = arith.constant 0 : index
    %c0_18 = arith.constant 0 : index
    %24 = vector.load %arg4[%c1_16, %c0_17, %c0_18] : memref<3x224x448xf32, #tpu.memory_space<vmem>>, vector<1x224x448xf32>
    %25 = vector.shape_cast %24 : vector<1x224x448xf32> to vector<224x448xf32>
    %cst_19 = arith.constant dense<0.000000e+00> : vector<96x448xf32>
    %26 = tpu.matmul %22, %25, %cst_19 {dimension_numbers = #tpu.dot_dimension_numbers<[1], [0], [0], [1], [0, 0, 1, 1], [], []>} : vector<96x224xf32>, vector<224x448xf32>, vector<96x448xf32> -> vector<96x448xf32>
    %27 = vector.extract_strided_slice %22 {offsets = [0, 0], sizes = [80, 224], strides = [1, 1]} : vector<96x224xf32> to vector<80x224xf32>
    %28 = tpu.concatenate %23, %27 in 0 : vector<16x224xf32>, vector<80x224xf32> -> vector<96x224xf32>
    %c0_20 = arith.constant 0 : index
    %c0_21 = arith.constant 0 : index
    %c0_22 = arith.constant 0 : index
    %29 = vector.load %arg4[%c0_20, %c0_21, %c0_22] : memref<3x224x448xf32, #tpu.memory_space<vmem>>, vector<1x224x448xf32>
    %30 = vector.shape_cast %29 : vector<1x224x448xf32> to vector<224x448xf32>
    %cst_23 = arith.constant dense<0.000000e+00> : vector<96x448xf32>
    %31 = tpu.matmul %28, %30, %cst_23 {dimension_numbers = #tpu.dot_dimension_numbers<[1], [0], [0], [1], [0, 0, 1, 1], [], []>} : vector<96x224xf32>, vector<224x448xf32>, vector<96x448xf32> -> vector<96x448xf32>
    %32 = arith.addf %26, %31 : vector<96x448xf32>
    %33 = vector.extract_strided_slice %22 {offsets = [16, 0], sizes = [80, 224], strides = [1, 1]} : vector<96x224xf32> to vector<80x224xf32>
    %34 = tpu.concatenate %33, %23 in 0 : vector<80x224xf32>, vector<16x224xf32> -> vector<96x224xf32>
    %c2_24 = arith.constant 2 : index
    %c0_25 = arith.constant 0 : index
    %c0_26 = arith.constant 0 : index
    %35 = vector.load %arg4[%c2_24, %c0_25, %c0_26] : memref<3x224x448xf32, #tpu.memory_space<vmem>>, vector<1x224x448xf32>
    %36 = vector.shape_cast %35 : vector<1x224x448xf32> to vector<224x448xf32>
    %cst_27 = arith.constant dense<0.000000e+00> : vector<96x448xf32>
    %37 = tpu.matmul %34, %36, %cst_27 {dimension_numbers = #tpu.dot_dimension_numbers<[1], [0], [0], [1], [0, 0, 1, 1], [], []>} : vector<96x224xf32>, vector<224x448xf32>, vector<96x448xf32> -> vector<96x448xf32>
    %38 = arith.addf %32, %37 : vector<96x448xf32>
    %c0_28 = arith.constant 0 : index
    %c0_29 = arith.constant 0 : index
    %39 = vector.load %arg5[%c0_28, %c0_29] : memref<1x448xf32, #tpu.memory_space<vmem>>, vector<1x448xf32>
    %40 = vector.broadcast %39 : vector<1x448xf32> to vector<96x448xf32>
    %41 = arith.addf %38, %40 : vector<96x448xf32>
    %cst_30 = arith.constant 0.000000e+00 : f32
    %42 = vector.broadcast %cst_30 : f32 to vector<96x448xf32>
    %43 = arith.maximumf %41, %42 : vector<96x448xf32>
    %cst_31 = arith.constant 0.000000e+00 : f32
    %44 = vector.broadcast %cst_31 : f32 to vector<16x448xf32>
    %c1_32 = arith.constant 1 : index
    %c0_33 = arith.constant 0 : index
    %c0_34 = arith.constant 0 : index
    %45 = vector.load %arg6[%c1_32, %c0_33, %c0_34] : memref<3x448x448xf32, #tpu.memory_space<vmem>>, vector<1x448x448xf32>
    %46 = vector.shape_cast %45 : vector<1x448x448xf32> to vector<448x448xf32>
    %cst_35 = arith.constant dense<0.000000e+00> : vector<96x448xf32>
    %47 = tpu.matmul %43, %46, %cst_35 {dimension_numbers = #tpu.dot_dimension_numbers<[1], [0], [0], [1], [0, 0, 1, 1], [], []>} : vector<96x448xf32>, vector<448x448xf32>, vector<96x448xf32> -> vector<96x448xf32>
    %48 = vector.extract_strided_slice %43 {offsets = [0, 0], sizes = [80, 448], strides = [1, 1]} : vector<96x448xf32> to vector<80x448xf32>
    %49 = tpu.concatenate %44, %48 in 0 : vector<16x448xf32>, vector<80x448xf32> -> vector<96x448xf32>
    %c0_36 = arith.constant 0 : index
    %c0_37 = arith.constant 0 : index
    %c0_38 = arith.constant 0 : index
    %50 = vector.load %arg6[%c0_36, %c0_37, %c0_38] : memref<3x448x448xf32, #tpu.memory_space<vmem>>, vector<1x448x448xf32>
    %51 = vector.shape_cast %50 : vector<1x448x448xf32> to vector<448x448xf32>
    %cst_39 = arith.constant dense<0.000000e+00> : vector<96x448xf32>
    %52 = tpu.matmul %49, %51, %cst_39 {dimension_numbers = #tpu.dot_dimension_numbers<[1], [0], [0], [1], [0, 0, 1, 1], [], []>} : vector<96x448xf32>, vector<448x448xf32>, vector<96x448xf32> -> vector<96x448xf32>
    %53 = arith.addf %47, %52 : vector<96x448xf32>
    %54 = vector.extract_strided_slice %43 {offsets = [16, 0], sizes = [80, 448], strides = [1, 1]} : vector<96x448xf32> to vector<80x448xf32>
    %55 = tpu.concatenate %54, %44 in 0 : vector<80x448xf32>, vector<16x448xf32> -> vector<96x448xf32>
    %c2_40 = arith.constant 2 : index
    %c0_41 = arith.constant 0 : index
    %c0_42 = arith.constant 0 : index
    %56 = vector.load %arg6[%c2_40, %c0_41, %c0_42] : memref<3x448x448xf32, #tpu.memory_space<vmem>>, vector<1x448x448xf32>
    %57 = vector.shape_cast %56 : vector<1x448x448xf32> to vector<448x448xf32>
    %cst_43 = arith.constant dense<0.000000e+00> : vector<96x448xf32>
    %58 = tpu.matmul %55, %57, %cst_43 {dimension_numbers = #tpu.dot_dimension_numbers<[1], [0], [0], [1], [0, 0, 1, 1], [], []>} : vector<96x448xf32>, vector<448x448xf32>, vector<96x448xf32> -> vector<96x448xf32>
    %59 = arith.addf %53, %58 : vector<96x448xf32>
    %c0_44 = arith.constant 0 : index
    %c0_45 = arith.constant 0 : index
    %60 = vector.load %arg7[%c0_44, %c0_45] : memref<1x448xf32, #tpu.memory_space<vmem>>, vector<1x448xf32>
    %61 = vector.broadcast %60 : vector<1x448xf32> to vector<96x448xf32>
    %62 = arith.addf %59, %61 : vector<96x448xf32>
    %cst_46 = arith.constant 0.000000e+00 : f32
    %63 = vector.broadcast %cst_46 : f32 to vector<96x448xf32>
    %64 = arith.maximumf %62, %63 : vector<96x448xf32>
    %cst_47 = arith.constant 0.000000e+00 : f32
    %65 = vector.broadcast %cst_47 : f32 to vector<16x256xf32>
    %66 = vector.extract_strided_slice %64 {offsets = [0, 0], sizes = [16, 448], strides = [1, 1]} : vector<96x448xf32> to vector<16x448xf32>
    %c0_48 = arith.constant 0 : index
    %c0_49 = arith.constant 0 : index
    %c0_50 = arith.constant 0 : index
    %67 = vector.load %arg8[%c0_48, %c0_49, %c0_50] : memref<6x448x256xf32, #tpu.memory_space<vmem>>, vector<1x448x256xf32>
    %68 = vector.shape_cast %67 : vector<1x448x256xf32> to vector<448x256xf32>
    %cst_51 = arith.constant dense<0.000000e+00> : vector<16x256xf32>
    %69 = tpu.matmul %66, %68, %cst_51 {dimension_numbers = #tpu.dot_dimension_numbers<[1], [0], [0], [1], [0, 0, 1, 1], [], []>} : vector<16x448xf32>, vector<448x256xf32>, vector<16x256xf32> -> vector<16x256xf32>
    %70 = arith.addf %65, %69 : vector<16x256xf32>
    %71 = vector.extract_strided_slice %64 {offsets = [16, 0], sizes = [16, 448], strides = [1, 1]} : vector<96x448xf32> to vector<16x448xf32>
    %c1_52 = arith.constant 1 : index
    %c0_53 = arith.constant 0 : index
    %c0_54 = arith.constant 0 : index
    %72 = vector.load %arg8[%c1_52, %c0_53, %c0_54] : memref<6x448x256xf32, #tpu.memory_space<vmem>>, vector<1x448x256xf32>
    %73 = vector.shape_cast %72 : vector<1x448x256xf32> to vector<448x256xf32>
    %cst_55 = arith.constant dense<0.000000e+00> : vector<16x256xf32>
    %74 = tpu.matmul %71, %73, %cst_55 {dimension_numbers = #tpu.dot_dimension_numbers<[1], [0], [0], [1], [0, 0, 1, 1], [], []>} : vector<16x448xf32>, vector<448x256xf32>, vector<16x256xf32> -> vector<16x256xf32>
    %75 = arith.addf %70, %74 : vector<16x256xf32>
    %76 = vector.extract_strided_slice %64 {offsets = [32, 0], sizes = [16, 448], strides = [1, 1]} : vector<96x448xf32> to vector<16x448xf32>
    %c2_56 = arith.constant 2 : index
    %c0_57 = arith.constant 0 : index
    %c0_58 = arith.constant 0 : index
    %77 = vector.load %arg8[%c2_56, %c0_57, %c0_58] : memref<6x448x256xf32, #tpu.memory_space<vmem>>, vector<1x448x256xf32>
    %78 = vector.shape_cast %77 : vector<1x448x256xf32> to vector<448x256xf32>
    %cst_59 = arith.constant dense<0.000000e+00> : vector<16x256xf32>
    %79 = tpu.matmul %76, %78, %cst_59 {dimension_numbers = #tpu.dot_dimension_numbers<[1], [0], [0], [1], [0, 0, 1, 1], [], []>} : vector<16x448xf32>, vector<448x256xf32>, vector<16x256xf32> -> vector<16x256xf32>
    %80 = arith.addf %75, %79 : vector<16x256xf32>
    %81 = vector.extract_strided_slice %64 {offsets = [48, 0], sizes = [16, 448], strides = [1, 1]} : vector<96x448xf32> to vector<16x448xf32>
    %c3 = arith.constant 3 : index
    %c0_60 = arith.constant 0 : index
    %c0_61 = arith.constant 0 : index
    %82 = vector.load %arg8[%c3, %c0_60, %c0_61] : memref<6x448x256xf32, #tpu.memory_space<vmem>>, vector<1x448x256xf32>
    %83 = vector.shape_cast %82 : vector<1x448x256xf32> to vector<448x256xf32>
    %cst_62 = arith.constant dense<0.000000e+00> : vector<16x256xf32>
    %84 = tpu.matmul %81, %83, %cst_62 {dimension_numbers = #tpu.dot_dimension_numbers<[1], [0], [0], [1], [0, 0, 1, 1], [], []>} : vector<16x448xf32>, vector<448x256xf32>, vector<16x256xf32> -> vector<16x256xf32>
    %85 = arith.addf %80, %84 : vector<16x256xf32>
    %86 = vector.extract_strided_slice %64 {offsets = [64, 0], sizes = [16, 448], strides = [1, 1]} : vector<96x448xf32> to vector<16x448xf32>
    %c4 = arith.constant 4 : index
    %c0_63 = arith.constant 0 : index
    %c0_64 = arith.constant 0 : index
    %87 = vector.load %arg8[%c4, %c0_63, %c0_64] : memref<6x448x256xf32, #tpu.memory_space<vmem>>, vector<1x448x256xf32>
    %88 = vector.shape_cast %87 : vector<1x448x256xf32> to vector<448x256xf32>
    %cst_65 = arith.constant dense<0.000000e+00> : vector<16x256xf32>
    %89 = tpu.matmul %86, %88, %cst_65 {dimension_numbers = #tpu.dot_dimension_numbers<[1], [0], [0], [1], [0, 0, 1, 1], [], []>} : vector<16x448xf32>, vector<448x256xf32>, vector<16x256xf32> -> vector<16x256xf32>
    %90 = arith.addf %85, %89 : vector<16x256xf32>
    %91 = vector.extract_strided_slice %64 {offsets = [80, 0], sizes = [16, 448], strides = [1, 1]} : vector<96x448xf32> to vector<16x448xf32>
    %c5 = arith.constant 5 : index
    %c0_66 = arith.constant 0 : index
    %c0_67 = arith.constant 0 : index
    %92 = vector.load %arg8[%c5, %c0_66, %c0_67] : memref<6x448x256xf32, #tpu.memory_space<vmem>>, vector<1x448x256xf32>
    %93 = vector.shape_cast %92 : vector<1x448x256xf32> to vector<448x256xf32>
    %cst_68 = arith.constant dense<0.000000e+00> : vector<16x256xf32>
    %94 = tpu.matmul %91, %93, %cst_68 {dimension_numbers = #tpu.dot_dimension_numbers<[1], [0], [0], [1], [0, 0, 1, 1], [], []>} : vector<16x448xf32>, vector<448x256xf32>, vector<16x256xf32> -> vector<16x256xf32>
    %95 = arith.addf %90, %94 : vector<16x256xf32>
    %c0_69 = arith.constant 0 : index
    %c0_70 = arith.constant 0 : index
    %96 = vector.load %arg9[%c0_69, %c0_70] : memref<1x256xf32, #tpu.memory_space<vmem>>, vector<1x256xf32>
    %97 = vector.broadcast %96 : vector<1x256xf32> to vector<16x256xf32>
    %98 = arith.addf %95, %97 : vector<16x256xf32>
    %cst_71 = arith.constant 0.000000e+00 : f32
    %99 = vector.broadcast %cst_71 : f32 to vector<16x256xf32>
    %100 = arith.maximumf %98, %99 : vector<16x256xf32>
    %c0_72 = arith.constant 0 : index
    %c0_73 = arith.constant 0 : index
    %101 = vector.load %arg10[%c0_72, %c0_73] : memref<256x128xf32, #tpu.memory_space<vmem>>, vector<256x128xf32>
    %cst_74 = arith.constant dense<0.000000e+00> : vector<16x128xf32>
    %102 = tpu.matmul %100, %101, %cst_74 {dimension_numbers = #tpu.dot_dimension_numbers<[1], [0], [0], [1], [0, 0, 1, 1], [], []>} : vector<16x256xf32>, vector<256x128xf32>, vector<16x128xf32> -> vector<16x128xf32>
    %c0_75 = arith.constant 0 : index
    %c0_76 = arith.constant 0 : index
    %103 = vector.load %arg11[%c0_75, %c0_76] : memref<1x128xf32, #tpu.memory_space<vmem>>, vector<1x128xf32>
    %104 = vector.broadcast %103 : vector<1x128xf32> to vector<16x128xf32>
    %105 = arith.addf %102, %104 : vector<16x128xf32>
    %106 = tpu.iota {dimensions = array<i32: 1>} : vector<16x128xi32>
    %c7_i32 = arith.constant 7 : i32
    %107 = vector.broadcast %c7_i32 : i32 to vector<16x128xi32>
    %108 = arith.cmpi slt, %106, %107 : vector<16x128xi32>
    %cst_77 = arith.constant 0xFF800000 : f32
    %109 = vector.broadcast %cst_77 : f32 to vector<16x128xf32>
    %110 = arith.select %108, %105, %109 : vector<16x128xi1>, vector<16x128xf32>
    %cst_78 = arith.constant dense<0xFF800000> : vector<16xf32>
    %111 = vector.multi_reduction <maximumf>, %110, %cst_78 [1] : vector<16x128xf32> to vector<16xf32>
    %112 = vector.shape_cast %111 : vector<16xf32> to vector<16x1xf32>
    %113 = vector.broadcast %112 : vector<16x1xf32> to vector<16x128xf32>
    %114 = arith.subf %110, %113 : vector<16x128xf32>
    %115 = math.exp %114 : vector<16x128xf32>
    %cst_79 = arith.constant dense<0.000000e+00> : vector<16xf32>
    %116 = vector.multi_reduction <add>, %115, %cst_79 [1] : vector<16x128xf32> to vector<16xf32>
    %117 = vector.shape_cast %116 : vector<16xf32> to vector<16x1xf32>
    %118 = tpu.reciprocal %117 {approx = true} : vector<16x1xf32> -> vector<16x1xf32>
    %119 = vector.broadcast %118 : vector<16x1xf32> to vector<16x128xf32>
    %120 = arith.mulf %115, %119 : vector<16x128xf32>
    %c7_i32_80 = arith.constant 7 : i32
    %121 = vector.broadcast %c7_i32_80 : i32 to vector<16x128xi32>
    %122 = arith.cmpi eq, %106, %121 : vector<16x128xi32>
    %123 = math.tanh %105 : vector<16x128xf32>
    %124 = arith.select %122, %123, %120 : vector<16x128xi1>, vector<16x128xf32>
    %c0_81 = arith.constant 0 : index
    %c0_82 = arith.constant 0 : index
    %c0_83 = arith.constant 0 : index
    %125 = vector.load %arg12[%c0_81, %c0_82, %c0_83] : memref<1x16x128xf32, #tpu.memory_space<vmem>>, vector<1x16x128xf32>
    %126 = vector.shape_cast %125 : vector<1x16x128xf32> to vector<16x128xf32>
    %127 = vector.shape_cast %124 : vector<16x128xf32> to vector<1x16x128xf32>
    tpu.vector_store %arg12[%c0_81, %c0_82, %c0_83], %127 {strides = array<i32>} : memref<1x16x128xf32, #tpu.memory_space<vmem>>, vector<1x16x128xf32>,
    return
  }
  func.func @transform_0(%arg0: i32) -> (i32, i32, i32) {
    %c0_i32 = arith.constant 0 : i32
    %c0_i32_0 = arith.constant 0 : i32
    %c0_i32_1 = arith.constant 0 : i32
    return %arg0, %c0_i32, %c0_i32_0 : i32, i32, i32
  }
  func.func @transform_1(%arg0: i32) -> (i32, i32, i32) {
    %c0_i32 = arith.constant 0 : i32
    %c0_i32_0 = arith.constant 0 : i32
    %c0_i32_1 = arith.constant 0 : i32
    %c0_i32_2 = arith.constant 0 : i32
    return %c0_i32, %c0_i32_0, %c0_i32_1 : i32, i32, i32
  }
  func.func @transform_2(%arg0: i32) -> (i32, i32) {
    %c0_i32 = arith.constant 0 : i32
    %c0_i32_0 = arith.constant 0 : i32
    %c0_i32_1 = arith.constant 0 : i32
    return %c0_i32, %c0_i32_0 : i32, i32
  }
  func.func @transform_3(%arg0: i32) -> (i32, i32, i32) {
    %c0_i32 = arith.constant 0 : i32
    %c0_i32_0 = arith.constant 0 : i32
    %c0_i32_1 = arith.constant 0 : i32
    %c0_i32_2 = arith.constant 0 : i32
    return %c0_i32, %c0_i32_0, %c0_i32_1 : i32, i32, i32
  }
  func.func @transform_4(%arg0: i32) -> (i32, i32) {
    %c0_i32 = arith.constant 0 : i32
    %c0_i32_0 = arith.constant 0 : i32
    %c0_i32_1 = arith.constant 0 : i32
    return %c0_i32, %c0_i32_0 : i32, i32
  }
  func.func @transform_5(%arg0: i32) -> (i32, i32, i32) {
    %c0_i32 = arith.constant 0 : i32
    %c0_i32_0 = arith.constant 0 : i32
    %c0_i32_1 = arith.constant 0 : i32
    %c0_i32_2 = arith.constant 0 : i32
    return %c0_i32, %c0_i32_0, %c0_i32_1 : i32, i32, i32
  }
  func.func @transform_6(%arg0: i32) -> (i32, i32) {
    %c0_i32 = arith.constant 0 : i32
    %c0_i32_0 = arith.constant 0 : i32
    %c0_i32_1 = arith.constant 0 : i32
    return %c0_i32, %c0_i32_0 : i32, i32
  }
  func.func @transform_7(%arg0: i32) -> (i32, i32, i32) {
    %c0_i32 = arith.constant 0 : i32
    %c0_i32_0 = arith.constant 0 : i32
    %c0_i32_1 = arith.constant 0 : i32
    %c0_i32_2 = arith.constant 0 : i32
    return %c0_i32, %c0_i32_0, %c0_i32_1 : i32, i32, i32
  }
  func.func @transform_8(%arg0: i32) -> (i32, i32) {
    %c0_i32 = arith.constant 0 : i32
    %c0_i32_0 = arith.constant 0 : i32
    %c0_i32_1 = arith.constant 0 : i32
    return %c0_i32, %c0_i32_0 : i32, i32
  }
  func.func @transform_9(%arg0: i32) -> (i32, i32) {
    %c0_i32 = arith.constant 0 : i32
    %c0_i32_0 = arith.constant 0 : i32
    %c0_i32_1 = arith.constant 0 : i32
    return %c0_i32, %c0_i32_0 : i32, i32
  }
  func.func @transform_10(%arg0: i32) -> (i32, i32) {
    %c0_i32 = arith.constant 0 : i32
    %c0_i32_0 = arith.constant 0 : i32
    %c0_i32_1 = arith.constant 0 : i32
    return %c0_i32, %c0_i32_0 : i32, i32
  }
  func.func @transform_11(%arg0: i32) -> (i32, i32, i32) {
    %c0_i32 = arith.constant 0 : i32
    %c0_i32_0 = arith.constant 0 : i32
    %c0_i32_1 = arith.constant 0 : i32
    return %arg0, %c0_i32, %c0_i32_0 : i32, i32, i32
  }
}

</mosaic_0001>

<llo_original>
// kernel: pallas_forward.1
$region0: #{pallas_forward.1}
  #allocation0 [shape = 'u32[]', space=smem, size = 0x4, offset = 0x4, fixed_abs, tag = 'smem constant byte address 0x4 - core index']
  #allocation1 [shape = 'u32[144,128]{1,0:T(1,128)}', space=vmem, size = 0x12000, scoped, tag = 'internal scratch']
  %s0 = inlined_call_operand.vmem [shape: f32[2,96,21], index: 0, kind: input, shape index: {}]
  %s1 = inlined_call_operand.hbm [shape: f32[3,21,224], index: 1, kind: input, shape index: {}]
  %s2 = inlined_call_operand.hbm [shape: f32[1,224], index: 2, kind: input, shape index: {}]
  %s3 = inlined_call_operand.hbm [shape: f32[3,224,448], index: 3, kind: input, shape index: {}]
  %s4 = inlined_call_operand.hbm [shape: f32[1,448], index: 4, kind: input, shape index: {}]
  %s5 = inlined_call_operand.hbm [shape: f32[3,448,448], index: 5, kind: input, shape index: {}]
  %s6 = inlined_call_operand.hbm [shape: f32[1,448], index: 6, kind: input, shape index: {}]
  %s7 = inlined_call_operand.hbm [shape: f32[6,448,256], index: 7, kind: input, shape index: {}]
  %s8 = inlined_call_operand.hbm [shape: f32[1,256], index: 8, kind: input, shape index: {}]
  %s9 = inlined_call_operand.hbm [shape: f32[256,128], index: 9, kind: input, shape index: {}]
  %s10 = inlined_call_operand.hbm [shape: f32[1,128], index: 10, kind: input, shape index: {}]
  %s11 = inlined_call_operand.vmem [shape: f32[2,16,128], index: 11, kind: output, shape index: {}]
  %s12 = sld [smem:[#allocation0]]
  $region117: #{pallas_forward.1} parent=0
    _
  %s14 = ssub.s32 1, %s12
  %s15 = scalar_select 0, %s14, %s12
  $region1: #{pallas_forward.1} parent=0
    #allocation2 [shape = 'u8[73728]{0}', space=vmem, size = 0x12000, scoped, tag = 'input window, operand 1, single buffered']
    #allocation3 [shape = 's32[2]{0}', space=sflag, size = 0x8, scoped, tag = 'scoped memory for pallas_forward.1']
    #allocation4 [shape = 'u8[1024]{0}', space=vmem, size = 0x400, scoped, tag = 'input window, operand 2, single buffered']
    #allocation5 [shape = 's32[1]{0}', space=sflag, size = 0x4, scoped, tag = 'scoped memory for pallas_forward.1']
    #allocation6 [shape = 'u8[1376256]{0}', space=vmem, size = 0x150000, scoped, tag = 'input window, operand 3, single buffered']
    #allocation7 [shape = 'u8[2048]{0}', space=vmem, size = 0x800, scoped, tag = 'input window, operand 4, single buffered']
    #allocation8 [shape = 's32[1]{0}', space=sflag, size = 0x4, scoped, tag = 'scoped memory for pallas_forward.1']
    #allocation9 [shape = 'u8[2752512]{0}', space=vmem, size = 0x2a0000, scoped, tag = 'input window, operand 5, single buffered']
    #allocation10 [shape = 'u8[2048]{0}', space=vmem, size = 0x800, scoped, tag = 'input window, operand 6, single buffered']
    #allocation11 [shape = 's32[1]{0}', space=sflag, size = 0x4, scoped, tag = 'scoped memory for pallas_forward.1']
    #allocation12 [shape = 'u8[2752512]{0}', space=vmem, size = 0x2a0000, scoped, tag = 'input window, operand 7, single buffered']
    #allocation13 [shape = 'u8[1024]{0}', space=vmem, size = 0x400, scoped, tag = 'input window, operand 8, single buffered']
    #allocation14 [shape = 's32[1]{0}', space=sflag, size = 0x4, scoped, tag = 'scoped memory for pallas_forward.1']
    #allocation15 [shape = 'u8[131072]{0}', space=vmem, size = 0x20000, scoped, tag = 'input window, operand 9, single buffered']
    #allocation16 [shape = 'u8[512]{0}', space=vmem, size = 0x400, scoped, tag = 'input window, operand 10, single buffered']
    #allocation17 [shape = 's32[1]{0}', space=sflag, size = 0x4, scoped, tag = 'scoped memory for pallas_forward.1']
    %16 = vsyncpa [#allocation3], 0
    %17 = vsyncpa [#allocation5], 0
    %18 = vsyncpa [#allocation8], 0
    %19 = vsyncpa [#allocation11], 0
    %20 = vsyncpa [#allocation14], 0
    %21 = vsyncpa [#allocation17], 0
    loop: start=0, step=1, limit=4
    $region2: #{pallas_forward.1} parent=1 // loop_pre_header
      _
    $region3: #{pallas_forward.1} parent=1 // loop_header
      %s23 = sphi 0, %s27
      %p24 = scmp.ge.s32.totalorder %s23, 4
      %s33 = sphi 0, %s35
      %s36 = sphi 0, %s33
      %s37 = sphi 0, %s36
      %s53 = sphi 0, %s37
      %s57 = sphi 0, %s57
      %s59 = sphi 0, %s57
      %s60 = sphi 0, %s59
      %s74 = sphi 0, %s60
      %s78 = sphi 0, %s78
      %s80 = sphi 0, %s78
      %s81 = sphi 0, %s80
      %s95 = sphi 0, %s81
      %s99 = sphi 0, %s99
      %s101 = sphi 0, %s99
      %s102 = sphi 0, %s101
      %s116 = sphi 0, %s102
      %s120 = sphi 0, %s120
      %s122 = sphi 0, %s120
      %s123 = sphi 0, %s122
      %s137 = sphi 0, %s123
      %s141 = sphi 0, %s141
      %s143 = sphi 0, %s141
      %s144 = sphi 0, %s143
      %s158 = sphi 0, %s144
      %s162 = sphi 0, %s162
      %s164 = sphi 0, %s162
      %s165 = sphi 0, %s164
      %s179 = sphi 0, %s165
      %s183 = sphi 0, %s183
      %s185 = sphi 0, %s183
      %s186 = sphi 0, %s185
      %s200 = sphi 0, %s186
      %s204 = sphi 0, %s204
      %s206 = sphi 0, %s204
      %s207 = sphi 0, %s206
      %s221 = sphi 0, %s207
      %s225 = sphi 0, %s225
      %s227 = sphi 0, %s225
      %s228 = sphi 0, %s227
      %s242 = sphi 0, %s228
      %s246 = sphi 0, %s246
      %s248 = sphi 0, %s246
      %s249 = sphi 0, %s248
      %s263 = sphi 0, %s249
      %s269 = sphi 0, %s271
      %s272 = sphi 0, %s269
      %s273 = sphi 0, %s272
      %s289 = sphi 0, %s273
    $region4: #{pallas_forward.1} parent=1 // loop_header_branch
      %26 = sbr.rel (%p24) target = $region8
    $region5: #{pallas_forward.1} parent=1 // loop_body
      %s28 = ssub.s32 %s23, 1
      %s29 = ssub.s32 %s23, 2
      %s30 = sadd.s32 %s23, 1
      %s31 = ssub.s32 %s23, %s30
      %p32 = scmp.eq.s32.totalorder %s31, 0
      %s34 = sadd.s32 %s33, 1
      %s35 = scalar_select %p32, %s33, %s34
      %p38 = pneg %p32
      %p39 = scmp.eq.s32.totalorder %s23, 1
      %p40 = por %p38, %p39
      %p41 = scmp.ne.s32.totalorder %s33, %s36
      %p42 = scmp.eq.s32.totalorder %s23, 0
      %p43 = por %p41, %p42
      %p44 = scmp.ne.s32.totalorder %s33, %s36
      %p45 = scmp.eq.s32.totalorder %s28, 1
      %p46 = por %p44, %p45
      %p47 = scmp.ne.s32.totalorder %s36, %s37
      %p48 = scmp.eq.s32.totalorder %s28, 0
      %p49 = por %p47, %p48
      %p50 = scmp.ne.s32.totalorder %s36, %s37
      %p51 = scmp.eq.s32.totalorder %s29, 1
      %p52 = por %p50, %p51
      %p54 = scmp.ne.s32.totalorder %s37, %s53
      %p55 = scmp.eq.s32.totalorder %s29, 0
      %p56 = por %p54, %p55
      %s58 = sadd.s32 %s57, 1
      %p61 = scmp.eq.s32.totalorder %s23, 1
      %p62 = scmp.ne.s32.totalorder %s57, %s59
      %p63 = scmp.eq.s32.totalorder %s23, 0
      %p64 = por %p62, %p63
      %p65 = scmp.ne.s32.totalorder %s57, %s59
      %p66 = scmp.eq.s32.totalorder %s28, 1
      %p67 = por %p65, %p66
      %p68 = scmp.ne.s32.totalorder %s59, %s60
      %p69 = scmp.eq.s32.totalorder %s28, 0
      %p70 = por %p68, %p69
      %p71 = scmp.ne.s32.totalorder %s59, %s60
      %p72 = scmp.eq.s32.totalorder %s29, 1
      %p73 = por %p71, %p72
      %p75 = scmp.ne.s32.totalorder %s60, %s74
      %p76 = scmp.eq.s32.totalorder %s29, 0
      %p77 = por %p75, %p76
      %s79 = sadd.s32 %s78, 1
      %p82 = scmp.eq.s32.totalorder %s23, 1
      %p83 = scmp.ne.s32.totalorder %s78, %s80
      %p84 = scmp.eq.s32.totalorder %s23, 0
      %p85 = por %p83, %p84
      %p86 = scmp.ne.s32.totalorder %s78, %s80
      %p87 = scmp.eq.s32.totalorder %s28, 1
      %p88 = por %p86, %p87
      %p89 = scmp.ne.s32.totalorder %s80, %s81
      %p90 = scmp.eq.s32.totalorder %s28, 0
      %p91 = por %p89, %p90
      %p92 = scmp.ne.s32.totalorder %s80, %s81
      %p93 = scmp.eq.s32.totalorder %s29, 1
      %p94 = por %p92, %p93
      %p96 = scmp.ne.s32.totalorder %s81, %s95
      %p97 = scmp.eq.s32.totalorder %s29, 0
      %p98 = por %p96, %p97
      %s100 = sadd.s32 %s99, 1
      %p103 = scmp.eq.s32.totalorder %s23, 1
      %p104 = scmp.ne.s32.totalorder %s99, %s101
      %p105 = scmp.eq.s32.totalorder %s23, 0
      %p106 = por %p104, %p105
      %p107 = scmp.ne.s32.totalorder %s99, %s101
      %p108 = scmp.eq.s32.totalorder %s28, 1
      %p109 = por %p107, %p108
      %p110 = scmp.ne.s32.totalorder %s101, %s102
      %p111 = scmp.eq.s32.totalorder %s28, 0
      %p112 = por %p110, %p111
      %p113 = scmp.ne.s32.totalorder %s101, %s102
      %p114 = scmp.eq.s32.totalorder %s29, 1
      %p115 = por %p113, %p114
      %p117 = scmp.ne.s32.totalorder %s102, %s116
      %p118 = scmp.eq.s32.totalorder %s29, 0
      %p119 = por %p117, %p118
      %s121 = sadd.s32 %s120, 1
      %p124 = scmp.eq.s32.totalorder %s23, 1
      %p125 = scmp.ne.s32.totalorder %s120, %s122
      %p126 = scmp.eq.s32.totalorder %s23, 0
      %p127 = por %p125, %p126
      %p128 = scmp.ne.s32.totalorder %s120, %s122
      %p129 = scmp.eq.s32.totalorder %s28, 1
      %p130 = por %p128, %p129
      %p131 = scmp.ne.s32.totalorder %s122, %s123
      %p132 = scmp.eq.s32.totalorder %s28, 0
      %p133 = por %p131, %p132
      %p134 = scmp.ne.s32.totalorder %s122, %s123
      %p135 = scmp.eq.s32.totalorder %s29, 1
      %p136 = por %p134, %p135
      %p138 = scmp.ne.s32.totalorder %s123, %s137
      %p139 = scmp.eq.s32.totalorder %s29, 0
      %p140 = por %p138, %p139
      %s142 = sadd.s32 %s141, 1
      %p145 = scmp.eq.s32.totalorder %s23, 1
      %p146 = scmp.ne.s32.totalorder %s141, %s143
      %p147 = scmp.eq.s32.totalorder %s23, 0
      %p148 = por %p146, %p147
      %p149 = scmp.ne.s32.totalorder %s141, %s143
      %p150 = scmp.eq.s32.totalorder %s28, 1
      %p151 = por %p149, %p150
      %p152 = scmp.ne.s32.totalorder %s143, %s144
      %p153 = scmp.eq.s32.totalorder %s28, 0
      %p154 = por %p152, %p153
      %p155 = scmp.ne.s32.totalorder %s143, %s144
      %p156 = scmp.eq.s32.totalorder %s29, 1
      %p157 = por %p155, %p156
      %p159 = scmp.ne.s32.totalorder %s144, %s158
      %p160 = scmp.eq.s32.totalorder %s29, 0
      %p161 = por %p159, %p160
      %s163 = sadd.s32 %s162, 1
      %p166 = scmp.eq.s32.totalorder %s23, 1
      %p167 = scmp.ne.s32.totalorder %s162, %s164
      %p168 = scmp.eq.s32.totalorder %s23, 0
      %p169 = por %p167, %p168
      %p170 = scmp.ne.s32.totalorder %s162, %s164
      %p171 = scmp.eq.s32.totalorder %s28, 1
      %p172 = por %p170, %p171
      %p173 = scmp.ne.s32.totalorder %s164, %s165
      %p174 = scmp.eq.s32.totalorder %s28, 0
      %p175 = por %p173, %p174
      %p176 = scmp.ne.s32.totalorder %s164, %s165
      %p177 = scmp.eq.s32.totalorder %s29, 1
      %p178 = por %p176, %p177
      %p180 = scmp.ne.s32.totalorder %s165, %s179
      %p181 = scmp.eq.s32.totalorder %s29, 0
      %p182 = por %p180, %p181
      %s184 = sadd.s32 %s183, 1
      %p187 = scmp.eq.s32.totalorder %s23, 1
      %p188 = scmp.ne.s32.totalorder %s183, %s185
      %p189 = scmp.eq.s32.totalorder %s23, 0
      %p190 = por %p188, %p189
      %p191 = scmp.ne.s32.totalorder %s183, %s185
      %p192 = scmp.eq.s32.totalorder %s28, 1
      %p193 = por %p191, %p192
      %p194 = scmp.ne.s32.totalorder %s185, %s186
      %p195 = scmp.eq.s32.totalorder %s28, 0
      %p196 = por %p194, %p195
      %p197 = scmp.ne.s32.totalorder %s185, %s186
      %p198 = scmp.eq.s32.totalorder %s29, 1
      %p199 = por %p197, %p198
      %p201 = scmp.ne.s32.totalorder %s186, %s200
      %p202 = scmp.eq.s32.totalorder %s29, 0
      %p203 = por %p201, %p202
      %s205 = sadd.s32 %s204, 1
      %p208 = scmp.eq.s32.totalorder %s23, 1
      %p209 = scmp.ne.s32.totalorder %s204, %s206
      %p210 = scmp.eq.s32.totalorder %s23, 0
      %p211 = por %p209, %p210
      %p212 = scmp.ne.s32.totalorder %s204, %s206
      %p213 = scmp.eq.s32.totalorder %s28, 1
      %p214 = por %p212, %p213
      %p215 = scmp.ne.s32.totalorder %s206, %s207
      %p216 = scmp.eq.s32.totalorder %s28, 0
      %p217 = por %p215, %p216
      %p218 = scmp.ne.s32.totalorder %s206, %s207
      %p219 = scmp.eq.s32.totalorder %s29, 1
      %p220 = por %p218, %p219
      %p222 = scmp.ne.s32.totalorder %s207, %s221
      %p223 = scmp.eq.s32.totalorder %s29, 0
      %p224 = por %p222, %p223
      %s226 = sadd.s32 %s225, 1
      %p229 = scmp.eq.s32.totalorder %s23, 1
      %p230 = scmp.ne.s32.totalorder %s225, %s227
      %p231 = scmp.eq.s32.totalorder %s23, 0
      %p232 = por %p230, %p231
      %p233 = scmp.ne.s32.totalorder %s225, %s227
      %p234 = scmp.eq.s32.totalorder %s28, 1
      %p235 = por %p233, %p234
      %p236 = scmp.ne.s32.totalorder %s227, %s228
      %p237 = scmp.eq.s32.totalorder %s28, 0
      %p238 = por %p236, %p237
      %p239 = scmp.ne.s32.totalorder %s227, %s228
      %p240 = scmp.eq.s32.totalorder %s29, 1
      %p241 = por %p239, %p240
      %p243 = scmp.ne.s32.totalorder %s228, %s242
      %p244 = scmp.eq.s32.totalorder %s29, 0
      %p245 = por %p243, %p244
      %s247 = sadd.s32 %s246, 1
      %p250 = scmp.eq.s32.totalorder %s23, 1
      %p251 = scmp.ne.s32.totalorder %s246, %s248
      %p252 = scmp.eq.s32.totalorder %s23, 0
      %p253 = por %p251, %p252
      %p254 = scmp.ne.s32.totalorder %s246, %s248
      %p255 = scmp.eq.s32.totalorder %s28, 1
      %p256 = por %p254, %p255
      %p257 = scmp.ne.s32.totalorder %s248, %s249
      %p258 = scmp.eq.s32.totalorder %s28, 0
      %p259 = por %p257, %p258
      %p260 = scmp.ne.s32.totalorder %s248, %s249
      %p261 = scmp.eq.s32.totalorder %s29, 1
      %p262 = por %p260, %p261
      %p264 = scmp.ne.s32.totalorder %s249, %s263
      %p265 = scmp.eq.s32.totalorder %s29, 0
      %p266 = por %p264, %p265
      %s267 = ssub.s32 %s23, %s30
      %p268 = scmp.eq.s32.totalorder %s267, 0
      %s270 = sadd.s32 %s269, 1
      %s271 = scalar_select %p268, %s269, %s270
      %p274 = pneg %p268
      %p275 = scmp.eq.s32.totalorder %s23, 1
      %p276 = por %p274, %p275
      %p277 = scmp.ne.s32.totalorder %s269, %s272
      %p278 = scmp.eq.s32.totalorder %s23, 0
      %p279 = por %p277, %p278
      %p280 = scmp.ne.s32.totalorder %s269, %s272
      %p281 = scmp.eq.s32.totalorder %s28, 1
      %p282 = por %p280, %p281
      %p283 = scmp.ne.s32.totalorder %s272, %s273
      %p284 = scmp.eq.s32.totalorder %s28, 0
      %p285 = por %p283, %p284
      %p286 = scmp.ne.s32.totalorder %s272, %s273
      %p287 = scmp.eq.s32.totalorder %s29, 1
      %p288 = por %p286, %p287
      %p290 = scmp.ne.s32.totalorder %s273, %s289
      %p291 = scmp.eq.s32.totalorder %s29, 0
      %p292 = por %p290, %p291
      %p293 = scmp.le.s32.totalorder 1, %s23
      %p294 = scmp.lt.s32.totalorder %s23, 3
      %p295 = pnand %p293, %p294
      %p296 = pneg %p295
      // Predicated region
      $region9: #{pallas_forward.1} parent=5 // pred_check
        _
      $region10: #{pallas_forward.1} parent=5 // pred_check_branch
        %298 = sbr.rel (%p295) target = $region12
      $region11: #{pallas_forward.1} parent=5 // pred_region
        %s299 = ssub.s32 %s23, 1
        // Predicated region
        $region13: #{pallas_forward.1} parent=11 // pred_check
          %p300 = pneg %p70
        $region14: #{pallas_forward.1} parent=11 // pred_check_branch
          %302 = sbr.rel (%p300) target = $region16
        $region15: #{pallas_forward.1} parent=11 // pred_region
          %s304 = ssub.s32 2304, 2304
          %305 = vsyncadd [#allocation3], %s304
          %s306 = sshll.u32 [#allocation2], 4
          %s307 = int_to_ptr.vmem [resolvable:$true] %s306
          %312 = dma.hbm_to_vmem [thread:$0]  %s1, 2304, %s307, [#allocation3], 256, 256, 16
        $region16: #{pallas_forward.1} parent=11 // pred_fallthru
          _
        // Predicated region
        $region17: #{pallas_forward.1} parent=11 // pred_check
          %p313 = pneg %p91
        $region18: #{pallas_forward.1} parent=11 // pred_check_branch
          %315 = sbr.rel (%p313) target = $region20
        $region19: #{pallas_forward.1} parent=11 // pred_region
          %s317 = ssub.s32 32, 32
          %318 = vsyncadd [#allocation5], %s317
          %s320 = sshll.u32 [#allocation4], 4
          %s321 = int_to_ptr.vmem [resolvable:$true] %s320
          %323 = dma.hbm_to_vmem [thread:$0]  %s2, 32, %s321, [#allocation5]
        $region20: #{pallas_forward.1} parent=11 // pred_fallthru
          _
        // Predicated region
        $region21: #{pallas_forward.1} parent=11 // pred_check
          %p324 = pneg %p112
        $region22: #{pallas_forward.1} parent=11 // pred_check_branch
          %326 = sbr.rel (%p324) target = $region24
        $region23: #{pallas_forward.1} parent=11 // pred_region
          %s328 = ssub.s32 43008, 43008
          %329 = vsyncadd [#allocation5], %s328
          %s330 = sshll.u32 [#allocation6], 4
          %s331 = int_to_ptr.vmem [resolvable:$true] %s330
          %336 = dma.hbm_to_vmem [thread:$0]  %s3, 43008, %s331, [#allocation5], 512, 512, 32
        $region24: #{pallas_forward.1} parent=11 // pred_fallthru
          _
        // Predicated region
        $region25: #{pallas_forward.1} parent=11 // pred_check
          %p337 = pneg %p133
        $region26: #{pallas_forward.1} parent=11 // pred_check_branch
          %339 = sbr.rel (%p337) target = $region28
        $region27: #{pallas_forward.1} parent=11 // pred_region
          %s341 = ssub.s32 64, 64
          %342 = vsyncadd [#allocation8], %s341
          %s344 = sshll.u32 [#allocation7], 4
          %s345 = int_to_ptr.vmem [resolvable:$true] %s344
          %347 = dma.hbm_to_vmem [thread:$0]  %s4, 64, %s345, [#allocation8]
        $region28: #{pallas_forward.1} parent=11 // pred_fallthru
          _
        // Predicated region
        $region29: #{pallas_forward.1} parent=11 // pred_check
          %p348 = pneg %p154
        $region30: #{pallas_forward.1} parent=11 // pred_check_branch
          %350 = sbr.rel (%p348) target = $region32
        $region31: #{pallas_forward.1} parent=11 // pred_region
          %s352 = ssub.s32 86016, 86016
          %353 = vsyncadd [#allocation8], %s352
          %s354 = sshll.u32 [#allocation9], 4
          %s355 = int_to_ptr.vmem [resolvable:$true] %s354
          %360 = dma.hbm_to_vmem [thread:$0]  %s5, 86016, %s355, [#allocation8], 512, 512, 32
        $region32: #{pallas_forward.1} parent=11 // pred_fallthru
          _
        // Predicated region
        $region33: #{pallas_forward.1} parent=11 // pred_check
          %p361 = pneg %p175
        $region34: #{pallas_forward.1} parent=11 // pred_check_branch
          %363 = sbr.rel (%p361) target = $region36
        $region35: #{pallas_forward.1} parent=11 // pred_region
          %s365 = ssub.s32 64, 64
          %366 = vsyncadd [#allocation11], %s365
          %s368 = sshll.u32 [#allocation10], 4
          %s369 = int_to_ptr.vmem [resolvable:$true] %s368
          %371 = dma.hbm_to_vmem [thread:$0]  %s6, 64, %s369, [#allocation11]
        $region36: #{pallas_forward.1} parent=11 // pred_fallthru
          _
        // Predicated region
        $region37: #{pallas_forward.1} parent=11 // pred_check
          %p372 = pneg %p196
        $region38: #{pallas_forward.1} parent=11 // pred_check_branch
          %374 = sbr.rel (%p372) target = $region40
        $region39: #{pallas_forward.1} parent=11 // pred_region
          %s376 = ssub.s32 86016, 86016
          %377 = vsyncadd [#allocation11], %s376
          %s378 = sshll.u32 [#allocation12], 4
          %s379 = int_to_ptr.vmem [resolvable:$true] %s378
          %384 = dma.hbm_to_vmem [thread:$0]  %s7, 86016, %s379, [#allocation11], 256, 256, 16
        $region40: #{pallas_forward.1} parent=11 // pred_fallthru
          _
        // Predicated region
        $region41: #{pallas_forward.1} parent=11 // pred_check
          %p385 = pneg %p217
        $region42: #{pallas_forward.1} parent=11 // pred_check_branch
          %387 = sbr.rel (%p385) target = $region44
        $region43: #{pallas_forward.1} parent=11 // pred_region
          %s389 = ssub.s32 32, 32
          %390 = vsyncadd [#allocation14], %s389
          %s392 = sshll.u32 [#allocation13], 4
          %s393 = int_to_ptr.vmem [resolvable:$true] %s392
          %395 = dma.hbm_to_vmem [thread:$0]  %s8, 32, %s393, [#allocation14]
        $region44: #{pallas_forward.1} parent=11 // pred_fallthru
          _
        // Predicated region
        $region45: #{pallas_forward.1} parent=11 // pred_check
          %p396 = pneg %p238
        $region46: #{pallas_forward.1} parent=11 // pred_check_branch
          %398 = sbr.rel (%p396) target = $region48
        $region47: #{pallas_forward.1} parent=11 // pred_region
          %s400 = ssub.s32 4096, 4096
          %401 = vsyncadd [#allocation14], %s400
          %s402 = sshll.u32 [#allocation15], 4
          %s403 = int_to_ptr.vmem [resolvable:$true] %s402
          %408 = dma.hbm_to_vmem [thread:$0]  %s9, 4096, %s403, [#allocation14], 128, 128, 8
        $region48: #{pallas_forward.1} parent=11 // pred_fallthru
          _
        // Predicated region
        $region49: #{pallas_forward.1} parent=11 // pred_check
          %p409 = pneg %p259
        $region50: #{pallas_forward.1} parent=11 // pred_check_branch
          %411 = sbr.rel (%p409) target = $region52
        $region51: #{pallas_forward.1} parent=11 // pred_region
          %s413 = ssub.s32 16, 16
          %414 = vsyncadd [#allocation17], %s413
          %s416 = sshll.u32 [#allocation16], 4
          %s417 = int_to_ptr.vmem [resolvable:$true] %s416
          %419 = dma.hbm_to_vmem [thread:$0]  %s10, 16, %s417, [#allocation17]
        $region52: #{pallas_forward.1} parent=11 // pred_fallthru
          _
      $region12: #{pallas_forward.1} parent=5 // pred_fallthru
        _
      %p420 = scmp.lt.s32.totalorder %s23, 2
      // Predicated region
      $region53: #{pallas_forward.1} parent=5 // pred_check
        %p421 = pneg %p420
      $region54: #{pallas_forward.1} parent=5 // pred_check_branch
        %423 = sbr.rel (%p421) target = $region56
      $region55: #{pallas_forward.1} parent=5 // pred_region
        // Predicated region
        $region57: #{pallas_forward.1} parent=55 // pred_check
          %p424 = pneg %p43
        $region58: #{pallas_forward.1} parent=55 // pred_check_branch
          %426 = sbr.rel (%p424) target = $region60
        $region59: #{pallas_forward.1} parent=55 // pred_region
          %p427 = scmp.lt.s32.totalorder %s23, 1
          %s428 = scalar_select %p427, %s23, 1
          %s429 = smul.addr %s428, 12
          %s430 = smul.addr %s429, 8
          %s431 = scalar_lea.vmem %s0, %s430
        $region60: #{pallas_forward.1} parent=55 // pred_fallthru
          _
      $region56: #{pallas_forward.1} parent=5 // pred_fallthru
        _
      %p432 = scmp.le.s32.totalorder 1, %s23
      %p433 = scmp.lt.s32.totalorder %s23, 3
      %p434 = pnand %p432, %p433
      %p435 = pneg %p434
      // Predicated region
      $region61: #{pallas_forward.1} parent=5 // pred_check
        _
      $region62: #{pallas_forward.1} parent=5 // pred_check_branch
        %437 = sbr.rel (%p434) target = $region64
      $region63: #{pallas_forward.1} parent=5 // pred_region
        %s438 = ssub.s32 %s23, 1
        // Predicated region
        $region65: #{pallas_forward.1} parent=63 // pred_check
          %p439 = pneg %p70
        $region66: #{pallas_forward.1} parent=63 // pred_check_branch
          %441 = sbr.rel (%p439) target = $region68
        $region67: #{pallas_forward.1} parent=63 // pred_region
          %442 = dma.done [#allocation3], 2304
        $region68: #{pallas_forward.1} parent=63 // pred_fallthru
          _
        // Predicated region
        $region69: #{pallas_forward.1} parent=63 // pred_check
          %p443 = pneg %p91
        $region70: #{pallas_forward.1} parent=63 // pred_check_branch
          %445 = sbr.rel (%p443) target = $region72
        $region71: #{pallas_forward.1} parent=63 // pred_region
          %446 = dma.done [#allocation5], 32
        $region72: #{pallas_forward.1} parent=63 // pred_fallthru
          _
        // Predicated region
        $region73: #{pallas_forward.1} parent=63 // pred_check
          %p447 = pneg %p112
        $region74: #{pallas_forward.1} parent=63 // pred_check_branch
          %449 = sbr.rel (%p447) target = $region76
        $region75: #{pallas_forward.1} parent=63 // pred_region
          %450 = dma.done [#allocation5], 43008
        $region76: #{pallas_forward.1} parent=63 // pred_fallthru
          _
        // Predicated region
        $region77: #{pallas_forward.1} parent=63 // pred_check
          %p451 = pneg %p133
        $region78: #{pallas_forward.1} parent=63 // pred_check_branch
          %453 = sbr.rel (%p451) target = $region80
        $region79: #{pallas_forward.1} parent=63 // pred_region
          %454 = dma.done [#allocation8], 64
        $region80: #{pallas_forward.1} parent=63 // pred_fallthru
          _
        // Predicated region
        $region81: #{pallas_forward.1} parent=63 // pred_check
          %p455 = pneg %p154
        $region82: #{pallas_forward.1} parent=63 // pred_check_branch
          %457 = sbr.rel (%p455) target = $region84
        $region83: #{pallas_forward.1} parent=63 // pred_region
          %458 = dma.done [#allocation8], 86016
        $region84: #{pallas_forward.1} parent=63 // pred_fallthru
          _
        // Predicated region
        $region85: #{pallas_forward.1} parent=63 // pred_check
          %p459 = pneg %p175
        $region86: #{pallas_forward.1} parent=63 // pred_check_branch
          %461 = sbr.rel (%p459) target = $region88
        $region87: #{pallas_forward.1} parent=63 // pred_region
          %462 = dma.done [#allocation11], 64
        $region88: #{pallas_forward.1} parent=63 // pred_fallthru
          _
        // Predicated region
        $region89: #{pallas_forward.1} parent=63 // pred_check
          %p463 = pneg %p196
        $region90: #{pallas_forward.1} parent=63 // pred_check_branch
          %465 = sbr.rel (%p463) target = $region92
        $region91: #{pallas_forward.1} parent=63 // pred_region
          %466 = dma.done [#allocation11], 86016
        $region92: #{pallas_forward.1} parent=63 // pred_fallthru
          _
        // Predicated region
        $region93: #{pallas_forward.1} parent=63 // pred_check
          %p467 = pneg %p217
        $region94: #{pallas_forward.1} parent=63 // pred_check_branch
          %469 = sbr.rel (%p467) target = $region96
        $region95: #{pallas_forward.1} parent=63 // pred_region
          %470 = dma.done [#allocation14], 32
        $region96: #{pallas_forward.1} parent=63 // pred_fallthru
          _
        // Predicated region
        $region97: #{pallas_forward.1} parent=63 // pred_check
          %p471 = pneg %p238
        $region98: #{pallas_forward.1} parent=63 // pred_check_branch
          %473 = sbr.rel (%p471) target = $region100
        $region99: #{pallas_forward.1} parent=63 // pred_region
          %474 = dma.done [#allocation14], 4096
        $region100: #{pallas_forward.1} parent=63 // pred_fallthru
          _
        // Predicated region
        $region101: #{pallas_forward.1} parent=63 // pred_check
          %p475 = pneg %p259
        $region102: #{pallas_forward.1} parent=63 // pred_check_branch
          %477 = sbr.rel (%p475) target = $region104
        $region103: #{pallas_forward.1} parent=63 // pred_region
          %478 = dma.done [#allocation17], 16
        $region104: #{pallas_forward.1} parent=63 // pred_fallthru
          _
        %p479 = scmp.lt.s32.totalorder %s28, 1
        %s480 = scalar_select %p479, %s28, 1
        %s481 = smul.addr %s480, 12
        %s482 = smul.addr %s481, 8
        %s483 = scalar_lea.vmem %s0, %s482
        %p484 = pneg %p49
        %p485 = pneg %p46
        %p486 = pneg %p70
        %p487 = pneg %p67
        %p488 = pneg %p91
        %p489 = pneg %p88
        %p490 = pneg %p112
        %p491 = pneg %p109
        %p492 = pneg %p133
        %p493 = pneg %p130
        %p494 = pneg %p154
        %p495 = pneg %p151
        %p496 = pneg %p175
        %p497 = pneg %p172
        %p498 = pneg %p196
        %p499 = pneg %p193
        %p500 = pneg %p217
        %p501 = pneg %p214
        %p502 = pneg %p238
        %p503 = pneg %p235
        %p504 = pneg %p259
        %p505 = pneg %p256
        %p506 = pneg %p285
        %p507 = pneg %p282
        %p508 = scmp.lt.s32.totalorder %s28, 1
        %s509 = scalar_select %p508, %s28, 1
        %s510 = smul.addr %s509, 2
        %s511 = smul.addr %s510, 8
        %s512 = scalar_lea.vmem %s11, %s511
        %p513 = scmp.lt.s32.totalorder %s28, 1
        %s514 = scalar_select %p513, %s28, 1
        %s515 = smul.addr %s514, 12
        %s516 = smul.addr %s515, 8
        %s517 = scalar_lea.vmem %s0, %s516
        %p518 = scmp.lt.s32.totalorder %s28, 1
        %s519 = scalar_select %p518, %s28, 1
        %s520 = smul.addr %s519, 2
        %s521 = smul.addr %s520, 8
        %s522 = scalar_lea.vmem %s11, %s521
        %v523 = vld [vmem:[%s517] sm:$0xff]
        %v524 = vld [vmem:[%s517 + $0x8] sm:$0xff]
        %v525 = vld [vmem:[%s517 + $0x10] sm:$0xff]
        %v526 = vld [vmem:[%s517 + $0x18] sm:$0xff]
        %v527 = vld [vmem:[%s517 + $0x20] sm:$0xff]
        %v528 = vld [vmem:[%s517 + $0x28] sm:$0xff]
        %v529 = vld [vmem:[%s517 + $0x30] sm:$0xff]
        %v530 = vld [vmem:[%s517 + $0x38] sm:$0xff]
        %v531 = vld [vmem:[%s517 + $0x40] sm:$0xff]
        %v532 = vld [vmem:[%s517 + $0x48] sm:$0xff]
        %v533 = vld [vmem:[%s517 + $0x50] sm:$0xff]
        %v534 = vld [vmem:[%s517 + $0x58] sm:$0xff]
        %s535 = scalar_lea.vmem [#allocation2], 48
        %v536 = vld [vmem:[%s535] sm:$0xff]
        %v537 = vld [vmem:[%s535 + $0x8] sm:$0xff]
        %v538 = vld [vmem:[%s535 + $0x10] sm:$0xff]
        %v539 = vld [vmem:[%s535 + $0x18] sm:$0xff]
        %v540 = vld [vmem:[%s535 + $0x20] sm:$0x1f]
        %v541 = vld [vmem:[%s535 + $0x28] sm:$0x1f]
        %v542 = vld [vmem:[#allocation2] sm:$0xff]
        %v543 = vld [vmem:[#allocation2 + $0x8] sm:$0xff]
        %v544 = vld [vmem:[#allocation2 + $0x10] sm:$0xff]
        %v545 = vld [vmem:[#allocation2 + $0x18] sm:$0xff]
        %v546 = vld [vmem:[#allocation2 + $0x20] sm:$0x1f]
        %v547 = vld [vmem:[#allocation2 + $0x28] sm:$0x1f]
        %vm548 = vcmask 171008
        %v550 = vsel %vm548, 0.0, 0
        %v553 = vsel %vm548, %v523, 0
        %v556 = vsel %vm548, %v524, 0
        %v559 = vsel %vm548, %v525, 0
        %v562 = vsel %vm548, %v526, 0
        %v565 = vsel %vm548, %v527, 0
        %v568 = vsel %vm548, %v528, 0
        %v571 = vsel %vm548, %v529, 0
        %v574 = vsel %vm548, %v530, 0
        %v577 = vsel %vm548, %v531, 0
        %v580 = vsel %vm548, %v532, 0
        %vm582 = vcmask 1044480
        %v584 = vsel %vm582, %v546, 0
        %v587 = vsel %vm582, %v547, 0
        %589 = vmatprep.subr.mxu0 %v543
        %590 = vmatpush1.msra.mxu0 %v542
        %591 = vmatprep.subr.mxu0 %v545
        %592 = vmatpush1.msra.mxu0 %v544
        %593 = vmatprep.subr.mxu0 %v587
        %594 = vmatpush1.msra.mxu0 %v584
        %595 = vmatprep.subr.mxu0 0.0
        %596 = vmatpush1.msra.mxu0 0.0
        %597 = vmatprep.subr.mxu0 0.0
        %598 = vmatpush1.msra.mxu0 0.0
        %599 = vmatprep.subr.mxu0 0.0
        %600 = vmatpush1.msra.mxu0 0.0
        %601 = vmatprep.subr.mxu0 0.0
        %602 = vmatpush1.msra.mxu0 0.0
        %603 = vmatprep.subr.mxu0 0.0
        %604 = vmatpush1.msra.mxu0 0.0
        %605 = vmatprep.subr.mxu0 0.0
        %606 = vmatpush1.msra.mxu0 0.0
        %607 = vmatprep.subr.mxu0 0.0
        %608 = vmatpush1.msra.mxu0 0.0
        %609 = vmatprep.subr.mxu0 0.0
        %610 = vmatpush1.msra.mxu0 0.0
        %611 = vmatprep.subr.mxu0 0.0
        %612 = vmatpush1.msra.mxu0 0.0
        %613 = vmatprep.subr.mxu0 0.0
        %614 = vmatpush1.msra.mxu0 0.0
        %615 = vmatprep.subr.mxu0 0.0
        %616 = vmatpush1.msra.mxu0 0.0
        %617 = vmatprep.subr.mxu0 0.0
        %618 = vmatpush1.msra.mxu0 0.0
        %619 = vmatprep.subr.mxu0 0.0
        %620 = vmatpush1.msra.mxu0 0.0
        %621 = vmatprep.subr.mxu0 0.0
        %622 = vmatpush1.msra.mxu0 0.0
        %623 = vmatprep.subr.mxu0 0.0
        %624 = vmatpush1.msra.mxu0 0.0
        %625 = vmatprep.subr.mxu0 0.0
        %626 = vmatpush1.msra.mxu0 0.0
        %627 = vmatprep.subr.mxu0 0.0
        %628 = vmatpush1.msra.mxu0 0.0
        %629 = vmatprep.subr.mxu0 0.0
        %630 = vmatpush1.msra.mxu0 0.0
        %631 = vmatprep.subr.mxu0 0.0
        %632 = vmatpush1.msra.mxu0 0.0
        %633 = vmatprep.subr.mxu0 0.0
        %634 = vmatpush1.msra.mxu0 0.0
        %635 = vmatprep.subr.mxu0 0.0
        %636 = vmatpush1.msra.mxu0 0.0
        %637 = vmatprep.subr.mxu0 0.0
        %638 = vmatpush1.msra.mxu0 0.0
        %639 = vmatprep.subr.mxu0 0.0
        %640 = vmatpush1.msra.mxu0 0.0
        %641 = vmatprep.subr.mxu0 0.0
        %642 = vmatpush1.msra.mxu0 0.0
        %643 = vmatprep.subr.mxu0 0.0
        %644 = vmatpush1.msra.mxu0 0.0
        %645 = vmatprep.subr.mxu0 0.0
        %646 = vmatpush1.msra.mxu0 0.0
        %647 = vmatprep.subr.mxu0 0.0
        %648 = vmatpush1.msra.mxu0 0.0
        %649 = vmatprep.subr.mxu0 0.0
        %650 = vmatpush1.msra.mxu0 0.0
        %651 = vmatprep.subr.mxu0 0.0
        %652 = vmatpush1.msra.mxu0 0.0
        %653 = vmatprep.mubr.f32.mxu0 0.0
        %654 = vmatmul.mubr.f32.gmra.mrb[0].mxu0 %v550
        %v655 = vpop.f32.mrb[0].mxu0
        %v656 = vadd.f32 0.0, %v655
        %v657 = vpop.f32.mrb[0].mxu0
        %v658 = vadd.f32 0.0, %v657
        %659 = vmatprep.mubr.f32.mxu0 0.0
        %660 = vmatmul.mubr.f32.gmra.mrb[0].mxu0 %v550
        %v661 = vpop.f32.mrb[0].mxu0
        %v662 = vadd.f32 0.0, %v661
        %v663 = vpop.f32.mrb[0].mxu0
        %v664 = vadd.f32 0.0, %v663
        %665 = vmatprep.mubr.f32.mxu0 0.0
        %666 = vmatmul.mubr.f32.gmra.mrb[0].mxu0 %v553
        %v667 = vpop.f32.mrb[0].mxu0
        %v668 = vadd.f32 0.0, %v667
        %v669 = vpop.f32.mrb[0].mxu0
        %v670 = vadd.f32 0.0, %v669
        %671 = vmatprep.mubr.f32.mxu0 0.0
        %672 = vmatmul.mubr.f32.gmra.mrb[0].mxu0 %v556
        %v673 = vpop.f32.mrb[0].mxu0
        %v674 = vadd.f32 0.0, %v673
        %v675 = vpop.f32.mrb[0].mxu0
        %v676 = vadd.f32 0.0, %v675
        %677 = vmatprep.mubr.f32.mxu0 0.0
        %678 = vmatmul.mubr.f32.gmra.mrb[0].mxu0 %v559
        %v679 = vpop.f32.mrb[0].mxu0
        %v680 = vadd.f32 0.0, %v679
        %v681 = vpop.f32.mrb[0].mxu0
        %v682 = vadd.f32 0.0, %v681
        %683 = vmatprep.mubr.f32.mxu0 0.0
        %684 = vmatmul.mubr.f32.gmra.mrb[0].mxu0 %v562
        %v685 = vpop.f32.mrb[0].mxu0
        %v686 = vadd.f32 0.0, %v685
        %v687 = vpop.f32.mrb[0].mxu0
        %v688 = vadd.f32 0.0, %v687
        %689 = vmatprep.mubr.f32.mxu0 0.0
        %690 = vmatmul.mubr.f32.gmra.mrb[0].mxu0 %v565
        %v691 = vpop.f32.mrb[0].mxu0
        %v692 = vadd.f32 0.0, %v691
        %v693 = vpop.f32.mrb[0].mxu0
        %v694 = vadd.f32 0.0, %v693
        %695 = vmatprep.mubr.f32.mxu0 0.0
        %696 = vmatmul.mubr.f32.gmra.mrb[0].mxu0 %v568
        %v697 = vpop.f32.mrb[0].mxu0
        %v698 = vadd.f32 0.0, %v697
        %v699 = vpop.f32.mrb[0].mxu0
        %v700 = vadd.f32 0.0, %v699
        %701 = vmatprep.mubr.f32.mxu0 0.0
        %702 = vmatmul.mubr.f32.gmra.mrb[0].mxu0 %v571
        %v703 = vpop.f32.mrb[0].mxu0
        %v704 = vadd.f32 0.0, %v703
        %v705 = vpop.f32.mrb[0].mxu0
        %v706 = vadd.f32 0.0, %v705
        %707 = vmatprep.mubr.f32.mxu0 0.0
        %708 = vmatmul.mubr.f32.gmra.mrb[0].mxu0 %v574
        %v709 = vpop.f32.mrb[0].mxu0
        %v710 = vadd.f32 0.0, %v709
        %v711 = vpop.f32.mrb[0].mxu0
        %v712 = vadd.f32 0.0, %v711
        %713 = vmatprep.mubr.f32.mxu0 0.0
        %714 = vmatmul.mubr.f32.gmra.mrb[0].mxu0 %v577
        %v715 = vpop.f32.mrb[0].mxu0
        %v716 = vadd.f32 0.0, %v715
        %v717 = vpop.f32.mrb[0].mxu0
        %v718 = vadd.f32 0.0, %v717
        %719 = vmatprep.mubr.f32.mxu0 0.0
        %720 = vmatmul.mubr.f32.gmra.mrb[0].mxu0 %v580
        %v721 = vpop.f32.mrb[0].mxu0
        %v722 = vadd.f32 0.0, %v721
        %v723 = vpop.f32.mrb[0].mxu0
        %v724 = vadd.f32 0.0, %v723
        %725 = vdwg.mxu0
        %v727 = vsel %vm548, %v533, 0
        %v730 = vsel %vm548, %v534, 0
        %v733 = vsel %vm582, %v540, 0
        %v736 = vsel %vm582, %v541, 0
        %738 = vmatprep.subr.mxu0 %v537
        %739 = vmatpush1.msra.mxu0 %v536
        %740 = vmatprep.subr.mxu0 %v539
        %741 = vmatpush1.msra.mxu0 %v538
        %742 = vmatprep.subr.mxu0 %v736
        %743 = vmatpush1.msra.mxu0 %v733
        %744 = vmatprep.subr.mxu0 0.0
        %745 = vmatpush1.msra.mxu0 0.0
        %746 = vmatprep.subr.mxu0 0.0
        %747 = vmatpush1.msra.mxu0 0.0
        %748 = vmatprep.subr.mxu0 0.0
        %749 = vmatpush1.msra.mxu0 0.0
        %750 = vmatprep.subr.mxu0 0.0
        %751 = vmatpush1.msra.mxu0 0.0
        %752 = vmatprep.subr.mxu0 0.0
        %753 = vmatpush1.msra.mxu0 0.0
        %754 = vmatprep.subr.mxu0 0.0
        %755 = vmatpush1.msra.mxu0 0.0
        %756 = vmatprep.subr.mxu0 0.0
        %757 = vmatpush1.msra.mxu0 0.0
        %758 = vmatprep.subr.mxu0 0.0
        %759 = vmatpush1.msra.mxu0 0.0
        %760 = vmatprep.subr.mxu0 0.0
        %761 = vmatpush1.msra.mxu0 0.0
        %762 = vmatprep.subr.mxu0 0.0
        %763 = vmatpush1.msra.mxu0 0.0
        %764 = vmatprep.subr.mxu0 0.0
        %765 = vmatpush1.msra.mxu0 0.0
        %766 = vmatprep.subr.mxu0 0.0
        %767 = vmatpush1.msra.mxu0 0.0
        %768 = vmatprep.subr.mxu0 0.0
        %769 = vmatpush1.msra.mxu0 0.0
        %770 = vmatprep.subr.mxu0 0.0
        %771 = vmatpush1.msra.mxu0 0.0
        %772 = vmatprep.subr.mxu0 0.0
        %773 = vmatpush1.msra.mxu0 0.0
        %774 = vmatprep.subr.mxu0 0.0
        %775 = vmatpush1.msra.mxu0 0.0
        %776 = vmatprep.subr.mxu0 0.0
        %777 = vmatpush1.msra.mxu0 0.0
        %778 = vmatprep.subr.mxu0 0.0
        %779 = vmatpush1.msra.mxu0 0.0
        %780 = vmatprep.subr.mxu0 0.0
        %781 = vmatpush1.msra.mxu0 0.0
        %782 = vmatprep.subr.mxu0 0.0
        %783 = vmatpush1.msra.mxu0 0.0
        %784 = vmatprep.subr.mxu0 0.0
        %785 = vmatpush1.msra.mxu0 0.0
        %786 = vmatprep.subr.mxu0 0.0
        %787 = vmatpush1.msra.mxu0 0.0
        %788 = vmatprep.subr.mxu0 0.0
        %789 = vmatpush1.msra.mxu0 0.0
        %790 = vmatprep.subr.mxu0 0.0
        %791 = vmatpush1.msra.mxu0 0.0
        %792 = vmatprep.subr.mxu0 0.0
        %793 = vmatpush1.msra.mxu0 0.0
        %794 = vmatprep.subr.mxu0 0.0
        %795 = vmatpush1.msra.mxu0 0.0
        %796 = vmatprep.subr.mxu0 0.0
        %797 = vmatpush1.msra.mxu0 0.0
        %798 = vmatprep.subr.mxu0 0.0
        %799 = vmatpush1.msra.mxu0 0.0
        %800 = vmatprep.subr.mxu0 0.0
        %801 = vmatpush1.msra.mxu0 0.0
        %802 = vmatprep.mubr.f32.mxu0 0.0
        %803 = vmatmul.mubr.f32.gmra.mrb[0].mxu0 %v553
        %v804 = vpop.f32.mrb[0].mxu0
        %v805 = vadd.f32 %v656, %v804
        %v806 = vpop.f32.mrb[0].mxu0
        %v807 = vadd.f32 %v658, %v806
        %808 = vmatprep.mubr.f32.mxu0 0.0
        %809 = vmatmul.mubr.f32.gmra.mrb[0].mxu0 %v556
        %v810 = vpop.f32.mrb[0].mxu0
        %v811 = vadd.f32 %v662, %v810
        %v812 = vpop.f32.mrb[0].mxu0
        %v813 = vadd.f32 %v664, %v812
        %814 = vmatprep.mubr.f32.mxu0 0.0
        %815 = vmatmul.mubr.f32.gmra.mrb[0].mxu0 %v559
        %v816 = vpop.f32.mrb[0].mxu0
        %v817 = vadd.f32 %v668, %v816
        %v818 = vpop.f32.mrb[0].mxu0
        %v819 = vadd.f32 %v670, %v818
        %820 = vmatprep.mubr.f32.mxu0 0.0
        %821 = vmatmul.mubr.f32.gmra.mrb[0].mxu0 %v562
        %v822 = vpop.f32.mrb[0].mxu0
        %v823 = vadd.f32 %v674, %v822
        %v824 = vpop.f32.mrb[0].mxu0
        %v825 = vadd.f32 %v676, %v824
        %826 = vmatprep.mubr.f32.mxu0 0.0
        %827 = vmatmul.mubr.f32.gmra.mrb[0].mxu0 %v565
        %v828 = vpop.f32.mrb[0].mxu0
        %v829 = vadd.f32 %v680, %v828
        %v830 = vpop.f32.mrb[0].mxu0
        %v831 = vadd.f32 %v682, %v830
        %832 = vmatprep.mubr.f32.mxu0 0.0
        %833 = vmatmul.mubr.f32.gmra.mrb[0].mxu0 %v568
        %v834 = vpop.f32.mrb[0].mxu0
        %v835 = vadd.f32 %v686, %v834
        %v836 = vpop.f32.mrb[0].mxu0
        %v837 = vadd.f32 %v688, %v836
        %838 = vmatprep.mubr.f32.mxu0 0.0
        %839 = vmatmul.mubr.f32.gmra.mrb[0].mxu0 %v571
        %v840 = vpop.f32.mrb[0].mxu0
        %v841 = vadd.f32 %v692, %v840
        %v842 = vpop.f32.mrb[0].mxu0
        %v843 = vadd.f32 %v694, %v842
        %844 = vmatprep.mubr.f32.mxu0 0.0
        %845 = vmatmul.mubr.f32.gmra.mrb[0].mxu0 %v574
        %v846 = vpop.f32.mrb[0].mxu0
        %v847 = vadd.f32 %v698, %v846
        %v848 = vpop.f32.mrb[0].mxu0
        %v849 = vadd.f32 %v700, %v848
        %850 = vmatprep.mubr.f32.mxu0 0.0
        %851 = vmatmul.mubr.f32.gmra.mrb[0].mxu0 %v577
        %v852 = vpop.f32.mrb[0].mxu0
        %v853 = vadd.f32 %v704, %v852
        %v854 = vpop.f32.mrb[0].mxu0
        %v855 = vadd.f32 %v706, %v854
        %856 = vmatprep.mubr.f32.mxu0 0.0
        %857 = vmatmul.mubr.f32.gmra.mrb[0].mxu0 %v580
        %v858 = vpop.f32.mrb[0].mxu0
        %v859 = vadd.f32 %v710, %v858
        %v860 = vpop.f32.mrb[0].mxu0
        %v861 = vadd.f32 %v712, %v860
        %862 = vmatprep.mubr.f32.mxu0 0.0
        %863 = vmatmul.mubr.f32.gmra.mrb[0].mxu0 %v727
        %v864 = vpop.f32.mrb[0].mxu0
        %v865 = vadd.f32 %v716, %v864
        %v866 = vpop.f32.mrb[0].mxu0
        %v867 = vadd.f32 %v718, %v866
        %868 = vmatprep.mubr.f32.mxu0 0.0
        %869 = vmatmul.mubr.f32.gmra.mrb[0].mxu0 %v730
        %v870 = vpop.f32.mrb[0].mxu0
        %v871 = vadd.f32 %v722, %v870
        %v872 = vpop.f32.mrb[0].mxu0
        %v873 = vadd.f32 %v724, %v872
        %874 = vdwg.mxu0
        %s875 = scalar_lea.vmem [#allocation2], 96
        %v876 = vld [vmem:[%s875] sm:$0xff]
        %v877 = vld [vmem:[%s875 + $0x8] sm:$0xff]
        %v878 = vld [vmem:[%s875 + $0x10] sm:$0xff]
        %v879 = vld [vmem:[%s875 + $0x18] sm:$0xff]
        %v880 = vld [vmem:[%s875 + $0x20] sm:$0x1f]
        %v881 = vld [vmem:[%s875 + $0x28] sm:$0x1f]
        %v883 = vsel %vm582, %v880, 0
        %v886 = vsel %vm582, %v881, 0
        %888 = vmatprep.subr.mxu0 %v877
        %889 = vmatpush1.msra.mxu0 %v876
        %890 = vmatprep.subr.mxu0 %v879
        %891 = vmatpush1.msra.mxu0 %v878
        %892 = vmatprep.subr.mxu0 %v886
        %893 = vmatpush1.msra.mxu0 %v883
        %894 = vmatprep.subr.mxu0 0.0
        %895 = vmatpush1.msra.mxu0 0.0
        %896 = vmatprep.subr.mxu0 0.0
        %897 = vmatpush1.msra.mxu0 0.0
        %898 = vmatprep.subr.mxu0 0.0
        %899 = vmatpush1.msra.mxu0 0.0
        %900 = vmatprep.subr.mxu0 0.0
        %901 = vmatpush1.msra.mxu0 0.0
        %902 = vmatprep.subr.mxu0 0.0
        %903 = vmatpush1.msra.mxu0 0.0
        %904 = vmatprep.subr.mxu0 0.0
        %905 = vmatpush1.msra.mxu0 0.0
        %906 = vmatprep.subr.mxu0 0.0
        %907 = vmatpush1.msra.mxu0 0.0
        %908 = vmatprep.subr.mxu0 0.0
        %909 = vmatpush1.msra.mxu0 0.0
        %910 = vmatprep.subr.mxu0 0.0
        %911 = vmatpush1.msra.mxu0 0.0
        %912 = vmatprep.subr.mxu0 0.0
        %913 = vmatpush1.msra.mxu0 0.0
        %914 = vmatprep.subr.mxu0 0.0
        %915 = vmatpush1.msra.mxu0 0.0
        %916 = vmatprep.subr.mxu0 0.0
        %917 = vmatpush1.msra.mxu0 0.0
        %918 = vmatprep.subr.mxu0 0.0
        %919 = vmatpush1.msra.mxu0 0.0
        %920 = vmatprep.subr.mxu0 0.0
        %921 = vmatpush1.msra.mxu0 0.0
        %922 = vmatprep.subr.mxu0 0.0
        %923 = vmatpush1.msra.mxu0 0.0
        %924 = vmatprep.subr.mxu0 0.0
        %925 = vmatpush1.msra.mxu0 0.0
        %926 = vmatprep.subr.mxu0 0.0
        %927 = vmatpush1.msra.mxu0 0.0
        %928 = vmatprep.subr.mxu0 0.0
        %929 = vmatpush1.msra.mxu0 0.0
        %930 = vmatprep.subr.mxu0 0.0
        %931 = vmatpush1.msra.mxu0 0.0
        %932 = vmatprep.subr.mxu0 0.0
        %933 = vmatpush1.msra.mxu0 0.0
        %934 = vmatprep.subr.mxu0 0.0
        %935 = vmatpush1.msra.mxu0 0.0
        %936 = vmatprep.subr.mxu0 0.0
        %937 = vmatpush1.msra.mxu0 0.0
        %938 = vmatprep.subr.mxu0 0.0
        %939 = vmatpush1.msra.mxu0 0.0
        %940 = vmatprep.subr.mxu0 0.0
        %941 = vmatpush1.msra.mxu0 0.0
        %942 = vmatprep.subr.mxu0 0.0
        %943 = vmatpush1.msra.mxu0 0.0
        %944 = vmatprep.subr.mxu0 0.0
        %945 = vmatpush1.msra.mxu0 0.0
        %946 = vmatprep.subr.mxu0 0.0
        %947 = vmatpush1.msra.mxu0 0.0
        %948 = vmatprep.subr.mxu0 0.0
        %949 = vmatpush1.msra.mxu0 0.0
        %950 = vmatprep.subr.mxu0 0.0
        %951 = vmatpush1.msra.mxu0 0.0
        %952 = vmatprep.mubr.f32.mxu0 0.0
        %953 = vmatmul.mubr.f32.gmra.mrb[0].mxu0 %v559
        %v954 = vpop.f32.mrb[0].mxu0
        %v955 = vadd.f32 0.0, %v954
        %v956 = vpop.f32.mrb[0].mxu0
        %v957 = vadd.f32 0.0, %v956
        %958 = vmatprep.mubr.f32.mxu0 0.0
        %959 = vmatmul.mubr.f32.gmra.mrb[0].mxu0 %v562
        %v960 = vpop.f32.mrb[0].mxu0
        %v961 = vadd.f32 0.0, %v960
        %v962 = vpop.f32.mrb[0].mxu0
        %v963 = vadd.f32 0.0, %v962
        %964 = vmatprep.mubr.f32.mxu0 0.0
        %965 = vmatmul.mubr.f32.gmra.mrb[0].mxu0 %v565
        %v966 = vpop.f32.mrb[0].mxu0
        %v967 = vadd.f32 0.0, %v966
        %v968 = vpop.f32.mrb[0].mxu0
        %v969 = vadd.f32 0.0, %v968
        %970 = vmatprep.mubr.f32.mxu0 0.0
        %971 = vmatmul.mubr.f32.gmra.mrb[0].mxu0 %v568
        %v972 = vpop.f32.mrb[0].mxu0
        %v973 = vadd.f32 0.0, %v972
        %v974 = vpop.f32.mrb[0].mxu0
        %v975 = vadd.f32 0.0, %v974
        %976 = vmatprep.mubr.f32.mxu0 0.0
        %977 = vmatmul.mubr.f32.gmra.mrb[0].mxu0 %v571
        %v978 = vpop.f32.mrb[0].mxu0
        %v979 = vadd.f32 0.0, %v978
        %v980 = vpop.f32.mrb[0].mxu0
        %v981 = vadd.f32 0.0, %v980
        %982 = vmatprep.mubr.f32.mxu0 0.0
        %983 = vmatmul.mubr.f32.gmra.mrb[0].mxu0 %v574
        %v984 = vpop.f32.mrb[0].mxu0
        %v985 = vadd.f32 0.0, %v984
        %v986 = vpop.f32.mrb[0].mxu0
        %v987 = vadd.f32 0.0, %v986
        %988 = vmatprep.mubr.f32.mxu0 0.0
        %989 = vmatmul.mubr.f32.gmra.mrb[0].mxu0 %v577
        %v990 = vpop.f32.mrb[0].mxu0
        %v991 = vadd.f32 0.0, %v990
        %v992 = vpop.f32.mrb[0].mxu0
        %v993 = vadd.f32 0.0, %v992
        %994 = vmatprep.mubr.f32.mxu0 0.0
        %995 = vmatmul.mubr.f32.gmra.mrb[0].mxu0 %v580
        %v996 = vpop.f32.mrb[0].mxu0
        %v997 = vadd.f32 0.0, %v996
        %v998 = vpop.f32.mrb[0].mxu0
        %v999 = vadd.f32 0.0, %v998
        %1000 = vmatprep.mubr.f32.mxu0 0.0
        %1001 = vmatmul.mubr.f32.gmra.mrb[0].mxu0 %v727
        %v1002 = vpop.f32.mrb[0].mxu0
        %v1003 = vadd.f32 0.0, %v1002
        %v1004 = vpop.f32.mrb[0].mxu0
        %v1005 = vadd.f32 0.0, %v1004
        %1006 = vmatprep.mubr.f32.mxu0 0.0
        %1007 = vmatmul.mubr.f32.gmra.mrb[0].mxu0 %v730
        %v1008 = vpop.f32.mrb[0].mxu0
        %v1009 = vadd.f32 0.0, %v1008
        %v1010 = vpop.f32.mrb[0].mxu0
        %v1011 = vadd.f32 0.0, %v1010
        %1012 = vmatprep.mubr.f32.mxu0 0.0
        %1013 = vmatmul.mubr.f32.gmra.mrb[0].mxu0 %v550
        %v1014 = vpop.f32.mrb[0].mxu0
        %v1015 = vadd.f32 0.0, %v1014
        %v1016 = vpop.f32.mrb[0].mxu0
        %v1017 = vadd.f32 0.0, %v1016
        %1018 = vmatprep.mubr.f32.mxu0 0.0
        %1019 = vmatmul.mubr.f32.gmra.mrb[0].mxu0 %v550
        %v1020 = vpop.f32.mrb[0].mxu0
        %v1021 = vadd.f32 0.0, %v1020
        %v1022 = vpop.f32.mrb[0].mxu0
        %v1023 = vadd.f32 0.0, %v1022
        %1024 = vdwg.mxu0
        %v1025 = vadd.f32 %v805, %v955
        %v1026 = vadd.f32 %v807, %v957
        %v1027 = vadd.f32 %v811, %v961
        %v1028 = vadd.f32 %v813, %v963
        %v1029 = vadd.f32 %v817, %v967
        %v1030 = vadd.f32 %v819, %v969
        %v1031 = vadd.f32 %v823, %v973
        %v1032 = vadd.f32 %v825, %v975
        %v1033 = vadd.f32 %v829, %v979
        %v1034 = vadd.f32 %v831, %v981
        %v1035 = vadd.f32 %v835, %v985
        %v1036 = vadd.f32 %v837, %v987
        %v1037 = vadd.f32 %v841, %v991
        %v1038 = vadd.f32 %v843, %v993
        %v1039 = vadd.f32 %v847, %v997
        %v1040 = vadd.f32 %v849, %v999
        %v1041 = vadd.f32 %v853, %v1003
        %v1042 = vadd.f32 %v855, %v1005
        %v1043 = vadd.f32 %v859, %v1009
        %v1044 = vadd.f32 %v861, %v1011
        %v1045 = vadd.f32 %v865, %v1015
        %v1046 = vadd.f32 %v867, %v1017
        %v1047 = vadd.f32 %v871, %v1021
        %v1048 = vadd.f32 %v873, %v1023
        %v1049 = vld [vmem:[#allocation4] sm:$0x3]
        %v1051 = vlaneseq
        %v1052 = vshrl.u32 %v1051, 7
        %v1053 = vsub.s32 0, %v1052
        %v1054 = vrot.slane %v1049, %v1053
        %v1055 = vlaneseq
        %v1056 = vshrl.u32 %v1055, 7
        %v1057 = vsub.s32 1, %v1056
        %v1058 = vrot.slane %v1049, %v1057
        %v1061 = vadd.f32 %v1025, %v1054
        %v1062 = vadd.f32 %v1026, %v1058
        %v1063 = vadd.f32 %v1027, %v1054
        %v1064 = vadd.f32 %v1028, %v1058
        %v1065 = vadd.f32 %v1029, %v1054
        %v1066 = vadd.f32 %v1030, %v1058
        %v1067 = vadd.f32 %v1031, %v1054
        %v1068 = vadd.f32 %v1032, %v1058
        %v1069 = vadd.f32 %v1033, %v1054
        %v1070 = vadd.f32 %v1034, %v1058
        %v1071 = vadd.f32 %v1035, %v1054
        %v1072 = vadd.f32 %v1036, %v1058
        %v1073 = vadd.f32 %v1037, %v1054
        %v1074 = vadd.f32 %v1038, %v1058
        %v1075 = vadd.f32 %v1039, %v1054
        %v1076 = vadd.f32 %v1040, %v1058
        %v1077 = vadd.f32 %v1041, %v1054
        %v1078 = vadd.f32 %v1042, %v1058
        %v1079 = vadd.f32 %v1043, %v1054
        %v1080 = vadd.f32 %v1044, %v1058
        %v1081 = vadd.f32 %v1045, %v1054
        %v1082 = vadd.f32 %v1046, %v1058
        %v1083 = vadd.f32 %v1047, %v1054
        %v1084 = vadd.f32 %v1048, %v1058
        %v1085 = vmax.f32 %v1061, 0.0
        %v1086 = vmax.f32 %v1062, 0.0
        %v1087 = vmax.f32 %v1063, 0.0
        %v1088 = vmax.f32 %v1064, 0.0
        %v1089 = vmax.f32 %v1065, 0.0
        %v1090 = vmax.f32 %v1066, 0.0
        %v1091 = vmax.f32 %v1067, 0.0
        %v1092 = vmax.f32 %v1068, 0.0
        %v1093 = vmax.f32 %v1069, 0.0
        %v1094 = vmax.f32 %v1070, 0.0
        %v1095 = vmax.f32 %v1071, 0.0
        %v1096 = vmax.f32 %v1072, 0.0
        %v1097 = vmax.f32 %v1073, 0.0
        %v1098 = vmax.f32 %v1074, 0.0
        %v1099 = vmax.f32 %v1075, 0.0
        %v1100 = vmax.f32 %v1076, 0.0
        %v1101 = vmax.f32 %v1077, 0.0
        %v1102 = vmax.f32 %v1078, 0.0
        %v1103 = vmax.f32 %v1079, 0.0
        %v1104 = vmax.f32 %v1080, 0.0
        %v1105 = vmax.f32 %v1081, 0.0
        %v1106 = vmax.f32 %v1082, 0.0
        %v1107 = vmax.f32 %v1083, 0.0
        %v1108 = vmax.f32 %v1084, 0.0
        %s1109 = scalar_lea.vmem [#allocation6], 896
        %v1110 = vld [vmem:[%s1109] sm:$0xff]
        %v1111 = vld [vmem:[%s1109 + $0x8] sm:$0xff]
        %v1112 = vld [vmem:[%s1109 + $0x10] sm:$0xff]
        %v1113 = vld [vmem:[%s1109 + $0x18] sm:$0xff]
        %v1114 = vld [vmem:[%s1109 + $0x20] sm:$0xff]
        %v1115 = vld [vmem:[%s1109 + $0x28] sm:$0xff]
        %v1116 = vld [vmem:[%s1109 + $0x30] sm:$0xff]
        %v1117 = vld [vmem:[%s1109 + $0x38] sm:$0xff]
        %v1118 = vld [vmem:[%s1109 + $0x40] sm:$0xff]
        %v1119 = vld [vmem:[%s1109 + $0x48] sm:$0xff]
        %v1120 = vld [vmem:[%s1109 + $0x50] sm:$0xff]
        %v1121 = vld [vmem:[%s1109 + $0x58] sm:$0xff]
        %v1122 = vld [vmem:[%s1109 + $0x60] sm:$0xff]
        %v1123 = vld [vmem:[%s1109 + $0x68] sm:$0xff]
        %v1124 = vld [vmem:[%s1109 + $0x70] sm:$0xff]
        %v1125 = vld [vmem:[%s1109 + $0x78] sm:$0xff]
        %v1126 = vld [vmem:[%s1109 + $0x80] sm:$0xff]
        %v1127 = vld [vmem:[%s1109 + $0x88] sm:$0xff]
        %v1128 = vld [vmem:[%s1109 + $0x90] sm:$0xff]
        %v1129 = vld [vmem:[%s1109 + $0x98] sm:$0xff]
        %v1130 = vld [vmem:[%s1109 + $0xa0] sm:$0xff]
        %v1131 = vld [vmem:[%s1109 + $0xa8] sm:$0xff]
        %v1132 = vld [vmem:[%s1109 + $0xb0] sm:$0xff]
        %v1133 = vld [vmem:[%s1109 + $0xb8] sm:$0xff]
        %v1134 = vld [vmem:[%s1109 + $0xc0] sm:$0xff]
        %v1135 = vld [vmem:[%s1109 + $0xc8] sm:$0xff]
        %v1136 = vld [vmem:[%s1109 + $0xd0] sm:$0xff]
        %v1137 = vld [vmem:[%s1109 + $0xd8] sm:$0xff]
        %v1138 = vld [vmem:[%s1109 + $0xe0] sm:$0xff]
        %v1139 = vld [vmem:[%s1109 + $0xe8] sm:$0xff]
        %v1140 = vld [vmem:[%s1109 + $0xf0] sm:$0xff]
        %v1141 = vld [vmem:[%s1109 + $0xf8] sm:$0xff]
        %v1142 = vld [vmem:[%s1109 + $0x100] sm:$0xff]
        %v1143 = vld [vmem:[%s1109 + $0x108] sm:$0xff]
        %v1144 = vld [vmem:[%s1109 + $0x110] sm:$0xff]
        %v1145 = vld [vmem:[%s1109 + $0x118] sm:$0xff]
        %v1146 = vld [vmem:[%s1109 + $0x120] sm:$0xff]
        %v1147 = vld [vmem:[%s1109 + $0x128] sm:$0xff]
        %v1148 = vld [vmem:[%s1109 + $0x130] sm:$0xff]
        %v1149 = vld [vmem:[%s1109 + $0x138] sm:$0xff]
        %v1150 = vld [vmem:[%s1109 + $0x140] sm:$0xff]
        %v1151 = vld [vmem:[%s1109 + $0x148] sm:$0xff]
        %v1152 = vld [vmem:[%s1109 + $0x150] sm:$0xff]
        %v1153 = vld [vmem:[%s1109 + $0x158] sm:$0xff]
        %v1154 = vld [vmem:[%s1109 + $0x160] sm:$0xff]
        %v1155 = vld [vmem:[%s1109 + $0x168] sm:$0xff]
        %v1156 = vld [vmem:[%s1109 + $0x170] sm:$0xff]
        %v1157 = vld [vmem:[%s1109 + $0x178] sm:$0xff]
        %v1158 = vld [vmem:[%s1109 + $0x180] sm:$0xff]
        %v1159 = vld [vmem:[%s1109 + $0x188] sm:$0xff]
        %v1160 = vld [vmem:[%s1109 + $0x190] sm:$0xff]
        %v1161 = vld [vmem:[%s1109 + $0x198] sm:$0xff]
        %v1162 = vld [vmem:[%s1109 + $0x1a0] sm:$0xff]
        %v1163 = vld [vmem:[%s1109 + $0x1a8] sm:$0xff]
        %v1164 = vld [vmem:[%s1109 + $0x1b0] sm:$0xff]
        %v1165 = vld [vmem:[%s1109 + $0x1b8] sm:$0xff]
        %v1166 = vld [vmem:[%s1109 + $0x1c0] sm:$0xff]
        %v1167 = vld [vmem:[%s1109 + $0x1c8] sm:$0xff]
        %v1168 = vld [vmem:[%s1109 + $0x1d0] sm:$0xff]
        %v1169 = vld [vmem:[%s1109 + $0x1d8] sm:$0xff]
        %v1170 = vld [vmem:[%s1109 + $0x1e0] sm:$0xff]
        %v1171 = vld [vmem:[%s1109 + $0x1e8] sm:$0xff]
        %v1172 = vld [vmem:[%s1109 + $0x1f0] sm:$0xff]
        %v1173 = vld [vmem:[%s1109 + $0x1f8] sm:$0xff]
        %v1174 = vld [vmem:[%s1109 + $0x200] sm:$0xff]
        %v1175 = vld [vmem:[%s1109 + $0x208] sm:$0xff]
        %v1176 = vld [vmem:[%s1109 + $0x210] sm:$0xff]
        %v1177 = vld [vmem:[%s1109 + $0x218] sm:$0xff]
        %v1178 = vld [vmem:[%s1109 + $0x220] sm:$0xff]
        %v1179 = vld [vmem:[%s1109 + $0x228] sm:$0xff]
        %v1180 = vld [vmem:[%s1109 + $0x230] sm:$0xff]
        %v1181 = vld [vmem:[%s1109 + $0x238] sm:$0xff]
        %v1182 = vld [vmem:[%s1109 + $0x240] sm:$0xff]
        %v1183 = vld [vmem:[%s1109 + $0x248] sm:$0xff]
        %v1184 = vld [vmem:[%s1109 + $0x250] sm:$0xff]
        %v1185 = vld [vmem:[%s1109 + $0x258] sm:$0xff]
        %v1186 = vld [vmem:[%s1109 + $0x260] sm:$0xff]
        %v1187 = vld [vmem:[%s1109 + $0x268] sm:$0xff]
        %v1188 = vld [vmem:[%s1109 + $0x270] sm:$0xff]
        %v1189 = vld [vmem:[%s1109 + $0x278] sm:$0xff]
        %v1190 = vld [vmem:[%s1109 + $0x280] sm:$0xff]
        %v1191 = vld [vmem:[%s1109 + $0x288] sm:$0xff]
        %v1192 = vld [vmem:[%s1109 + $0x290] sm:$0xff]
        %v1193 = vld [vmem:[%s1109 + $0x298] sm:$0xff]
        %v1194 = vld [vmem:[%s1109 + $0x2a0] sm:$0xff]
        %v1195 = vld [vmem:[%s1109 + $0x2a8] sm:$0xff]
        %v1196 = vld [vmem:[%s1109 + $0x2b0] sm:$0xff]
        %v1197 = vld [vmem:[%s1109 + $0x2b8] sm:$0xff]
        %v1198 = vld [vmem:[%s1109 + $0x2c0] sm:$0xff]
        %v1199 = vld [vmem:[%s1109 + $0x2c8] sm:$0xff]
        %v1200 = vld [vmem:[%s1109 + $0x2d0] sm:$0xff]
        %v1201 = vld [vmem:[%s1109 + $0x2d8] sm:$0xff]
        %v1202 = vld [vmem:[%s1109 + $0x2e0] sm:$0xff]
        %v1203 = vld [vmem:[%s1109 + $0x2e8] sm:$0xff]
        %v1204 = vld [vmem:[%s1109 + $0x2f0] sm:$0xff]
        %v1205 = vld [vmem:[%s1109 + $0x2f8] sm:$0xff]
        %v1206 = vld [vmem:[%s1109 + $0x300] sm:$0xff]
        %v1207 = vld [vmem:[%s1109 + $0x308] sm:$0xff]
        %v1208 = vld [vmem:[%s1109 + $0x310] sm:$0xff]
        %v1209 = vld [vmem:[%s1109 + $0x318] sm:$0xff]
        %v1210 = vld [vmem:[%s1109 + $0x320] sm:$0xff]
        %v1211 = vld [vmem:[%s1109 + $0x328] sm:$0xff]
        %v1212 = vld [vmem:[%s1109 + $0x330] sm:$0xff]
        %v1213 = vld [vmem:[%s1109 + $0x338] sm:$0xff]
        %v1214 = vld [vmem:[%s1109 + $0x340] sm:$0xff]
        %v1215 = vld [vmem:[%s1109 + $0x348] sm:$0xff]
        %v1216 = vld [vmem:[%s1109 + $0x350] sm:$0xff]
        %v1217 = vld [vmem:[%s1109 + $0x358] sm:$0xff]
        %v1218 = vld [vmem:[%s1109 + $0x360] sm:$0xff]
        %v1219 = vld [vmem:[%s1109 + $0x368] sm:$0xff]
        %v1220 = vld [vmem:[%s1109 + $0x370] sm:$0xff]
        %v1221 = vld [vmem:[%s1109 + $0x378] sm:$0xff]
        %v1222 = vld [vmem:[#allocation6] sm:$0xff]
        %v1223 = vld [vmem:[#allocation6 + $0x8] sm:$0xff]
        %v1224 = vld [vmem:[#allocation6 + $0x10] sm:$0xff]
        %v1225 = vld [vmem:[#allocation6 + $0x18] sm:$0xff]
        %v1226 = vld [vmem:[#allocation6 + $0x20] sm:$0xff]
        %v1227 = vld [vmem:[#allocation6 + $0x28] sm:$0xff]
        %v1228 = vld [vmem:[#allocation6 + $0x30] sm:$0xff]
        %v1229 = vld [vmem:[#allocation6 + $0x38] sm:$0xff]
        %v1230 = vld [vmem:[#allocation6 + $0x40] sm:$0xff]
        %v1231 = vld [vmem:[#allocation6 + $0x48] sm:$0xff]
        %v1232 = vld [vmem:[#allocation6 + $0x50] sm:$0xff]
        %v1233 = vld [vmem:[#allocation6 + $0x58] sm:$0xff]
        %v1234 = vld [vmem:[#allocation6 + $0x60] sm:$0xff]
        %v1235 = vld [vmem:[#allocation6 + $0x68] sm:$0xff]
        %v1236 = vld [vmem:[#allocation6 + $0x70] sm:$0xff]
        %v1237 = vld [vmem:[#allocation6 + $0x78] sm:$0xff]
        %v1238 = vld [vmem:[#allocation6 + $0x80] sm:$0xff]
        %v1239 = vld [vmem:[#allocation6 + $0x88] sm:$0xff]
        %v1240 = vld [vmem:[#allocation6 + $0x90] sm:$0xff]
        %v1241 = vld [vmem:[#allocation6 + $0x98] sm:$0xff]
        %v1242 = vld [vmem:[#allocation6 + $0xa0] sm:$0xff]
        %v1243 = vld [vmem:[#allocation6 + $0xa8] sm:$0xff]
        %v1244 = vld [vmem:[#allocation6 + $0xb0] sm:$0xff]
        %v1245 = vld [vmem:[#allocation6 + $0xb8] sm:$0xff]
        %v1246 = vld [vmem:[#allocation6 + $0xc0] sm:$0xff]
        %v1247 = vld [vmem:[#allocation6 + $0xc8] sm:$0xff]
        %v1248 = vld [vmem:[#allocation6 + $0xd0] sm:$0xff]
        %v1249 = vld [vmem:[#allocation6 + $0xd8] sm:$0xff]
        %v1250 = vld [vmem:[#allocation6 + $0xe0] sm:$0xff]
        %v1251 = vld [vmem:[#allocation6 + $0xe8] sm:$0xff]
        %v1252 = vld [vmem:[#allocation6 + $0xf0] sm:$0xff]
        %v1253 = vld [vmem:[#allocation6 + $0xf8] sm:$0xff]
        %v1254 = vld [vmem:[#allocation6 + $0x100] sm:$0xff]
        %v1255 = vld [vmem:[#allocation6 + $0x108] sm:$0xff]
        %v1256 = vld [vmem:[#allocation6 + $0x110] sm:$0xff]
        %v1257 = vld [vmem:[#allocation6 + $0x118] sm:$0xff]
        %v1258 = vld [vmem:[#allocation6 + $0x120] sm:$0xff]
        %v1259 = vld [vmem:[#allocation6 + $0x128] sm:$0xff]
        %v1260 = vld [vmem:[#allocation6 + $0x130] sm:$0xff]
        %v1261 = vld [vmem:[#allocation6 + $0x138] sm:$0xff]
        %v1262 = vld [vmem:[#allocation6 + $0x140] sm:$0xff]
        %v1263 = vld [vmem:[#allocation6 + $0x148] sm:$0xff]
        %v1264 = vld [vmem:[#allocation6 + $0x150] sm:$0xff]
        %v1265 = vld [vmem:[#allocation6 + $0x158] sm:$0xff]
        %v1266 = vld [vmem:[#allocation6 + $0x160] sm:$0xff]
        %v1267 = vld [vmem:[#allocation6 + $0x168] sm:$0xff]
        %v1268 = vld [vmem:[#allocation6 + $0x170] sm:$0xff]
        %v1269 = vld [vmem:[#allocation6 + $0x178] sm:$0xff]
        %v1270 = vld [vmem:[#allocation6 + $0x180] sm:$0xff]
        %v1271 = vld [vmem:[#allocation6 + $0x188] sm:$0xff]
        %v1272 = vld [vmem:[#allocation6 + $0x190] sm:$0xff]
        %v1273 = vld [vmem:[#allocation6 + $0x198] sm:$0xff]
        %v1274 = vld [vmem:[#allocation6 + $0x1a0] sm:$0xff]
        %v1275 = vld [vmem:[#allocation6 + $0x1a8] sm:$0xff]
        %v1276 = vld [vmem:[#allocation6 + $0x1b0] sm:$0xff]
        %v1277 = vld [vmem:[#allocation6 + $0x1b8] sm:$0xff]
        %v1278 = vld [vmem:[#allocation6 + $0x1c0] sm:$0xff]
        %v1279 = vld [vmem:[#allocation6 + $0x1c8] sm:$0xff]
        %v1280 = vld [vmem:[#allocation6 + $0x1d0] sm:$0xff]
        %v1281 = vld [vmem:[#allocation6 + $0x1d8] sm:$0xff]
        %v1282 = vld [vmem:[#allocation6 + $0x1e0] sm:$0xff]
        %v1283 = vld [vmem:[#allocation6 + $0x1e8] sm:$0xff]
        %v1284 = vld [vmem:[#allocation6 + $0x1f0] sm:$0xff]
        %v1285 = vld [vmem:[#allocation6 + $0x1f8] sm:$0xff]
        %v1286 = vld [vmem:[#allocation6 + $0x200] sm:$0xff]
        %v1287 = vld [vmem:[#allocation6 + $0x208] sm:$0xff]
        %v1288 = vld [vmem:[#allocation6 + $0x210] sm:$0xff]
        %v1289 = vld [vmem:[#allocation6 + $0x218] sm:$0xff]
        %v1290 = vld [vmem:[#allocation6 + $0x220] sm:$0xff]
        %v1291 = vld [vmem:[#allocation6 + $0x228] sm:$0xff]
        %v1292 = vld [vmem:[#allocation6 + $0x230] sm:$0xff]
        %v1293 = vld [vmem:[#allocation6 + $0x238] sm:$0xff]
        %v1294 = vld [vmem:[#allocation6 + $0x240] sm:$0xff]
        %v1295 = vld [vmem:[#allocation6 + $0x248] sm:$0xff]
        %v1296 = vld [vmem:[#allocation6 + $0x250] sm:$0xff]
        %v1297 = vld [vmem:[#allocation6 + $0x258] sm:$0xff]
        %v1298 = vld [vmem:[#allocation6 + $0x260] sm:$0xff]
        %v1299 = vld [vmem:[#allocation6 + $0x268] sm:$0xff]
        %v1300 = vld [vmem:[#allocation6 + $0x270] sm:$0xff]
        %v1301 = vld [vmem:[#allocation6 + $0x278] sm:$0xff]
        %v1302 = vld [vmem:[#allocation6 + $0x280] sm:$0xff]
        %v1303 = vld [vmem:[#allocation6 + $0x288] sm:$0xff]
        %v1304 = vld [vmem:[#allocation6 + $0x290] sm:$0xff]
        %v1305 = vld [vmem:[#allocation6 + $0x298] sm:$0xff]
        %v1306 = vld [vmem:[#allocation6 + $0x2a0] sm:$0xff]
        %v1307 = vld [vmem:[#allocation6 + $0x2a8] sm:$0xff]
        %v1308 = vld [vmem:[#allocation6 + $0x2b0] sm:$0xff]
        %v1309 = vld [vmem:[#allocation6 + $0x2b8] sm:$0xff]
        %v1310 = vld [vmem:[#allocation6 + $0x2c0] sm:$0xff]
        %v1311 = vld [vmem:[#allocation6 + $0x2c8] sm:$0xff]
        %v1312 = vld [vmem:[#allocation6 + $0x2d0] sm:$0xff]
        %v1313 = vld [vmem:[#allocation6 + $0x2d8] sm:$0xff]
        %v1314 = vld [vmem:[#allocation6 + $0x2e0] sm:$0xff]
        %v1315 = vld [vmem:[#allocation6 + $0x2e8] sm:$0xff]
        %v1316 = vld [vmem:[#allocation6 + $0x2f0] sm:$0xff]
        %v1317 = vld [vmem:[#allocation6 + $0x2f8] sm:$0xff]
        %v1318 = vld [vmem:[#allocation6 + $0x300] sm:$0xff]
        %v1319 = vld [vmem:[#allocation6 + $0x308] sm:$0xff]
        %v1320 = vld [vmem:[#allocation6 + $0x310] sm:$0xff]
        %v1321 = vld [vmem:[#allocation6 + $0x318] sm:$0xff]
        %v1322 = vld [vmem:[#allocation6 + $0x320] sm:$0xff]
        %v1323 = vld [vmem:[#allocation6 + $0x328] sm:$0xff]
        %v1324 = vld [vmem:[#allocation6 + $0x330] sm:$0xff]
        %v1325 = vld [vmem:[#allocation6 + $0x338] sm:$0xff]
        %v1326 = vld [vmem:[#allocation6 + $0x340] sm:$0xff]
        %v1327 = vld [vmem:[#allocation6 + $0x348] sm:$0xff]
        %v1328 = vld [vmem:[#allocation6 + $0x350] sm:$0xff]
        %v1329 = vld [vmem:[#allocation6 + $0x358] sm:$0xff]
        %v1330 = vld [vmem:[#allocation6 + $0x360] sm:$0xff]
        %v1331 = vld [vmem:[#allocation6 + $0x368] sm:$0xff]
        %v1332 = vld [vmem:[#allocation6 + $0x370] sm:$0xff]
        %v1333 = vld [vmem:[#allocation6 + $0x378] sm:$0xff]
        %vm1334 = vcmask 785408
        %v1335 = vsel %vm1334, 0.0, 0
        %v1338 = vsel %vm1334, %v1086, 0
        %v1341 = vsel %vm1334, %v1088, 0
        %v1344 = vsel %vm1334, %v1090, 0
        %v1347 = vsel %vm1334, %v1092, 0
        %v1350 = vsel %vm1334, %v1094, 0
        %v1353 = vsel %vm1334, %v1096, 0
        %v1356 = vsel %vm1334, %v1098, 0
        %v1359 = vsel %vm1334, %v1100, 0
        %v1362 = vsel %vm1334, %v1102, 0
        %v1365 = vsel %vm1334, %v1104, 0
        %1367 = vmatprep.subr.mxu0 %v1223
        %1368 = vmatpush1.msra.mxu0 %v1222
        %1369 = vmatprep.subr.mxu0 %v1227
        %1370 = vmatpush1.msra.mxu0 %v1226
        %1371 = vmatprep.subr.mxu0 %v1231
        %1372 = vmatpush1.msra.mxu0 %v1230
        %1373 = vmatprep.subr.mxu0 %v1235
        %1374 = vmatpush1.msra.mxu0 %v1234
        %1375 = vmatprep.subr.mxu0 %v1239
        %1376 = vmatpush1.msra.mxu0 %v1238
        %1377 = vmatprep.subr.mxu0 %v1243
        %1378 = vmatpush1.msra.mxu0 %v1242
        %1379 = vmatprep.subr.mxu0 %v1247
        %1380 = vmatpush1.msra.mxu0 %v1246
        %1381 = vmatprep.subr.mxu0 %v1251
        %1382 = vmatpush1.msra.mxu0 %v1250
        %1383 = vmatprep.subr.mxu0 %v1255
        %1384 = vmatpush1.msra.mxu0 %v1254
        %1385 = vmatprep.subr.mxu0 %v1259
        %1386 = vmatpush1.msra.mxu0 %v1258
        %1387 = vmatprep.subr.mxu0 %v1263
        %1388 = vmatpush1.msra.mxu0 %v1262
        %1389 = vmatprep.subr.mxu0 %v1267
        %1390 = vmatpush1.msra.mxu0 %v1266
        %1391 = vmatprep.subr.mxu0 %v1271
        %1392 = vmatpush1.msra.mxu0 %v1270
        %1393 = vmatprep.subr.mxu0 %v1275
        %1394 = vmatpush1.msra.mxu0 %v1274
        %1395 = vmatprep.subr.mxu0 %v1279
        %1396 = vmatpush1.msra.mxu0 %v1278
        %1397 = vmatprep.subr.mxu0 %v1283
        %1398 = vmatpush1.msra.mxu0 %v1282
        %1399 = vmatprep.subr.mxu0 %v1287
        %1400 = vmatpush1.msra.mxu0 %v1286
        %1401 = vmatprep.subr.mxu0 %v1291
        %1402 = vmatpush1.msra.mxu0 %v1290
        %1403 = vmatprep.subr.mxu0 %v1295
        %1404 = vmatpush1.msra.mxu0 %v1294
        %1405 = vmatprep.subr.mxu0 %v1299
        %1406 = vmatpush1.msra.mxu0 %v1298
        %1407 = vmatprep.subr.mxu0 %v1303
        %1408 = vmatpush1.msra.mxu0 %v1302
        %1409 = vmatprep.subr.mxu0 %v1307
        %1410 = vmatpush1.msra.mxu0 %v1306
        %1411 = vmatprep.subr.mxu0 %v1311
        %1412 = vmatpush1.msra.mxu0 %v1310
        %1413 = vmatprep.subr.mxu0 %v1315
        %1414 = vmatpush1.msra.mxu0 %v1314
        %1415 = vmatprep.subr.mxu0 %v1319
        %1416 = vmatpush1.msra.mxu0 %v1318
        %1417 = vmatprep.subr.mxu0 %v1323
        %1418 = vmatpush1.msra.mxu0 %v1322
        %1419 = vmatprep.subr.mxu0 %v1327
        %1420 = vmatpush1.msra.mxu0 %v1326
        %1421 = vmatprep.subr.mxu0 %v1331
        %1422 = vmatpush1.msra.mxu0 %v1330
        %1423 = vmatprep.subr.mxu0 0.0
        %1424 = vmatpush1.msra.mxu0 0.0
        %1425 = vmatprep.subr.mxu0 0.0
        %1426 = vmatpush1.msra.mxu0 0.0
        %1427 = vmatprep.subr.mxu0 0.0
        %1428 = vmatpush1.msra.mxu0 0.0
        %1429 = vmatprep.subr.mxu0 0.0
        %1430 = vmatpush1.msra.mxu0 0.0
        %1431 = vmatprep.mubr.f32.mxu0 %v1335
        %1432 = vmatmul.mubr.f32.gmra.mrb[0].mxu0 0.0
        %v1433 = vpop.f32.mrb[0].mxu0
        %v1434 = vadd.f32 0.0, %v1433
        %v1435 = vpop.f32.mrb[0].mxu0
        %v1436 = vadd.f32 0.0, %v1435
        %1437 = vmatprep.mubr.f32.mxu0 %v1335
        %1438 = vmatmul.mubr.f32.gmra.mrb[0].mxu0 0.0
        %v1439 = vpop.f32.mrb[0].mxu0
        %v1440 = vadd.f32 0.0, %v1439
        %v1441 = vpop.f32.mrb[0].mxu0
        %v1442 = vadd.f32 0.0, %v1441
        %1443 = vmatprep.mubr.f32.mxu0 %v1338
        %1444 = vmatmul.mubr.f32.gmra.mrb[0].mxu0 %v1085
        %v1445 = vpop.f32.mrb[0].mxu0
        %v1446 = vadd.f32 0.0, %v1445
        %v1447 = vpop.f32.mrb[0].mxu0
        %v1448 = vadd.f32 0.0, %v1447
        %1449 = vmatprep.mubr.f32.mxu0 %v1341
        %1450 = vmatmul.mubr.f32.gmra.mrb[0].mxu0 %v1087
        %v1451 = vpop.f32.mrb[0].mxu0
        %v1452 = vadd.f32 0.0, %v1451
        %v1453 = vpop.f32.mrb[0].mxu0
        %v1454 = vadd.f32 0.0, %v1453
        %1455 = vmatprep.mubr.f32.mxu0 %v1344
        %1456 = vmatmul.mubr.f32.gmra.mrb[0].mxu0 %v1089
        %v1457 = vpop.f32.mrb[0].mxu0
        %v1458 = vadd.f32 0.0, %v1457
        %v1459 = vpop.f32.mrb[0].mxu0
        %v1460 = vadd.f32 0.0, %v1459
        %1461 = vmatprep.mubr.f32.mxu0 %v1347
        %1462 = vmatmul.mubr.f32.gmra.mrb[0].mxu0 %v1091
        %v1463 = vpop.f32.mrb[0].mxu0
        %v1464 = vadd.f32 0.0, %v1463
        %v1465 = vpop.f32.mrb[0].mxu0
        %v1466 = vadd.f32 0.0, %v1465
        %1467 = vmatprep.mubr.f32.mxu0 %v1350
        %1468 = vmatmul.mubr.f32.gmra.mrb[0].mxu0 %v1093
        %v1469 = vpop.f32.mrb[0].mxu0
        %v1470 = vadd.f32 0.0, %v1469
        %v1471 = vpop.f32.mrb[0].mxu0
        %v1472 = vadd.f32 0.0, %v1471
        %1473 = vmatprep.mubr.f32.mxu0 %v1353
        %1474 = vmatmul.mubr.f32.gmra.mrb[0].mxu0 %v1095
        %v1475 = vpop.f32.mrb[0].mxu0
        %v1476 = vadd.f32 0.0, %v1475
        %v1477 = vpop.f32.mrb[0].mxu0
        %v1478 = vadd.f32 0.0, %v1477
        %1479 = vmatprep.mubr.f32.mxu0 %v1356
        %1480 = vmatmul.mubr.f32.gmra.mrb[0].mxu0 %v1097
        %v1481 = vpop.f32.mrb[0].mxu0
        %v1482 = vadd.f32 0.0, %v1481
        %v1483 = vpop.f32.mrb[0].mxu0
        %v1484 = vadd.f32 0.0, %v1483
        %1485 = vmatprep.mubr.f32.mxu0 %v1359
        %1486 = vmatmul.mubr.f32.gmra.mrb[0].mxu0 %v1099
        %v1487 = vpop.f32.mrb[0].mxu0
        %v1488 = vadd.f32 0.0, %v1487
        %v1489 = vpop.f32.mrb[0].mxu0
        %v1490 = vadd.f32 0.0, %v1489
        %1491 = vmatprep.mubr.f32.mxu0 %v1362
        %1492 = vmatmul.mubr.f32.gmra.mrb[0].mxu0 %v1101
        %v1493 = vpop.f32.mrb[0].mxu0
        %v1494 = vadd.f32 0.0, %v1493
        %v1495 = vpop.f32.mrb[0].mxu0
        %v1496 = vadd.f32 0.0, %v1495
        %1497 = vmatprep.mubr.f32.mxu0 %v1365
        %1498 = vmatmul.mubr.f32.gmra.mrb[0].mxu0 %v1103
        %v1499 = vpop.f32.mrb[0].mxu0
        %v1500 = vadd.f32 0.0, %v1499
        %v1501 = vpop.f32.mrb[0].mxu0
        %v1502 = vadd.f32 0.0, %v1501
        %1503 = vdwg.mxu0
        %1504 = vmatprep.subr.mxu0 %v1225
        %1505 = vmatpush1.msra.mxu0 %v1224
        %1506 = vmatprep.subr.mxu0 %v1229
        %1507 = vmatpush1.msra.mxu0 %v1228
        %1508 = vmatprep.subr.mxu0 %v1233
        %1509 = vmatpush1.msra.mxu0 %v1232
        %1510 = vmatprep.subr.mxu0 %v1237
        %1511 = vmatpush1.msra.mxu0 %v1236
        %1512 = vmatprep.subr.mxu0 %v1241
        %1513 = vmatpush1.msra.mxu0 %v1240
        %1514 = vmatprep.subr.mxu0 %v1245
        %1515 = vmatpush1.msra.mxu0 %v1244
        %1516 = vmatprep.subr.mxu0 %v1249
        %1517 = vmatpush1.msra.mxu0 %v1248
        %1518 = vmatprep.subr.mxu0 %v1253
        %1519 = vmatpush1.msra.mxu0 %v1252
        %1520 = vmatprep.subr.mxu0 %v1257
        %1521 = vmatpush1.msra.mxu0 %v1256
        %1522 = vmatprep.subr.mxu0 %v1261
        %1523 = vmatpush1.msra.mxu0 %v1260
        %1524 = vmatprep.subr.mxu0 %v1265
        %1525 = vmatpush1.msra.mxu0 %v1264
        %1526 = vmatprep.subr.mxu0 %v1269
        %1527 = vmatpush1.msra.mxu0 %v1268
        %1528 = vmatprep.subr.mxu0 %v1273
        %1529 = vmatpush1.msra.mxu0 %v1272
        %1530 = vmatprep.subr.mxu0 %v1277
        %1531 = vmatpush1.msra.mxu0 %v1276
        %1532 = vmatprep.subr.mxu0 %v1281
        %1533 = vmatpush1.msra.mxu0 %v1280
        %1534 = vmatprep.subr.mxu0 %v1285
        %1535 = vmatpush1.msra.mxu0 %v1284
        %1536 = vmatprep.subr.mxu0 %v1289
        %1537 = vmatpush1.msra.mxu0 %v1288
        %1538 = vmatprep.subr.mxu0 %v1293
        %1539 = vmatpush1.msra.mxu0 %v1292
        %1540 = vmatprep.subr.mxu0 %v1297
        %1541 = vmatpush1.msra.mxu0 %v1296
        %1542 = vmatprep.subr.mxu0 %v1301
        %1543 = vmatpush1.msra.mxu0 %v1300
        %1544 = vmatprep.subr.mxu0 %v1305
        %1545 = vmatpush1.msra.mxu0 %v1304
        %1546 = vmatprep.subr.mxu0 %v1309
        %1547 = vmatpush1.msra.mxu0 %v1308
        %1548 = vmatprep.subr.mxu0 %v1313
        %1549 = vmatpush1.msra.mxu0 %v1312
        %1550 = vmatprep.subr.mxu0 %v1317
        %1551 = vmatpush1.msra.mxu0 %v1316
        %1552 = vmatprep.subr.mxu0 %v1321
        %1553 = vmatpush1.msra.mxu0 %v1320
        %1554 = vmatprep.subr.mxu0 %v1325
        %1555 = vmatpush1.msra.mxu0 %v1324
        %1556 = vmatprep.subr.mxu0 %v1329
        %1557 = vmatpush1.msra.mxu0 %v1328
        %1558 = vmatprep.subr.mxu0 %v1333
        %1559 = vmatpush1.msra.mxu0 %v1332
        %1560 = vmatprep.subr.mxu0 0.0
        %1561 = vmatpush1.msra.mxu0 0.0
        %1562 = vmatprep.subr.mxu0 0.0
        %1563 = vmatpush1.msra.mxu0 0.0
        %1564 = vmatprep.subr.mxu0 0.0
        %1565 = vmatpush1.msra.mxu0 0.0
        %1566 = vmatprep.subr.mxu0 0.0
        %1567 = vmatpush1.msra.mxu0 0.0
        %1568 = vmatprep.mubr.f32.mxu0 %v1335
        %1569 = vmatmul.mubr.f32.gmra.mrb[0].mxu0 0.0
        %v1570 = vpop.f32.mrb[0].mxu0
        %v1571 = vadd.f32 0.0, %v1570
        %v1572 = vpop.f32.mrb[0].mxu0
        %v1573 = vadd.f32 0.0, %v1572
        %1574 = vmatprep.mubr.f32.mxu0 %v1335
        %1575 = vmatmul.mubr.f32.gmra.mrb[0].mxu0 0.0
        %v1576 = vpop.f32.mrb[0].mxu0
        %v1577 = vadd.f32 0.0, %v1576
        %v1578 = vpop.f32.mrb[0].mxu0
        %v1579 = vadd.f32 0.0, %v1578
        %1580 = vmatprep.mubr.f32.mxu0 %v1338
        %1581 = vmatmul.mubr.f32.gmra.mrb[0].mxu0 %v1085
        %v1582 = vpop.f32.mrb[0].mxu0
        %v1583 = vadd.f32 0.0, %v1582
        %v1584 = vpop.f32.mrb[0].mxu0
        %v1585 = vadd.f32 0.0, %v1584
        %1586 = vmatprep.mubr.f32.mxu0 %v1341
        %1587 = vmatmul.mubr.f32.gmra.mrb[0].mxu0 %v1087
        %v1588 = vpop.f32.mrb[0].mxu0
        %v1589 = vadd.f32 0.0, %v1588
        %v1590 = vpop.f32.mrb[0].mxu0
        %v1591 = vadd.f32 0.0, %v1590
        %1592 = vmatprep.mubr.f32.mxu0 %v1344
        %1593 = vmatmul.mubr.f32.gmra.mrb[0].mxu0 %v1089
        %v1594 = vpop.f32.mrb[0].mxu0
        %v1595 = vadd.f32 0.0, %v1594
        %v1596 = vpop.f32.mrb[0].mxu0
        %v1597 = vadd.f32 0.0, %v1596
        %1598 = vmatprep.mubr.f32.mxu0 %v1347
        %1599 = vmatmul.mubr.f32.gmra.mrb[0].mxu0 %v1091
        %v1600 = vpop.f32.mrb[0].mxu0
        %v1601 = vadd.f32 0.0, %v1600
        %v1602 = vpop.f32.mrb[0].mxu0
        %v1603 = vadd.f32 0.0, %v1602
        %1604 = vmatprep.mubr.f32.mxu0 %v1350
        %1605 = vmatmul.mubr.f32.gmra.mrb[0].mxu0 %v1093
        %v1606 = vpop.f32.mrb[0].mxu0
        %v1607 = vadd.f32 0.0, %v1606
        %v1608 = vpop.f32.mrb[0].mxu0
        %v1609 = vadd.f32 0.0, %v1608
        %1610 = vmatprep.mubr.f32.mxu0 %v1353
        %1611 = vmatmul.mubr.f32.gmra.mrb[0].mxu0 %v1095
        %v1612 = vpop.f32.mrb[0].mxu0
        %v1613 = vadd.f32 0.0, %v1612
        %v1614 = vpop.f32.mrb[0].mxu0
        %v1615 = vadd.f32 0.0, %v1614
        %1616 = vmatprep.mubr.f32.mxu0 %v1356
        %1617 = vmatmul.mubr.f32.gmra.mrb[0].mxu0 %v1097
        %v1618 = vpop.f32.mrb[0].mxu0
        %v1619 = vadd.f32 0.0, %v1618
        %v1620 = vpop.f32.mrb[0].mxu0
        %v1621 = vadd.f32 0.0, %v1620
        %1622 = vmatprep.mubr.f32.mxu0 %v1359
        %1623 = vmatmul.mubr.f32.gmra.mrb[0].mxu0 %v1099
        %v1624 = vpop.f32.mrb[0].mxu0
        %v1625 = vadd.f32 0.0, %v1624
        %v1626 = vpop.f32.mrb[0].mxu0
        %v1627 = vadd.f32 0.0, %v1626
        %1628 = vmatprep.mubr.f32.mxu0 %v1362
        %1629 = vmatmul.mubr.f32.gmra.mrb[0].mxu0 %v1101
        %v1630 = vpop.f32.mrb[0].mxu0
        %v1631 = vadd.f32 0.0, %v1630
        %v1632 = vpop.f32.mrb[0].mxu0
        %v1633 = vadd.f32 0.0, %v1632
        %1634 = vmatprep.mubr.f32.mxu0 %v1365
        %1635 = vmatmul.mubr.f32.gmra.mrb[0].mxu0 %v1103
        %v1636 = vpop.f32.mrb[0].mxu0
        %v1637 = vadd.f32 0.0, %v1636
        %v1638 = vpop.f32.mrb[0].mxu0
        %v1639 = vadd.f32 0.0, %v1638
        %1640 = vdwg.mxu0
        %v1642 = vsel %vm1334, %v1106, 0
        %v1645 = vsel %vm1334, %v1108, 0
        %1647 = vmatprep.subr.mxu0 %v1111
        %1648 = vmatpush1.msra.mxu0 %v1110
        %1649 = vmatprep.subr.mxu0 %v1115
        %1650 = vmatpush1.msra.mxu0 %v1114
        %1651 = vmatprep.subr.mxu0 %v1119
        %1652 = vmatpush1.msra.mxu0 %v1118
        %1653 = vmatprep.subr.mxu0 %v1123
        %1654 = vmatpush1.msra.mxu0 %v1122
        %1655 = vmatprep.subr.mxu0 %v1127
        %1656 = vmatpush1.msra.mxu0 %v1126
        %1657 = vmatprep.subr.mxu0 %v1131
        %1658 = vmatpush1.msra.mxu0 %v1130
        %1659 = vmatprep.subr.mxu0 %v1135
        %1660 = vmatpush1.msra.mxu0 %v1134
        %1661 = vmatprep.subr.mxu0 %v1139
        %1662 = vmatpush1.msra.mxu0 %v1138
        %1663 = vmatprep.subr.mxu0 %v1143
        %1664 = vmatpush1.msra.mxu0 %v1142
        %1665 = vmatprep.subr.mxu0 %v1147
        %1666 = vmatpush1.msra.mxu0 %v1146
        %1667 = vmatprep.subr.mxu0 %v1151
        %1668 = vmatpush1.msra.mxu0 %v1150
        %1669 = vmatprep.subr.mxu0 %v1155
        %1670 = vmatpush1.msra.mxu0 %v1154
        %1671 = vmatprep.subr.mxu0 %v1159
        %1672 = vmatpush1.msra.mxu0 %v1158
        %1673 = vmatprep.subr.mxu0 %v1163
        %1674 = vmatpush1.msra.mxu0 %v1162
        %1675 = vmatprep.subr.mxu0 %v1167
        %1676 = vmatpush1.msra.mxu0 %v1166
        %1677 = vmatprep.subr.mxu0 %v1171
        %1678 = vmatpush1.msra.mxu0 %v1170
        %1679 = vmatprep.subr.mxu0 %v1175
        %1680 = vmatpush1.msra.mxu0 %v1174
        %1681 = vmatprep.subr.mxu0 %v1179
        %1682 = vmatpush1.msra.mxu0 %v1178
        %1683 = vmatprep.subr.mxu0 %v1183
        %1684 = vmatpush1.msra.mxu0 %v1182
        %1685 = vmatprep.subr.mxu0 %v1187
        %1686 = vmatpush1.msra.mxu0 %v1186
        %1687 = vmatprep.subr.mxu0 %v1191
        %1688 = vmatpush1.msra.mxu0 %v1190
        %1689 = vmatprep.subr.mxu0 %v1195
        %1690 = vmatpush1.msra.mxu0 %v1194
        %1691 = vmatprep.subr.mxu0 %v1199
        %1692 = vmatpush1.msra.mxu0 %v1198
        %1693 = vmatprep.subr.mxu0 %v1203
        %1694 = vmatpush1.msra.mxu0 %v1202
        %1695 = vmatprep.subr.mxu0 %v1207
        %1696 = vmatpush1.msra.mxu0 %v1206
        %1697 = vmatprep.subr.mxu0 %v1211
        %1698 = vmatpush1.msra.mxu0 %v1210
        %1699 = vmatprep.subr.mxu0 %v1215
        %1700 = vmatpush1.msra.mxu0 %v1214
        %1701 = vmatprep.subr.mxu0 %v1219
        %1702 = vmatpush1.msra.mxu0 %v1218
        %1703 = vmatprep.subr.mxu0 0.0
        %1704 = vmatpush1.msra.mxu0 0.0
        %1705 = vmatprep.subr.mxu0 0.0
        %1706 = vmatpush1.msra.mxu0 0.0
        %1707 = vmatprep.subr.mxu0 0.0
        %1708 = vmatpush1.msra.mxu0 0.0
        %1709 = vmatprep.subr.mxu0 0.0
        %1710 = vmatpush1.msra.mxu0 0.0
        %1711 = vmatprep.mubr.f32.mxu0 %v1338
        %1712 = vmatmul.mubr.f32.gmra.mrb[0].mxu0 %v1085
        %v1713 = vpop.f32.mrb[0].mxu0
        %v1714 = vadd.f32 %v1434, %v1713
        %v1715 = vpop.f32.mrb[0].mxu0
        %v1716 = vadd.f32 %v1436, %v1715
        %1717 = vmatprep.mubr.f32.mxu0 %v1341
        %1718 = vmatmul.mubr.f32.gmra.mrb[0].mxu0 %v1087
        %v1719 = vpop.f32.mrb[0].mxu0
        %v1720 = vadd.f32 %v1440, %v1719
        %v1721 = vpop.f32.mrb[0].mxu0
        %v1722 = vadd.f32 %v1442, %v1721
        %1723 = vmatprep.mubr.f32.mxu0 %v1344
        %1724 = vmatmul.mubr.f32.gmra.mrb[0].mxu0 %v1089
        %v1725 = vpop.f32.mrb[0].mxu0
        %v1726 = vadd.f32 %v1446, %v1725
        %v1727 = vpop.f32.mrb[0].mxu0
        %v1728 = vadd.f32 %v1448, %v1727
        %1729 = vmatprep.mubr.f32.mxu0 %v1347
        %1730 = vmatmul.mubr.f32.gmra.mrb[0].mxu0 %v1091
        %v1731 = vpop.f32.mrb[0].mxu0
        %v1732 = vadd.f32 %v1452, %v1731
        %v1733 = vpop.f32.mrb[0].mxu0
        %v1734 = vadd.f32 %v1454, %v1733
        %1735 = vmatprep.mubr.f32.mxu0 %v1350
        %1736 = vmatmul.mubr.f32.gmra.mrb[0].mxu0 %v1093
        %v1737 = vpop.f32.mrb[0].mxu0
        %v1738 = vadd.f32 %v1458, %v1737
        %v1739 = vpop.f32.mrb[0].mxu0
        %v1740 = vadd.f32 %v1460, %v1739
        %1741 = vmatprep.mubr.f32.mxu0 %v1353
        %1742 = vmatmul.mubr.f32.gmra.mrb[0].mxu0 %v1095
        %v1743 = vpop.f32.mrb[0].mxu0
        %v1744 = vadd.f32 %v1464, %v1743
        %v1745 = vpop.f32.mrb[0].mxu0
        %v1746 = vadd.f32 %v1466, %v1745
        %1747 = vmatprep.mubr.f32.mxu0 %v1356
        %1748 = vmatmul.mubr.f32.gmra.mrb[0].mxu0 %v1097
        %v1749 = vpop.f32.mrb[0].mxu0
        %v1750 = vadd.f32 %v1470, %v1749
        %v1751 = vpop.f32.mrb[0].mxu0
        %v1752 = vadd.f32 %v1472, %v1751
        %1753 = vmatprep.mubr.f32.mxu0 %v1359
        %1754 = vmatmul.mubr.f32.gmra.mrb[0].mxu0 %v1099
        %v1755 = vpop.f32.mrb[0].mxu0
        %v1756 = vadd.f32 %v1476, %v1755
        %v1757 = vpop.f32.mrb[0].mxu0
        %v1758 = vadd.f32 %v1478, %v1757
        %1759 = vmatprep.mubr.f32.mxu0 %v1362
        %1760 = vmatmul.mubr.f32.gmra.mrb[0].mxu0 %v1101
        %v1761 = vpop.f32.mrb[0].mxu0
        %v1762 = vadd.f32 %v1482, %v1761
        %v1763 = vpop.f32.mrb[0].mxu0
        %v1764 = vadd.f32 %v1484, %v1763
        %1765 = vmatprep.mubr.f32.mxu0 %v1365
        %1766 = vmatmul.mubr.f32.gmra.mrb[0].mxu0 %v1103
        %v1767 = vpop.f32.mrb[0].mxu0
        %v1768 = vadd.f32 %v1488, %v1767
        %v1769 = vpop.f32.mrb[0].mxu0
        %v1770 = vadd.f32 %v1490, %v1769
        %1771 = vmatprep.mubr.f32.mxu0 %v1642
        %1772 = vmatmul.mubr.f32.gmra.mrb[0].mxu0 %v1105
        %v1773 = vpop.f32.mrb[0].mxu0
        %v1774 = vadd.f32 %v1494, %v1773
        %v1775 = vpop.f32.mrb[0].mxu0
        %v1776 = vadd.f32 %v1496, %v1775
        %1777 = vmatprep.mubr.f32.mxu0 %v1645
        %1778 = vmatmul.mubr.f32.gmra.mrb[0].mxu0 %v1107
        %v1779 = vpop.f32.mrb[0].mxu0
        %v1780 = vadd.f32 %v1500, %v1779
        %v1781 = vpop.f32.mrb[0].mxu0
        %v1782 = vadd.f32 %v1502, %v1781
        %1783 = vdwg.mxu0
        %1784 = vmatprep.subr.mxu0 %v1113
        %1785 = vmatpush1.msra.mxu0 %v1112
        %1786 = vmatprep.subr.mxu0 %v1117
        %1787 = vmatpush1.msra.mxu0 %v1116
        %1788 = vmatprep.subr.mxu0 %v1121
        %1789 = vmatpush1.msra.mxu0 %v1120
        %1790 = vmatprep.subr.mxu0 %v1125
        %1791 = vmatpush1.msra.mxu0 %v1124
        %1792 = vmatprep.subr.mxu0 %v1129
        %1793 = vmatpush1.msra.mxu0 %v1128
        %1794 = vmatprep.subr.mxu0 %v1133
        %1795 = vmatpush1.msra.mxu0 %v1132
        %1796 = vmatprep.subr.mxu0 %v1137
        %1797 = vmatpush1.msra.mxu0 %v1136
        %1798 = vmatprep.subr.mxu0 %v1141
        %1799 = vmatpush1.msra.mxu0 %v1140
        %1800 = vmatprep.subr.mxu0 %v1145
        %1801 = vmatpush1.msra.mxu0 %v1144
        %1802 = vmatprep.subr.mxu0 %v1149
        %1803 = vmatpush1.msra.mxu0 %v1148
        %1804 = vmatprep.subr.mxu0 %v1153
        %1805 = vmatpush1.msra.mxu0 %v1152
        %1806 = vmatprep.subr.mxu0 %v1157
        %1807 = vmatpush1.msra.mxu0 %v1156
        %1808 = vmatprep.subr.mxu0 %v1161
        %1809 = vmatpush1.msra.mxu0 %v1160
        %1810 = vmatprep.subr.mxu0 %v1165
        %1811 = vmatpush1.msra.mxu0 %v1164
        %1812 = vmatprep.subr.mxu0 %v1169
        %1813 = vmatpush1.msra.mxu0 %v1168
        %1814 = vmatprep.subr.mxu0 %v1173
        %1815 = vmatpush1.msra.mxu0 %v1172
        %1816 = vmatprep.subr.mxu0 %v1177
        %1817 = vmatpush1.msra.mxu0 %v1176
        %1818 = vmatprep.subr.mxu0 %v1181
        %1819 = vmatpush1.msra.mxu0 %v1180
        %1820 = vmatprep.subr.mxu0 %v1185
        %1821 = vmatpush1.msra.mxu0 %v1184
        %1822 = vmatprep.subr.mxu0 %v1189
        %1823 = vmatpush1.msra.mxu0 %v1188
        %1824 = vmatprep.subr.mxu0 %v1193
        %1825 = vmatpush1.msra.mxu0 %v1192
        %1826 = vmatprep.subr.mxu0 %v1197
        %1827 = vmatpush1.msra.mxu0 %v1196
        %1828 = vmatprep.subr.mxu0 %v1201
        %1829 = vmatpush1.msra.mxu0 %v1200
        %1830 = vmatprep.subr.mxu0 %v1205
        %1831 = vmatpush1.msra.mxu0 %v1204
        %1832 = vmatprep.subr.mxu0 %v1209
        %1833 = vmatpush1.msra.mxu0 %v1208
        %1834 = vmatprep.subr.mxu0 %v1213
        %1835 = vmatpush1.msra.mxu0 %v1212
        %1836 = vmatprep.subr.mxu0 %v1217
        %1837 = vmatpush1.msra.mxu0 %v1216
        %1838 = vmatprep.subr.mxu0 %v1221
        %1839 = vmatpush1.msra.mxu0 %v1220
        %1840 = vmatprep.subr.mxu0 0.0
        %1841 = vmatpush1.msra.mxu0 0.0
        %1842 = vmatprep.subr.mxu0 0.0
        %1843 = vmatpush1.msra.mxu0 0.0
        %1844 = vmatprep.subr.mxu0 0.0
        %1845 = vmatpush1.msra.mxu0 0.0
        %1846 = vmatprep.subr.mxu0 0.0
        %1847 = vmatpush1.msra.mxu0 0.0
        %1848 = vmatprep.mubr.f32.mxu0 %v1338
        %1849 = vmatmul.mubr.f32.gmra.mrb[0].mxu0 %v1085
        %v1850 = vpop.f32.mrb[0].mxu0
        %v1851 = vadd.f32 %v1571, %v1850
        %v1852 = vpop.f32.mrb[0].mxu0
        %v1853 = vadd.f32 %v1573, %v1852
        %1854 = vmatprep.mubr.f32.mxu0 %v1341
        %1855 = vmatmul.mubr.f32.gmra.mrb[0].mxu0 %v1087
        %v1856 = vpop.f32.mrb[0].mxu0
        %v1857 = vadd.f32 %v1577, %v1856
        %v1858 = vpop.f32.mrb[0].mxu0
        %v1859 = vadd.f32 %v1579, %v1858
        %1860 = vmatprep.mubr.f32.mxu0 %v1344
        %1861 = vmatmul.mubr.f32.gmra.mrb[0].mxu0 %v1089
        %v1862 = vpop.f32.mrb[0].mxu0
        %v1863 = vadd.f32 %v1583, %v1862
        %v1864 = vpop.f32.mrb[0].mxu0
        %v1865 = vadd.f32 %v1585, %v1864
        %1866 = vmatprep.mubr.f32.mxu0 %v1347
        %1867 = vmatmul.mubr.f32.gmra.mrb[0].mxu0 %v1091
        %v1868 = vpop.f32.mrb[0].mxu0
        %v1869 = vadd.f32 %v1589, %v1868
        %v1870 = vpop.f32.mrb[0].mxu0
        %v1871 = vadd.f32 %v1591, %v1870
        %1872 = vmatprep.mubr.f32.mxu0 %v1350
        %1873 = vmatmul.mubr.f32.gmra.mrb[0].mxu0 %v1093
        %v1874 = vpop.f32.mrb[0].mxu0
        %v1875 = vadd.f32 %v1595, %v1874
        %v1876 = vpop.f32.mrb[0].mxu0
        %v1877 = vadd.f32 %v1597, %v1876
        %1878 = vmatprep.mubr.f32.mxu0 %v1353
        %1879 = vmatmul.mubr.f32.gmra.mrb[0].mxu0 %v1095
        %v1880 = vpop.f32.mrb[0].mxu0
        %v1881 = vadd.f32 %v1601, %v1880
        %v1882 = vpop.f32.mrb[0].mxu0
        %v1883 = vadd.f32 %v1603, %v1882
        %1884 = vmatprep.mubr.f32.mxu0 %v1356
        %1885 = vmatmul.mubr.f32.gmra.mrb[0].mxu0 %v1097
        %v1886 = vpop.f32.mrb[0].mxu0
        %v1887 = vadd.f32 %v1607, %v1886
        %v1888 = vpop.f32.mrb[0].mxu0
        %v1889 = vadd.f32 %v1609, %v1888
        %1890 = vmatprep.mubr.f32.mxu0 %v1359
        %1891 = vmatmul.mubr.f32.gmra.mrb[0].mxu0 %v1099
        %v1892 = vpop.f32.mrb[0].mxu0
        %v1893 = vadd.f32 %v1613, %v1892
        %v1894 = vpop.f32.mrb[0].mxu0
        %v1895 = vadd.f32 %v1615, %v1894
        %1896 = vmatprep.mubr.f32.mxu0 %v1362
        %1897 = vmatmul.mubr.f32.gmra.mrb[0].mxu0 %v1101
        %v1898 = vpop.f32.mrb[0].mxu0
        %v1899 = vadd.f32 %v1619, %v1898
        %v1900 = vpop.f32.mrb[0].mxu0
        %v1901 = vadd.f32 %v1621, %v1900
        %1902 = vmatprep.mubr.f32.mxu0 %v1365
        %1903 = vmatmul.mubr.f32.gmra.mrb[0].mxu0 %v1103
        %v1904 = vpop.f32.mrb[0].mxu0
        %v1905 = vadd.f32 %v1625, %v1904
        %v1906 = vpop.f32.mrb[0].mxu0
        %v1907 = vadd.f32 %v1627, %v1906
        %1908 = vmatprep.mubr.f32.mxu0 %v1642
        %1909 = vmatmul.mubr.f32.gmra.mrb[0].mxu0 %v1105
        %v1910 = vpop.f32.mrb[0].mxu0
        %v1911 = vadd.f32 %v1631, %v1910
        %v1912 = vpop.f32.mrb[0].mxu0
        %v1913 = vadd.f32 %v1633, %v1912
        %1914 = vmatprep.mubr.f32.mxu0 %v1645
        %1915 = vmatmul.mubr.f32.gmra.mrb[0].mxu0 %v1107
        %v1916 = vpop.f32.mrb[0].mxu0
        %v1917 = vadd.f32 %v1637, %v1916
        %v1918 = vpop.f32.mrb[0].mxu0
        %v1919 = vadd.f32 %v1639, %v1918
        %1920 = vdwg.mxu0
        %s1921 = scalar_lea.vmem [#allocation6], 1792
        %v1922 = vld [vmem:[%s1921] sm:$0xff]
        %v1923 = vld [vmem:[%s1921 + $0x8] sm:$0xff]
        %v1924 = vld [vmem:[%s1921 + $0x10] sm:$0xff]
        %v1925 = vld [vmem:[%s1921 + $0x18] sm:$0xff]
        %v1926 = vld [vmem:[%s1921 + $0x20] sm:$0xff]
        %v1927 = vld [vmem:[%s1921 + $0x28] sm:$0xff]
        %v1928 = vld [vmem:[%s1921 + $0x30] sm:$0xff]
        %v1929 = vld [vmem:[%s1921 + $0x38] sm:$0xff]
        %v1930 = vld [vmem:[%s1921 + $0x40] sm:$0xff]
        %v1931 = vld [vmem:[%s1921 + $0x48] sm:$0xff]
        %v1932 = vld [vmem:[%s1921 + $0x50] sm:$0xff]
        %v1933 = vld [vmem:[%s1921 + $0x58] sm:$0xff]
        %v1934 = vld [vmem:[%s1921 + $0x60] sm:$0xff]
        %v1935 = vld [vmem:[%s1921 + $0x68] sm:$0xff]
        %v1936 = vld [vmem:[%s1921 + $0x70] sm:$0xff]
        %v1937 = vld [vmem:[%s1921 + $0x78] sm:$0xff]
        %v1938 = vld [vmem:[%s1921 + $0x80] sm:$0xff]
        %v1939 = vld [vmem:[%s1921 + $0x88] sm:$0xff]
        %v1940 = vld [vmem:[%s1921 + $0x90] sm:$0xff]
        %v1941 = vld [vmem:[%s1921 + $0x98] sm:$0xff]
        %v1942 = vld [vmem:[%s1921 + $0xa0] sm:$0xff]
        %v1943 = vld [vmem:[%s1921 + $0xa8] sm:$0xff]
        %v1944 = vld [vmem:[%s1921 + $0xb0] sm:$0xff]
        %v1945 = vld [vmem:[%s1921 + $0xb8] sm:$0xff]
        %v1946 = vld [vmem:[%s1921 + $0xc0] sm:$0xff]
        %v1947 = vld [vmem:[%s1921 + $0xc8] sm:$0xff]
        %v1948 = vld [vmem:[%s1921 + $0xd0] sm:$0xff]
        %v1949 = vld [vmem:[%s1921 + $0xd8] sm:$0xff]
        %v1950 = vld [vmem:[%s1921 + $0xe0] sm:$0xff]
        %v1951 = vld [vmem:[%s1921 + $0xe8] sm:$0xff]
        %v1952 = vld [vmem:[%s1921 + $0xf0] sm:$0xff]
        %v1953 = vld [vmem:[%s1921 + $0xf8] sm:$0xff]
        %v1954 = vld [vmem:[%s1921 + $0x100] sm:$0xff]
        %v1955 = vld [vmem:[%s1921 + $0x108] sm:$0xff]
        %v1956 = vld [vmem:[%s1921 + $0x110] sm:$0xff]
        %v1957 = vld [vmem:[%s1921 + $0x118] sm:$0xff]
        %v1958 = vld [vmem:[%s1921 + $0x120] sm:$0xff]
        %v1959 = vld [vmem:[%s1921 + $0x128] sm:$0xff]
        %v1960 = vld [vmem:[%s1921 + $0x130] sm:$0xff]
        %v1961 = vld [vmem:[%s1921 + $0x138] sm:$0xff]
        %v1962 = vld [vmem:[%s1921 + $0x140] sm:$0xff]
        %v1963 = vld [vmem:[%s1921 + $0x148] sm:$0xff]
        %v1964 = vld [vmem:[%s1921 + $0x150] sm:$0xff]
        %v1965 = vld [vmem:[%s1921 + $0x158] sm:$0xff]
        %v1966 = vld [vmem:[%s1921 + $0x160] sm:$0xff]
        %v1967 = vld [vmem:[%s1921 + $0x168] sm:$0xff]
        %v1968 = vld [vmem:[%s1921 + $0x170] sm:$0xff]
        %v1969 = vld [vmem:[%s1921 + $0x178] sm:$0xff]
        %v1970 = vld [vmem:[%s1921 + $0x180] sm:$0xff]
        %v1971 = vld [vmem:[%s1921 + $0x188] sm:$0xff]
        %v1972 = vld [vmem:[%s1921 + $0x190] sm:$0xff]
        %v1973 = vld [vmem:[%s1921 + $0x198] sm:$0xff]
        %v1974 = vld [vmem:[%s1921 + $0x1a0] sm:$0xff]
        %v1975 = vld [vmem:[%s1921 + $0x1a8] sm:$0xff]
        %v1976 = vld [vmem:[%s1921 + $0x1b0] sm:$0xff]
        %v1977 = vld [vmem:[%s1921 + $0x1b8] sm:$0xff]
        %v1978 = vld [vmem:[%s1921 + $0x1c0] sm:$0xff]
        %v1979 = vld [vmem:[%s1921 + $0x1c8] sm:$0xff]
        %v1980 = vld [vmem:[%s1921 + $0x1d0] sm:$0xff]
        %v1981 = vld [vmem:[%s1921 + $0x1d8] sm:$0xff]
        %v1982 = vld [vmem:[%s1921 + $0x1e0] sm:$0xff]
        %v1983 = vld [vmem:[%s1921 + $0x1e8] sm:$0xff]
        %v1984 = vld [vmem:[%s1921 + $0x1f0] sm:$0xff]
        %v1985 = vld [vmem:[%s1921 + $0x1f8] sm:$0xff]
        %v1986 = vld [vmem:[%s1921 + $0x200] sm:$0xff]
        %v1987 = vld [vmem:[%s1921 + $0x208] sm:$0xff]
        %v1988 = vld [vmem:[%s1921 + $0x210] sm:$0xff]
        %v1989 = vld [vmem:[%s1921 + $0x218] sm:$0xff]
        %v1990 = vld [vmem:[%s1921 + $0x220] sm:$0xff]
        %v1991 = vld [vmem:[%s1921 + $0x228] sm:$0xff]
        %v1992 = vld [vmem:[%s1921 + $0x230] sm:$0xff]
        %v1993 = vld [vmem:[%s1921 + $0x238] sm:$0xff]
        %v1994 = vld [vmem:[%s1921 + $0x240] sm:$0xff]
        %v1995 = vld [vmem:[%s1921 + $0x248] sm:$0xff]
        %v1996 = vld [vmem:[%s1921 + $0x250] sm:$0xff]
        %v1997 = vld [vmem:[%s1921 + $0x258] sm:$0xff]
        %v1998 = vld [vmem:[%s1921 + $0x260] sm:$0xff]
        %v1999 = vld [vmem:[%s1921 + $0x268] sm:$0xff]
        %v2000 = vld [vmem:[%s1921 + $0x270] sm:$0xff]
        %v2001 = vld [vmem:[%s1921 + $0x278] sm:$0xff]
        %v2002 = vld [vmem:[%s1921 + $0x280] sm:$0xff]
        %v2003 = vld [vmem:[%s1921 + $0x288] sm:$0xff]
        %v2004 = vld [vmem:[%s1921 + $0x290] sm:$0xff]
        %v2005 = vld [vmem:[%s1921 + $0x298] sm:$0xff]
        %v2006 = vld [vmem:[%s1921 + $0x2a0] sm:$0xff]
        %v2007 = vld [vmem:[%s1921 + $0x2a8] sm:$0xff]
        %v2008 = vld [vmem:[%s1921 + $0x2b0] sm:$0xff]
        %v2009 = vld [vmem:[%s1921 + $0x2b8] sm:$0xff]
        %v2010 = vld [vmem:[%s1921 + $0x2c0] sm:$0xff]
        %v2011 = vld [vmem:[%s1921 + $0x2c8] sm:$0xff]
        %v2012 = vld [vmem:[%s1921 + $0x2d0] sm:$0xff]
        %v2013 = vld [vmem:[%s1921 + $0x2d8] sm:$0xff]
        %v2014 = vld [vmem:[%s1921 + $0x2e0] sm:$0xff]
        %v2015 = vld [vmem:[%s1921 + $0x2e8] sm:$0xff]
        %v2016 = vld [vmem:[%s1921 + $0x2f0] sm:$0xff]
        %v2017 = vld [vmem:[%s1921 + $0x2f8] sm:$0xff]
        %v2018 = vld [vmem:[%s1921 + $0x300] sm:$0xff]
        %v2019 = vld [vmem:[%s1921 + $0x308] sm:$0xff]
        %v2020 = vld [vmem:[%s1921 + $0x310] sm:$0xff]
        %v2021 = vld [vmem:[%s1921 + $0x318] sm:$0xff]
        %v2022 = vld [vmem:[%s1921 + $0x320] sm:$0xff]
        %v2023 = vld [vmem:[%s1921 + $0x328] sm:$0xff]
        %v2024 = vld [vmem:[%s1921 + $0x330] sm:$0xff]
        %v2025 = vld [vmem:[%s1921 + $0x338] sm:$0xff]
        %v2026 = vld [vmem:[%s1921 + $0x340] sm:$0xff]
        %v2027 = vld [vmem:[%s1921 + $0x348] sm:$0xff]
        %v2028 = vld [vmem:[%s1921 + $0x350] sm:$0xff]
        %v2029 = vld [vmem:[%s1921 + $0x358] sm:$0xff]
        %v2030 = vld [vmem:[%s1921 + $0x360] sm:$0xff]
        %v2031 = vld [vmem:[%s1921 + $0x368] sm:$0xff]
        %v2032 = vld [vmem:[%s1921 + $0x370] sm:$0xff]
        %v2033 = vld [vmem:[%s1921 + $0x378] sm:$0xff]
        %2034 = vmatprep.subr.mxu0 %v1923
        %2035 = vmatpush1.msra.mxu0 %v1922
        %2036 = vmatprep.subr.mxu0 %v1927
        %2037 = vmatpush1.msra.mxu0 %v1926
        %2038 = vmatprep.subr.mxu0 %v1931
        %2039 = vmatpush1.msra.mxu0 %v1930
        %2040 = vmatprep.subr.mxu0 %v1935
        %2041 = vmatpush1.msra.mxu0 %v1934
        %2042 = vmatprep.subr.mxu0 %v1939
        %2043 = vmatpush1.msra.mxu0 %v1938
        %2044 = vmatprep.subr.mxu0 %v1943
        %2045 = vmatpush1.msra.mxu0 %v1942
        %2046 = vmatprep.subr.mxu0 %v1947
        %2047 = vmatpush1.msra.mxu0 %v1946
        %2048 = vmatprep.subr.mxu0 %v1951
        %2049 = vmatpush1.msra.mxu0 %v1950
        %2050 = vmatprep.subr.mxu0 %v1955
        %2051 = vmatpush1.msra.mxu0 %v1954
        %2052 = vmatprep.subr.mxu0 %v1959
        %2053 = vmatpush1.msra.mxu0 %v1958
        %2054 = vmatprep.subr.mxu0 %v1963
        %2055 = vmatpush1.msra.mxu0 %v1962
        %2056 = vmatprep.subr.mxu0 %v1967
        %2057 = vmatpush1.msra.mxu0 %v1966
        %2058 = vmatprep.subr.mxu0 %v1971
        %2059 = vmatpush1.msra.mxu0 %v1970
        %2060 = vmatprep.subr.mxu0 %v1975
        %2061 = vmatpush1.msra.mxu0 %v1974
        %2062 = vmatprep.subr.mxu0 %v1979
        %2063 = vmatpush1.msra.mxu0 %v1978
        %2064 = vmatprep.subr.mxu0 %v1983
        %2065 = vmatpush1.msra.mxu0 %v1982
        %2066 = vmatprep.subr.mxu0 %v1987
        %2067 = vmatpush1.msra.mxu0 %v1986
        %2068 = vmatprep.subr.mxu0 %v1991
        %2069 = vmatpush1.msra.mxu0 %v1990
        %2070 = vmatprep.subr.mxu0 %v1995
        %2071 = vmatpush1.msra.mxu0 %v1994
        %2072 = vmatprep.subr.mxu0 %v1999
        %2073 = vmatpush1.msra.mxu0 %v1998
        %2074 = vmatprep.subr.mxu0 %v2003
        %2075 = vmatpush1.msra.mxu0 %v2002
        %2076 = vmatprep.subr.mxu0 %v2007
        %2077 = vmatpush1.msra.mxu0 %v2006
        %2078 = vmatprep.subr.mxu0 %v2011
        %2079 = vmatpush1.msra.mxu0 %v2010
        %2080 = vmatprep.subr.mxu0 %v2015
        %2081 = vmatpush1.msra.mxu0 %v2014
        %2082 = vmatprep.subr.mxu0 %v2019
        %2083 = vmatpush1.msra.mxu0 %v2018
        %2084 = vmatprep.subr.mxu0 %v2023
        %2085 = vmatpush1.msra.mxu0 %v2022
        %2086 = vmatprep.subr.mxu0 %v2027
        %2087 = vmatpush1.msra.mxu0 %v2026
        %2088 = vmatprep.subr.mxu0 %v2031
        %2089 = vmatpush1.msra.mxu0 %v2030
        %2090 = vmatprep.subr.mxu0 0.0
        %2091 = vmatpush1.msra.mxu0 0.0
        %2092 = vmatprep.subr.mxu0 0.0
        %2093 = vmatpush1.msra.mxu0 0.0
        %2094 = vmatprep.subr.mxu0 0.0
        %2095 = vmatpush1.msra.mxu0 0.0
        %2096 = vmatprep.subr.mxu0 0.0
        %2097 = vmatpush1.msra.mxu0 0.0
        %2098 = vmatprep.mubr.f32.mxu0 %v1344
        %2099 = vmatmul.mubr.f32.gmra.mrb[0].mxu0 %v1089
        %v2100 = vpop.f32.mrb[0].mxu0
        %v2101 = vadd.f32 0.0, %v2100
        %v2102 = vpop.f32.mrb[0].mxu0
        %v2103 = vadd.f32 0.0, %v2102
        %2104 = vmatprep.mubr.f32.mxu0 %v1347
        %2105 = vmatmul.mubr.f32.gmra.mrb[0].mxu0 %v1091
        %v2106 = vpop.f32.mrb[0].mxu0
        %v2107 = vadd.f32 0.0, %v2106
        %v2108 = vpop.f32.mrb[0].mxu0
        %v2109 = vadd.f32 0.0, %v2108
        %2110 = vmatprep.mubr.f32.mxu0 %v1350
        %2111 = vmatmul.mubr.f32.gmra.mrb[0].mxu0 %v1093
        %v2112 = vpop.f32.mrb[0].mxu0
        %v2113 = vadd.f32 0.0, %v2112
        %v2114 = vpop.f32.mrb[0].mxu0
        %v2115 = vadd.f32 0.0, %v2114
        %2116 = vmatprep.mubr.f32.mxu0 %v1353
        %2117 = vmatmul.mubr.f32.gmra.mrb[0].mxu0 %v1095
        %v2118 = vpop.f32.mrb[0].mxu0
        %v2119 = vadd.f32 0.0, %v2118
        %v2120 = vpop.f32.mrb[0].mxu0
        %v2121 = vadd.f32 0.0, %v2120
        %2122 = vmatprep.mubr.f32.mxu0 %v1356
        %2123 = vmatmul.mubr.f32.gmra.mrb[0].mxu0 %v1097
        %v2124 = vpop.f32.mrb[0].mxu0
        %v2125 = vadd.f32 0.0, %v2124
        %v2126 = vpop.f32.mrb[0].mxu0
        %v2127 = vadd.f32 0.0, %v2126
        %2128 = vmatprep.mubr.f32.mxu0 %v1359
        %2129 = vmatmul.mubr.f32.gmra.mrb[0].mxu0 %v1099
        %v2130 = vpop.f32.mrb[0].mxu0
        %v2131 = vadd.f32 0.0, %v2130
        %v2132 = vpop.f32.mrb[0].mxu0
        %v2133 = vadd.f32 0.0, %v2132
        %2134 = vmatprep.mubr.f32.mxu0 %v1362
        %2135 = vmatmul.mubr.f32.gmra.mrb[0].mxu0 %v1101
        %v2136 = vpop.f32.mrb[0].mxu0
        %v2137 = vadd.f32 0.0, %v2136
        %v2138 = vpop.f32.mrb[0].mxu0
        %v2139 = vadd.f32 0.0, %v2138
        %2140 = vmatprep.mubr.f32.mxu0 %v1365
        %2141 = vmatmul.mubr.f32.gmra.mrb[0].mxu0 %v1103
        %v2142 = vpop.f32.mrb[0].mxu0
        %v2143 = vadd.f32 0.0, %v2142
        %v2144 = vpop.f32.mrb[0].mxu0
        %v2145 = vadd.f32 0.0, %v2144
        %2146 = vmatprep.mubr.f32.mxu0 %v1642
        %2147 = vmatmul.mubr.f32.gmra.mrb[0].mxu0 %v1105
        %v2148 = vpop.f32.mrb[0].mxu0
        %v2149 = vadd.f32 0.0, %v2148
        %v2150 = vpop.f32.mrb[0].mxu0
        %v2151 = vadd.f32 0.0, %v2150
        %2152 = vmatprep.mubr.f32.mxu0 %v1645
        %2153 = vmatmul.mubr.f32.gmra.mrb[0].mxu0 %v1107
        %v2154 = vpop.f32.mrb[0].mxu0
        %v2155 = vadd.f32 0.0, %v2154
        %v2156 = vpop.f32.mrb[0].mxu0
        %v2157 = vadd.f32 0.0, %v2156
        %2158 = vmatprep.mubr.f32.mxu0 %v1335
        %2159 = vmatmul.mubr.f32.gmra.mrb[0].mxu0 0.0
        %v2160 = vpop.f32.mrb[0].mxu0
        %v2161 = vadd.f32 0.0, %v2160
        %v2162 = vpop.f32.mrb[0].mxu0
        %v2163 = vadd.f32 0.0, %v2162
        %2164 = vmatprep.mubr.f32.mxu0 %v1335
        %2165 = vmatmul.mubr.f32.gmra.mrb[0].mxu0 0.0
        %v2166 = vpop.f32.mrb[0].mxu0
        %v2167 = vadd.f32 0.0, %v2166
        %v2168 = vpop.f32.mrb[0].mxu0
        %v2169 = vadd.f32 0.0, %v2168
        %2170 = vdwg.mxu0
        %2171 = vmatprep.subr.mxu0 %v1925
        %2172 = vmatpush1.msra.mxu0 %v1924
        %2173 = vmatprep.subr.mxu0 %v1929
        %2174 = vmatpush1.msra.mxu0 %v1928
        %2175 = vmatprep.subr.mxu0 %v1933
        %2176 = vmatpush1.msra.mxu0 %v1932
        %2177 = vmatprep.subr.mxu0 %v1937
        %2178 = vmatpush1.msra.mxu0 %v1936
        %2179 = vmatprep.subr.mxu0 %v1941
        %2180 = vmatpush1.msra.mxu0 %v1940
        %2181 = vmatprep.subr.mxu0 %v1945
        %2182 = vmatpush1.msra.mxu0 %v1944
        %2183 = vmatprep.subr.mxu0 %v1949
        %2184 = vmatpush1.msra.mxu0 %v1948
        %2185 = vmatprep.subr.mxu0 %v1953
        %2186 = vmatpush1.msra.mxu0 %v1952
        %2187 = vmatprep.subr.mxu0 %v1957
        %2188 = vmatpush1.msra.mxu0 %v1956
        %2189 = vmatprep.subr.mxu0 %v1961
        %2190 = vmatpush1.msra.mxu0 %v1960
        %2191 = vmatprep.subr.mxu0 %v1965
        %2192 = vmatpush1.msra.mxu0 %v1964
        %2193 = vmatprep.subr.mxu0 %v1969
        %2194 = vmatpush1.msra.mxu0 %v1968
        %2195 = vmatprep.subr.mxu0 %v1973
        %2196 = vmatpush1.msra.mxu0 %v1972
        %2197 = vmatprep.subr.mxu0 %v1977
        %2198 = vmatpush1.msra.mxu0 %v1976
        %2199 = vmatprep.subr.mxu0 %v1981
        %2200 = vmatpush1.msra.mxu0 %v1980
        %2201 = vmatprep.subr.mxu0 %v1985
        %2202 = vmatpush1.msra.mxu0 %v1984
        %2203 = vmatprep.subr.mxu0 %v1989
        %2204 = vmatpush1.msra.mxu0 %v1988
        %2205 = vmatprep.subr.mxu0 %v1993
        %2206 = vmatpush1.msra.mxu0 %v1992
        %2207 = vmatprep.subr.mxu0 %v1997
        %2208 = vmatpush1.msra.mxu0 %v1996
        %2209 = vmatprep.subr.mxu0 %v2001
        %2210 = vmatpush1.msra.mxu0 %v2000
        %2211 = vmatprep.subr.mxu0 %v2005
        %2212 = vmatpush1.msra.mxu0 %v2004
        %2213 = vmatprep.subr.mxu0 %v2009
        %2214 = vmatpush1.msra.mxu0 %v2008
        %2215 = vmatprep.subr.mxu0 %v2013
        %2216 = vmatpush1.msra.mxu0 %v2012
        %2217 = vmatprep.subr.mxu0 %v2017
        %2218 = vmatpush1.msra.mxu0 %v2016
        %2219 = vmatprep.subr.mxu0 %v2021
        %2220 = vmatpush1.msra.mxu0 %v2020
        %2221 = vmatprep.subr.mxu0 %v2025
        %2222 = vmatpush1.msra.mxu0 %v2024
        %2223 = vmatprep.subr.mxu0 %v2029
        %2224 = vmatpush1.msra.mxu0 %v2028
        %2225 = vmatprep.subr.mxu0 %v2033
        %2226 = vmatpush1.msra.mxu0 %v2032
        %2227 = vmatprep.subr.mxu0 0.0
        %2228 = vmatpush1.msra.mxu0 0.0
        %2229 = vmatprep.subr.mxu0 0.0
        %2230 = vmatpush1.msra.mxu0 0.0
        %2231 = vmatprep.subr.mxu0 0.0
        %2232 = vmatpush1.msra.mxu0 0.0
        %2233 = vmatprep.subr.mxu0 0.0
        %2234 = vmatpush1.msra.mxu0 0.0
        %2235 = vmatprep.mubr.f32.mxu0 %v1344
        %2236 = vmatmul.mubr.f32.gmra.mrb[0].mxu0 %v1089
        %v2237 = vpop.f32.mrb[0].mxu0
        %v2238 = vadd.f32 0.0, %v2237
        %v2239 = vpop.f32.mrb[0].mxu0
        %v2240 = vadd.f32 0.0, %v2239
        %2241 = vmatprep.mubr.f32.mxu0 %v1347
        %2242 = vmatmul.mubr.f32.gmra.mrb[0].mxu0 %v1091
        %v2243 = vpop.f32.mrb[0].mxu0
        %v2244 = vadd.f32 0.0, %v2243
        %v2245 = vpop.f32.mrb[0].mxu0
        %v2246 = vadd.f32 0.0, %v2245
        %2247 = vmatprep.mubr.f32.mxu0 %v1350
        %2248 = vmatmul.mubr.f32.gmra.mrb[0].mxu0 %v1093
        %v2249 = vpop.f32.mrb[0].mxu0
        %v2250 = vadd.f32 0.0, %v2249
        %v2251 = vpop.f32.mrb[0].mxu0
        %v2252 = vadd.f32 0.0, %v2251
        %2253 = vmatprep.mubr.f32.mxu0 %v1353
        %2254 = vmatmul.mubr.f32.gmra.mrb[0].mxu0 %v1095
        %v2255 = vpop.f32.mrb[0].mxu0
        %v2256 = vadd.f32 0.0, %v2255
        %v2257 = vpop.f32.mrb[0].mxu0
        %v2258 = vadd.f32 0.0, %v2257
        %2259 = vmatprep.mubr.f32.mxu0 %v1356
        %2260 = vmatmul.mubr.f32.gmra.mrb[0].mxu0 %v1097
        %v2261 = vpop.f32.mrb[0].mxu0
        %v2262 = vadd.f32 0.0, %v2261
        %v2263 = vpop.f32.mrb[0].mxu0
        %v2264 = vadd.f32 0.0, %v2263
        %2265 = vmatprep.mubr.f32.mxu0 %v1359
        %2266 = vmatmul.mubr.f32.gmra.mrb[0].mxu0 %v1099
        %v2267 = vpop.f32.mrb[0].mxu0
        %v2268 = vadd.f32 0.0, %v2267
        %v2269 = vpop.f32.mrb[0].mxu0
        %v2270 = vadd.f32 0.0, %v2269
        %2271 = vmatprep.mubr.f32.mxu0 %v1362
        %2272 = vmatmul.mubr.f32.gmra.mrb[0].mxu0 %v1101
        %v2273 = vpop.f32.mrb[0].mxu0
        %v2274 = vadd.f32 0.0, %v2273
        %v2275 = vpop.f32.mrb[0].mxu0
        %v2276 = vadd.f32 0.0, %v2275
        %2277 = vmatprep.mubr.f32.mxu0 %v1365
        %2278 = vmatmul.mubr.f32.gmra.mrb[0].mxu0 %v1103
        %v2279 = vpop.f32.mrb[0].mxu0
        %v2280 = vadd.f32 0.0, %v2279
        %v2281 = vpop.f32.mrb[0].mxu0
        %v2282 = vadd.f32 0.0, %v2281
        %2283 = vmatprep.mubr.f32.mxu0 %v1642
        %2284 = vmatmul.mubr.f32.gmra.mrb[0].mxu0 %v1105
        %v2285 = vpop.f32.mrb[0].mxu0
        %v2286 = vadd.f32 0.0, %v2285
        %v2287 = vpop.f32.mrb[0].mxu0
        %v2288 = vadd.f32 0.0, %v2287
        %2289 = vmatprep.mubr.f32.mxu0 %v1645
        %2290 = vmatmul.mubr.f32.gmra.mrb[0].mxu0 %v1107
        %v2291 = vpop.f32.mrb[0].mxu0
        %v2292 = vadd.f32 0.0, %v2291
        %v2293 = vpop.f32.mrb[0].mxu0
        %v2294 = vadd.f32 0.0, %v2293
        %2295 = vmatprep.mubr.f32.mxu0 %v1335
        %2296 = vmatmul.mubr.f32.gmra.mrb[0].mxu0 0.0
        %v2297 = vpop.f32.mrb[0].mxu0
        %v2298 = vadd.f32 0.0, %v2297
        %v2299 = vpop.f32.mrb[0].mxu0
        %v2300 = vadd.f32 0.0, %v2299
        %2301 = vmatprep.mubr.f32.mxu0 %v1335
        %2302 = vmatmul.mubr.f32.gmra.mrb[0].mxu0 0.0
        %v2303 = vpop.f32.mrb[0].mxu0
        %v2304 = vadd.f32 0.0, %v2303
        %v2305 = vpop.f32.mrb[0].mxu0
        %v2306 = vadd.f32 0.0, %v2305
        %2307 = vdwg.mxu0
        %v2308 = vadd.f32 %v1714, %v2101
        %v2309 = vadd.f32 %v1716, %v2103
        %v2310 = vadd.f32 %v1851, %v2238
        %v2311 = vadd.f32 %v1853, %v2240
        %v2312 = vadd.f32 %v1720, %v2107
        %v2313 = vadd.f32 %v1722, %v2109
        %v2314 = vadd.f32 %v1857, %v2244
        %v2315 = vadd.f32 %v1859, %v2246
        %v2316 = vadd.f32 %v1726, %v2113
        %v2317 = vadd.f32 %v1728, %v2115
        %v2318 = vadd.f32 %v1863, %v2250
        %v2319 = vadd.f32 %v1865, %v2252
        %v2320 = vadd.f32 %v1732, %v2119
        %v2321 = vadd.f32 %v1734, %v2121
        %v2322 = vadd.f32 %v1869, %v2256
        %v2323 = vadd.f32 %v1871, %v2258
        %v2324 = vadd.f32 %v1738, %v2125
        %v2325 = vadd.f32 %v1740, %v2127
        %v2326 = vadd.f32 %v1875, %v2262
        %v2327 = vadd.f32 %v1877, %v2264
        %v2328 = vadd.f32 %v1744, %v2131
        %v2329 = vadd.f32 %v1746, %v2133
        %v2330 = vadd.f32 %v1881, %v2268
        %v2331 = vadd.f32 %v1883, %v2270
        %v2332 = vadd.f32 %v1750, %v2137
        %v2333 = vadd.f32 %v1752, %v2139
        %v2334 = vadd.f32 %v1887, %v2274
        %v2335 = vadd.f32 %v1889, %v2276
        %v2336 = vadd.f32 %v1756, %v2143
        %v2337 = vadd.f32 %v1758, %v2145
        %v2338 = vadd.f32 %v1893, %v2280
        %v2339 = vadd.f32 %v1895, %v2282
        %v2340 = vadd.f32 %v1762, %v2149
        %v2341 = vadd.f32 %v1764, %v2151
        %v2342 = vadd.f32 %v1899, %v2286
        %v2343 = vadd.f32 %v1901, %v2288
        %v2344 = vadd.f32 %v1768, %v2155
        %v2345 = vadd.f32 %v1770, %v2157
        %v2346 = vadd.f32 %v1905, %v2292
        %v2347 = vadd.f32 %v1907, %v2294
        %v2348 = vadd.f32 %v1774, %v2161
        %v2349 = vadd.f32 %v1776, %v2163
        %v2350 = vadd.f32 %v1911, %v2298
        %v2351 = vadd.f32 %v1913, %v2300
        %v2352 = vadd.f32 %v1780, %v2167
        %v2353 = vadd.f32 %v1782, %v2169
        %v2354 = vadd.f32 %v1917, %v2304
        %v2355 = vadd.f32 %v1919, %v2306
        %v2356 = vld [vmem:[#allocation7] sm:$0xf]
        %v2358 = vlaneseq
        %v2359 = vshrl.u32 %v2358, 7
        %v2360 = vsub.s32 0, %v2359
        %v2361 = vrot.slane %v2356, %v2360
        %v2362 = vlaneseq
        %v2363 = vshrl.u32 %v2362, 7
        %v2364 = vsub.s32 1, %v2363
        %v2365 = vrot.slane %v2356, %v2364
        %v2366 = vlaneseq
        %v2367 = vshrl.u32 %v2366, 7
        %v2368 = vsub.s32 2, %v2367
        %v2369 = vrot.slane %v2356, %v2368
        %v2370 = vlaneseq
        %v2371 = vshrl.u32 %v2370, 7
        %v2372 = vsub.s32 3, %v2371
        %v2373 = vrot.slane %v2356, %v2372
        %v2378 = vadd.f32 %v2308, %v2361
        %v2379 = vadd.f32 %v2309, %v2365
        %v2380 = vadd.f32 %v2310, %v2369
        %v2381 = vadd.f32 %v2311, %v2373
        %v2382 = vadd.f32 %v2312, %v2361
        %v2383 = vadd.f32 %v2313, %v2365
        %v2384 = vadd.f32 %v2314, %v2369
        %v2385 = vadd.f32 %v2315, %v2373
        %v2386 = vadd.f32 %v2316, %v2361
        %v2387 = vadd.f32 %v2317, %v2365
        %v2388 = vadd.f32 %v2318, %v2369
        %v2389 = vadd.f32 %v2319, %v2373
        %v2390 = vadd.f32 %v2320, %v2361
        %v2391 = vadd.f32 %v2321, %v2365
        %v2392 = vadd.f32 %v2322, %v2369
        %v2393 = vadd.f32 %v2323, %v2373
        %v2394 = vadd.f32 %v2324, %v2361
        %v2395 = vadd.f32 %v2325, %v2365
        %v2396 = vadd.f32 %v2326, %v2369
        %v2397 = vadd.f32 %v2327, %v2373
        %v2398 = vadd.f32 %v2328, %v2361
        %v2399 = vadd.f32 %v2329, %v2365
        %v2400 = vadd.f32 %v2330, %v2369
        %v2401 = vadd.f32 %v2331, %v2373
        %v2402 = vadd.f32 %v2332, %v2361
        %v2403 = vadd.f32 %v2333, %v2365
        %v2404 = vadd.f32 %v2334, %v2369
        %v2405 = vadd.f32 %v2335, %v2373
        %v2406 = vadd.f32 %v2336, %v2361
        %v2407 = vadd.f32 %v2337, %v2365
        %v2408 = vadd.f32 %v2338, %v2369
        %v2409 = vadd.f32 %v2339, %v2373
        %v2410 = vadd.f32 %v2340, %v2361
        %v2411 = vadd.f32 %v2341, %v2365
        %v2412 = vadd.f32 %v2342, %v2369
        %v2413 = vadd.f32 %v2343, %v2373
        %v2414 = vadd.f32 %v2344, %v2361
        %v2415 = vadd.f32 %v2345, %v2365
        %v2416 = vadd.f32 %v2346, %v2369
        %v2417 = vadd.f32 %v2347, %v2373
        %v2418 = vadd.f32 %v2348, %v2361
        %v2419 = vadd.f32 %v2349, %v2365
        %v2420 = vadd.f32 %v2350, %v2369
        %v2421 = vadd.f32 %v2351, %v2373
        %v2422 = vadd.f32 %v2352, %v2361
        %v2423 = vadd.f32 %v2353, %v2365
        %v2424 = vadd.f32 %v2354, %v2369
        %v2425 = vadd.f32 %v2355, %v2373
        %v2426 = vmax.f32 %v2378, 0.0
        %v2427 = vmax.f32 %v2379, 0.0
        %v2428 = vmax.f32 %v2380, 0.0
        %v2429 = vmax.f32 %v2381, 0.0
        %v2430 = vmax.f32 %v2382, 0.0
        %v2431 = vmax.f32 %v2383, 0.0
        %v2432 = vmax.f32 %v2384, 0.0
        %v2433 = vmax.f32 %v2385, 0.0
        %v2434 = vmax.f32 %v2386, 0.0
        %v2435 = vmax.f32 %v2387, 0.0
        %v2436 = vmax.f32 %v2388, 0.0
        %v2437 = vmax.f32 %v2389, 0.0
        %v2438 = vmax.f32 %v2390, 0.0
        %v2439 = vmax.f32 %v2391, 0.0
        %v2440 = vmax.f32 %v2392, 0.0
        %v2441 = vmax.f32 %v2393, 0.0
        %v2442 = vmax.f32 %v2394, 0.0
        %v2443 = vmax.f32 %v2395, 0.0
        %v2444 = vmax.f32 %v2396, 0.0
        %v2445 = vmax.f32 %v2397, 0.0
        %v2446 = vmax.f32 %v2398, 0.0
        %v2447 = vmax.f32 %v2399, 0.0
        %v2448 = vmax.f32 %v2400, 0.0
        %v2449 = vmax.f32 %v2401, 0.0
        %v2450 = vmax.f32 %v2402, 0.0
        %v2451 = vmax.f32 %v2403, 0.0
        %v2452 = vmax.f32 %v2404, 0.0
        %v2453 = vmax.f32 %v2405, 0.0
        %v2454 = vmax.f32 %v2406, 0.0
        %v2455 = vmax.f32 %v2407, 0.0
        %v2456 = vmax.f32 %v2408, 0.0
        %v2457 = vmax.f32 %v2409, 0.0
        %v2458 = vmax.f32 %v2410, 0.0
        %v2459 = vmax.f32 %v2411, 0.0
        %v2460 = vmax.f32 %v2412, 0.0
        %v2461 = vmax.f32 %v2413, 0.0
        %v2462 = vmax.f32 %v2414, 0.0
        %v2463 = vmax.f32 %v2415, 0.0
        %v2464 = vmax.f32 %v2416, 0.0
        %v2465 = vmax.f32 %v2417, 0.0
        %v2466 = vmax.f32 %v2418, 0.0
        %v2467 = vmax.f32 %v2419, 0.0
        %v2468 = vmax.f32 %v2420, 0.0
        %v2469 = vmax.f32 %v2421, 0.0
        %v2470 = vmax.f32 %v2422, 0.0
        %v2471 = vmax.f32 %v2423, 0.0
        %v2472 = vmax.f32 %v2424, 0.0
        %v2473 = vmax.f32 %v2425, 0.0
        %s2474 = scalar_lea.vmem [#allocation9], 1792
        %v2475 = vld [vmem:[%s2474] sm:$0xff]
        %v2476 = vld [vmem:[%s2474 + $0x8] sm:$0xff]
        %v2477 = vld [vmem:[%s2474 + $0x10] sm:$0xff]
        %v2478 = vld [vmem:[%s2474 + $0x18] sm:$0xff]
        %v2479 = vld [vmem:[%s2474 + $0x20] sm:$0xff]
        %v2480 = vld [vmem:[%s2474 + $0x28] sm:$0xff]
        %v2481 = vld [vmem:[%s2474 + $0x30] sm:$0xff]
        %v2482 = vld [vmem:[%s2474 + $0x38] sm:$0xff]
        %v2483 = vld [vmem:[%s2474 + $0x40] sm:$0xff]
        %v2484 = vld [vmem:[%s2474 + $0x48] sm:$0xff]
        %v2485 = vld [vmem:[%s2474 + $0x50] sm:$0xff]
        %v2486 = vld [vmem:[%s2474 + $0x58] sm:$0xff]
        %v2487 = vld [vmem:[%s2474 + $0x60] sm:$0xff]
        %v2488 = vld [vmem:[%s2474 + $0x68] sm:$0xff]
        %v2489 = vld [vmem:[%s2474 + $0x70] sm:$0xff]
        %v2490 = vld [vmem:[%s2474 + $0x78] sm:$0xff]
        %v2491 = vld [vmem:[%s2474 + $0x80] sm:$0xff]
        %v2492 = vld [vmem:[%s2474 + $0x88] sm:$0xff]
        %v2493 = vld [vmem:[%s2474 + $0x90] sm:$0xff]
        %v2494 = vld [vmem:[%s2474 + $0x98] sm:$0xff]
        %v2495 = vld [vmem:[%s2474 + $0xa0] sm:$0xff]
        %v2496 = vld [vmem:[%s2474 + $0xa8] sm:$0xff]
        %v2497 = vld [vmem:[%s2474 + $0xb0] sm:$0xff]
        %v2498 = vld [vmem:[%s2474 + $0xb8] sm:$0xff]
        %v2499 = vld [vmem:[%s2474 + $0xc0] sm:$0xff]
        %v2500 = vld [vmem:[%s2474 + $0xc8] sm:$0xff]
        %v2501 = vld [vmem:[%s2474 + $0xd0] sm:$0xff]
        %v2502 = vld [vmem:[%s2474 + $0xd8] sm:$0xff]
        %v2503 = vld [vmem:[%s2474 + $0xe0] sm:$0xff]
        %v2504 = vld [vmem:[%s2474 + $0xe8] sm:$0xff]
        %v2505 = vld [vmem:[%s2474 + $0xf0] sm:$0xff]
        %v2506 = vld [vmem:[%s2474 + $0xf8] sm:$0xff]
        %v2507 = vld [vmem:[%s2474 + $0x100] sm:$0xff]
        %v2508 = vld [vmem:[%s2474 + $0x108] sm:$0xff]
        %v2509 = vld [vmem:[%s2474 + $0x110] sm:$0xff]
        %v2510 = vld [vmem:[%s2474 + $0x118] sm:$0xff]
        %v2511 = vld [vmem:[%s2474 + $0x120] sm:$0xff]
        %v2512 = vld [vmem:[%s2474 + $0x128] sm:$0xff]
        %v2513 = vld [vmem:[%s2474 + $0x130] sm:$0xff]
        %v2514 = vld [vmem:[%s2474 + $0x138] sm:$0xff]
        %v2515 = vld [vmem:[%s2474 + $0x140] sm:$0xff]
        %v2516 = vld [vmem:[%s2474 + $0x148] sm:$0xff]
        %v2517 = vld [vmem:[%s2474 + $0x150] sm:$0xff]
        %v2518 = vld [vmem:[%s2474 + $0x158] sm:$0xff]
        %v2519 = vld [vmem:[%s2474 + $0x160] sm:$0xff]
        %v2520 = vld [vmem:[%s2474 + $0x168] sm:$0xff]
        %v2521 = vld [vmem:[%s2474 + $0x170] sm:$0xff]
        %v2522 = vld [vmem:[%s2474 + $0x178] sm:$0xff]
        %v2523 = vld [vmem:[%s2474 + $0x180] sm:$0xff]
        %v2524 = vld [vmem:[%s2474 + $0x188] sm:$0xff]
        %v2525 = vld [vmem:[%s2474 + $0x190] sm:$0xff]
        %v2526 = vld [vmem:[%s2474 + $0x198] sm:$0xff]
        %v2527 = vld [vmem:[%s2474 + $0x1a0] sm:$0xff]
        %v2528 = vld [vmem:[%s2474 + $0x1a8] sm:$0xff]
        %v2529 = vld [vmem:[%s2474 + $0x1b0] sm:$0xff]
        %v2530 = vld [vmem:[%s2474 + $0x1b8] sm:$0xff]
        %v2531 = vld [vmem:[%s2474 + $0x1c0] sm:$0xff]
        %v2532 = vld [vmem:[%s2474 + $0x1c8] sm:$0xff]
        %v2533 = vld [vmem:[%s2474 + $0x1d0] sm:$0xff]
        %v2534 = vld [vmem:[%s2474 + $0x1d8] sm:$0xff]
        %v2535 = vld [vmem:[%s2474 + $0x1e0] sm:$0xff]
        %v2536 = vld [vmem:[%s2474 + $0x1e8] sm:$0xff]
        %v2537 = vld [vmem:[%s2474 + $0x1f0] sm:$0xff]
        %v2538 = vld [vmem:[%s2474 + $0x1f8] sm:$0xff]
        %v2539 = vld [vmem:[%s2474 + $0x200] sm:$0xff]
        %v2540 = vld [vmem:[%s2474 + $0x208] sm:$0xff]
        %v2541 = vld [vmem:[%s2474 + $0x210] sm:$0xff]
        %v2542 = vld [vmem:[%s2474 + $0x218] sm:$0xff]
        %v2543 = vld [vmem:[%s2474 + $0x220] sm:$0xff]
        %v2544 = vld [vmem:[%s2474 + $0x228] sm:$0xff]
        %v2545 = vld [vmem:[%s2474 + $0x230] sm:$0xff]
        %v2546 = vld [vmem:[%s2474 + $0x238] sm:$0xff]
        %v2547 = vld [vmem:[%s2474 + $0x240] sm:$0xff]
        %v2548 = vld [vmem:[%s2474 + $0x248] sm:$0xff]
        %v2549 = vld [vmem:[%s2474 + $0x250] sm:$0xff]
        %v2550 = vld [vmem:[%s2474 + $0x258] sm:$0xff]
        %v2551 = vld [vmem:[%s2474 + $0x260] sm:$0xff]
        %v2552 = vld [vmem:[%s2474 + $0x268] sm:$0xff]
        %v2553 = vld [vmem:[%s2474 + $0x270] sm:$0xff]
        %v2554 = vld [vmem:[%s2474 + $0x278] sm:$0xff]
        %v2555 = vld [vmem:[%s2474 + $0x280] sm:$0xff]
        %v2556 = vld [vmem:[%s2474 + $0x288] sm:$0xff]
        %v2557 = vld [vmem:[%s2474 + $0x290] sm:$0xff]
        %v2558 = vld [vmem:[%s2474 + $0x298] sm:$0xff]
        %v2559 = vld [vmem:[%s2474 + $0x2a0] sm:$0xff]
        %v2560 = vld [vmem:[%s2474 + $0x2a8] sm:$0xff]
        %v2561 = vld [vmem:[%s2474 + $0x2b0] sm:$0xff]
        %v2562 = vld [vmem:[%s2474 + $0x2b8] sm:$0xff]
        %v2563 = vld [vmem:[%s2474 + $0x2c0] sm:$0xff]
        %v2564 = vld [vmem:[%s2474 + $0x2c8] sm:$0xff]
        %v2565 = vld [vmem:[%s2474 + $0x2d0] sm:$0xff]
        %v2566 = vld [vmem:[%s2474 + $0x2d8] sm:$0xff]
        %v2567 = vld [vmem:[%s2474 + $0x2e0] sm:$0xff]
        %v2568 = vld [vmem:[%s2474 + $0x2e8] sm:$0xff]
        %v2569 = vld [vmem:[%s2474 + $0x2f0] sm:$0xff]
        %v2570 = vld [vmem:[%s2474 + $0x2f8] sm:$0xff]
        %v2571 = vld [vmem:[%s2474 + $0x300] sm:$0xff]
        %v2572 = vld [vmem:[%s2474 + $0x308] sm:$0xff]
        %v2573 = vld [vmem:[%s2474 + $0x310] sm:$0xff]
        %v2574 = vld [vmem:[%s2474 + $0x318] sm:$0xff]
        %v2575 = vld [vmem:[%s2474 + $0x320] sm:$0xff]
        %v2576 = vld [vmem:[%s2474 + $0x328] sm:$0xff]
        %v2577 = vld [vmem:[%s2474 + $0x330] sm:$0xff]
        %v2578 = vld [vmem:[%s2474 + $0x338] sm:$0xff]
        %v2579 = vld [vmem:[%s2474 + $0x340] sm:$0xff]
        %v2580 = vld [vmem:[%s2474 + $0x348] sm:$0xff]
        %v2581 = vld [vmem:[%s2474 + $0x350] sm:$0xff]
        %v2582 = vld [vmem:[%s2474 + $0x358] sm:$0xff]
        %v2583 = vld [vmem:[%s2474 + $0x360] sm:$0xff]
        %v2584 = vld [vmem:[%s2474 + $0x368] sm:$0xff]
        %v2585 = vld [vmem:[%s2474 + $0x370] sm:$0xff]
        %v2586 = vld [vmem:[%s2474 + $0x378] sm:$0xff]
        %v2587 = vld [vmem:[%s2474 + $0x380] sm:$0xff]
        %v2588 = vld [vmem:[%s2474 + $0x388] sm:$0xff]
        %v2589 = vld [vmem:[%s2474 + $0x390] sm:$0xff]
        %v2590 = vld [vmem:[%s2474 + $0x398] sm:$0xff]
        %v2591 = vld [vmem:[%s2474 + $0x3a0] sm:$0xff]
        %v2592 = vld [vmem:[%s2474 + $0x3a8] sm:$0xff]
        %v2593 = vld [vmem:[%s2474 + $0x3b0] sm:$0xff]
        %v2594 = vld [vmem:[%s2474 + $0x3b8] sm:$0xff]
        %v2595 = vld [vmem:[%s2474 + $0x3c0] sm:$0xff]
        %v2596 = vld [vmem:[%s2474 + $0x3c8] sm:$0xff]
        %v2597 = vld [vmem:[%s2474 + $0x3d0] sm:$0xff]
        %v2598 = vld [vmem:[%s2474 + $0x3d8] sm:$0xff]
        %v2599 = vld [vmem:[%s2474 + $0x3e0] sm:$0xff]
        %v2600 = vld [vmem:[%s2474 + $0x3e8] sm:$0xff]
        %v2601 = vld [vmem:[%s2474 + $0x3f0] sm:$0xff]
        %v2602 = vld [vmem:[%s2474 + $0x3f8] sm:$0xff]
        %v2603 = vld [vmem:[%s2474 + $0x400] sm:$0xff]
        %v2604 = vld [vmem:[%s2474 + $0x408] sm:$0xff]
        %v2605 = vld [vmem:[%s2474 + $0x410] sm:$0xff]
        %v2606 = vld [vmem:[%s2474 + $0x418] sm:$0xff]
        %v2607 = vld [vmem:[%s2474 + $0x420] sm:$0xff]
        %v2608 = vld [vmem:[%s2474 + $0x428] sm:$0xff]
        %v2609 = vld [vmem:[%s2474 + $0x430] sm:$0xff]
        %v2610 = vld [vmem:[%s2474 + $0x438] sm:$0xff]
        %v2611 = vld [vmem:[%s2474 + $0x440] sm:$0xff]
        %v2612 = vld [vmem:[%s2474 + $0x448] sm:$0xff]
        %v2613 = vld [vmem:[%s2474 + $0x450] sm:$0xff]
        %v2614 = vld [vmem:[%s2474 + $0x458] sm:$0xff]
        %v2615 = vld [vmem:[%s2474 + $0x460] sm:$0xff]
        %v2616 = vld [vmem:[%s2474 + $0x468] sm:$0xff]
        %v2617 = vld [vmem:[%s2474 + $0x470] sm:$0xff]
        %v2618 = vld [vmem:[%s2474 + $0x478] sm:$0xff]
        %v2619 = vld [vmem:[%s2474 + $0x480] sm:$0xff]
        %v2620 = vld [vmem:[%s2474 + $0x488] sm:$0xff]
        %v2621 = vld [vmem:[%s2474 + $0x490] sm:$0xff]
        %v2622 = vld [vmem:[%s2474 + $0x498] sm:$0xff]
        %v2623 = vld [vmem:[%s2474 + $0x4a0] sm:$0xff]
        %v2624 = vld [vmem:[%s2474 + $0x4a8] sm:$0xff]
        %v2625 = vld [vmem:[%s2474 + $0x4b0] sm:$0xff]
        %v2626 = vld [vmem:[%s2474 + $0x4b8] sm:$0xff]
        %v2627 = vld [vmem:[%s2474 + $0x4c0] sm:$0xff]
        %v2628 = vld [vmem:[%s2474 + $0x4c8] sm:$0xff]
        %v2629 = vld [vmem:[%s2474 + $0x4d0] sm:$0xff]
        %v2630 = vld [vmem:[%s2474 + $0x4d8] sm:$0xff]
        %v2631 = vld [vmem:[%s2474 + $0x4e0] sm:$0xff]
        %v2632 = vld [vmem:[%s2474 + $0x4e8] sm:$0xff]
        %v2633 = vld [vmem:[%s2474 + $0x4f0] sm:$0xff]
        %v2634 = vld [vmem:[%s2474 + $0x4f8] sm:$0xff]
        %v2635 = vld [vmem:[%s2474 + $0x500] sm:$0xff]
        %v2636 = vld [vmem:[%s2474 + $0x508] sm:$0xff]
        %v2637 = vld [vmem:[%s2474 + $0x510] sm:$0xff]
        %v2638 = vld [vmem:[%s2474 + $0x518] sm:$0xff]
        %v2639 = vld [vmem:[%s2474 + $0x520] sm:$0xff]
        %v2640 = vld [vmem:[%s2474 + $0x528] sm:$0xff]
        %v2641 = vld [vmem:[%s2474 + $0x530] sm:$0xff]
        %v2642 = vld [vmem:[%s2474 + $0x538] sm:$0xff]
        %v2643 = vld [vmem:[%s2474 + $0x540] sm:$0xff]
        %v2644 = vld [vmem:[%s2474 + $0x548] sm:$0xff]
        %v2645 = vld [vmem:[%s2474 + $0x550] sm:$0xff]
        %v2646 = vld [vmem:[%s2474 + $0x558] sm:$0xff]
        %v2647 = vld [vmem:[%s2474 + $0x560] sm:$0xff]
        %v2648 = vld [vmem:[%s2474 + $0x568] sm:$0xff]
        %v2649 = vld [vmem:[%s2474 + $0x570] sm:$0xff]
        %v2650 = vld [vmem:[%s2474 + $0x578] sm:$0xff]
        %v2651 = vld [vmem:[%s2474 + $0x580] sm:$0xff]
        %v2652 = vld [vmem:[%s2474 + $0x588] sm:$0xff]
        %v2653 = vld [vmem:[%s2474 + $0x590] sm:$0xff]
        %v2654 = vld [vmem:[%s2474 + $0x598] sm:$0xff]
        %v2655 = vld [vmem:[%s2474 + $0x5a0] sm:$0xff]
        %v2656 = vld [vmem:[%s2474 + $0x5a8] sm:$0xff]
        %v2657 = vld [vmem:[%s2474 + $0x5b0] sm:$0xff]
        %v2658 = vld [vmem:[%s2474 + $0x5b8] sm:$0xff]
        %v2659 = vld [vmem:[%s2474 + $0x5c0] sm:$0xff]
        %v2660 = vld [vmem:[%s2474 + $0x5c8] sm:$0xff]
        %v2661 = vld [vmem:[%s2474 + $0x5d0] sm:$0xff]
        %v2662 = vld [vmem:[%s2474 + $0x5d8] sm:$0xff]
        %v2663 = vld [vmem:[%s2474 + $0x5e0] sm:$0xff]
        %v2664 = vld [vmem:[%s2474 + $0x5e8] sm:$0xff]
        %v2665 = vld [vmem:[%s2474 + $0x5f0] sm:$0xff]
        %v2666 = vld [vmem:[%s2474 + $0x5f8] sm:$0xff]
        %v2667 = vld [vmem:[%s2474 + $0x600] sm:$0xff]
        %v2668 = vld [vmem:[%s2474 + $0x608] sm:$0xff]
        %v2669 = vld [vmem:[%s2474 + $0x610] sm:$0xff]
        %v2670 = vld [vmem:[%s2474 + $0x618] sm:$0xff]
        %v2671 = vld [vmem:[%s2474 + $0x620] sm:$0xff]
        %v2672 = vld [vmem:[%s2474 + $0x628] sm:$0xff]
        %v2673 = vld [vmem:[%s2474 + $0x630] sm:$0xff]
        %v2674 = vld [vmem:[%s2474 + $0x638] sm:$0xff]
        %v2675 = vld [vmem:[%s2474 + $0x640] sm:$0xff]
        %v2676 = vld [vmem:[%s2474 + $0x648] sm:$0xff]
        %v2677 = vld [vmem:[%s2474 + $0x650] sm:$0xff]
        %v2678 = vld [vmem:[%s2474 + $0x658] sm:$0xff]
        %v2679 = vld [vmem:[%s2474 + $0x660] sm:$0xff]
        %v2680 = vld [vmem:[%s2474 + $0x668] sm:$0xff]
        %v2681 = vld [vmem:[%s2474 + $0x670] sm:$0xff]
        %v2682 = vld [vmem:[%s2474 + $0x678] sm:$0xff]
        %v2683 = vld [vmem:[%s2474 + $0x680] sm:$0xff]
        %v2684 = vld [vmem:[%s2474 + $0x688] sm:$0xff]
        %v2685 = vld [vmem:[%s2474 + $0x690] sm:$0xff]
        %v2686 = vld [vmem:[%s2474 + $0x698] sm:$0xff]
        %v2687 = vld [vmem:[%s2474 + $0x6a0] sm:$0xff]
        %v2688 = vld [vmem:[%s2474 + $0x6a8] sm:$0xff]
        %v2689 = vld [vmem:[%s2474 + $0x6b0] sm:$0xff]
        %v2690 = vld [vmem:[%s2474 + $0x6b8] sm:$0xff]
        %v2691 = vld [vmem:[%s2474 + $0x6c0] sm:$0xff]
        %v2692 = vld [vmem:[%s2474 + $0x6c8] sm:$0xff]
        %v2693 = vld [vmem:[%s2474 + $0x6d0] sm:$0xff]
        %v2694 = vld [vmem:[%s2474 + $0x6d8] sm:$0xff]
        %v2695 = vld [vmem:[%s2474 + $0x6e0] sm:$0xff]
        %v2696 = vld [vmem:[%s2474 + $0x6e8] sm:$0xff]
        %v2697 = vld [vmem:[%s2474 + $0x6f0] sm:$0xff]
        %v2698 = vld [vmem:[%s2474 + $0x6f8] sm:$0xff]
        %v2699 = vld [vmem:[#allocation9] sm:$0xff]
        %v2700 = vld [vmem:[#allocation9 + $0x8] sm:$0xff]
        %v2701 = vld [vmem:[#allocation9 + $0x10] sm:$0xff]
        %v2702 = vld [vmem:[#allocation9 + $0x18] sm:$0xff]
        %v2703 = vld [vmem:[#allocation9 + $0x20] sm:$0xff]
        %v2704 = vld [vmem:[#allocation9 + $0x28] sm:$0xff]
        %v2705 = vld [vmem:[#allocation9 + $0x30] sm:$0xff]
        %v2706 = vld [vmem:[#allocation9 + $0x38] sm:$0xff]
        %v2707 = vld [vmem:[#allocation9 + $0x40] sm:$0xff]
        %v2708 = vld [vmem:[#allocation9 + $0x48] sm:$0xff]
        %v2709 = vld [vmem:[#allocation9 + $0x50] sm:$0xff]
        %v2710 = vld [vmem:[#allocation9 + $0x58] sm:$0xff]
        %v2711 = vld [vmem:[#allocation9 + $0x60] sm:$0xff]
        %v2712 = vld [vmem:[#allocation9 + $0x68] sm:$0xff]
        %v2713 = vld [vmem:[#allocation9 + $0x70] sm:$0xff]
        %v2714 = vld [vmem:[#allocation9 + $0x78] sm:$0xff]
        %v2715 = vld [vmem:[#allocation9 + $0x80] sm:$0xff]
        %v2716 = vld [vmem:[#allocation9 + $0x88] sm:$0xff]
        %v2717 = vld [vmem:[#allocation9 + $0x90] sm:$0xff]
        %v2718 = vld [vmem:[#allocation9 + $0x98] sm:$0xff]
        %v2719 = vld [vmem:[#allocation9 + $0xa0] sm:$0xff]
        %v2720 = vld [vmem:[#allocation9 + $0xa8] sm:$0xff]
        %v2721 = vld [vmem:[#allocation9 + $0xb0] sm:$0xff]
        %v2722 = vld [vmem:[#allocation9 + $0xb8] sm:$0xff]
        %v2723 = vld [vmem:[#allocation9 + $0xc0] sm:$0xff]
        %v2724 = vld [vmem:[#allocation9 + $0xc8] sm:$0xff]
        %v2725 = vld [vmem:[#allocation9 + $0xd0] sm:$0xff]
        %v2726 = vld [vmem:[#allocation9 + $0xd8] sm:$0xff]
        %v2727 = vld [vmem:[#allocation9 + $0xe0] sm:$0xff]
        %v2728 = vld [vmem:[#allocation9 + $0xe8] sm:$0xff]
        %v2729 = vld [vmem:[#allocation9 + $0xf0] sm:$0xff]
        %v2730 = vld [vmem:[#allocation9 + $0xf8] sm:$0xff]
        %v2731 = vld [vmem:[#allocation9 + $0x100] sm:$0xff]
        %v2732 = vld [vmem:[#allocation9 + $0x108] sm:$0xff]
        %v2733 = vld [vmem:[#allocation9 + $0x110] sm:$0xff]
        %v2734 = vld [vmem:[#allocation9 + $0x118] sm:$0xff]
        %v2735 = vld [vmem:[#allocation9 + $0x120] sm:$0xff]
        %v2736 = vld [vmem:[#allocation9 + $0x128] sm:$0xff]
        %v2737 = vld [vmem:[#allocation9 + $0x130] sm:$0xff]
        %v2738 = vld [vmem:[#allocation9 + $0x138] sm:$0xff]
        %v2739 = vld [vmem:[#allocation9 + $0x140] sm:$0xff]
        %v2740 = vld [vmem:[#allocation9 + $0x148] sm:$0xff]
        %v2741 = vld [vmem:[#allocation9 + $0x150] sm:$0xff]
        %v2742 = vld [vmem:[#allocation9 + $0x158] sm:$0xff]
        %v2743 = vld [vmem:[#allocation9 + $0x160] sm:$0xff]
        %v2744 = vld [vmem:[#allocation9 + $0x168] sm:$0xff]
        %v2745 = vld [vmem:[#allocation9 + $0x170] sm:$0xff]
        %v2746 = vld [vmem:[#allocation9 + $0x178] sm:$0xff]
        %v2747 = vld [vmem:[#allocation9 + $0x180] sm:$0xff]
        %v2748 = vld [vmem:[#allocation9 + $0x188] sm:$0xff]
        %v2749 = vld [vmem:[#allocation9 + $0x190] sm:$0xff]
        %v2750 = vld [vmem:[#allocation9 + $0x198] sm:$0xff]
        %v2751 = vld [vmem:[#allocation9 + $0x1a0] sm:$0xff]
        %v2752 = vld [vmem:[#allocation9 + $0x1a8] sm:$0xff]
        %v2753 = vld [vmem:[#allocation9 + $0x1b0] sm:$0xff]
        %v2754 = vld [vmem:[#allocation9 + $0x1b8] sm:$0xff]
        %v2755 = vld [vmem:[#allocation9 + $0x1c0] sm:$0xff]
        %v2756 = vld [vmem:[#allocation9 + $0x1c8] sm:$0xff]
        %v2757 = vld [vmem:[#allocation9 + $0x1d0] sm:$0xff]
        %v2758 = vld [vmem:[#allocation9 + $0x1d8] sm:$0xff]
        %v2759 = vld [vmem:[#allocation9 + $0x1e0] sm:$0xff]
        %v2760 = vld [vmem:[#allocation9 + $0x1e8] sm:$0xff]
        %v2761 = vld [vmem:[#allocation9 + $0x1f0] sm:$0xff]
        %v2762 = vld [vmem:[#allocation9 + $0x1f8] sm:$0xff]
        %v2763 = vld [vmem:[#allocation9 + $0x200] sm:$0xff]
        %v2764 = vld [vmem:[#allocation9 + $0x208] sm:$0xff]
        %v2765 = vld [vmem:[#allocation9 + $0x210] sm:$0xff]
        %v2766 = vld [vmem:[#allocation9 + $0x218] sm:$0xff]
        %v2767 = vld [vmem:[#allocation9 + $0x220] sm:$0xff]
        %v2768 = vld [vmem:[#allocation9 + $0x228] sm:$0xff]
        %v2769 = vld [vmem:[#allocation9 + $0x230] sm:$0xff]
        %v2770 = vld [vmem:[#allocation9 + $0x238] sm:$0xff]
        %v2771 = vld [vmem:[#allocation9 + $0x240] sm:$0xff]
        %v2772 = vld [vmem:[#allocation9 + $0x248] sm:$0xff]
        %v2773 = vld [vmem:[#allocation9 + $0x250] sm:$0xff]
        %v2774 = vld [vmem:[#allocation9 + $0x258] sm:$0xff]
        %v2775 = vld [vmem:[#allocation9 + $0x260] sm:$0xff]
        %v2776 = vld [vmem:[#allocation9 + $0x268] sm:$0xff]
        %v2777 = vld [vmem:[#allocation9 + $0x270] sm:$0xff]
        %v2778 = vld [vmem:[#allocation9 + $0x278] sm:$0xff]
        %v2779 = vld [vmem:[#allocation9 + $0x280] sm:$0xff]
        %v2780 = vld [vmem:[#allocation9 + $0x288] sm:$0xff]
        %v2781 = vld [vmem:[#allocation9 + $0x290] sm:$0xff]
        %v2782 = vld [vmem:[#allocation9 + $0x298] sm:$0xff]
        %v2783 = vld [vmem:[#allocation9 + $0x2a0] sm:$0xff]
        %v2784 = vld [vmem:[#allocation9 + $0x2a8] sm:$0xff]
        %v2785 = vld [vmem:[#allocation9 + $0x2b0] sm:$0xff]
        %v2786 = vld [vmem:[#allocation9 + $0x2b8] sm:$0xff]
        %v2787 = vld [vmem:[#allocation9 + $0x2c0] sm:$0xff]
        %v2788 = vld [vmem:[#allocation9 + $0x2c8] sm:$0xff]
        %v2789 = vld [vmem:[#allocation9 + $0x2d0] sm:$0xff]
        %v2790 = vld [vmem:[#allocation9 + $0x2d8] sm:$0xff]
        %v2791 = vld [vmem:[#allocation9 + $0x2e0] sm:$0xff]
        %v2792 = vld [vmem:[#allocation9 + $0x2e8] sm:$0xff]
        %v2793 = vld [vmem:[#allocation9 + $0x2f0] sm:$0xff]
        %v2794 = vld [vmem:[#allocation9 + $0x2f8] sm:$0xff]
        %v2795 = vld [vmem:[#allocation9 + $0x300] sm:$0xff]
        %v2796 = vld [vmem:[#allocation9 + $0x308] sm:$0xff]
        %v2797 = vld [vmem:[#allocation9 + $0x310] sm:$0xff]
        %v2798 = vld [vmem:[#allocation9 + $0x318] sm:$0xff]
        %v2799 = vld [vmem:[#allocation9 + $0x320] sm:$0xff]
        %v2800 = vld [vmem:[#allocation9 + $0x328] sm:$0xff]
        %v2801 = vld [vmem:[#allocation9 + $0x330] sm:$0xff]
        %v2802 = vld [vmem:[#allocation9 + $0x338] sm:$0xff]
        %v2803 = vld [vmem:[#allocation9 + $0x340] sm:$0xff]
        %v2804 = vld [vmem:[#allocation9 + $0x348] sm:$0xff]
        %v2805 = vld [vmem:[#allocation9 + $0x350] sm:$0xff]
        %v2806 = vld [vmem:[#allocation9 + $0x358] sm:$0xff]
        %v2807 = vld [vmem:[#allocation9 + $0x360] sm:$0xff]
        %v2808 = vld [vmem:[#allocation9 + $0x368] sm:$0xff]
        %v2809 = vld [vmem:[#allocation9 + $0x370] sm:$0xff]
        %v2810 = vld [vmem:[#allocation9 + $0x378] sm:$0xff]
        %v2811 = vld [vmem:[#allocation9 + $0x380] sm:$0xff]
        %v2812 = vld [vmem:[#allocation9 + $0x388] sm:$0xff]
        %v2813 = vld [vmem:[#allocation9 + $0x390] sm:$0xff]
        %v2814 = vld [vmem:[#allocation9 + $0x398] sm:$0xff]
        %v2815 = vld [vmem:[#allocation9 + $0x3a0] sm:$0xff]
        %v2816 = vld [vmem:[#allocation9 + $0x3a8] sm:$0xff]
        %v2817 = vld [vmem:[#allocation9 + $0x3b0] sm:$0xff]
        %v2818 = vld [vmem:[#allocation9 + $0x3b8] sm:$0xff]
        %v2819 = vld [vmem:[#allocation9 + $0x3c0] sm:$0xff]
        %v2820 = vld [vmem:[#allocation9 + $0x3c8] sm:$0xff]
        %v2821 = vld [vmem:[#allocation9 + $0x3d0] sm:$0xff]
        %v2822 = vld [vmem:[#allocation9 + $0x3d8] sm:$0xff]
        %v2823 = vld [vmem:[#allocation9 + $0x3e0] sm:$0xff]
        %v2824 = vld [vmem:[#allocation9 + $0x3e8] sm:$0xff]
        %v2825 = vld [vmem:[#allocation9 + $0x3f0] sm:$0xff]
        %v2826 = vld [vmem:[#allocation9 + $0x3f8] sm:$0xff]
        %v2827 = vld [vmem:[#allocation9 + $0x400] sm:$0xff]
        %v2828 = vld [vmem:[#allocation9 + $0x408] sm:$0xff]
        %v2829 = vld [vmem:[#allocation9 + $0x410] sm:$0xff]
        %v2830 = vld [vmem:[#allocation9 + $0x418] sm:$0xff]
        %v2831 = vld [vmem:[#allocation9 + $0x420] sm:$0xff]
        %v2832 = vld [vmem:[#allocation9 + $0x428] sm:$0xff]
        %v2833 = vld [vmem:[#allocation9 + $0x430] sm:$0xff]
        %v2834 = vld [vmem:[#allocation9 + $0x438] sm:$0xff]
        %v2835 = vld [vmem:[#allocation9 + $0x440] sm:$0xff]
        %v2836 = vld [vmem:[#allocation9 + $0x448] sm:$0xff]
        %v2837 = vld [vmem:[#allocation9 + $0x450] sm:$0xff]
        %v2838 = vld [vmem:[#allocation9 + $0x458] sm:$0xff]
        %v2839 = vld [vmem:[#allocation9 + $0x460] sm:$0xff]
        %v2840 = vld [vmem:[#allocation9 + $0x468] sm:$0xff]
        %v2841 = vld [vmem:[#allocation9 + $0x470] sm:$0xff]
        %v2842 = vld [vmem:[#allocation9 + $0x478] sm:$0xff]
        %v2843 = vld [vmem:[#allocation9 + $0x480] sm:$0xff]
        %v2844 = vld [vmem:[#allocation9 + $0x488] sm:$0xff]
        %v2845 = vld [vmem:[#allocation9 + $0x490] sm:$0xff]
        %v2846 = vld [vmem:[#allocation9 + $0x498] sm:$0xff]
        %v2847 = vld [vmem:[#allocation9 + $0x4a0] sm:$0xff]
        %v2848 = vld [vmem:[#allocation9 + $0x4a8] sm:$0xff]
        %v2849 = vld [vmem:[#allocation9 + $0x4b0] sm:$0xff]
        %v2850 = vld [vmem:[#allocation9 + $0x4b8] sm:$0xff]
        %v2851 = vld [vmem:[#allocation9 + $0x4c0] sm:$0xff]
        %v2852 = vld [vmem:[#allocation9 + $0x4c8] sm:$0xff]
        %v2853 = vld [vmem:[#allocation9 + $0x4d0] sm:$0xff]
        %v2854 = vld [vmem:[#allocation9 + $0x4d8] sm:$0xff]
        %v2855 = vld [vmem:[#allocation9 + $0x4e0] sm:$0xff]
        %v2856 = vld [vmem:[#allocation9 + $0x4e8] sm:$0xff]
        %v2857 = vld [vmem:[#allocation9 + $0x4f0] sm:$0xff]
        %v2858 = vld [vmem:[#allocation9 + $0x4f8] sm:$0xff]
        %v2859 = vld [vmem:[#allocation9 + $0x500] sm:$0xff]
        %v2860 = vld [vmem:[#allocation9 + $0x508] sm:$0xff]
        %v2861 = vld [vmem:[#allocation9 + $0x510] sm:$0xff]
        %v2862 = vld [vmem:[#allocation9 + $0x518] sm:$0xff]
        %v2863 = vld [vmem:[#allocation9 + $0x520] sm:$0xff]
        %v2864 = vld [vmem:[#allocation9 + $0x528] sm:$0xff]
        %v2865 = vld [vmem:[#allocation9 + $0x530] sm:$0xff]
        %v2866 = vld [vmem:[#allocation9 + $0x538] sm:$0xff]
        %v2867 = vld [vmem:[#allocation9 + $0x540] sm:$0xff]
        %v2868 = vld [vmem:[#allocation9 + $0x548] sm:$0xff]
        %v2869 = vld [vmem:[#allocation9 + $0x550] sm:$0xff]
        %v2870 = vld [vmem:[#allocation9 + $0x558] sm:$0xff]
        %v2871 = vld [vmem:[#allocation9 + $0x560] sm:$0xff]
        %v2872 = vld [vmem:[#allocation9 + $0x568] sm:$0xff]
        %v2873 = vld [vmem:[#allocation9 + $0x570] sm:$0xff]
        %v2874 = vld [vmem:[#allocation9 + $0x578] sm:$0xff]
        %v2875 = vld [vmem:[#allocation9 + $0x580] sm:$0xff]
        %v2876 = vld [vmem:[#allocation9 + $0x588] sm:$0xff]
        %v2877 = vld [vmem:[#allocation9 + $0x590] sm:$0xff]
        %v2878 = vld [vmem:[#allocation9 + $0x598] sm:$0xff]
        %v2879 = vld [vmem:[#allocation9 + $0x5a0] sm:$0xff]
        %v2880 = vld [vmem:[#allocation9 + $0x5a8] sm:$0xff]
        %v2881 = vld [vmem:[#allocation9 + $0x5b0] sm:$0xff]
        %v2882 = vld [vmem:[#allocation9 + $0x5b8] sm:$0xff]
        %v2883 = vld [vmem:[#allocation9 + $0x5c0] sm:$0xff]
        %v2884 = vld [vmem:[#allocation9 + $0x5c8] sm:$0xff]
        %v2885 = vld [vmem:[#allocation9 + $0x5d0] sm:$0xff]
        %v2886 = vld [vmem:[#allocation9 + $0x5d8] sm:$0xff]
        %v2887 = vld [vmem:[#allocation9 + $0x5e0] sm:$0xff]
        %v2888 = vld [vmem:[#allocation9 + $0x5e8] sm:$0xff]
        %v2889 = vld [vmem:[#allocation9 + $0x5f0] sm:$0xff]
        %v2890 = vld [vmem:[#allocation9 + $0x5f8] sm:$0xff]
        %v2891 = vld [vmem:[#allocation9 + $0x600] sm:$0xff]
        %v2892 = vld [vmem:[#allocation9 + $0x608] sm:$0xff]
        %v2893 = vld [vmem:[#allocation9 + $0x610] sm:$0xff]
        %v2894 = vld [vmem:[#allocation9 + $0x618] sm:$0xff]
        %v2895 = vld [vmem:[#allocation9 + $0x620] sm:$0xff]
        %v2896 = vld [vmem:[#allocation9 + $0x628] sm:$0xff]
        %v2897 = vld [vmem:[#allocation9 + $0x630] sm:$0xff]
        %v2898 = vld [vmem:[#allocation9 + $0x638] sm:$0xff]
        %v2899 = vld [vmem:[#allocation9 + $0x640] sm:$0xff]
        %v2900 = vld [vmem:[#allocation9 + $0x648] sm:$0xff]
        %v2901 = vld [vmem:[#allocation9 + $0x650] sm:$0xff]
        %v2902 = vld [vmem:[#allocation9 + $0x658] sm:$0xff]
        %v2903 = vld [vmem:[#allocation9 + $0x660] sm:$0xff]
        %v2904 = vld [vmem:[#allocation9 + $0x668] sm:$0xff]
        %v2905 = vld [vmem:[#allocation9 + $0x670] sm:$0xff]
        %v2906 = vld [vmem:[#allocation9 + $0x678] sm:$0xff]
        %v2907 = vld [vmem:[#allocation9 + $0x680] sm:$0xff]
        %v2908 = vld [vmem:[#allocation9 + $0x688] sm:$0xff]
        %v2909 = vld [vmem:[#allocation9 + $0x690] sm:$0xff]
        %v2910 = vld [vmem:[#allocation9 + $0x698] sm:$0xff]
        %v2911 = vld [vmem:[#allocation9 + $0x6a0] sm:$0xff]
        %v2912 = vld [vmem:[#allocation9 + $0x6a8] sm:$0xff]
        %v2913 = vld [vmem:[#allocation9 + $0x6b0] sm:$0xff]
        %v2914 = vld [vmem:[#allocation9 + $0x6b8] sm:$0xff]
        %v2915 = vld [vmem:[#allocation9 + $0x6c0] sm:$0xff]
        %v2916 = vld [vmem:[#allocation9 + $0x6c8] sm:$0xff]
        %v2917 = vld [vmem:[#allocation9 + $0x6d0] sm:$0xff]
        %v2918 = vld [vmem:[#allocation9 + $0x6d8] sm:$0xff]
        %v2919 = vld [vmem:[#allocation9 + $0x6e0] sm:$0xff]
        %v2920 = vld [vmem:[#allocation9 + $0x6e8] sm:$0xff]
        %v2921 = vld [vmem:[#allocation9 + $0x6f0] sm:$0xff]
        %v2922 = vld [vmem:[#allocation9 + $0x6f8] sm:$0xff]
        %vm2923 = vcmask 523264
        %v2924 = vsel %vm2923, 0.0, 0
        %v2927 = vsel %vm2923, %v2429, 0
        %v2930 = vsel %vm2923, %v2433, 0
        %v2933 = vsel %vm2923, %v2437, 0
        %v2936 = vsel %vm2923, %v2441, 0
        %v2939 = vsel %vm2923, %v2445, 0
        %v2942 = vsel %vm2923, %v2449, 0
        %v2945 = vsel %vm2923, %v2453, 0
        %v2948 = vsel %vm2923, %v2457, 0
        %v2951 = vsel %vm2923, %v2461, 0
        %v2954 = vsel %vm2923, %v2465, 0
        %2956 = vmatprep.subr.mxu0 %v2700
        %2957 = vmatpush1.msra.mxu0 %v2699
        %2958 = vmatprep.subr.mxu0 %v2704
        %2959 = vmatpush1.msra.mxu0 %v2703
        %2960 = vmatprep.subr.mxu0 %v2708
        %2961 = vmatpush1.msra.mxu0 %v2707
        %2962 = vmatprep.subr.mxu0 %v2712
        %2963 = vmatpush1.msra.mxu0 %v2711
        %2964 = vmatprep.subr.mxu0 %v2716
        %2965 = vmatpush1.msra.mxu0 %v2715
        %2966 = vmatprep.subr.mxu0 %v2720
        %2967 = vmatpush1.msra.mxu0 %v2719
        %2968 = vmatprep.subr.mxu0 %v2724
        %2969 = vmatpush1.msra.mxu0 %v2723
        %2970 = vmatprep.subr.mxu0 %v2728
        %2971 = vmatpush1.msra.mxu0 %v2727
        %2972 = vmatprep.subr.mxu0 %v2732
        %2973 = vmatpush1.msra.mxu0 %v2731
        %2974 = vmatprep.subr.mxu0 %v2736
        %2975 = vmatpush1.msra.mxu0 %v2735
        %2976 = vmatprep.subr.mxu0 %v2740
        %2977 = vmatpush1.msra.mxu0 %v2739
        %2978 = vmatprep.subr.mxu0 %v2744
        %2979 = vmatpush1.msra.mxu0 %v2743
        %2980 = vmatprep.subr.mxu0 %v2748
        %2981 = vmatpush1.msra.mxu0 %v2747
        %2982 = vmatprep.subr.mxu0 %v2752
        %2983 = vmatpush1.msra.mxu0 %v2751
        %2984 = vmatprep.subr.mxu0 %v2756
        %2985 = vmatpush1.msra.mxu0 %v2755
        %2986 = vmatprep.subr.mxu0 %v2760
        %2987 = vmatpush1.msra.mxu0 %v2759
        %2988 = vmatprep.subr.mxu0 %v2764
        %2989 = vmatpush1.msra.mxu0 %v2763
        %2990 = vmatprep.subr.mxu0 %v2768
        %2991 = vmatpush1.msra.mxu0 %v2767
        %2992 = vmatprep.subr.mxu0 %v2772
        %2993 = vmatpush1.msra.mxu0 %v2771
        %2994 = vmatprep.subr.mxu0 %v2776
        %2995 = vmatpush1.msra.mxu0 %v2775
        %2996 = vmatprep.subr.mxu0 %v2780
        %2997 = vmatpush1.msra.mxu0 %v2779
        %2998 = vmatprep.subr.mxu0 %v2784
        %2999 = vmatpush1.msra.mxu0 %v2783
        %3000 = vmatprep.subr.mxu0 %v2788
        %3001 = vmatpush1.msra.mxu0 %v2787
        %3002 = vmatprep.subr.mxu0 %v2792
        %3003 = vmatpush1.msra.mxu0 %v2791
        %3004 = vmatprep.subr.mxu0 %v2796
        %3005 = vmatpush1.msra.mxu0 %v2795
        %3006 = vmatprep.subr.mxu0 %v2800
        %3007 = vmatpush1.msra.mxu0 %v2799
        %3008 = vmatprep.subr.mxu0 %v2804
        %3009 = vmatpush1.msra.mxu0 %v2803
        %3010 = vmatprep.subr.mxu0 %v2808
        %3011 = vmatpush1.msra.mxu0 %v2807
        %3012 = vmatprep.subr.mxu0 %v2812
        %3013 = vmatpush1.msra.mxu0 %v2811
        %3014 = vmatprep.subr.mxu0 %v2816
        %3015 = vmatpush1.msra.mxu0 %v2815
        %3016 = vmatprep.subr.mxu0 %v2820
        %3017 = vmatpush1.msra.mxu0 %v2819
        %3018 = vmatprep.subr.mxu0 %v2824
        %3019 = vmatpush1.msra.mxu0 %v2823
        %3020 = vmatprep.mubr.f32.mxu0 0.0
        %3021 = vmatmul.mubr.f32.gmra.mrb[0].mxu0 0.0
        %v3022 = vpop.f32.mrb[0].mxu0
        %v3023 = vadd.f32 0.0, %v3022
        %v3024 = vpop.f32.mrb[0].mxu0
        %v3025 = vadd.f32 0.0, %v3024
        %3026 = vmatprep.mubr.f32.mxu0 0.0
        %3027 = vmatmul.mubr.f32.gmra.mrb[0].mxu0 0.0
        %v3028 = vpop.f32.mrb[0].mxu0
        %v3029 = vadd.f32 0.0, %v3028
        %v3030 = vpop.f32.mrb[0].mxu0
        %v3031 = vadd.f32 0.0, %v3030
        %3032 = vmatprep.mubr.f32.mxu0 %v2427
        %3033 = vmatmul.mubr.f32.gmra.mrb[0].mxu0 %v2426
        %v3034 = vpop.f32.mrb[0].mxu0
        %v3035 = vadd.f32 0.0, %v3034
        %v3036 = vpop.f32.mrb[0].mxu0
        %v3037 = vadd.f32 0.0, %v3036
        %3038 = vmatprep.mubr.f32.mxu0 %v2431
        %3039 = vmatmul.mubr.f32.gmra.mrb[0].mxu0 %v2430
        %v3040 = vpop.f32.mrb[0].mxu0
        %v3041 = vadd.f32 0.0, %v3040
        %v3042 = vpop.f32.mrb[0].mxu0
        %v3043 = vadd.f32 0.0, %v3042
        %3044 = vmatprep.mubr.f32.mxu0 %v2435
        %3045 = vmatmul.mubr.f32.gmra.mrb[0].mxu0 %v2434
        %v3046 = vpop.f32.mrb[0].mxu0
        %v3047 = vadd.f32 0.0, %v3046
        %v3048 = vpop.f32.mrb[0].mxu0
        %v3049 = vadd.f32 0.0, %v3048
        %3050 = vmatprep.mubr.f32.mxu0 %v2439
        %3051 = vmatmul.mubr.f32.gmra.mrb[0].mxu0 %v2438
        %v3052 = vpop.f32.mrb[0].mxu0
        %v3053 = vadd.f32 0.0, %v3052
        %v3054 = vpop.f32.mrb[0].mxu0
        %v3055 = vadd.f32 0.0, %v3054
        %3056 = vmatprep.mubr.f32.mxu0 %v2443
        %3057 = vmatmul.mubr.f32.gmra.mrb[0].mxu0 %v2442
        %v3058 = vpop.f32.mrb[0].mxu0
        %v3059 = vadd.f32 0.0, %v3058
        %v3060 = vpop.f32.mrb[0].mxu0
        %v3061 = vadd.f32 0.0, %v3060
        %3062 = vmatprep.mubr.f32.mxu0 %v2447
        %3063 = vmatmul.mubr.f32.gmra.mrb[0].mxu0 %v2446
        %v3064 = vpop.f32.mrb[0].mxu0
        %v3065 = vadd.f32 0.0, %v3064
        %v3066 = vpop.f32.mrb[0].mxu0
        %v3067 = vadd.f32 0.0, %v3066
        %3068 = vmatprep.mubr.f32.mxu0 %v2451
        %3069 = vmatmul.mubr.f32.gmra.mrb[0].mxu0 %v2450
        %v3070 = vpop.f32.mrb[0].mxu0
        %v3071 = vadd.f32 0.0, %v3070
        %v3072 = vpop.f32.mrb[0].mxu0
        %v3073 = vadd.f32 0.0, %v3072
        %3074 = vmatprep.mubr.f32.mxu0 %v2455
        %3075 = vmatmul.mubr.f32.gmra.mrb[0].mxu0 %v2454
        %v3076 = vpop.f32.mrb[0].mxu0
        %v3077 = vadd.f32 0.0, %v3076
        %v3078 = vpop.f32.mrb[0].mxu0
        %v3079 = vadd.f32 0.0, %v3078
        %3080 = vmatprep.mubr.f32.mxu0 %v2459
        %3081 = vmatmul.mubr.f32.gmra.mrb[0].mxu0 %v2458
        %v3082 = vpop.f32.mrb[0].mxu0
        %v3083 = vadd.f32 0.0, %v3082
        %v3084 = vpop.f32.mrb[0].mxu0
        %v3085 = vadd.f32 0.0, %v3084
        %3086 = vmatprep.mubr.f32.mxu0 %v2463
        %3087 = vmatmul.mubr.f32.gmra.mrb[0].mxu0 %v2462
        %v3088 = vpop.f32.mrb[0].mxu0
        %v3089 = vadd.f32 0.0, %v3088
        %v3090 = vpop.f32.mrb[0].mxu0
        %v3091 = vadd.f32 0.0, %v3090
        %3092 = vdwg.mxu0
        %3093 = vmatprep.subr.mxu0 %v2828
        %3094 = vmatpush1.msra.mxu0 %v2827
        %3095 = vmatprep.subr.mxu0 %v2832
        %3096 = vmatpush1.msra.mxu0 %v2831
        %3097 = vmatprep.subr.mxu0 %v2836
        %3098 = vmatpush1.msra.mxu0 %v2835
        %3099 = vmatprep.subr.mxu0 %v2840
        %3100 = vmatpush1.msra.mxu0 %v2839
        %3101 = vmatprep.subr.mxu0 %v2844
        %3102 = vmatpush1.msra.mxu0 %v2843
        %3103 = vmatprep.subr.mxu0 %v2848
        %3104 = vmatpush1.msra.mxu0 %v2847
        %3105 = vmatprep.subr.mxu0 %v2852
        %3106 = vmatpush1.msra.mxu0 %v2851
        %3107 = vmatprep.subr.mxu0 %v2856
        %3108 = vmatpush1.msra.mxu0 %v2855
        %3109 = vmatprep.subr.mxu0 %v2860
        %3110 = vmatpush1.msra.mxu0 %v2859
        %3111 = vmatprep.subr.mxu0 %v2864
        %3112 = vmatpush1.msra.mxu0 %v2863
        %3113 = vmatprep.subr.mxu0 %v2868
        %3114 = vmatpush1.msra.mxu0 %v2867
        %3115 = vmatprep.subr.mxu0 %v2872
        %3116 = vmatpush1.msra.mxu0 %v2871
        %3117 = vmatprep.subr.mxu0 %v2876
        %3118 = vmatpush1.msra.mxu0 %v2875
        %3119 = vmatprep.subr.mxu0 %v2880
        %3120 = vmatpush1.msra.mxu0 %v2879
        %3121 = vmatprep.subr.mxu0 %v2884
        %3122 = vmatpush1.msra.mxu0 %v2883
        %3123 = vmatprep.subr.mxu0 %v2888
        %3124 = vmatpush1.msra.mxu0 %v2887
        %3125 = vmatprep.subr.mxu0 %v2892
        %3126 = vmatpush1.msra.mxu0 %v2891
        %3127 = vmatprep.subr.mxu0 %v2896
        %3128 = vmatpush1.msra.mxu0 %v2895
        %3129 = vmatprep.subr.mxu0 %v2900
        %3130 = vmatpush1.msra.mxu0 %v2899
        %3131 = vmatprep.subr.mxu0 %v2904
        %3132 = vmatpush1.msra.mxu0 %v2903
        %3133 = vmatprep.subr.mxu0 %v2908
        %3134 = vmatpush1.msra.mxu0 %v2907
        %3135 = vmatprep.subr.mxu0 %v2912
        %3136 = vmatpush1.msra.mxu0 %v2911
        %3137 = vmatprep.subr.mxu0 %v2916
        %3138 = vmatpush1.msra.mxu0 %v2915
        %3139 = vmatprep.subr.mxu0 %v2920
        %3140 = vmatpush1.msra.mxu0 %v2919
        %3141 = vmatprep.subr.mxu0 0.0
        %3142 = vmatpush1.msra.mxu0 0.0
        %3143 = vmatprep.subr.mxu0 0.0
        %3144 = vmatpush1.msra.mxu0 0.0
        %3145 = vmatprep.subr.mxu0 0.0
        %3146 = vmatpush1.msra.mxu0 0.0
        %3147 = vmatprep.subr.mxu0 0.0
        %3148 = vmatpush1.msra.mxu0 0.0
        %3149 = vmatprep.subr.mxu0 0.0
        %3150 = vmatpush1.msra.mxu0 0.0
        %3151 = vmatprep.subr.mxu0 0.0
        %3152 = vmatpush1.msra.mxu0 0.0
        %3153 = vmatprep.subr.mxu0 0.0
        %3154 = vmatpush1.msra.mxu0 0.0
        %3155 = vmatprep.subr.mxu0 0.0
        %3156 = vmatpush1.msra.mxu0 0.0
        %3157 = vmatprep.mubr.f32.mxu0 %v2924
        %3158 = vmatmul.mubr.f32.gmra.mrb[0].mxu0 0.0
        %v3159 = vpop.f32.mrb[0].mxu0
        %v3160 = vadd.f32 %v3023, %v3159
        %v3161 = vpop.f32.mrb[0].mxu0
        %v3162 = vadd.f32 %v3025, %v3161
        %3163 = vmatprep.mubr.f32.mxu0 %v2924
        %3164 = vmatmul.mubr.f32.gmra.mrb[0].mxu0 0.0
        %v3165 = vpop.f32.mrb[0].mxu0
        %v3166 = vadd.f32 %v3029, %v3165
        %v3167 = vpop.f32.mrb[0].mxu0
        %v3168 = vadd.f32 %v3031, %v3167
        %3169 = vmatprep.mubr.f32.mxu0 %v2927
        %3170 = vmatmul.mubr.f32.gmra.mrb[0].mxu0 %v2428
        %v3171 = vpop.f32.mrb[0].mxu0
        %v3172 = vadd.f32 %v3035, %v3171
        %v3173 = vpop.f32.mrb[0].mxu0
        %v3174 = vadd.f32 %v3037, %v3173
        %3175 = vmatprep.mubr.f32.mxu0 %v2930
        %3176 = vmatmul.mubr.f32.gmra.mrb[0].mxu0 %v2432
        %v3177 = vpop.f32.mrb[0].mxu0
        %v3178 = vadd.f32 %v3041, %v3177
        %v3179 = vpop.f32.mrb[0].mxu0
        %v3180 = vadd.f32 %v3043, %v3179
        %3181 = vmatprep.mubr.f32.mxu0 %v2933
        %3182 = vmatmul.mubr.f32.gmra.mrb[0].mxu0 %v2436
        %v3183 = vpop.f32.mrb[0].mxu0
        %v3184 = vadd.f32 %v3047, %v3183
        %v3185 = vpop.f32.mrb[0].mxu0
        %v3186 = vadd.f32 %v3049, %v3185
        %3187 = vmatprep.mubr.f32.mxu0 %v2936
        %3188 = vmatmul.mubr.f32.gmra.mrb[0].mxu0 %v2440
        %v3189 = vpop.f32.mrb[0].mxu0
        %v3190 = vadd.f32 %v3053, %v3189
        %v3191 = vpop.f32.mrb[0].mxu0
        %v3192 = vadd.f32 %v3055, %v3191
        %3193 = vmatprep.mubr.f32.mxu0 %v2939
        %3194 = vmatmul.mubr.f32.gmra.mrb[0].mxu0 %v2444
        %v3195 = vpop.f32.mrb[0].mxu0
        %v3196 = vadd.f32 %v3059, %v3195
        %v3197 = vpop.f32.mrb[0].mxu0
        %v3198 = vadd.f32 %v3061, %v3197
        %3199 = vmatprep.mubr.f32.mxu0 %v2942
        %3200 = vmatmul.mubr.f32.gmra.mrb[0].mxu0 %v2448
        %v3201 = vpop.f32.mrb[0].mxu0
        %v3202 = vadd.f32 %v3065, %v3201
        %v3203 = vpop.f32.mrb[0].mxu0
        %v3204 = vadd.f32 %v3067, %v3203
        %3205 = vmatprep.mubr.f32.mxu0 %v2945
        %3206 = vmatmul.mubr.f32.gmra.mrb[0].mxu0 %v2452
        %v3207 = vpop.f32.mrb[0].mxu0
        %v3208 = vadd.f32 %v3071, %v3207
        %v3209 = vpop.f32.mrb[0].mxu0
        %v3210 = vadd.f32 %v3073, %v3209
        %3211 = vmatprep.mubr.f32.mxu0 %v2948
        %3212 = vmatmul.mubr.f32.gmra.mrb[0].mxu0 %v2456
        %v3213 = vpop.f32.mrb[0].mxu0
        %v3214 = vadd.f32 %v3077, %v3213
        %v3215 = vpop.f32.mrb[0].mxu0
        %v3216 = vadd.f32 %v3079, %v3215
        %3217 = vmatprep.mubr.f32.mxu0 %v2951
        %3218 = vmatmul.mubr.f32.gmra.mrb[0].mxu0 %v2460
        %v3219 = vpop.f32.mrb[0].mxu0
        %v3220 = vadd.f32 %v3083, %v3219
        %v3221 = vpop.f32.mrb[0].mxu0
        %v3222 = vadd.f32 %v3085, %v3221
        %3223 = vmatprep.mubr.f32.mxu0 %v2954
        %3224 = vmatmul.mubr.f32.gmra.mrb[0].mxu0 %v2464
        %v3225 = vpop.f32.mrb[0].mxu0
        %v3226 = vadd.f32 %v3089, %v3225
        %v3227 = vpop.f32.mrb[0].mxu0
        %v3228 = vadd.f32 %v3091, %v3227
        %3229 = vdwg.mxu0
        %3230 = vmatprep.subr.mxu0 %v2702
        %3231 = vmatpush1.msra.mxu0 %v2701
        %3232 = vmatprep.subr.mxu0 %v2706
        %3233 = vmatpush1.msra.mxu0 %v2705
        %3234 = vmatprep.subr.mxu0 %v2710
        %3235 = vmatpush1.msra.mxu0 %v2709
        %3236 = vmatprep.subr.mxu0 %v2714
        %3237 = vmatpush1.msra.mxu0 %v2713
        %3238 = vmatprep.subr.mxu0 %v2718
        %3239 = vmatpush1.msra.mxu0 %v2717
        %3240 = vmatprep.subr.mxu0 %v2722
        %3241 = vmatpush1.msra.mxu0 %v2721
        %3242 = vmatprep.subr.mxu0 %v2726
        %3243 = vmatpush1.msra.mxu0 %v2725
        %3244 = vmatprep.subr.mxu0 %v2730
        %3245 = vmatpush1.msra.mxu0 %v2729
        %3246 = vmatprep.subr.mxu0 %v2734
        %3247 = vmatpush1.msra.mxu0 %v2733
        %3248 = vmatprep.subr.mxu0 %v2738
        %3249 = vmatpush1.msra.mxu0 %v2737
        %3250 = vmatprep.subr.mxu0 %v2742
        %3251 = vmatpush1.msra.mxu0 %v2741
        %3252 = vmatprep.subr.mxu0 %v2746
        %3253 = vmatpush1.msra.mxu0 %v2745
        %3254 = vmatprep.subr.mxu0 %v2750
        %3255 = vmatpush1.msra.mxu0 %v2749
        %3256 = vmatprep.subr.mxu0 %v2754
        %3257 = vmatpush1.msra.mxu0 %v2753
        %3258 = vmatprep.subr.mxu0 %v2758
        %3259 = vmatpush1.msra.mxu0 %v2757
        %3260 = vmatprep.subr.mxu0 %v2762
        %3261 = vmatpush1.msra.mxu0 %v2761
        %3262 = vmatprep.subr.mxu0 %v2766
        %3263 = vmatpush1.msra.mxu0 %v2765
        %3264 = vmatprep.subr.mxu0 %v2770
        %3265 = vmatpush1.msra.mxu0 %v2769
        %3266 = vmatprep.subr.mxu0 %v2774
        %3267 = vmatpush1.msra.mxu0 %v2773
        %3268 = vmatprep.subr.mxu0 %v2778
        %3269 = vmatpush1.msra.mxu0 %v2777
        %3270 = vmatprep.subr.mxu0 %v2782
        %3271 = vmatpush1.msra.mxu0 %v2781
        %3272 = vmatprep.subr.mxu0 %v2786
        %3273 = vmatpush1.msra.mxu0 %v2785
        %3274 = vmatprep.subr.mxu0 %v2790
        %3275 = vmatpush1.msra.mxu0 %v2789
        %3276 = vmatprep.subr.mxu0 %v2794
        %3277 = vmatpush1.msra.mxu0 %v2793
        %3278 = vmatprep.subr.mxu0 %v2798
        %3279 = vmatpush1.msra.mxu0 %v2797
        %3280 = vmatprep.subr.mxu0 %v2802
        %3281 = vmatpush1.msra.mxu0 %v2801
        %3282 = vmatprep.subr.mxu0 %v2806
        %3283 = vmatpush1.msra.mxu0 %v2805
        %3284 = vmatprep.subr.mxu0 %v2810
        %3285 = vmatpush1.msra.mxu0 %v2809
        %3286 = vmatprep.subr.mxu0 %v2814
        %3287 = vmatpush1.msra.mxu0 %v2813
        %3288 = vmatprep.subr.mxu0 %v2818
        %3289 = vmatpush1.msra.mxu0 %v2817
        %3290 = vmatprep.subr.mxu0 %v2822
        %3291 = vmatpush1.msra.mxu0 %v2821
        %3292 = vmatprep.subr.mxu0 %v2826
        %3293 = vmatpush1.msra.mxu0 %v2825
        %3294 = vmatprep.mubr.f32.mxu0 0.0
        %3295 = vmatmul.mubr.f32.gmra.mrb[0].mxu0 0.0
        %v3296 = vpop.f32.mrb[0].mxu0
        %v3297 = vadd.f32 0.0, %v3296
        %v3298 = vpop.f32.mrb[0].mxu0
        %v3299 = vadd.f32 0.0, %v3298
        %3300 = vmatprep.mubr.f32.mxu0 0.0
        %3301 = vmatmul.mubr.f32.gmra.mrb[0].mxu0 0.0
        %v3302 = vpop.f32.mrb[0].mxu0
        %v3303 = vadd.f32 0.0, %v3302
        %v3304 = vpop.f32.mrb[0].mxu0
        %v3305 = vadd.f32 0.0, %v3304
        %3306 = vmatprep.mubr.f32.mxu0 %v2427
        %3307 = vmatmul.mubr.f32.gmra.mrb[0].mxu0 %v2426
        %v3308 = vpop.f32.mrb[0].mxu0
        %v3309 = vadd.f32 0.0, %v3308
        %v3310 = vpop.f32.mrb[0].mxu0
        %v3311 = vadd.f32 0.0, %v3310
        %3312 = vmatprep.mubr.f32.mxu0 %v2431
        %3313 = vmatmul.mubr.f32.gmra.mrb[0].mxu0 %v2430
        %v3314 = vpop.f32.mrb[0].mxu0
        %v3315 = vadd.f32 0.0, %v3314
        %v3316 = vpop.f32.mrb[0].mxu0
        %v3317 = vadd.f32 0.0, %v3316
        %3318 = vmatprep.mubr.f32.mxu0 %v2435
        %3319 = vmatmul.mubr.f32.gmra.mrb[0].mxu0 %v2434
        %v3320 = vpop.f32.mrb[0].mxu0
        %v3321 = vadd.f32 0.0, %v3320
        %v3322 = vpop.f32.mrb[0].mxu0
        %v3323 = vadd.f32 0.0, %v3322
        %3324 = vmatprep.mubr.f32.mxu0 %v2439
        %3325 = vmatmul.mubr.f32.gmra.mrb[0].mxu0 %v2438
        %v3326 = vpop.f32.mrb[0].mxu0
        %v3327 = vadd.f32 0.0, %v3326
        %v3328 = vpop.f32.mrb[0].mxu0
        %v3329 = vadd.f32 0.0, %v3328
        %3330 = vmatprep.mubr.f32.mxu0 %v2443
        %3331 = vmatmul.mubr.f32.gmra.mrb[0].mxu0 %v2442
        %v3332 = vpop.f32.mrb[0].mxu0
        %v3333 = vadd.f32 0.0, %v3332
        %v3334 = vpop.f32.mrb[0].mxu0
        %v3335 = vadd.f32 0.0, %v3334
        %3336 = vmatprep.mubr.f32.mxu0 %v2447
        %3337 = vmatmul.mubr.f32.gmra.mrb[0].mxu0 %v2446
        %v3338 = vpop.f32.mrb[0].mxu0
        %v3339 = vadd.f32 0.0, %v3338
        %v3340 = vpop.f32.mrb[0].mxu0
        %v3341 = vadd.f32 0.0, %v3340
        %3342 = vmatprep.mubr.f32.mxu0 %v2451
        %3343 = vmatmul.mubr.f32.gmra.mrb[0].mxu0 %v2450
        %v3344 = vpop.f32.mrb[0].mxu0
        %v3345 = vadd.f32 0.0, %v3344
        %v3346 = vpop.f32.mrb[0].mxu0
        %v3347 = vadd.f32 0.0, %v3346
        %3348 = vmatprep.mubr.f32.mxu0 %v2455
        %3349 = vmatmul.mubr.f32.gmra.mrb[0].mxu0 %v2454
        %v3350 = vpop.f32.mrb[0].mxu0
        %v3351 = vadd.f32 0.0, %v3350
        %v3352 = vpop.f32.mrb[0].mxu0
        %v3353 = vadd.f32 0.0, %v3352
        %3354 = vmatprep.mubr.f32.mxu0 %v2459
        %3355 = vmatmul.mubr.f32.gmra.mrb[0].mxu0 %v2458
        %v3356 = vpop.f32.mrb[0].mxu0
        %v3357 = vadd.f32 0.0, %v3356
        %v3358 = vpop.f32.mrb[0].mxu0
        %v3359 = vadd.f32 0.0, %v3358
        %3360 = vmatprep.mubr.f32.mxu0 %v2463
        %3361 = vmatmul.mubr.f32.gmra.mrb[0].mxu0 %v2462
        %v3362 = vpop.f32.mrb[0].mxu0
        %v3363 = vadd.f32 0.0, %v3362
        %v3364 = vpop.f32.mrb[0].mxu0
        %v3365 = vadd.f32 0.0, %v3364
        %3366 = vdwg.mxu0
        %3367 = vmatprep.subr.mxu0 %v2830
        %3368 = vmatpush1.msra.mxu0 %v2829
        %3369 = vmatprep.subr.mxu0 %v2834
        %3370 = vmatpush1.msra.mxu0 %v2833
        %3371 = vmatprep.subr.mxu0 %v2838
        %3372 = vmatpush1.msra.mxu0 %v2837
        %3373 = vmatprep.subr.mxu0 %v2842
        %3374 = vmatpush1.msra.mxu0 %v2841
        %3375 = vmatprep.subr.mxu0 %v2846
        %3376 = vmatpush1.msra.mxu0 %v2845
        %3377 = vmatprep.subr.mxu0 %v2850
        %3378 = vmatpush1.msra.mxu0 %v2849
        %3379 = vmatprep.subr.mxu0 %v2854
        %3380 = vmatpush1.msra.mxu0 %v2853
        %3381 = vmatprep.subr.mxu0 %v2858
        %3382 = vmatpush1.msra.mxu0 %v2857
        %3383 = vmatprep.subr.mxu0 %v2862
        %3384 = vmatpush1.msra.mxu0 %v2861
        %3385 = vmatprep.subr.mxu0 %v2866
        %3386 = vmatpush1.msra.mxu0 %v2865
        %3387 = vmatprep.subr.mxu0 %v2870
        %3388 = vmatpush1.msra.mxu0 %v2869
        %3389 = vmatprep.subr.mxu0 %v2874
        %3390 = vmatpush1.msra.mxu0 %v2873
        %3391 = vmatprep.subr.mxu0 %v2878
        %3392 = vmatpush1.msra.mxu0 %v2877
        %3393 = vmatprep.subr.mxu0 %v2882
        %3394 = vmatpush1.msra.mxu0 %v2881
        %3395 = vmatprep.subr.mxu0 %v2886
        %3396 = vmatpush1.msra.mxu0 %v2885
        %3397 = vmatprep.subr.mxu0 %v2890
        %3398 = vmatpush1.msra.mxu0 %v2889
        %3399 = vmatprep.subr.mxu0 %v2894
        %3400 = vmatpush1.msra.mxu0 %v2893
        %3401 = vmatprep.subr.mxu0 %v2898
        %3402 = vmatpush1.msra.mxu0 %v2897
        %3403 = vmatprep.subr.mxu0 %v2902
        %3404 = vmatpush1.msra.mxu0 %v2901
        %3405 = vmatprep.subr.mxu0 %v2906
        %3406 = vmatpush1.msra.mxu0 %v2905
        %3407 = vmatprep.subr.mxu0 %v2910
        %3408 = vmatpush1.msra.mxu0 %v2909
        %3409 = vmatprep.subr.mxu0 %v2914
        %3410 = vmatpush1.msra.mxu0 %v2913
        %3411 = vmatprep.subr.mxu0 %v2918
        %3412 = vmatpush1.msra.mxu0 %v2917
        %3413 = vmatprep.subr.mxu0 %v2922
        %3414 = vmatpush1.msra.mxu0 %v2921
        %3415 = vmatprep.subr.mxu0 0.0
        %3416 = vmatpush1.msra.mxu0 0.0
        %3417 = vmatprep.subr.mxu0 0.0
        %3418 = vmatpush1.msra.mxu0 0.0
        %3419 = vmatprep.subr.mxu0 0.0
        %3420 = vmatpush1.msra.mxu0 0.0
        %3421 = vmatprep.subr.mxu0 0.0
        %3422 = vmatpush1.msra.mxu0 0.0
        %3423 = vmatprep.subr.mxu0 0.0
        %3424 = vmatpush1.msra.mxu0 0.0
        %3425 = vmatprep.subr.mxu0 0.0
        %3426 = vmatpush1.msra.mxu0 0.0
        %3427 = vmatprep.subr.mxu0 0.0
        %3428 = vmatpush1.msra.mxu0 0.0
        %3429 = vmatprep.subr.mxu0 0.0
        %3430 = vmatpush1.msra.mxu0 0.0
        %3431 = vmatprep.mubr.f32.mxu0 %v2924
        %3432 = vmatmul.mubr.f32.gmra.mrb[0].mxu0 0.0
        %v3433 = vpop.f32.mrb[0].mxu0
        %v3434 = vadd.f32 %v3297, %v3433
        %v3435 = vpop.f32.mrb[0].mxu0
        %v3436 = vadd.f32 %v3299, %v3435
        %3437 = vmatprep.mubr.f32.mxu0 %v2924
        %3438 = vmatmul.mubr.f32.gmra.mrb[0].mxu0 0.0
        %v3439 = vpop.f32.mrb[0].mxu0
        %v3440 = vadd.f32 %v3303, %v3439
        %v3441 = vpop.f32.mrb[0].mxu0
        %v3442 = vadd.f32 %v3305, %v3441
        %3443 = vmatprep.mubr.f32.mxu0 %v2927
        %3444 = vmatmul.mubr.f32.gmra.mrb[0].mxu0 %v2428
        %v3445 = vpop.f32.mrb[0].mxu0
        %v3446 = vadd.f32 %v3309, %v3445
        %v3447 = vpop.f32.mrb[0].mxu0
        %v3448 = vadd.f32 %v3311, %v3447
        %3449 = vmatprep.mubr.f32.mxu0 %v2930
        %3450 = vmatmul.mubr.f32.gmra.mrb[0].mxu0 %v2432
        %v3451 = vpop.f32.mrb[0].mxu0
        %v3452 = vadd.f32 %v3315, %v3451
        %v3453 = vpop.f32.mrb[0].mxu0
        %v3454 = vadd.f32 %v3317, %v3453
        %3455 = vmatprep.mubr.f32.mxu0 %v2933
        %3456 = vmatmul.mubr.f32.gmra.mrb[0].mxu0 %v2436
        %v3457 = vpop.f32.mrb[0].mxu0
        %v3458 = vadd.f32 %v3321, %v3457
        %v3459 = vpop.f32.mrb[0].mxu0
        %v3460 = vadd.f32 %v3323, %v3459
        %3461 = vmatprep.mubr.f32.mxu0 %v2936
        %3462 = vmatmul.mubr.f32.gmra.mrb[0].mxu0 %v2440
        %v3463 = vpop.f32.mrb[0].mxu0
        %v3464 = vadd.f32 %v3327, %v3463
        %v3465 = vpop.f32.mrb[0].mxu0
        %v3466 = vadd.f32 %v3329, %v3465
        %3467 = vmatprep.mubr.f32.mxu0 %v2939
        %3468 = vmatmul.mubr.f32.gmra.mrb[0].mxu0 %v2444
        %v3469 = vpop.f32.mrb[0].mxu0
        %v3470 = vadd.f32 %v3333, %v3469
        %v3471 = vpop.f32.mrb[0].mxu0
        %v3472 = vadd.f32 %v3335, %v3471
        %3473 = vmatprep.mubr.f32.mxu0 %v2942
        %3474 = vmatmul.mubr.f32.gmra.mrb[0].mxu0 %v2448
        %v3475 = vpop.f32.mrb[0].mxu0
        %v3476 = vadd.f32 %v3339, %v3475
        %v3477 = vpop.f32.mrb[0].mxu0
        %v3478 = vadd.f32 %v3341, %v3477
        %3479 = vmatprep.mubr.f32.mxu0 %v2945
        %3480 = vmatmul.mubr.f32.gmra.mrb[0].mxu0 %v2452
        %v3481 = vpop.f32.mrb[0].mxu0
        %v3482 = vadd.f32 %v3345, %v3481
        %v3483 = vpop.f32.mrb[0].mxu0
        %v3484 = vadd.f32 %v3347, %v3483
        %3485 = vmatprep.mubr.f32.mxu0 %v2948
        %3486 = vmatmul.mubr.f32.gmra.mrb[0].mxu0 %v2456
        %v3487 = vpop.f32.mrb[0].mxu0
        %v3488 = vadd.f32 %v3351, %v3487
        %v3489 = vpop.f32.mrb[0].mxu0
        %v3490 = vadd.f32 %v3353, %v3489
        %3491 = vmatprep.mubr.f32.mxu0 %v2951
        %3492 = vmatmul.mubr.f32.gmra.mrb[0].mxu0 %v2460
        %v3493 = vpop.f32.mrb[0].mxu0
        %v3494 = vadd.f32 %v3357, %v3493
        %v3495 = vpop.f32.mrb[0].mxu0
        %v3496 = vadd.f32 %v3359, %v3495
        %3497 = vmatprep.mubr.f32.mxu0 %v2954
        %3498 = vmatmul.mubr.f32.gmra.mrb[0].mxu0 %v2464
        %v3499 = vpop.f32.mrb[0].mxu0
        %v3500 = vadd.f32 %v3363, %v3499
        %v3501 = vpop.f32.mrb[0].mxu0
        %v3502 = vadd.f32 %v3365, %v3501
        %3503 = vdwg.mxu0
        %v3505 = vsel %vm2923, %v2469, 0
        %v3508 = vsel %vm2923, %v2473, 0
        %3510 = vmatprep.subr.mxu0 %v2476
        %3511 = vmatpush1.msra.mxu0 %v2475
        %3512 = vmatprep.subr.mxu0 %v2480
        %3513 = vmatpush1.msra.mxu0 %v2479
        %3514 = vmatprep.subr.mxu0 %v2484
        %3515 = vmatpush1.msra.mxu0 %v2483
        %3516 = vmatprep.subr.mxu0 %v2488
        %3517 = vmatpush1.msra.mxu0 %v2487
        %3518 = vmatprep.subr.mxu0 %v2492
        %3519 = vmatpush1.msra.mxu0 %v2491
        %3520 = vmatprep.subr.mxu0 %v2496
        %3521 = vmatpush1.msra.mxu0 %v2495
        %3522 = vmatprep.subr.mxu0 %v2500
        %3523 = vmatpush1.msra.mxu0 %v2499
        %3524 = vmatprep.subr.mxu0 %v2504
        %3525 = vmatpush1.msra.mxu0 %v2503
        %3526 = vmatprep.subr.mxu0 %v2508
        %3527 = vmatpush1.msra.mxu0 %v2507
        %3528 = vmatprep.subr.mxu0 %v2512
        %3529 = vmatpush1.msra.mxu0 %v2511
        %3530 = vmatprep.subr.mxu0 %v2516
        %3531 = vmatpush1.msra.mxu0 %v2515
        %3532 = vmatprep.subr.mxu0 %v2520
        %3533 = vmatpush1.msra.mxu0 %v2519
        %3534 = vmatprep.subr.mxu0 %v2524
        %3535 = vmatpush1.msra.mxu0 %v2523
        %3536 = vmatprep.subr.mxu0 %v2528
        %3537 = vmatpush1.msra.mxu0 %v2527
        %3538 = vmatprep.subr.mxu0 %v2532
        %3539 = vmatpush1.msra.mxu0 %v2531
        %3540 = vmatprep.subr.mxu0 %v2536
        %3541 = vmatpush1.msra.mxu0 %v2535
        %3542 = vmatprep.subr.mxu0 %v2540
        %3543 = vmatpush1.msra.mxu0 %v2539
        %3544 = vmatprep.subr.mxu0 %v2544
        %3545 = vmatpush1.msra.mxu0 %v2543
        %3546 = vmatprep.subr.mxu0 %v2548
        %3547 = vmatpush1.msra.mxu0 %v2547
        %3548 = vmatprep.subr.mxu0 %v2552
        %3549 = vmatpush1.msra.mxu0 %v2551
        %3550 = vmatprep.subr.mxu0 %v2556
        %3551 = vmatpush1.msra.mxu0 %v2555
        %3552 = vmatprep.subr.mxu0 %v2560
        %3553 = vmatpush1.msra.mxu0 %v2559
        %3554 = vmatprep.subr.mxu0 %v2564
        %3555 = vmatpush1.msra.mxu0 %v2563
        %3556 = vmatprep.subr.mxu0 %v2568
        %3557 = vmatpush1.msra.mxu0 %v2567
        %3558 = vmatprep.subr.mxu0 %v2572
        %3559 = vmatpush1.msra.mxu0 %v2571
        %3560 = vmatprep.subr.mxu0 %v2576
        %3561 = vmatpush1.msra.mxu0 %v2575
        %3562 = vmatprep.subr.mxu0 %v2580
        %3563 = vmatpush1.msra.mxu0 %v2579
        %3564 = vmatprep.subr.mxu0 %v2584
        %3565 = vmatpush1.msra.mxu0 %v2583
        %3566 = vmatprep.subr.mxu0 %v2588
        %3567 = vmatpush1.msra.mxu0 %v2587
        %3568 = vmatprep.subr.mxu0 %v2592
        %3569 = vmatpush1.msra.mxu0 %v2591
        %3570 = vmatprep.subr.mxu0 %v2596
        %3571 = vmatpush1.msra.mxu0 %v2595
        %3572 = vmatprep.subr.mxu0 %v2600
        %3573 = vmatpush1.msra.mxu0 %v2599
        %3574 = vmatprep.mubr.f32.mxu0 %v2427
        %3575 = vmatmul.mubr.f32.gmra.mrb[0].mxu0 %v2426
        %v3576 = vpop.f32.mrb[0].mxu0
        %v3577 = vadd.f32 %v3160, %v3576
        %v3578 = vpop.f32.mrb[0].mxu0
        %v3579 = vadd.f32 %v3162, %v3578
        %3580 = vmatprep.mubr.f32.mxu0 %v2431
        %3581 = vmatmul.mubr.f32.gmra.mrb[0].mxu0 %v2430
        %v3582 = vpop.f32.mrb[0].mxu0
        %v3583 = vadd.f32 %v3166, %v3582
        %v3584 = vpop.f32.mrb[0].mxu0
        %v3585 = vadd.f32 %v3168, %v3584
        %3586 = vmatprep.mubr.f32.mxu0 %v2435
        %3587 = vmatmul.mubr.f32.gmra.mrb[0].mxu0 %v2434
        %v3588 = vpop.f32.mrb[0].mxu0
        %v3589 = vadd.f32 %v3172, %v3588
        %v3590 = vpop.f32.mrb[0].mxu0
        %v3591 = vadd.f32 %v3174, %v3590
        %3592 = vmatprep.mubr.f32.mxu0 %v2439
        %3593 = vmatmul.mubr.f32.gmra.mrb[0].mxu0 %v2438
        %v3594 = vpop.f32.mrb[0].mxu0
        %v3595 = vadd.f32 %v3178, %v3594
        %v3596 = vpop.f32.mrb[0].mxu0
        %v3597 = vadd.f32 %v3180, %v3596
        %3598 = vmatprep.mubr.f32.mxu0 %v2443
        %3599 = vmatmul.mubr.f32.gmra.mrb[0].mxu0 %v2442
        %v3600 = vpop.f32.mrb[0].mxu0
        %v3601 = vadd.f32 %v3184, %v3600
        %v3602 = vpop.f32.mrb[0].mxu0
        %v3603 = vadd.f32 %v3186, %v3602
        %3604 = vmatprep.mubr.f32.mxu0 %v2447
        %3605 = vmatmul.mubr.f32.gmra.mrb[0].mxu0 %v2446
        %v3606 = vpop.f32.mrb[0].mxu0
        %v3607 = vadd.f32 %v3190, %v3606
        %v3608 = vpop.f32.mrb[0].mxu0
        %v3609 = vadd.f32 %v3192, %v3608
        %3610 = vmatprep.mubr.f32.mxu0 %v2451
        %3611 = vmatmul.mubr.f32.gmra.mrb[0].mxu0 %v2450
        %v3612 = vpop.f32.mrb[0].mxu0
        %v3613 = vadd.f32 %v3196, %v3612
        %v3614 = vpop.f32.mrb[0].mxu0
        %v3615 = vadd.f32 %v3198, %v3614
        %3616 = vmatprep.mubr.f32.mxu0 %v2455
        %3617 = vmatmul.mubr.f32.gmra.mrb[0].mxu0 %v2454
        %v3618 = vpop.f32.mrb[0].mxu0
        %v3619 = vadd.f32 %v3202, %v3618
        %v3620 = vpop.f32.mrb[0].mxu0
        %v3621 = vadd.f32 %v3204, %v3620
        %3622 = vmatprep.mubr.f32.mxu0 %v2459
        %3623 = vmatmul.mubr.f32.gmra.mrb[0].mxu0 %v2458
        %v3624 = vpop.f32.mrb[0].mxu0
        %v3625 = vadd.f32 %v3208, %v3624
        %v3626 = vpop.f32.mrb[0].mxu0
        %v3627 = vadd.f32 %v3210, %v3626
        %3628 = vmatprep.mubr.f32.mxu0 %v2463
        %3629 = vmatmul.mubr.f32.gmra.mrb[0].mxu0 %v2462
        %v3630 = vpop.f32.mrb[0].mxu0
        %v3631 = vadd.f32 %v3214, %v3630
        %v3632 = vpop.f32.mrb[0].mxu0
        %v3633 = vadd.f32 %v3216, %v3632
        %3634 = vmatprep.mubr.f32.mxu0 %v2467
        %3635 = vmatmul.mubr.f32.gmra.mrb[0].mxu0 %v2466
        %v3636 = vpop.f32.mrb[0].mxu0
        %v3637 = vadd.f32 %v3220, %v3636
        %v3638 = vpop.f32.mrb[0].mxu0
        %v3639 = vadd.f32 %v3222, %v3638
        %3640 = vmatprep.mubr.f32.mxu0 %v2471
        %3641 = vmatmul.mubr.f32.gmra.mrb[0].mxu0 %v2470
        %v3642 = vpop.f32.mrb[0].mxu0
        %v3643 = vadd.f32 %v3226, %v3642
        %v3644 = vpop.f32.mrb[0].mxu0
        %v3645 = vadd.f32 %v3228, %v3644
        %3646 = vdwg.mxu0
        %3647 = vmatprep.subr.mxu0 %v2604
        %3648 = vmatpush1.msra.mxu0 %v2603
        %3649 = vmatprep.subr.mxu0 %v2608
        %3650 = vmatpush1.msra.mxu0 %v2607
        %3651 = vmatprep.subr.mxu0 %v2612
        %3652 = vmatpush1.msra.mxu0 %v2611
        %3653 = vmatprep.subr.mxu0 %v2616
        %3654 = vmatpush1.msra.mxu0 %v2615
        %3655 = vmatprep.subr.mxu0 %v2620
        %3656 = vmatpush1.msra.mxu0 %v2619
        %3657 = vmatprep.subr.mxu0 %v2624
        %3658 = vmatpush1.msra.mxu0 %v2623
        %3659 = vmatprep.subr.mxu0 %v2628
        %3660 = vmatpush1.msra.mxu0 %v2627
        %3661 = vmatprep.subr.mxu0 %v2632
        %3662 = vmatpush1.msra.mxu0 %v2631
        %3663 = vmatprep.subr.mxu0 %v2636
        %3664 = vmatpush1.msra.mxu0 %v2635
        %3665 = vmatprep.subr.mxu0 %v2640
        %3666 = vmatpush1.msra.mxu0 %v2639
        %3667 = vmatprep.subr.mxu0 %v2644
        %3668 = vmatpush1.msra.mxu0 %v2643
        %3669 = vmatprep.subr.mxu0 %v2648
        %3670 = vmatpush1.msra.mxu0 %v2647
        %3671 = vmatprep.subr.mxu0 %v2652
        %3672 = vmatpush1.msra.mxu0 %v2651
        %3673 = vmatprep.subr.mxu0 %v2656
        %3674 = vmatpush1.msra.mxu0 %v2655
        %3675 = vmatprep.subr.mxu0 %v2660
        %3676 = vmatpush1.msra.mxu0 %v2659
        %3677 = vmatprep.subr.mxu0 %v2664
        %3678 = vmatpush1.msra.mxu0 %v2663
        %3679 = vmatprep.subr.mxu0 %v2668
        %3680 = vmatpush1.msra.mxu0 %v2667
        %3681 = vmatprep.subr.mxu0 %v2672
        %3682 = vmatpush1.msra.mxu0 %v2671
        %3683 = vmatprep.subr.mxu0 %v2676
        %3684 = vmatpush1.msra.mxu0 %v2675
        %3685 = vmatprep.subr.mxu0 %v2680
        %3686 = vmatpush1.msra.mxu0 %v2679
        %3687 = vmatprep.subr.mxu0 %v2684
        %3688 = vmatpush1.msra.mxu0 %v2683
        %3689 = vmatprep.subr.mxu0 %v2688
        %3690 = vmatpush1.msra.mxu0 %v2687
        %3691 = vmatprep.subr.mxu0 %v2692
        %3692 = vmatpush1.msra.mxu0 %v2691
        %3693 = vmatprep.subr.mxu0 %v2696
        %3694 = vmatpush1.msra.mxu0 %v2695
        %3695 = vmatprep.subr.mxu0 0.0
        %3696 = vmatpush1.msra.mxu0 0.0
        %3697 = vmatprep.subr.mxu0 0.0
        %3698 = vmatpush1.msra.mxu0 0.0
        %3699 = vmatprep.subr.mxu0 0.0
        %3700 = vmatpush1.msra.mxu0 0.0
        %3701 = vmatprep.subr.mxu0 0.0
        %3702 = vmatpush1.msra.mxu0 0.0
        %3703 = vmatprep.subr.mxu0 0.0
        %3704 = vmatpush1.msra.mxu0 0.0
        %3705 = vmatprep.subr.mxu0 0.0
        %3706 = vmatpush1.msra.mxu0 0.0
        %3707 = vmatprep.subr.mxu0 0.0
        %3708 = vmatpush1.msra.mxu0 0.0
        %3709 = vmatprep.subr.mxu0 0.0
        %3710 = vmatpush1.msra.mxu0 0.0
        %3711 = vmatprep.mubr.f32.mxu0 %v2927
        %3712 = vmatmul.mubr.f32.gmra.mrb[0].mxu0 %v2428
        %v3713 = vpop.f32.mrb[0].mxu0
        %v3714 = vadd.f32 %v3577, %v3713
        %v3715 = vpop.f32.mrb[0].mxu0
        %v3716 = vadd.f32 %v3579, %v3715
        %3717 = vmatprep.mubr.f32.mxu0 %v2930
        %3718 = vmatmul.mubr.f32.gmra.mrb[0].mxu0 %v2432
        %v3719 = vpop.f32.mrb[0].mxu0
        %v3720 = vadd.f32 %v3583, %v3719
        %v3721 = vpop.f32.mrb[0].mxu0
        %v3722 = vadd.f32 %v3585, %v3721
        %3723 = vmatprep.mubr.f32.mxu0 %v2933
        %3724 = vmatmul.mubr.f32.gmra.mrb[0].mxu0 %v2436
        %v3725 = vpop.f32.mrb[0].mxu0
        %v3726 = vadd.f32 %v3589, %v3725
        %v3727 = vpop.f32.mrb[0].mxu0
        %v3728 = vadd.f32 %v3591, %v3727
        %3729 = vmatprep.mubr.f32.mxu0 %v2936
        %3730 = vmatmul.mubr.f32.gmra.mrb[0].mxu0 %v2440
        %v3731 = vpop.f32.mrb[0].mxu0
        %v3732 = vadd.f32 %v3595, %v3731
        %v3733 = vpop.f32.mrb[0].mxu0
        %v3734 = vadd.f32 %v3597, %v3733
        %3735 = vmatprep.mubr.f32.mxu0 %v2939
        %3736 = vmatmul.mubr.f32.gmra.mrb[0].mxu0 %v2444
        %v3737 = vpop.f32.mrb[0].mxu0
        %v3738 = vadd.f32 %v3601, %v3737
        %v3739 = vpop.f32.mrb[0].mxu0
        %v3740 = vadd.f32 %v3603, %v3739
        %3741 = vmatprep.mubr.f32.mxu0 %v2942
        %3742 = vmatmul.mubr.f32.gmra.mrb[0].mxu0 %v2448
        %v3743 = vpop.f32.mrb[0].mxu0
        %v3744 = vadd.f32 %v3607, %v3743
        %v3745 = vpop.f32.mrb[0].mxu0
        %v3746 = vadd.f32 %v3609, %v3745
        %3747 = vmatprep.mubr.f32.mxu0 %v2945
        %3748 = vmatmul.mubr.f32.gmra.mrb[0].mxu0 %v2452
        %v3749 = vpop.f32.mrb[0].mxu0
        %v3750 = vadd.f32 %v3613, %v3749
        %v3751 = vpop.f32.mrb[0].mxu0
        %v3752 = vadd.f32 %v3615, %v3751
        %3753 = vmatprep.mubr.f32.mxu0 %v2948
        %3754 = vmatmul.mubr.f32.gmra.mrb[0].mxu0 %v2456
        %v3755 = vpop.f32.mrb[0].mxu0
        %v3756 = vadd.f32 %v3619, %v3755
        %v3757 = vpop.f32.mrb[0].mxu0
        %v3758 = vadd.f32 %v3621, %v3757
        %3759 = vmatprep.mubr.f32.mxu0 %v2951
        %3760 = vmatmul.mubr.f32.gmra.mrb[0].mxu0 %v2460
        %v3761 = vpop.f32.mrb[0].mxu0
        %v3762 = vadd.f32 %v3625, %v3761
        %v3763 = vpop.f32.mrb[0].mxu0
        %v3764 = vadd.f32 %v3627, %v3763
        %3765 = vmatprep.mubr.f32.mxu0 %v2954
        %3766 = vmatmul.mubr.f32.gmra.mrb[0].mxu0 %v2464
        %v3767 = vpop.f32.mrb[0].mxu0
        %v3768 = vadd.f32 %v3631, %v3767
        %v3769 = vpop.f32.mrb[0].mxu0
        %v3770 = vadd.f32 %v3633, %v3769
        %3771 = vmatprep.mubr.f32.mxu0 %v3505
        %3772 = vmatmul.mubr.f32.gmra.mrb[0].mxu0 %v2468
        %v3773 = vpop.f32.mrb[0].mxu0
        %v3774 = vadd.f32 %v3637, %v3773
        %v3775 = vpop.f32.mrb[0].mxu0
        %v3776 = vadd.f32 %v3639, %v3775
        %3777 = vmatprep.mubr.f32.mxu0 %v3508
        %3778 = vmatmul.mubr.f32.gmra.mrb[0].mxu0 %v2472
        %v3779 = vpop.f32.mrb[0].mxu0
        %v3780 = vadd.f32 %v3643, %v3779
        %v3781 = vpop.f32.mrb[0].mxu0
        %v3782 = vadd.f32 %v3645, %v3781
        %3783 = vdwg.mxu0
        %3784 = vmatprep.subr.mxu0 %v2478
        %3785 = vmatpush1.msra.mxu0 %v2477
        %3786 = vmatprep.subr.mxu0 %v2482
        %3787 = vmatpush1.msra.mxu0 %v2481
        %3788 = vmatprep.subr.mxu0 %v2486
        %3789 = vmatpush1.msra.mxu0 %v2485
        %3790 = vmatprep.subr.mxu0 %v2490
        %3791 = vmatpush1.msra.mxu0 %v2489
        %3792 = vmatprep.subr.mxu0 %v2494
        %3793 = vmatpush1.msra.mxu0 %v2493
        %3794 = vmatprep.subr.mxu0 %v2498
        %3795 = vmatpush1.msra.mxu0 %v2497
        %3796 = vmatprep.subr.mxu0 %v2502
        %3797 = vmatpush1.msra.mxu0 %v2501
        %3798 = vmatprep.subr.mxu0 %v2506
        %3799 = vmatpush1.msra.mxu0 %v2505
        %3800 = vmatprep.subr.mxu0 %v2510
        %3801 = vmatpush1.msra.mxu0 %v2509
        %3802 = vmatprep.subr.mxu0 %v2514
        %3803 = vmatpush1.msra.mxu0 %v2513
        %3804 = vmatprep.subr.mxu0 %v2518
        %3805 = vmatpush1.msra.mxu0 %v2517
        %3806 = vmatprep.subr.mxu0 %v2522
        %3807 = vmatpush1.msra.mxu0 %v2521
        %3808 = vmatprep.subr.mxu0 %v2526
        %3809 = vmatpush1.msra.mxu0 %v2525
        %3810 = vmatprep.subr.mxu0 %v2530
        %3811 = vmatpush1.msra.mxu0 %v2529
        %3812 = vmatprep.subr.mxu0 %v2534
        %3813 = vmatpush1.msra.mxu0 %v2533
        %3814 = vmatprep.subr.mxu0 %v2538
        %3815 = vmatpush1.msra.mxu0 %v2537
        %3816 = vmatprep.subr.mxu0 %v2542
        %3817 = vmatpush1.msra.mxu0 %v2541
        %3818 = vmatprep.subr.mxu0 %v2546
        %3819 = vmatpush1.msra.mxu0 %v2545
        %3820 = vmatprep.subr.mxu0 %v2550
        %3821 = vmatpush1.msra.mxu0 %v2549
        %3822 = vmatprep.subr.mxu0 %v2554
        %3823 = vmatpush1.msra.mxu0 %v2553
        %3824 = vmatprep.subr.mxu0 %v2558
        %3825 = vmatpush1.msra.mxu0 %v2557
        %3826 = vmatprep.subr.mxu0 %v2562
        %3827 = vmatpush1.msra.mxu0 %v2561
        %3828 = vmatprep.subr.mxu0 %v2566
        %3829 = vmatpush1.msra.mxu0 %v2565
        %3830 = vmatprep.subr.mxu0 %v2570
        %3831 = vmatpush1.msra.mxu0 %v2569
        %3832 = vmatprep.subr.mxu0 %v2574
        %3833 = vmatpush1.msra.mxu0 %v2573
        %3834 = vmatprep.subr.mxu0 %v2578
        %3835 = vmatpush1.msra.mxu0 %v2577
        %3836 = vmatprep.subr.mxu0 %v2582
        %3837 = vmatpush1.msra.mxu0 %v2581
        %3838 = vmatprep.subr.mxu0 %v2586
        %3839 = vmatpush1.msra.mxu0 %v2585
        %3840 = vmatprep.subr.mxu0 %v2590
        %3841 = vmatpush1.msra.mxu0 %v2589
        %3842 = vmatprep.subr.mxu0 %v2594
        %3843 = vmatpush1.msra.mxu0 %v2593
        %3844 = vmatprep.subr.mxu0 %v2598
        %3845 = vmatpush1.msra.mxu0 %v2597
        %3846 = vmatprep.subr.mxu0 %v2602
        %3847 = vmatpush1.msra.mxu0 %v2601
        %3848 = vmatprep.mubr.f32.mxu0 %v2427
        %3849 = vmatmul.mubr.f32.gmra.mrb[0].mxu0 %v2426
        %v3850 = vpop.f32.mrb[0].mxu0
        %v3851 = vadd.f32 %v3434, %v3850
        %v3852 = vpop.f32.mrb[0].mxu0
        %v3853 = vadd.f32 %v3436, %v3852
        %3854 = vmatprep.mubr.f32.mxu0 %v2431
        %3855 = vmatmul.mubr.f32.gmra.mrb[0].mxu0 %v2430
        %v3856 = vpop.f32.mrb[0].mxu0
        %v3857 = vadd.f32 %v3440, %v3856
        %v3858 = vpop.f32.mrb[0].mxu0
        %v3859 = vadd.f32 %v3442, %v3858
        %3860 = vmatprep.mubr.f32.mxu0 %v2435
        %3861 = vmatmul.mubr.f32.gmra.mrb[0].mxu0 %v2434
        %v3862 = vpop.f32.mrb[0].mxu0
        %v3863 = vadd.f32 %v3446, %v3862
        %v3864 = vpop.f32.mrb[0].mxu0
        %v3865 = vadd.f32 %v3448, %v3864
        %3866 = vmatprep.mubr.f32.mxu0 %v2439
        %3867 = vmatmul.mubr.f32.gmra.mrb[0].mxu0 %v2438
        %v3868 = vpop.f32.mrb[0].mxu0
        %v3869 = vadd.f32 %v3452, %v3868
        %v3870 = vpop.f32.mrb[0].mxu0
        %v3871 = vadd.f32 %v3454, %v3870
        %3872 = vmatprep.mubr.f32.mxu0 %v2443
        %3873 = vmatmul.mubr.f32.gmra.mrb[0].mxu0 %v2442
        %v3874 = vpop.f32.mrb[0].mxu0
        %v3875 = vadd.f32 %v3458, %v3874
        %v3876 = vpop.f32.mrb[0].mxu0
        %v3877 = vadd.f32 %v3460, %v3876
        %3878 = vmatprep.mubr.f32.mxu0 %v2447
        %3879 = vmatmul.mubr.f32.gmra.mrb[0].mxu0 %v2446
        %v3880 = vpop.f32.mrb[0].mxu0
        %v3881 = vadd.f32 %v3464, %v3880
        %v3882 = vpop.f32.mrb[0].mxu0
        %v3883 = vadd.f32 %v3466, %v3882
        %3884 = vmatprep.mubr.f32.mxu0 %v2451
        %3885 = vmatmul.mubr.f32.gmra.mrb[0].mxu0 %v2450
        %v3886 = vpop.f32.mrb[0].mxu0
        %v3887 = vadd.f32 %v3470, %v3886
        %v3888 = vpop.f32.mrb[0].mxu0
        %v3889 = vadd.f32 %v3472, %v3888
        %3890 = vmatprep.mubr.f32.mxu0 %v2455
        %3891 = vmatmul.mubr.f32.gmra.mrb[0].mxu0 %v2454
        %v3892 = vpop.f32.mrb[0].mxu0
        %v3893 = vadd.f32 %v3476, %v3892
        %v3894 = vpop.f32.mrb[0].mxu0
        %v3895 = vadd.f32 %v3478, %v3894
        %3896 = vmatprep.mubr.f32.mxu0 %v2459
        %3897 = vmatmul.mubr.f32.gmra.mrb[0].mxu0 %v2458
        %v3898 = vpop.f32.mrb[0].mxu0
        %v3899 = vadd.f32 %v3482, %v3898
        %v3900 = vpop.f32.mrb[0].mxu0
        %v3901 = vadd.f32 %v3484, %v3900
        %3902 = vmatprep.mubr.f32.mxu0 %v2463
        %3903 = vmatmul.mubr.f32.gmra.mrb[0].mxu0 %v2462
        %v3904 = vpop.f32.mrb[0].mxu0
        %v3905 = vadd.f32 %v3488, %v3904
        %v3906 = vpop.f32.mrb[0].mxu0
        %v3907 = vadd.f32 %v3490, %v3906
        %3908 = vmatprep.mubr.f32.mxu0 %v2467
        %3909 = vmatmul.mubr.f32.gmra.mrb[0].mxu0 %v2466
        %v3910 = vpop.f32.mrb[0].mxu0
        %v3911 = vadd.f32 %v3494, %v3910
        %v3912 = vpop.f32.mrb[0].mxu0
        %v3913 = vadd.f32 %v3496, %v3912
        %3914 = vmatprep.mubr.f32.mxu0 %v2471
        %3915 = vmatmul.mubr.f32.gmra.mrb[0].mxu0 %v2470
        %v3916 = vpop.f32.mrb[0].mxu0
        %v3917 = vadd.f32 %v3500, %v3916
        %v3918 = vpop.f32.mrb[0].mxu0
        %v3919 = vadd.f32 %v3502, %v3918
        %3920 = vdwg.mxu0
        %3921 = vmatprep.subr.mxu0 %v2606
        %3922 = vmatpush1.msra.mxu0 %v2605
        %3923 = vmatprep.subr.mxu0 %v2610
        %3924 = vmatpush1.msra.mxu0 %v2609
        %3925 = vmatprep.subr.mxu0 %v2614
        %3926 = vmatpush1.msra.mxu0 %v2613
        %3927 = vmatprep.subr.mxu0 %v2618
        %3928 = vmatpush1.msra.mxu0 %v2617
        %3929 = vmatprep.subr.mxu0 %v2622
        %3930 = vmatpush1.msra.mxu0 %v2621
        %3931 = vmatprep.subr.mxu0 %v2626
        %3932 = vmatpush1.msra.mxu0 %v2625
        %3933 = vmatprep.subr.mxu0 %v2630
        %3934 = vmatpush1.msra.mxu0 %v2629
        %3935 = vmatprep.subr.mxu0 %v2634
        %3936 = vmatpush1.msra.mxu0 %v2633
        %3937 = vmatprep.subr.mxu0 %v2638
        %3938 = vmatpush1.msra.mxu0 %v2637
        %3939 = vmatprep.subr.mxu0 %v2642
        %3940 = vmatpush1.msra.mxu0 %v2641
        %3941 = vmatprep.subr.mxu0 %v2646
        %3942 = vmatpush1.msra.mxu0 %v2645
        %3943 = vmatprep.subr.mxu0 %v2650
        %3944 = vmatpush1.msra.mxu0 %v2649
        %3945 = vmatprep.subr.mxu0 %v2654
        %3946 = vmatpush1.msra.mxu0 %v2653
        %3947 = vmatprep.subr.mxu0 %v2658
        %3948 = vmatpush1.msra.mxu0 %v2657
        %3949 = vmatprep.subr.mxu0 %v2662
        %3950 = vmatpush1.msra.mxu0 %v2661
        %3951 = vmatprep.subr.mxu0 %v2666
        %3952 = vmatpush1.msra.mxu0 %v2665
        %3953 = vmatprep.subr.mxu0 %v2670
        %3954 = vmatpush1.msra.mxu0 %v2669
        %3955 = vmatprep.subr.mxu0 %v2674
        %3956 = vmatpush1.msra.mxu0 %v2673
        %3957 = vmatprep.subr.mxu0 %v2678
        %3958 = vmatpush1.msra.mxu0 %v2677
        %3959 = vmatprep.subr.mxu0 %v2682
        %3960 = vmatpush1.msra.mxu0 %v2681
        %3961 = vmatprep.subr.mxu0 %v2686
        %3962 = vmatpush1.msra.mxu0 %v2685
        %3963 = vmatprep.subr.mxu0 %v2690
        %3964 = vmatpush1.msra.mxu0 %v2689
        %3965 = vmatprep.subr.mxu0 %v2694
        %3966 = vmatpush1.msra.mxu0 %v2693
        %3967 = vmatprep.subr.mxu0 %v2698
        %3968 = vmatpush1.msra.mxu0 %v2697
        %3969 = vmatprep.subr.mxu0 0.0
        %3970 = vmatpush1.msra.mxu0 0.0
        %3971 = vmatprep.subr.mxu0 0.0
        %3972 = vmatpush1.msra.mxu0 0.0
        %3973 = vmatprep.subr.mxu0 0.0
        %3974 = vmatpush1.msra.mxu0 0.0
        %3975 = vmatprep.subr.mxu0 0.0
        %3976 = vmatpush1.msra.mxu0 0.0
        %3977 = vmatprep.subr.mxu0 0.0
        %3978 = vmatpush1.msra.mxu0 0.0
        %3979 = vmatprep.subr.mxu0 0.0
        %3980 = vmatpush1.msra.mxu0 0.0
        %3981 = vmatprep.subr.mxu0 0.0
        %3982 = vmatpush1.msra.mxu0 0.0
        %3983 = vmatprep.subr.mxu0 0.0
        %3984 = vmatpush1.msra.mxu0 0.0
        %3985 = vmatprep.mubr.f32.mxu0 %v2927
        %3986 = vmatmul.mubr.f32.gmra.mrb[0].mxu0 %v2428
        %v3987 = vpop.f32.mrb[0].mxu0
        %v3988 = vadd.f32 %v3851, %v3987
        %v3989 = vpop.f32.mrb[0].mxu0
        %v3990 = vadd.f32 %v3853, %v3989
        %3991 = vmatprep.mubr.f32.mxu0 %v2930
        %3992 = vmatmul.mubr.f32.gmra.mrb[0].mxu0 %v2432
        %v3993 = vpop.f32.mrb[0].mxu0
        %v3994 = vadd.f32 %v3857, %v3993
        %v3995 = vpop.f32.mrb[0].mxu0
        %v3996 = vadd.f32 %v3859, %v3995
        %3997 = vmatprep.mubr.f32.mxu0 %v2933
        %3998 = vmatmul.mubr.f32.gmra.mrb[0].mxu0 %v2436
        %v3999 = vpop.f32.mrb[0].mxu0
        %v4000 = vadd.f32 %v3863, %v3999
        %v4001 = vpop.f32.mrb[0].mxu0
        %v4002 = vadd.f32 %v3865, %v4001
        %4003 = vmatprep.mubr.f32.mxu0 %v2936
        %4004 = vmatmul.mubr.f32.gmra.mrb[0].mxu0 %v2440
        %v4005 = vpop.f32.mrb[0].mxu0
        %v4006 = vadd.f32 %v3869, %v4005
        %v4007 = vpop.f32.mrb[0].mxu0
        %v4008 = vadd.f32 %v3871, %v4007
        %4009 = vmatprep.mubr.f32.mxu0 %v2939
        %4010 = vmatmul.mubr.f32.gmra.mrb[0].mxu0 %v2444
        %v4011 = vpop.f32.mrb[0].mxu0
        %v4012 = vadd.f32 %v3875, %v4011
        %v4013 = vpop.f32.mrb[0].mxu0
        %v4014 = vadd.f32 %v3877, %v4013
        %4015 = vmatprep.mubr.f32.mxu0 %v2942
        %4016 = vmatmul.mubr.f32.gmra.mrb[0].mxu0 %v2448
        %v4017 = vpop.f32.mrb[0].mxu0
        %v4018 = vadd.f32 %v3881, %v4017
        %v4019 = vpop.f32.mrb[0].mxu0
        %v4020 = vadd.f32 %v3883, %v4019
        %4021 = vmatprep.mubr.f32.mxu0 %v2945
        %4022 = vmatmul.mubr.f32.gmra.mrb[0].mxu0 %v2452
        %v4023 = vpop.f32.mrb[0].mxu0
        %v4024 = vadd.f32 %v3887, %v4023
        %v4025 = vpop.f32.mrb[0].mxu0
        %v4026 = vadd.f32 %v3889, %v4025
        %4027 = vmatprep.mubr.f32.mxu0 %v2948
        %4028 = vmatmul.mubr.f32.gmra.mrb[0].mxu0 %v2456
        %v4029 = vpop.f32.mrb[0].mxu0
        %v4030 = vadd.f32 %v3893, %v4029
        %v4031 = vpop.f32.mrb[0].mxu0
        %v4032 = vadd.f32 %v3895, %v4031
        %4033 = vmatprep.mubr.f32.mxu0 %v2951
        %4034 = vmatmul.mubr.f32.gmra.mrb[0].mxu0 %v2460
        %v4035 = vpop.f32.mrb[0].mxu0
        %v4036 = vadd.f32 %v3899, %v4035
        %v4037 = vpop.f32.mrb[0].mxu0
        %v4038 = vadd.f32 %v3901, %v4037
        %4039 = vmatprep.mubr.f32.mxu0 %v2954
        %4040 = vmatmul.mubr.f32.gmra.mrb[0].mxu0 %v2464
        %v4041 = vpop.f32.mrb[0].mxu0
        %v4042 = vadd.f32 %v3905, %v4041
        %v4043 = vpop.f32.mrb[0].mxu0
        %v4044 = vadd.f32 %v3907, %v4043
        %4045 = vmatprep.mubr.f32.mxu0 %v3505
        %4046 = vmatmul.mubr.f32.gmra.mrb[0].mxu0 %v2468
        %v4047 = vpop.f32.mrb[0].mxu0
        %v4048 = vadd.f32 %v3911, %v4047
        %v4049 = vpop.f32.mrb[0].mxu0
        %v4050 = vadd.f32 %v3913, %v4049
        %4051 = vmatprep.mubr.f32.mxu0 %v3508
        %4052 = vmatmul.mubr.f32.gmra.mrb[0].mxu0 %v2472
        %v4053 = vpop.f32.mrb[0].mxu0
        %v4054 = vadd.f32 %v3917, %v4053
        %v4055 = vpop.f32.mrb[0].mxu0
        %v4056 = vadd.f32 %v3919, %v4055
        %4057 = vdwg.mxu0
        %s4058 = scalar_lea.vmem [#allocation9], 3584
        %v4059 = vld [vmem:[%s4058] sm:$0xff]
        %v4060 = vld [vmem:[%s4058 + $0x8] sm:$0xff]
        %v4061 = vld [vmem:[%s4058 + $0x10] sm:$0xff]
        %v4062 = vld [vmem:[%s4058 + $0x18] sm:$0xff]
        %v4063 = vld [vmem:[%s4058 + $0x20] sm:$0xff]
        %v4064 = vld [vmem:[%s4058 + $0x28] sm:$0xff]
        %v4065 = vld [vmem:[%s4058 + $0x30] sm:$0xff]
        %v4066 = vld [vmem:[%s4058 + $0x38] sm:$0xff]
        %v4067 = vld [vmem:[%s4058 + $0x40] sm:$0xff]
        %v4068 = vld [vmem:[%s4058 + $0x48] sm:$0xff]
        %v4069 = vld [vmem:[%s4058 + $0x50] sm:$0xff]
        %v4070 = vld [vmem:[%s4058 + $0x58] sm:$0xff]
        %v4071 = vld [vmem:[%s4058 + $0x60] sm:$0xff]
        %v4072 = vld [vmem:[%s4058 + $0x68] sm:$0xff]
        %v4073 = vld [vmem:[%s4058 + $0x70] sm:$0xff]
        %v4074 = vld [vmem:[%s4058 + $0x78] sm:$0xff]
        %v4075 = vld [vmem:[%s4058 + $0x80] sm:$0xff]
        %v4076 = vld [vmem:[%s4058 + $0x88] sm:$0xff]
        %v4077 = vld [vmem:[%s4058 + $0x90] sm:$0xff]
        %v4078 = vld [vmem:[%s4058 + $0x98] sm:$0xff]
        %v4079 = vld [vmem:[%s4058 + $0xa0] sm:$0xff]
        %v4080 = vld [vmem:[%s4058 + $0xa8] sm:$0xff]
        %v4081 = vld [vmem:[%s4058 + $0xb0] sm:$0xff]
        %v4082 = vld [vmem:[%s4058 + $0xb8] sm:$0xff]
        %v4083 = vld [vmem:[%s4058 + $0xc0] sm:$0xff]
        %v4084 = vld [vmem:[%s4058 + $0xc8] sm:$0xff]
        %v4085 = vld [vmem:[%s4058 + $0xd0] sm:$0xff]
        %v4086 = vld [vmem:[%s4058 + $0xd8] sm:$0xff]
        %v4087 = vld [vmem:[%s4058 + $0xe0] sm:$0xff]
        %v4088 = vld [vmem:[%s4058 + $0xe8] sm:$0xff]
        %v4089 = vld [vmem:[%s4058 + $0xf0] sm:$0xff]
        %v4090 = vld [vmem:[%s4058 + $0xf8] sm:$0xff]
        %v4091 = vld [vmem:[%s4058 + $0x100] sm:$0xff]
        %v4092 = vld [vmem:[%s4058 + $0x108] sm:$0xff]
        %v4093 = vld [vmem:[%s4058 + $0x110] sm:$0xff]
        %v4094 = vld [vmem:[%s4058 + $0x118] sm:$0xff]
        %v4095 = vld [vmem:[%s4058 + $0x120] sm:$0xff]
        %v4096 = vld [vmem:[%s4058 + $0x128] sm:$0xff]
        %v4097 = vld [vmem:[%s4058 + $0x130] sm:$0xff]
        %v4098 = vld [vmem:[%s4058 + $0x138] sm:$0xff]
        %v4099 = vld [vmem:[%s4058 + $0x140] sm:$0xff]
        %v4100 = vld [vmem:[%s4058 + $0x148] sm:$0xff]
        %v4101 = vld [vmem:[%s4058 + $0x150] sm:$0xff]
        %v4102 = vld [vmem:[%s4058 + $0x158] sm:$0xff]
        %v4103 = vld [vmem:[%s4058 + $0x160] sm:$0xff]
        %v4104 = vld [vmem:[%s4058 + $0x168] sm:$0xff]
        %v4105 = vld [vmem:[%s4058 + $0x170] sm:$0xff]
        %v4106 = vld [vmem:[%s4058 + $0x178] sm:$0xff]
        %v4107 = vld [vmem:[%s4058 + $0x180] sm:$0xff]
        %v4108 = vld [vmem:[%s4058 + $0x188] sm:$0xff]
        %v4109 = vld [vmem:[%s4058 + $0x190] sm:$0xff]
        %v4110 = vld [vmem:[%s4058 + $0x198] sm:$0xff]
        %v4111 = vld [vmem:[%s4058 + $0x1a0] sm:$0xff]
        %v4112 = vld [vmem:[%s4058 + $0x1a8] sm:$0xff]
        %v4113 = vld [vmem:[%s4058 + $0x1b0] sm:$0xff]
        %v4114 = vld [vmem:[%s4058 + $0x1b8] sm:$0xff]
        %v4115 = vld [vmem:[%s4058 + $0x1c0] sm:$0xff]
        %v4116 = vld [vmem:[%s4058 + $0x1c8] sm:$0xff]
        %v4117 = vld [vmem:[%s4058 + $0x1d0] sm:$0xff]
        %v4118 = vld [vmem:[%s4058 + $0x1d8] sm:$0xff]
        %v4119 = vld [vmem:[%s4058 + $0x1e0] sm:$0xff]
        %v4120 = vld [vmem:[%s4058 + $0x1e8] sm:$0xff]
        %v4121 = vld [vmem:[%s4058 + $0x1f0] sm:$0xff]
        %v4122 = vld [vmem:[%s4058 + $0x1f8] sm:$0xff]
        %v4123 = vld [vmem:[%s4058 + $0x200] sm:$0xff]
        %v4124 = vld [vmem:[%s4058 + $0x208] sm:$0xff]
        %v4125 = vld [vmem:[%s4058 + $0x210] sm:$0xff]
        %v4126 = vld [vmem:[%s4058 + $0x218] sm:$0xff]
        %v4127 = vld [vmem:[%s4058 + $0x220] sm:$0xff]
        %v4128 = vld [vmem:[%s4058 + $0x228] sm:$0xff]
        %v4129 = vld [vmem:[%s4058 + $0x230] sm:$0xff]
        %v4130 = vld [vmem:[%s4058 + $0x238] sm:$0xff]
        %v4131 = vld [vmem:[%s4058 + $0x240] sm:$0xff]
        %v4132 = vld [vmem:[%s4058 + $0x248] sm:$0xff]
        %v4133 = vld [vmem:[%s4058 + $0x250] sm:$0xff]
        %v4134 = vld [vmem:[%s4058 + $0x258] sm:$0xff]
        %v4135 = vld [vmem:[%s4058 + $0x260] sm:$0xff]
        %v4136 = vld [vmem:[%s4058 + $0x268] sm:$0xff]
        %v4137 = vld [vmem:[%s4058 + $0x270] sm:$0xff]
        %v4138 = vld [vmem:[%s4058 + $0x278] sm:$0xff]
        %v4139 = vld [vmem:[%s4058 + $0x280] sm:$0xff]
        %v4140 = vld [vmem:[%s4058 + $0x288] sm:$0xff]
        %v4141 = vld [vmem:[%s4058 + $0x290] sm:$0xff]
        %v4142 = vld [vmem:[%s4058 + $0x298] sm:$0xff]
        %v4143 = vld [vmem:[%s4058 + $0x2a0] sm:$0xff]
        %v4144 = vld [vmem:[%s4058 + $0x2a8] sm:$0xff]
        %v4145 = vld [vmem:[%s4058 + $0x2b0] sm:$0xff]
        %v4146 = vld [vmem:[%s4058 + $0x2b8] sm:$0xff]
        %v4147 = vld [vmem:[%s4058 + $0x2c0] sm:$0xff]
        %v4148 = vld [vmem:[%s4058 + $0x2c8] sm:$0xff]
        %v4149 = vld [vmem:[%s4058 + $0x2d0] sm:$0xff]
        %v4150 = vld [vmem:[%s4058 + $0x2d8] sm:$0xff]
        %v4151 = vld [vmem:[%s4058 + $0x2e0] sm:$0xff]
        %v4152 = vld [vmem:[%s4058 + $0x2e8] sm:$0xff]
        %v4153 = vld [vmem:[%s4058 + $0x2f0] sm:$0xff]
        %v4154 = vld [vmem:[%s4058 + $0x2f8] sm:$0xff]
        %v4155 = vld [vmem:[%s4058 + $0x300] sm:$0xff]
        %v4156 = vld [vmem:[%s4058 + $0x308] sm:$0xff]
        %v4157 = vld [vmem:[%s4058 + $0x310] sm:$0xff]
        %v4158 = vld [vmem:[%s4058 + $0x318] sm:$0xff]
        %v4159 = vld [vmem:[%s4058 + $0x320] sm:$0xff]
        %v4160 = vld [vmem:[%s4058 + $0x328] sm:$0xff]
        %v4161 = vld [vmem:[%s4058 + $0x330] sm:$0xff]
        %v4162 = vld [vmem:[%s4058 + $0x338] sm:$0xff]
        %v4163 = vld [vmem:[%s4058 + $0x340] sm:$0xff]
        %v4164 = vld [vmem:[%s4058 + $0x348] sm:$0xff]
        %v4165 = vld [vmem:[%s4058 + $0x350] sm:$0xff]
        %v4166 = vld [vmem:[%s4058 + $0x358] sm:$0xff]
        %v4167 = vld [vmem:[%s4058 + $0x360] sm:$0xff]
        %v4168 = vld [vmem:[%s4058 + $0x368] sm:$0xff]
        %v4169 = vld [vmem:[%s4058 + $0x370] sm:$0xff]
        %v4170 = vld [vmem:[%s4058 + $0x378] sm:$0xff]
        %v4171 = vld [vmem:[%s4058 + $0x380] sm:$0xff]
        %v4172 = vld [vmem:[%s4058 + $0x388] sm:$0xff]
        %v4173 = vld [vmem:[%s4058 + $0x390] sm:$0xff]
        %v4174 = vld [vmem:[%s4058 + $0x398] sm:$0xff]
        %v4175 = vld [vmem:[%s4058 + $0x3a0] sm:$0xff]
        %v4176 = vld [vmem:[%s4058 + $0x3a8] sm:$0xff]
        %v4177 = vld [vmem:[%s4058 + $0x3b0] sm:$0xff]
        %v4178 = vld [vmem:[%s4058 + $0x3b8] sm:$0xff]
        %v4179 = vld [vmem:[%s4058 + $0x3c0] sm:$0xff]
        %v4180 = vld [vmem:[%s4058 + $0x3c8] sm:$0xff]
        %v4181 = vld [vmem:[%s4058 + $0x3d0] sm:$0xff]
        %v4182 = vld [vmem:[%s4058 + $0x3d8] sm:$0xff]
        %v4183 = vld [vmem:[%s4058 + $0x3e0] sm:$0xff]
        %v4184 = vld [vmem:[%s4058 + $0x3e8] sm:$0xff]
        %v4185 = vld [vmem:[%s4058 + $0x3f0] sm:$0xff]
        %v4186 = vld [vmem:[%s4058 + $0x3f8] sm:$0xff]
        %v4187 = vld [vmem:[%s4058 + $0x400] sm:$0xff]
        %v4188 = vld [vmem:[%s4058 + $0x408] sm:$0xff]
        %v4189 = vld [vmem:[%s4058 + $0x410] sm:$0xff]
        %v4190 = vld [vmem:[%s4058 + $0x418] sm:$0xff]
        %v4191 = vld [vmem:[%s4058 + $0x420] sm:$0xff]
        %v4192 = vld [vmem:[%s4058 + $0x428] sm:$0xff]
        %v4193 = vld [vmem:[%s4058 + $0x430] sm:$0xff]
        %v4194 = vld [vmem:[%s4058 + $0x438] sm:$0xff]
        %v4195 = vld [vmem:[%s4058 + $0x440] sm:$0xff]
        %v4196 = vld [vmem:[%s4058 + $0x448] sm:$0xff]
        %v4197 = vld [vmem:[%s4058 + $0x450] sm:$0xff]
        %v4198 = vld [vmem:[%s4058 + $0x458] sm:$0xff]
        %v4199 = vld [vmem:[%s4058 + $0x460] sm:$0xff]
        %v4200 = vld [vmem:[%s4058 + $0x468] sm:$0xff]
        %v4201 = vld [vmem:[%s4058 + $0x470] sm:$0xff]
        %v4202 = vld [vmem:[%s4058 + $0x478] sm:$0xff]
        %v4203 = vld [vmem:[%s4058 + $0x480] sm:$0xff]
        %v4204 = vld [vmem:[%s4058 + $0x488] sm:$0xff]
        %v4205 = vld [vmem:[%s4058 + $0x490] sm:$0xff]
        %v4206 = vld [vmem:[%s4058 + $0x498] sm:$0xff]
        %v4207 = vld [vmem:[%s4058 + $0x4a0] sm:$0xff]
        %v4208 = vld [vmem:[%s4058 + $0x4a8] sm:$0xff]
        %v4209 = vld [vmem:[%s4058 + $0x4b0] sm:$0xff]
        %v4210 = vld [vmem:[%s4058 + $0x4b8] sm:$0xff]
        %v4211 = vld [vmem:[%s4058 + $0x4c0] sm:$0xff]
        %v4212 = vld [vmem:[%s4058 + $0x4c8] sm:$0xff]
        %v4213 = vld [vmem:[%s4058 + $0x4d0] sm:$0xff]
        %v4214 = vld [vmem:[%s4058 + $0x4d8] sm:$0xff]
        %v4215 = vld [vmem:[%s4058 + $0x4e0] sm:$0xff]
        %v4216 = vld [vmem:[%s4058 + $0x4e8] sm:$0xff]
        %v4217 = vld [vmem:[%s4058 + $0x4f0] sm:$0xff]
        %v4218 = vld [vmem:[%s4058 + $0x4f8] sm:$0xff]
        %v4219 = vld [vmem:[%s4058 + $0x500] sm:$0xff]
        %v4220 = vld [vmem:[%s4058 + $0x508] sm:$0xff]
        %v4221 = vld [vmem:[%s4058 + $0x510] sm:$0xff]
        %v4222 = vld [vmem:[%s4058 + $0x518] sm:$0xff]
        %v4223 = vld [vmem:[%s4058 + $0x520] sm:$0xff]
        %v4224 = vld [vmem:[%s4058 + $0x528] sm:$0xff]
        %v4225 = vld [vmem:[%s4058 + $0x530] sm:$0xff]
        %v4226 = vld [vmem:[%s4058 + $0x538] sm:$0xff]
        %v4227 = vld [vmem:[%s4058 + $0x540] sm:$0xff]
        %v4228 = vld [vmem:[%s4058 + $0x548] sm:$0xff]
        %v4229 = vld [vmem:[%s4058 + $0x550] sm:$0xff]
        %v4230 = vld [vmem:[%s4058 + $0x558] sm:$0xff]
        %v4231 = vld [vmem:[%s4058 + $0x560] sm:$0xff]
        %v4232 = vld [vmem:[%s4058 + $0x568] sm:$0xff]
        %v4233 = vld [vmem:[%s4058 + $0x570] sm:$0xff]
        %v4234 = vld [vmem:[%s4058 + $0x578] sm:$0xff]
        %v4235 = vld [vmem:[%s4058 + $0x580] sm:$0xff]
        %v4236 = vld [vmem:[%s4058 + $0x588] sm:$0xff]
        %v4237 = vld [vmem:[%s4058 + $0x590] sm:$0xff]
        %v4238 = vld [vmem:[%s4058 + $0x598] sm:$0xff]
        %v4239 = vld [vmem:[%s4058 + $0x5a0] sm:$0xff]
        %v4240 = vld [vmem:[%s4058 + $0x5a8] sm:$0xff]
        %v4241 = vld [vmem:[%s4058 + $0x5b0] sm:$0xff]
        %v4242 = vld [vmem:[%s4058 + $0x5b8] sm:$0xff]
        %v4243 = vld [vmem:[%s4058 + $0x5c0] sm:$0xff]
        %v4244 = vld [vmem:[%s4058 + $0x5c8] sm:$0xff]
        %v4245 = vld [vmem:[%s4058 + $0x5d0] sm:$0xff]
        %v4246 = vld [vmem:[%s4058 + $0x5d8] sm:$0xff]
        %v4247 = vld [vmem:[%s4058 + $0x5e0] sm:$0xff]
        %v4248 = vld [vmem:[%s4058 + $0x5e8] sm:$0xff]
        %v4249 = vld [vmem:[%s4058 + $0x5f0] sm:$0xff]
        %v4250 = vld [vmem:[%s4058 + $0x5f8] sm:$0xff]
        %v4251 = vld [vmem:[%s4058 + $0x600] sm:$0xff]
        %v4252 = vld [vmem:[%s4058 + $0x608] sm:$0xff]
        %v4253 = vld [vmem:[%s4058 + $0x610] sm:$0xff]
        %v4254 = vld [vmem:[%s4058 + $0x618] sm:$0xff]
        %v4255 = vld [vmem:[%s4058 + $0x620] sm:$0xff]
        %v4256 = vld [vmem:[%s4058 + $0x628] sm:$0xff]
        %v4257 = vld [vmem:[%s4058 + $0x630] sm:$0xff]
        %v4258 = vld [vmem:[%s4058 + $0x638] sm:$0xff]
        %v4259 = vld [vmem:[%s4058 + $0x640] sm:$0xff]
        %v4260 = vld [vmem:[%s4058 + $0x648] sm:$0xff]
        %v4261 = vld [vmem:[%s4058 + $0x650] sm:$0xff]
        %v4262 = vld [vmem:[%s4058 + $0x658] sm:$0xff]
        %v4263 = vld [vmem:[%s4058 + $0x660] sm:$0xff]
        %v4264 = vld [vmem:[%s4058 + $0x668] sm:$0xff]
        %v4265 = vld [vmem:[%s4058 + $0x670] sm:$0xff]
        %v4266 = vld [vmem:[%s4058 + $0x678] sm:$0xff]
        %v4267 = vld [vmem:[%s4058 + $0x680] sm:$0xff]
        %v4268 = vld [vmem:[%s4058 + $0x688] sm:$0xff]
        %v4269 = vld [vmem:[%s4058 + $0x690] sm:$0xff]
        %v4270 = vld [vmem:[%s4058 + $0x698] sm:$0xff]
        %v4271 = vld [vmem:[%s4058 + $0x6a0] sm:$0xff]
        %v4272 = vld [vmem:[%s4058 + $0x6a8] sm:$0xff]
        %v4273 = vld [vmem:[%s4058 + $0x6b0] sm:$0xff]
        %v4274 = vld [vmem:[%s4058 + $0x6b8] sm:$0xff]
        %v4275 = vld [vmem:[%s4058 + $0x6c0] sm:$0xff]
        %v4276 = vld [vmem:[%s4058 + $0x6c8] sm:$0xff]
        %v4277 = vld [vmem:[%s4058 + $0x6d0] sm:$0xff]
        %v4278 = vld [vmem:[%s4058 + $0x6d8] sm:$0xff]
        %v4279 = vld [vmem:[%s4058 + $0x6e0] sm:$0xff]
        %v4280 = vld [vmem:[%s4058 + $0x6e8] sm:$0xff]
        %v4281 = vld [vmem:[%s4058 + $0x6f0] sm:$0xff]
        %v4282 = vld [vmem:[%s4058 + $0x6f8] sm:$0xff]
        %4283 = vmatprep.subr.mxu0 %v4060
        %4284 = vmatpush1.msra.mxu0 %v4059
        %4285 = vmatprep.subr.mxu0 %v4064
        %4286 = vmatpush1.msra.mxu0 %v4063
        %4287 = vmatprep.subr.mxu0 %v4068
        %4288 = vmatpush1.msra.mxu0 %v4067
        %4289 = vmatprep.subr.mxu0 %v4072
        %4290 = vmatpush1.msra.mxu0 %v4071
        %4291 = vmatprep.subr.mxu0 %v4076
        %4292 = vmatpush1.msra.mxu0 %v4075
        %4293 = vmatprep.subr.mxu0 %v4080
        %4294 = vmatpush1.msra.mxu0 %v4079
        %4295 = vmatprep.subr.mxu0 %v4084
        %4296 = vmatpush1.msra.mxu0 %v4083
        %4297 = vmatprep.subr.mxu0 %v4088
        %4298 = vmatpush1.msra.mxu0 %v4087
        %4299 = vmatprep.subr.mxu0 %v4092
        %4300 = vmatpush1.msra.mxu0 %v4091
        %4301 = vmatprep.subr.mxu0 %v4096
        %4302 = vmatpush1.msra.mxu0 %v4095
        %4303 = vmatprep.subr.mxu0 %v4100
        %4304 = vmatpush1.msra.mxu0 %v4099
        %4305 = vmatprep.subr.mxu0 %v4104
        %4306 = vmatpush1.msra.mxu0 %v4103
        %4307 = vmatprep.subr.mxu0 %v4108
        %4308 = vmatpush1.msra.mxu0 %v4107
        %4309 = vmatprep.subr.mxu0 %v4112
        %4310 = vmatpush1.msra.mxu0 %v4111
        %4311 = vmatprep.subr.mxu0 %v4116
        %4312 = vmatpush1.msra.mxu0 %v4115
        %4313 = vmatprep.subr.mxu0 %v4120
        %4314 = vmatpush1.msra.mxu0 %v4119
        %4315 = vmatprep.subr.mxu0 %v4124
        %4316 = vmatpush1.msra.mxu0 %v4123
        %4317 = vmatprep.subr.mxu0 %v4128
        %4318 = vmatpush1.msra.mxu0 %v4127
        %4319 = vmatprep.subr.mxu0 %v4132
        %4320 = vmatpush1.msra.mxu0 %v4131
        %4321 = vmatprep.subr.mxu0 %v4136
        %4322 = vmatpush1.msra.mxu0 %v4135
        %4323 = vmatprep.subr.mxu0 %v4140
        %4324 = vmatpush1.msra.mxu0 %v4139
        %4325 = vmatprep.subr.mxu0 %v4144
        %4326 = vmatpush1.msra.mxu0 %v4143
        %4327 = vmatprep.subr.mxu0 %v4148
        %4328 = vmatpush1.msra.mxu0 %v4147
        %4329 = vmatprep.subr.mxu0 %v4152
        %4330 = vmatpush1.msra.mxu0 %v4151
        %4331 = vmatprep.subr.mxu0 %v4156
        %4332 = vmatpush1.msra.mxu0 %v4155
        %4333 = vmatprep.subr.mxu0 %v4160
        %4334 = vmatpush1.msra.mxu0 %v4159
        %4335 = vmatprep.subr.mxu0 %v4164
        %4336 = vmatpush1.msra.mxu0 %v4163
        %4337 = vmatprep.subr.mxu0 %v4168
        %4338 = vmatpush1.msra.mxu0 %v4167
        %4339 = vmatprep.subr.mxu0 %v4172
        %4340 = vmatpush1.msra.mxu0 %v4171
        %4341 = vmatprep.subr.mxu0 %v4176
        %4342 = vmatpush1.msra.mxu0 %v4175
        %4343 = vmatprep.subr.mxu0 %v4180
        %4344 = vmatpush1.msra.mxu0 %v4179
        %4345 = vmatprep.subr.mxu0 %v4184
        %4346 = vmatpush1.msra.mxu0 %v4183
        %4347 = vmatprep.mubr.f32.mxu0 %v2435
        %4348 = vmatmul.mubr.f32.gmra.mrb[0].mxu0 %v2434
        %v4349 = vpop.f32.mrb[0].mxu0
        %v4350 = vadd.f32 0.0, %v4349
        %v4351 = vpop.f32.mrb[0].mxu0
        %v4352 = vadd.f32 0.0, %v4351
        %4353 = vmatprep.mubr.f32.mxu0 %v2439
        %4354 = vmatmul.mubr.f32.gmra.mrb[0].mxu0 %v2438
        %v4355 = vpop.f32.mrb[0].mxu0
        %v4356 = vadd.f32 0.0, %v4355
        %v4357 = vpop.f32.mrb[0].mxu0
        %v4358 = vadd.f32 0.0, %v4357
        %4359 = vmatprep.mubr.f32.mxu0 %v2443
        %4360 = vmatmul.mubr.f32.gmra.mrb[0].mxu0 %v2442
        %v4361 = vpop.f32.mrb[0].mxu0
        %v4362 = vadd.f32 0.0, %v4361
        %v4363 = vpop.f32.mrb[0].mxu0
        %v4364 = vadd.f32 0.0, %v4363
        %4365 = vmatprep.mubr.f32.mxu0 %v2447
        %4366 = vmatmul.mubr.f32.gmra.mrb[0].mxu0 %v2446
        %v4367 = vpop.f32.mrb[0].mxu0
        %v4368 = vadd.f32 0.0, %v4367
        %v4369 = vpop.f32.mrb[0].mxu0
        %v4370 = vadd.f32 0.0, %v4369
        %4371 = vmatprep.mubr.f32.mxu0 %v2451
        %4372 = vmatmul.mubr.f32.gmra.mrb[0].mxu0 %v2450
        %v4373 = vpop.f32.mrb[0].mxu0
        %v4374 = vadd.f32 0.0, %v4373
        %v4375 = vpop.f32.mrb[0].mxu0
        %v4376 = vadd.f32 0.0, %v4375
        %4377 = vmatprep.mubr.f32.mxu0 %v2455
        %4378 = vmatmul.mubr.f32.gmra.mrb[0].mxu0 %v2454
        %v4379 = vpop.f32.mrb[0].mxu0
        %v4380 = vadd.f32 0.0, %v4379
        %v4381 = vpop.f32.mrb[0].mxu0
        %v4382 = vadd.f32 0.0, %v4381
        %4383 = vmatprep.mubr.f32.mxu0 %v2459
        %4384 = vmatmul.mubr.f32.gmra.mrb[0].mxu0 %v2458
        %v4385 = vpop.f32.mrb[0].mxu0
        %v4386 = vadd.f32 0.0, %v4385
        %v4387 = vpop.f32.mrb[0].mxu0
        %v4388 = vadd.f32 0.0, %v4387
        %4389 = vmatprep.mubr.f32.mxu0 %v2463
        %4390 = vmatmul.mubr.f32.gmra.mrb[0].mxu0 %v2462
        %v4391 = vpop.f32.mrb[0].mxu0
        %v4392 = vadd.f32 0.0, %v4391
        %v4393 = vpop.f32.mrb[0].mxu0
        %v4394 = vadd.f32 0.0, %v4393
        %4395 = vmatprep.mubr.f32.mxu0 %v2467
        %4396 = vmatmul.mubr.f32.gmra.mrb[0].mxu0 %v2466
        %v4397 = vpop.f32.mrb[0].mxu0
        %v4398 = vadd.f32 0.0, %v4397
        %v4399 = vpop.f32.mrb[0].mxu0
        %v4400 = vadd.f32 0.0, %v4399
        %4401 = vmatprep.mubr.f32.mxu0 %v2471
        %4402 = vmatmul.mubr.f32.gmra.mrb[0].mxu0 %v2470
        %v4403 = vpop.f32.mrb[0].mxu0
        %v4404 = vadd.f32 0.0, %v4403
        %v4405 = vpop.f32.mrb[0].mxu0
        %v4406 = vadd.f32 0.0, %v4405
        %4407 = vmatprep.mubr.f32.mxu0 0.0
        %4408 = vmatmul.mubr.f32.gmra.mrb[0].mxu0 0.0
        %v4409 = vpop.f32.mrb[0].mxu0
        %v4410 = vadd.f32 0.0, %v4409
        %v4411 = vpop.f32.mrb[0].mxu0
        %v4412 = vadd.f32 0.0, %v4411
        %4413 = vmatprep.mubr.f32.mxu0 0.0
        %4414 = vmatmul.mubr.f32.gmra.mrb[0].mxu0 0.0
        %v4415 = vpop.f32.mrb[0].mxu0
        %v4416 = vadd.f32 0.0, %v4415
        %v4417 = vpop.f32.mrb[0].mxu0
        %v4418 = vadd.f32 0.0, %v4417
        %4419 = vdwg.mxu0
        %4420 = vmatprep.subr.mxu0 %v4188
        %4421 = vmatpush1.msra.mxu0 %v4187
        %4422 = vmatprep.subr.mxu0 %v4192
        %4423 = vmatpush1.msra.mxu0 %v4191
        %4424 = vmatprep.subr.mxu0 %v4196
        %4425 = vmatpush1.msra.mxu0 %v4195
        %4426 = vmatprep.subr.mxu0 %v4200
        %4427 = vmatpush1.msra.mxu0 %v4199
        %4428 = vmatprep.subr.mxu0 %v4204
        %4429 = vmatpush1.msra.mxu0 %v4203
        %4430 = vmatprep.subr.mxu0 %v4208
        %4431 = vmatpush1.msra.mxu0 %v4207
        %4432 = vmatprep.subr.mxu0 %v4212
        %4433 = vmatpush1.msra.mxu0 %v4211
        %4434 = vmatprep.subr.mxu0 %v4216
        %4435 = vmatpush1.msra.mxu0 %v4215
        %4436 = vmatprep.subr.mxu0 %v4220
        %4437 = vmatpush1.msra.mxu0 %v4219
        %4438 = vmatprep.subr.mxu0 %v4224
        %4439 = vmatpush1.msra.mxu0 %v4223
        %4440 = vmatprep.subr.mxu0 %v4228
        %4441 = vmatpush1.msra.mxu0 %v4227
        %4442 = vmatprep.subr.mxu0 %v4232
        %4443 = vmatpush1.msra.mxu0 %v4231
        %4444 = vmatprep.subr.mxu0 %v4236
        %4445 = vmatpush1.msra.mxu0 %v4235
        %4446 = vmatprep.subr.mxu0 %v4240
        %4447 = vmatpush1.msra.mxu0 %v4239
        %4448 = vmatprep.subr.mxu0 %v4244
        %4449 = vmatpush1.msra.mxu0 %v4243
        %4450 = vmatprep.subr.mxu0 %v4248
        %4451 = vmatpush1.msra.mxu0 %v4247
        %4452 = vmatprep.subr.mxu0 %v4252
        %4453 = vmatpush1.msra.mxu0 %v4251
        %4454 = vmatprep.subr.mxu0 %v4256
        %4455 = vmatpush1.msra.mxu0 %v4255
        %4456 = vmatprep.subr.mxu0 %v4260
        %4457 = vmatpush1.msra.mxu0 %v4259
        %4458 = vmatprep.subr.mxu0 %v4264
        %4459 = vmatpush1.msra.mxu0 %v4263
        %4460 = vmatprep.subr.mxu0 %v4268
        %4461 = vmatpush1.msra.mxu0 %v4267
        %4462 = vmatprep.subr.mxu0 %v4272
        %4463 = vmatpush1.msra.mxu0 %v4271
        %4464 = vmatprep.subr.mxu0 %v4276
        %4465 = vmatpush1.msra.mxu0 %v4275
        %4466 = vmatprep.subr.mxu0 %v4280
        %4467 = vmatpush1.msra.mxu0 %v4279
        %4468 = vmatprep.subr.mxu0 0.0
        %4469 = vmatpush1.msra.mxu0 0.0
        %4470 = vmatprep.subr.mxu0 0.0
        %4471 = vmatpush1.msra.mxu0 0.0
        %4472 = vmatprep.subr.mxu0 0.0
        %4473 = vmatpush1.msra.mxu0 0.0
        %4474 = vmatprep.subr.mxu0 0.0
        %4475 = vmatpush1.msra.mxu0 0.0
        %4476 = vmatprep.subr.mxu0 0.0
        %4477 = vmatpush1.msra.mxu0 0.0
        %4478 = vmatprep.subr.mxu0 0.0
        %4479 = vmatpush1.msra.mxu0 0.0
        %4480 = vmatprep.subr.mxu0 0.0
        %4481 = vmatpush1.msra.mxu0 0.0
        %4482 = vmatprep.subr.mxu0 0.0
        %4483 = vmatpush1.msra.mxu0 0.0
        %4484 = vmatprep.mubr.f32.mxu0 %v2933
        %4485 = vmatmul.mubr.f32.gmra.mrb[0].mxu0 %v2436
        %v4486 = vpop.f32.mrb[0].mxu0
        %v4487 = vadd.f32 %v4350, %v4486
        %v4488 = vpop.f32.mrb[0].mxu0
        %v4489 = vadd.f32 %v4352, %v4488
        %4490 = vmatprep.mubr.f32.mxu0 %v2936
        %4491 = vmatmul.mubr.f32.gmra.mrb[0].mxu0 %v2440
        %v4492 = vpop.f32.mrb[0].mxu0
        %v4493 = vadd.f32 %v4356, %v4492
        %v4494 = vpop.f32.mrb[0].mxu0
        %v4495 = vadd.f32 %v4358, %v4494
        %4496 = vmatprep.mubr.f32.mxu0 %v2939
        %4497 = vmatmul.mubr.f32.gmra.mrb[0].mxu0 %v2444
        %v4498 = vpop.f32.mrb[0].mxu0
        %v4499 = vadd.f32 %v4362, %v4498
        %v4500 = vpop.f32.mrb[0].mxu0
        %v4501 = vadd.f32 %v4364, %v4500
        %4502 = vmatprep.mubr.f32.mxu0 %v2942
        %4503 = vmatmul.mubr.f32.gmra.mrb[0].mxu0 %v2448
        %v4504 = vpop.f32.mrb[0].mxu0
        %v4505 = vadd.f32 %v4368, %v4504
        %v4506 = vpop.f32.mrb[0].mxu0
        %v4507 = vadd.f32 %v4370, %v4506
        %4508 = vmatprep.mubr.f32.mxu0 %v2945
        %4509 = vmatmul.mubr.f32.gmra.mrb[0].mxu0 %v2452
        %v4510 = vpop.f32.mrb[0].mxu0
        %v4511 = vadd.f32 %v4374, %v4510
        %v4512 = vpop.f32.mrb[0].mxu0
        %v4513 = vadd.f32 %v4376, %v4512
        %4514 = vmatprep.mubr.f32.mxu0 %v2948
        %4515 = vmatmul.mubr.f32.gmra.mrb[0].mxu0 %v2456
        %v4516 = vpop.f32.mrb[0].mxu0
        %v4517 = vadd.f32 %v4380, %v4516
        %v4518 = vpop.f32.mrb[0].mxu0
        %v4519 = vadd.f32 %v4382, %v4518
        %4520 = vmatprep.mubr.f32.mxu0 %v2951
        %4521 = vmatmul.mubr.f32.gmra.mrb[0].mxu0 %v2460
        %v4522 = vpop.f32.mrb[0].mxu0
        %v4523 = vadd.f32 %v4386, %v4522
        %v4524 = vpop.f32.mrb[0].mxu0
        %v4525 = vadd.f32 %v4388, %v4524
        %4526 = vmatprep.mubr.f32.mxu0 %v2954
        %4527 = vmatmul.mubr.f32.gmra.mrb[0].mxu0 %v2464
        %v4528 = vpop.f32.mrb[0].mxu0
        %v4529 = vadd.f32 %v4392, %v4528
        %v4530 = vpop.f32.mrb[0].mxu0
        %v4531 = vadd.f32 %v4394, %v4530
        %4532 = vmatprep.mubr.f32.mxu0 %v3505
        %4533 = vmatmul.mubr.f32.gmra.mrb[0].mxu0 %v2468
        %v4534 = vpop.f32.mrb[0].mxu0
        %v4535 = vadd.f32 %v4398, %v4534
        %v4536 = vpop.f32.mrb[0].mxu0
        %v4537 = vadd.f32 %v4400, %v4536
        %4538 = vmatprep.mubr.f32.mxu0 %v3508
        %4539 = vmatmul.mubr.f32.gmra.mrb[0].mxu0 %v2472
        %v4540 = vpop.f32.mrb[0].mxu0
        %v4541 = vadd.f32 %v4404, %v4540
        %v4542 = vpop.f32.mrb[0].mxu0
        %v4543 = vadd.f32 %v4406, %v4542
        %4544 = vmatprep.mubr.f32.mxu0 %v2924
        %4545 = vmatmul.mubr.f32.gmra.mrb[0].mxu0 0.0
        %v4546 = vpop.f32.mrb[0].mxu0
        %v4547 = vadd.f32 %v4410, %v4546
        %v4548 = vpop.f32.mrb[0].mxu0
        %v4549 = vadd.f32 %v4412, %v4548
        %4550 = vmatprep.mubr.f32.mxu0 %v2924
        %4551 = vmatmul.mubr.f32.gmra.mrb[0].mxu0 0.0
        %v4552 = vpop.f32.mrb[0].mxu0
        %v4553 = vadd.f32 %v4416, %v4552
        %v4554 = vpop.f32.mrb[0].mxu0
        %v4555 = vadd.f32 %v4418, %v4554
        %4556 = vdwg.mxu0
        %4557 = vmatprep.subr.mxu0 %v4062
        %4558 = vmatpush1.msra.mxu0 %v4061
        %4559 = vmatprep.subr.mxu0 %v4066
        %4560 = vmatpush1.msra.mxu0 %v4065
        %4561 = vmatprep.subr.mxu0 %v4070
        %4562 = vmatpush1.msra.mxu0 %v4069
        %4563 = vmatprep.subr.mxu0 %v4074
        %4564 = vmatpush1.msra.mxu0 %v4073
        %4565 = vmatprep.subr.mxu0 %v4078
        %4566 = vmatpush1.msra.mxu0 %v4077
        %4567 = vmatprep.subr.mxu0 %v4082
        %4568 = vmatpush1.msra.mxu0 %v4081
        %4569 = vmatprep.subr.mxu0 %v4086
        %4570 = vmatpush1.msra.mxu0 %v4085
        %4571 = vmatprep.subr.mxu0 %v4090
        %4572 = vmatpush1.msra.mxu0 %v4089
        %4573 = vmatprep.subr.mxu0 %v4094
        %4574 = vmatpush1.msra.mxu0 %v4093
        %4575 = vmatprep.subr.mxu0 %v4098
        %4576 = vmatpush1.msra.mxu0 %v4097
        %4577 = vmatprep.subr.mxu0 %v4102
        %4578 = vmatpush1.msra.mxu0 %v4101
        %4579 = vmatprep.subr.mxu0 %v4106
        %4580 = vmatpush1.msra.mxu0 %v4105
        %4581 = vmatprep.subr.mxu0 %v4110
        %4582 = vmatpush1.msra.mxu0 %v4109
        %4583 = vmatprep.subr.mxu0 %v4114
        %4584 = vmatpush1.msra.mxu0 %v4113
        %4585 = vmatprep.subr.mxu0 %v4118
        %4586 = vmatpush1.msra.mxu0 %v4117
        %4587 = vmatprep.subr.mxu0 %v4122
        %4588 = vmatpush1.msra.mxu0 %v4121
        %4589 = vmatprep.subr.mxu0 %v4126
        %4590 = vmatpush1.msra.mxu0 %v4125
        %4591 = vmatprep.subr.mxu0 %v4130
        %4592 = vmatpush1.msra.mxu0 %v4129
        %4593 = vmatprep.subr.mxu0 %v4134
        %4594 = vmatpush1.msra.mxu0 %v4133
        %4595 = vmatprep.subr.mxu0 %v4138
        %4596 = vmatpush1.msra.mxu0 %v4137
        %4597 = vmatprep.subr.mxu0 %v4142
        %4598 = vmatpush1.msra.mxu0 %v4141
        %4599 = vmatprep.subr.mxu0 %v4146
        %4600 = vmatpush1.msra.mxu0 %v4145
        %4601 = vmatprep.subr.mxu0 %v4150
        %4602 = vmatpush1.msra.mxu0 %v4149
        %4603 = vmatprep.subr.mxu0 %v4154
        %4604 = vmatpush1.msra.mxu0 %v4153
        %4605 = vmatprep.subr.mxu0 %v4158
        %4606 = vmatpush1.msra.mxu0 %v4157
        %4607 = vmatprep.subr.mxu0 %v4162
        %4608 = vmatpush1.msra.mxu0 %v4161
        %4609 = vmatprep.subr.mxu0 %v4166
        %4610 = vmatpush1.msra.mxu0 %v4165
        %4611 = vmatprep.subr.mxu0 %v4170
        %4612 = vmatpush1.msra.mxu0 %v4169
        %4613 = vmatprep.subr.mxu0 %v4174
        %4614 = vmatpush1.msra.mxu0 %v4173
        %4615 = vmatprep.subr.mxu0 %v4178
        %4616 = vmatpush1.msra.mxu0 %v4177
        %4617 = vmatprep.subr.mxu0 %v4182
        %4618 = vmatpush1.msra.mxu0 %v4181
        %4619 = vmatprep.subr.mxu0 %v4186
        %4620 = vmatpush1.msra.mxu0 %v4185
        %4621 = vmatprep.mubr.f32.mxu0 %v2435
        %4622 = vmatmul.mubr.f32.gmra.mrb[0].mxu0 %v2434
        %v4623 = vpop.f32.mrb[0].mxu0
        %v4624 = vadd.f32 0.0, %v4623
        %v4625 = vpop.f32.mrb[0].mxu0
        %v4626 = vadd.f32 0.0, %v4625
        %4627 = vmatprep.mubr.f32.mxu0 %v2439
        %4628 = vmatmul.mubr.f32.gmra.mrb[0].mxu0 %v2438
        %v4629 = vpop.f32.mrb[0].mxu0
        %v4630 = vadd.f32 0.0, %v4629
        %v4631 = vpop.f32.mrb[0].mxu0
        %v4632 = vadd.f32 0.0, %v4631
        %4633 = vmatprep.mubr.f32.mxu0 %v2443
        %4634 = vmatmul.mubr.f32.gmra.mrb[0].mxu0 %v2442
        %v4635 = vpop.f32.mrb[0].mxu0
        %v4636 = vadd.f32 0.0, %v4635
        %v4637 = vpop.f32.mrb[0].mxu0
        %v4638 = vadd.f32 0.0, %v4637
        %4639 = vmatprep.mubr.f32.mxu0 %v2447
        %4640 = vmatmul.mubr.f32.gmra.mrb[0].mxu0 %v2446
        %v4641 = vpop.f32.mrb[0].mxu0
        %v4642 = vadd.f32 0.0, %v4641
        %v4643 = vpop.f32.mrb[0].mxu0
        %v4644 = vadd.f32 0.0, %v4643
        %4645 = vmatprep.mubr.f32.mxu0 %v2451
        %4646 = vmatmul.mubr.f32.gmra.mrb[0].mxu0 %v2450
        %v4647 = vpop.f32.mrb[0].mxu0
        %v4648 = vadd.f32 0.0, %v4647
        %v4649 = vpop.f32.mrb[0].mxu0
        %v4650 = vadd.f32 0.0, %v4649
        %4651 = vmatprep.mubr.f32.mxu0 %v2455
        %4652 = vmatmul.mubr.f32.gmra.mrb[0].mxu0 %v2454
        %v4653 = vpop.f32.mrb[0].mxu0
        %v4654 = vadd.f32 0.0, %v4653
        %v4655 = vpop.f32.mrb[0].mxu0
        %v4656 = vadd.f32 0.0, %v4655
        %4657 = vmatprep.mubr.f32.mxu0 %v2459
        %4658 = vmatmul.mubr.f32.gmra.mrb[0].mxu0 %v2458
        %v4659 = vpop.f32.mrb[0].mxu0
        %v4660 = vadd.f32 0.0, %v4659
        %v4661 = vpop.f32.mrb[0].mxu0
        %v4662 = vadd.f32 0.0, %v4661
        %4663 = vmatprep.mubr.f32.mxu0 %v2463
        %4664 = vmatmul.mubr.f32.gmra.mrb[0].mxu0 %v2462
        %v4665 = vpop.f32.mrb[0].mxu0
        %v4666 = vadd.f32 0.0, %v4665
        %v4667 = vpop.f32.mrb[0].mxu0
        %v4668 = vadd.f32 0.0, %v4667
        %4669 = vmatprep.mubr.f32.mxu0 %v2467
        %4670 = vmatmul.mubr.f32.gmra.mrb[0].mxu0 %v2466
        %v4671 = vpop.f32.mrb[0].mxu0
        %v4672 = vadd.f32 0.0, %v4671
        %v4673 = vpop.f32.mrb[0].mxu0
        %v4674 = vadd.f32 0.0, %v4673
        %4675 = vmatprep.mubr.f32.mxu0 %v2471
        %4676 = vmatmul.mubr.f32.gmra.mrb[0].mxu0 %v2470
        %v4677 = vpop.f32.mrb[0].mxu0
        %v4678 = vadd.f32 0.0, %v4677
        %v4679 = vpop.f32.mrb[0].mxu0
        %v4680 = vadd.f32 0.0, %v4679
        %4681 = vmatprep.mubr.f32.mxu0 0.0
        %4682 = vmatmul.mubr.f32.gmra.mrb[0].mxu0 0.0
        %v4683 = vpop.f32.mrb[0].mxu0
        %v4684 = vadd.f32 0.0, %v4683
        %v4685 = vpop.f32.mrb[0].mxu0
        %v4686 = vadd.f32 0.0, %v4685
        %4687 = vmatprep.mubr.f32.mxu0 0.0
        %4688 = vmatmul.mubr.f32.gmra.mrb[0].mxu0 0.0
        %v4689 = vpop.f32.mrb[0].mxu0
        %v4690 = vadd.f32 0.0, %v4689
        %v4691 = vpop.f32.mrb[0].mxu0
        %v4692 = vadd.f32 0.0, %v4691
        %4693 = vdwg.mxu0
        %4694 = vmatprep.subr.mxu0 %v4190
        %4695 = vmatpush1.msra.mxu0 %v4189
        %4696 = vmatprep.subr.mxu0 %v4194
        %4697 = vmatpush1.msra.mxu0 %v4193
        %4698 = vmatprep.subr.mxu0 %v4198
        %4699 = vmatpush1.msra.mxu0 %v4197
        %4700 = vmatprep.subr.mxu0 %v4202
        %4701 = vmatpush1.msra.mxu0 %v4201
        %4702 = vmatprep.subr.mxu0 %v4206
        %4703 = vmatpush1.msra.mxu0 %v4205
        %4704 = vmatprep.subr.mxu0 %v4210
        %4705 = vmatpush1.msra.mxu0 %v4209
        %4706 = vmatprep.subr.mxu0 %v4214
        %4707 = vmatpush1.msra.mxu0 %v4213
        %4708 = vmatprep.subr.mxu0 %v4218
        %4709 = vmatpush1.msra.mxu0 %v4217
        %4710 = vmatprep.subr.mxu0 %v4222
        %4711 = vmatpush1.msra.mxu0 %v4221
        %4712 = vmatprep.subr.mxu0 %v4226
        %4713 = vmatpush1.msra.mxu0 %v4225
        %4714 = vmatprep.subr.mxu0 %v4230
        %4715 = vmatpush1.msra.mxu0 %v4229
        %4716 = vmatprep.subr.mxu0 %v4234
        %4717 = vmatpush1.msra.mxu0 %v4233
        %4718 = vmatprep.subr.mxu0 %v4238
        %4719 = vmatpush1.msra.mxu0 %v4237
        %4720 = vmatprep.subr.mxu0 %v4242
        %4721 = vmatpush1.msra.mxu0 %v4241
        %4722 = vmatprep.subr.mxu0 %v4246
        %4723 = vmatpush1.msra.mxu0 %v4245
        %4724 = vmatprep.subr.mxu0 %v4250
        %4725 = vmatpush1.msra.mxu0 %v4249
        %4726 = vmatprep.subr.mxu0 %v4254
        %4727 = vmatpush1.msra.mxu0 %v4253
        %4728 = vmatprep.subr.mxu0 %v4258
        %4729 = vmatpush1.msra.mxu0 %v4257
        %4730 = vmatprep.subr.mxu0 %v4262
        %4731 = vmatpush1.msra.mxu0 %v4261
        %4732 = vmatprep.subr.mxu0 %v4266
        %4733 = vmatpush1.msra.mxu0 %v4265
        %4734 = vmatprep.subr.mxu0 %v4270
        %4735 = vmatpush1.msra.mxu0 %v4269
        %4736 = vmatprep.subr.mxu0 %v4274
        %4737 = vmatpush1.msra.mxu0 %v4273
        %4738 = vmatprep.subr.mxu0 %v4278
        %4739 = vmatpush1.msra.mxu0 %v4277
        %4740 = vmatprep.subr.mxu0 %v4282
        %4741 = vmatpush1.msra.mxu0 %v4281
        %4742 = vmatprep.subr.mxu0 0.0
        %4743 = vmatpush1.msra.mxu0 0.0
        %4744 = vmatprep.subr.mxu0 0.0
        %4745 = vmatpush1.msra.mxu0 0.0
        %4746 = vmatprep.subr.mxu0 0.0
        %4747 = vmatpush1.msra.mxu0 0.0
        %4748 = vmatprep.subr.mxu0 0.0
        %4749 = vmatpush1.msra.mxu0 0.0
        %4750 = vmatprep.subr.mxu0 0.0
        %4751 = vmatpush1.msra.mxu0 0.0
        %4752 = vmatprep.subr.mxu0 0.0
        %4753 = vmatpush1.msra.mxu0 0.0
        %4754 = vmatprep.subr.mxu0 0.0
        %4755 = vmatpush1.msra.mxu0 0.0
        %4756 = vmatprep.subr.mxu0 0.0
        %4757 = vmatpush1.msra.mxu0 0.0
        %4758 = vmatprep.mubr.f32.mxu0 %v2933
        %4759 = vmatmul.mubr.f32.gmra.mrb[0].mxu0 %v2436
        %v4760 = vpop.f32.mrb[0].mxu0
        %v4761 = vadd.f32 %v4624, %v4760
        %v4762 = vpop.f32.mrb[0].mxu0
        %v4763 = vadd.f32 %v4626, %v4762
        %4764 = vmatprep.mubr.f32.mxu0 %v2936
        %4765 = vmatmul.mubr.f32.gmra.mrb[0].mxu0 %v2440
        %v4766 = vpop.f32.mrb[0].mxu0
        %v4767 = vadd.f32 %v4630, %v4766
        %v4768 = vpop.f32.mrb[0].mxu0
        %v4769 = vadd.f32 %v4632, %v4768
        %4770 = vmatprep.mubr.f32.mxu0 %v2939
        %4771 = vmatmul.mubr.f32.gmra.mrb[0].mxu0 %v2444
        %v4772 = vpop.f32.mrb[0].mxu0
        %v4773 = vadd.f32 %v4636, %v4772
        %v4774 = vpop.f32.mrb[0].mxu0
        %v4775 = vadd.f32 %v4638, %v4774
        %4776 = vmatprep.mubr.f32.mxu0 %v2942
        %4777 = vmatmul.mubr.f32.gmra.mrb[0].mxu0 %v2448
        %v4778 = vpop.f32.mrb[0].mxu0
        %v4779 = vadd.f32 %v4642, %v4778
        %v4780 = vpop.f32.mrb[0].mxu0
        %v4781 = vadd.f32 %v4644, %v4780
        %4782 = vmatprep.mubr.f32.mxu0 %v2945
        %4783 = vmatmul.mubr.f32.gmra.mrb[0].mxu0 %v2452
        %v4784 = vpop.f32.mrb[0].mxu0
        %v4785 = vadd.f32 %v4648, %v4784
        %v4786 = vpop.f32.mrb[0].mxu0
        %v4787 = vadd.f32 %v4650, %v4786
        %4788 = vmatprep.mubr.f32.mxu0 %v2948
        %4789 = vmatmul.mubr.f32.gmra.mrb[0].mxu0 %v2456
        %v4790 = vpop.f32.mrb[0].mxu0
        %v4791 = vadd.f32 %v4654, %v4790
        %v4792 = vpop.f32.mrb[0].mxu0
        %v4793 = vadd.f32 %v4656, %v4792
        %4794 = vmatprep.mubr.f32.mxu0 %v2951
        %4795 = vmatmul.mubr.f32.gmra.mrb[0].mxu0 %v2460
        %v4796 = vpop.f32.mrb[0].mxu0
        %v4797 = vadd.f32 %v4660, %v4796
        %v4798 = vpop.f32.mrb[0].mxu0
        %v4799 = vadd.f32 %v4662, %v4798
        %4800 = vmatprep.mubr.f32.mxu0 %v2954
        %4801 = vmatmul.mubr.f32.gmra.mrb[0].mxu0 %v2464
        %v4802 = vpop.f32.mrb[0].mxu0
        %v4803 = vadd.f32 %v4666, %v4802
        %v4804 = vpop.f32.mrb[0].mxu0
        %v4805 = vadd.f32 %v4668, %v4804
        %4806 = vmatprep.mubr.f32.mxu0 %v3505
        %4807 = vmatmul.mubr.f32.gmra.mrb[0].mxu0 %v2468
        %v4808 = vpop.f32.mrb[0].mxu0
        %v4809 = vadd.f32 %v4672, %v4808
        %v4810 = vpop.f32.mrb[0].mxu0
        %v4811 = vadd.f32 %v4674, %v4810
        %4812 = vmatprep.mubr.f32.mxu0 %v3508
        %4813 = vmatmul.mubr.f32.gmra.mrb[0].mxu0 %v2472
        %v4814 = vpop.f32.mrb[0].mxu0
        %v4815 = vadd.f32 %v4678, %v4814
        %v4816 = vpop.f32.mrb[0].mxu0
        %v4817 = vadd.f32 %v4680, %v4816
        %4818 = vmatprep.mubr.f32.mxu0 %v2924
        %4819 = vmatmul.mubr.f32.gmra.mrb[0].mxu0 0.0
        %v4820 = vpop.f32.mrb[0].mxu0
        %v4821 = vadd.f32 %v4684, %v4820
        %v4822 = vpop.f32.mrb[0].mxu0
        %v4823 = vadd.f32 %v4686, %v4822
        %4824 = vmatprep.mubr.f32.mxu0 %v2924
        %4825 = vmatmul.mubr.f32.gmra.mrb[0].mxu0 0.0
        %v4826 = vpop.f32.mrb[0].mxu0
        %v4827 = vadd.f32 %v4690, %v4826
        %v4828 = vpop.f32.mrb[0].mxu0
        %v4829 = vadd.f32 %v4692, %v4828
        %4830 = vdwg.mxu0
        %v4831 = vadd.f32 %v3714, %v4487
        %v4832 = vadd.f32 %v3716, %v4489
        %v4833 = vadd.f32 %v3988, %v4761
        %v4834 = vadd.f32 %v3990, %v4763
        %v4835 = vadd.f32 %v3720, %v4493
        %v4836 = vadd.f32 %v3722, %v4495
        %v4837 = vadd.f32 %v3994, %v4767
        %v4838 = vadd.f32 %v3996, %v4769
        %v4839 = vadd.f32 %v3726, %v4499
        %v4840 = vadd.f32 %v3728, %v4501
        %v4841 = vadd.f32 %v4000, %v4773
        %v4842 = vadd.f32 %v4002, %v4775
        %v4843 = vadd.f32 %v3732, %v4505
        %v4844 = vadd.f32 %v3734, %v4507
        %v4845 = vadd.f32 %v4006, %v4779
        %v4846 = vadd.f32 %v4008, %v4781
        %v4847 = vadd.f32 %v3738, %v4511
        %v4848 = vadd.f32 %v3740, %v4513
        %v4849 = vadd.f32 %v4012, %v4785
        %v4850 = vadd.f32 %v4014, %v4787
        %v4851 = vadd.f32 %v3744, %v4517
        %v4852 = vadd.f32 %v3746, %v4519
        %v4853 = vadd.f32 %v4018, %v4791
        %v4854 = vadd.f32 %v4020, %v4793
        %v4855 = vadd.f32 %v3750, %v4523
        %v4856 = vadd.f32 %v3752, %v4525
        %v4857 = vadd.f32 %v4024, %v4797
        %v4858 = vadd.f32 %v4026, %v4799
        %v4859 = vadd.f32 %v3756, %v4529
        %v4860 = vadd.f32 %v3758, %v4531
        %v4861 = vadd.f32 %v4030, %v4803
        %v4862 = vadd.f32 %v4032, %v4805
        %v4863 = vadd.f32 %v3762, %v4535
        %v4864 = vadd.f32 %v3764, %v4537
        %v4865 = vadd.f32 %v4036, %v4809
        %v4866 = vadd.f32 %v4038, %v4811
        %v4867 = vadd.f32 %v3768, %v4541
        %v4868 = vadd.f32 %v3770, %v4543
        %v4869 = vadd.f32 %v4042, %v4815
        %v4870 = vadd.f32 %v4044, %v4817
        %v4871 = vadd.f32 %v3774, %v4547
        %v4872 = vadd.f32 %v3776, %v4549
        %v4873 = vadd.f32 %v4048, %v4821
        %v4874 = vadd.f32 %v4050, %v4823
        %v4875 = vadd.f32 %v3780, %v4553
        %v4876 = vadd.f32 %v3782, %v4555
        %v4877 = vadd.f32 %v4054, %v4827
        %v4878 = vadd.f32 %v4056, %v4829
        %v4879 = vld [vmem:[#allocation10] sm:$0xf]
        %v4881 = vlaneseq
        %v4882 = vshrl.u32 %v4881, 7
        %v4883 = vsub.s32 0, %v4882
        %v4884 = vrot.slane %v4879, %v4883
        %v4885 = vlaneseq
        %v4886 = vshrl.u32 %v4885, 7
        %v4887 = vsub.s32 1, %v4886
        %v4888 = vrot.slane %v4879, %v4887
        %v4889 = vlaneseq
        %v4890 = vshrl.u32 %v4889, 7
        %v4891 = vsub.s32 2, %v4890
        %v4892 = vrot.slane %v4879, %v4891
        %v4893 = vlaneseq
        %v4894 = vshrl.u32 %v4893, 7
        %v4895 = vsub.s32 3, %v4894
        %v4896 = vrot.slane %v4879, %v4895
        %v4901 = vadd.f32 %v4831, %v4884
        %v4902 = vadd.f32 %v4832, %v4888
        %v4903 = vadd.f32 %v4833, %v4892
        %v4904 = vadd.f32 %v4834, %v4896
        %v4905 = vadd.f32 %v4835, %v4884
        %v4906 = vadd.f32 %v4836, %v4888
        %v4907 = vadd.f32 %v4837, %v4892
        %v4908 = vadd.f32 %v4838, %v4896
        %v4909 = vadd.f32 %v4839, %v4884
        %v4910 = vadd.f32 %v4840, %v4888
        %v4911 = vadd.f32 %v4841, %v4892
        %v4912 = vadd.f32 %v4842, %v4896
        %v4913 = vadd.f32 %v4843, %v4884
        %v4914 = vadd.f32 %v4844, %v4888
        %v4915 = vadd.f32 %v4845, %v4892
        %v4916 = vadd.f32 %v4846, %v4896
        %v4917 = vadd.f32 %v4847, %v4884
        %v4918 = vadd.f32 %v4848, %v4888
        %v4919 = vadd.f32 %v4849, %v4892
        %v4920 = vadd.f32 %v4850, %v4896
        %v4921 = vadd.f32 %v4851, %v4884
        %v4922 = vadd.f32 %v4852, %v4888
        %v4923 = vadd.f32 %v4853, %v4892
        %v4924 = vadd.f32 %v4854, %v4896
        %v4925 = vadd.f32 %v4855, %v4884
        %v4926 = vadd.f32 %v4856, %v4888
        %v4927 = vadd.f32 %v4857, %v4892
        %v4928 = vadd.f32 %v4858, %v4896
        %v4929 = vadd.f32 %v4859, %v4884
        %v4930 = vadd.f32 %v4860, %v4888
        %v4931 = vadd.f32 %v4861, %v4892
        %v4932 = vadd.f32 %v4862, %v4896
        %v4933 = vadd.f32 %v4863, %v4884
        %v4934 = vadd.f32 %v4864, %v4888
        %v4935 = vadd.f32 %v4865, %v4892
        %v4936 = vadd.f32 %v4866, %v4896
        %v4937 = vadd.f32 %v4867, %v4884
        %v4938 = vadd.f32 %v4868, %v4888
        %v4939 = vadd.f32 %v4869, %v4892
        %v4940 = vadd.f32 %v4870, %v4896
        %v4941 = vadd.f32 %v4871, %v4884
        %v4942 = vadd.f32 %v4872, %v4888
        %v4943 = vadd.f32 %v4873, %v4892
        %v4944 = vadd.f32 %v4874, %v4896
        %v4945 = vadd.f32 %v4875, %v4884
        %v4946 = vadd.f32 %v4876, %v4888
        %v4947 = vadd.f32 %v4877, %v4892
        %v4948 = vadd.f32 %v4878, %v4896
        %v4949 = vmax.f32 %v4901, 0.0
        %v4950 = vmax.f32 %v4902, 0.0
        %v4951 = vmax.f32 %v4903, 0.0
        %v4952 = vmax.f32 %v4904, 0.0
        %v4953 = vmax.f32 %v4905, 0.0
        %v4954 = vmax.f32 %v4906, 0.0
        %v4955 = vmax.f32 %v4907, 0.0
        %v4956 = vmax.f32 %v4908, 0.0
        %v4957 = vmax.f32 %v4909, 0.0
        %v4958 = vmax.f32 %v4910, 0.0
        %v4959 = vmax.f32 %v4911, 0.0
        %v4960 = vmax.f32 %v4912, 0.0
        %v4961 = vmax.f32 %v4913, 0.0
        %v4962 = vmax.f32 %v4914, 0.0
        %v4963 = vmax.f32 %v4915, 0.0
        %v4964 = vmax.f32 %v4916, 0.0
        %v4965 = vmax.f32 %v4917, 0.0
        %v4966 = vmax.f32 %v4918, 0.0
        %v4967 = vmax.f32 %v4919, 0.0
        %v4968 = vmax.f32 %v4920, 0.0
        %v4969 = vmax.f32 %v4921, 0.0
        %v4970 = vmax.f32 %v4922, 0.0
        %v4971 = vmax.f32 %v4923, 0.0
        %v4972 = vmax.f32 %v4924, 0.0
        %v4973 = vmax.f32 %v4925, 0.0
        %v4974 = vmax.f32 %v4926, 0.0
        %v4975 = vmax.f32 %v4927, 0.0
        %v4976 = vmax.f32 %v4928, 0.0
        %v4977 = vmax.f32 %v4929, 0.0
        %v4978 = vmax.f32 %v4930, 0.0
        %v4979 = vmax.f32 %v4931, 0.0
        %v4980 = vmax.f32 %v4932, 0.0
        %v4981 = vmax.f32 %v4933, 0.0
        %v4982 = vmax.f32 %v4934, 0.0
        %v4983 = vmax.f32 %v4935, 0.0
        %v4984 = vmax.f32 %v4936, 0.0
        %v4985 = vmax.f32 %v4937, 0.0
        %v4986 = vmax.f32 %v4938, 0.0
        %v4987 = vmax.f32 %v4939, 0.0
        %v4988 = vmax.f32 %v4940, 0.0
        %v4989 = vmax.f32 %v4941, 0.0
        %v4990 = vmax.f32 %v4942, 0.0
        %v4991 = vmax.f32 %v4943, 0.0
        %v4992 = vmax.f32 %v4944, 0.0
        %v4993 = vmax.f32 %v4945, 0.0
        %v4994 = vmax.f32 %v4946, 0.0
        %v4995 = vmax.f32 %v4947, 0.0
        %v4996 = vmax.f32 %v4948, 0.0
        %v4997 = vld [vmem:[#allocation12] sm:$0xff]
        %v4998 = vld [vmem:[#allocation12 + $0x8] sm:$0xff]
        %v4999 = vld [vmem:[#allocation12 + $0x10] sm:$0xff]
        %v5000 = vld [vmem:[#allocation12 + $0x18] sm:$0xff]
        %v5001 = vld [vmem:[#allocation12 + $0x20] sm:$0xff]
        %v5002 = vld [vmem:[#allocation12 + $0x28] sm:$0xff]
        %v5003 = vld [vmem:[#allocation12 + $0x30] sm:$0xff]
        %v5004 = vld [vmem:[#allocation12 + $0x38] sm:$0xff]
        %v5005 = vld [vmem:[#allocation12 + $0x40] sm:$0xff]
        %v5006 = vld [vmem:[#allocation12 + $0x48] sm:$0xff]
        %v5007 = vld [vmem:[#allocation12 + $0x50] sm:$0xff]
        %v5008 = vld [vmem:[#allocation12 + $0x58] sm:$0xff]
        %v5009 = vld [vmem:[#allocation12 + $0x60] sm:$0xff]
        %v5010 = vld [vmem:[#allocation12 + $0x68] sm:$0xff]
        %v5011 = vld [vmem:[#allocation12 + $0x70] sm:$0xff]
        %v5012 = vld [vmem:[#allocation12 + $0x78] sm:$0xff]
        %v5013 = vld [vmem:[#allocation12 + $0x80] sm:$0xff]
        %v5014 = vld [vmem:[#allocation12 + $0x88] sm:$0xff]
        %v5015 = vld [vmem:[#allocation12 + $0x90] sm:$0xff]
        %v5016 = vld [vmem:[#allocation12 + $0x98] sm:$0xff]
        %v5017 = vld [vmem:[#allocation12 + $0xa0] sm:$0xff]
        %v5018 = vld [vmem:[#allocation12 + $0xa8] sm:$0xff]
        %v5019 = vld [vmem:[#allocation12 + $0xb0] sm:$0xff]
        %v5020 = vld [vmem:[#allocation12 + $0xb8] sm:$0xff]
        %v5021 = vld [vmem:[#allocation12 + $0xc0] sm:$0xff]
        %v5022 = vld [vmem:[#allocation12 + $0xc8] sm:$0xff]
        %v5023 = vld [vmem:[#allocation12 + $0xd0] sm:$0xff]
        %v5024 = vld [vmem:[#allocation12 + $0xd8] sm:$0xff]
        %v5025 = vld [vmem:[#allocation12 + $0xe0] sm:$0xff]
        %v5026 = vld [vmem:[#allocation12 + $0xe8] sm:$0xff]
        %v5027 = vld [vmem:[#allocation12 + $0xf0] sm:$0xff]
        %v5028 = vld [vmem:[#allocation12 + $0xf8] sm:$0xff]
        %v5029 = vld [vmem:[#allocation12 + $0x100] sm:$0xff]
        %v5030 = vld [vmem:[#allocation12 + $0x108] sm:$0xff]
        %v5031 = vld [vmem:[#allocation12 + $0x110] sm:$0xff]
        %v5032 = vld [vmem:[#allocation12 + $0x118] sm:$0xff]
        %v5033 = vld [vmem:[#allocation12 + $0x120] sm:$0xff]
        %v5034 = vld [vmem:[#allocation12 + $0x128] sm:$0xff]
        %v5035 = vld [vmem:[#allocation12 + $0x130] sm:$0xff]
        %v5036 = vld [vmem:[#allocation12 + $0x138] sm:$0xff]
        %v5037 = vld [vmem:[#allocation12 + $0x140] sm:$0xff]
        %v5038 = vld [vmem:[#allocation12 + $0x148] sm:$0xff]
        %v5039 = vld [vmem:[#allocation12 + $0x150] sm:$0xff]
        %v5040 = vld [vmem:[#allocation12 + $0x158] sm:$0xff]
        %v5041 = vld [vmem:[#allocation12 + $0x160] sm:$0xff]
        %v5042 = vld [vmem:[#allocation12 + $0x168] sm:$0xff]
        %v5043 = vld [vmem:[#allocation12 + $0x170] sm:$0xff]
        %v5044 = vld [vmem:[#allocation12 + $0x178] sm:$0xff]
        %v5045 = vld [vmem:[#allocation12 + $0x180] sm:$0xff]
        %v5046 = vld [vmem:[#allocation12 + $0x188] sm:$0xff]
        %v5047 = vld [vmem:[#allocation12 + $0x190] sm:$0xff]
        %v5048 = vld [vmem:[#allocation12 + $0x198] sm:$0xff]
        %v5049 = vld [vmem:[#allocation12 + $0x1a0] sm:$0xff]
        %v5050 = vld [vmem:[#allocation12 + $0x1a8] sm:$0xff]
        %v5051 = vld [vmem:[#allocation12 + $0x1b0] sm:$0xff]
        %v5052 = vld [vmem:[#allocation12 + $0x1b8] sm:$0xff]
        %v5053 = vld [vmem:[#allocation12 + $0x1c0] sm:$0xff]
        %v5054 = vld [vmem:[#allocation12 + $0x1c8] sm:$0xff]
        %v5055 = vld [vmem:[#allocation12 + $0x1d0] sm:$0xff]
        %v5056 = vld [vmem:[#allocation12 + $0x1d8] sm:$0xff]
        %v5057 = vld [vmem:[#allocation12 + $0x1e0] sm:$0xff]
        %v5058 = vld [vmem:[#allocation12 + $0x1e8] sm:$0xff]
        %v5059 = vld [vmem:[#allocation12 + $0x1f0] sm:$0xff]
        %v5060 = vld [vmem:[#allocation12 + $0x1f8] sm:$0xff]
        %v5061 = vld [vmem:[#allocation12 + $0x200] sm:$0xff]
        %v5062 = vld [vmem:[#allocation12 + $0x208] sm:$0xff]
        %v5063 = vld [vmem:[#allocation12 + $0x210] sm:$0xff]
        %v5064 = vld [vmem:[#allocation12 + $0x218] sm:$0xff]
        %v5065 = vld [vmem:[#allocation12 + $0x220] sm:$0xff]
        %v5066 = vld [vmem:[#allocation12 + $0x228] sm:$0xff]
        %v5067 = vld [vmem:[#allocation12 + $0x230] sm:$0xff]
        %v5068 = vld [vmem:[#allocation12 + $0x238] sm:$0xff]
        %v5069 = vld [vmem:[#allocation12 + $0x240] sm:$0xff]
        %v5070 = vld [vmem:[#allocation12 + $0x248] sm:$0xff]
        %v5071 = vld [vmem:[#allocation12 + $0x250] sm:$0xff]
        %v5072 = vld [vmem:[#allocation12 + $0x258] sm:$0xff]
        %v5073 = vld [vmem:[#allocation12 + $0x260] sm:$0xff]
        %v5074 = vld [vmem:[#allocation12 + $0x268] sm:$0xff]
        %v5075 = vld [vmem:[#allocation12 + $0x270] sm:$0xff]
        %v5076 = vld [vmem:[#allocation12 + $0x278] sm:$0xff]
        %v5077 = vld [vmem:[#allocation12 + $0x280] sm:$0xff]
        %v5078 = vld [vmem:[#allocation12 + $0x288] sm:$0xff]
        %v5079 = vld [vmem:[#allocation12 + $0x290] sm:$0xff]
        %v5080 = vld [vmem:[#allocation12 + $0x298] sm:$0xff]
        %v5081 = vld [vmem:[#allocation12 + $0x2a0] sm:$0xff]
        %v5082 = vld [vmem:[#allocation12 + $0x2a8] sm:$0xff]
        %v5083 = vld [vmem:[#allocation12 + $0x2b0] sm:$0xff]
        %v5084 = vld [vmem:[#allocation12 + $0x2b8] sm:$0xff]
        %v5085 = vld [vmem:[#allocation12 + $0x2c0] sm:$0xff]
        %v5086 = vld [vmem:[#allocation12 + $0x2c8] sm:$0xff]
        %v5087 = vld [vmem:[#allocation12 + $0x2d0] sm:$0xff]
        %v5088 = vld [vmem:[#allocation12 + $0x2d8] sm:$0xff]
        %v5089 = vld [vmem:[#allocation12 + $0x2e0] sm:$0xff]
        %v5090 = vld [vmem:[#allocation12 + $0x2e8] sm:$0xff]
        %v5091 = vld [vmem:[#allocation12 + $0x2f0] sm:$0xff]
        %v5092 = vld [vmem:[#allocation12 + $0x2f8] sm:$0xff]
        %v5093 = vld [vmem:[#allocation12 + $0x300] sm:$0xff]
        %v5094 = vld [vmem:[#allocation12 + $0x308] sm:$0xff]
        %v5095 = vld [vmem:[#allocation12 + $0x310] sm:$0xff]
        %v5096 = vld [vmem:[#allocation12 + $0x318] sm:$0xff]
        %v5097 = vld [vmem:[#allocation12 + $0x320] sm:$0xff]
        %v5098 = vld [vmem:[#allocation12 + $0x328] sm:$0xff]
        %v5099 = vld [vmem:[#allocation12 + $0x330] sm:$0xff]
        %v5100 = vld [vmem:[#allocation12 + $0x338] sm:$0xff]
        %v5101 = vld [vmem:[#allocation12 + $0x340] sm:$0xff]
        %v5102 = vld [vmem:[#allocation12 + $0x348] sm:$0xff]
        %v5103 = vld [vmem:[#allocation12 + $0x350] sm:$0xff]
        %v5104 = vld [vmem:[#allocation12 + $0x358] sm:$0xff]
        %v5105 = vld [vmem:[#allocation12 + $0x360] sm:$0xff]
        %v5106 = vld [vmem:[#allocation12 + $0x368] sm:$0xff]
        %v5107 = vld [vmem:[#allocation12 + $0x370] sm:$0xff]
        %v5108 = vld [vmem:[#allocation12 + $0x378] sm:$0xff]
        %s5109 = scalar_lea.vmem [#allocation12], 896
        %v5110 = vld [vmem:[%s5109] sm:$0xff]
        %v5111 = vld [vmem:[%s5109 + $0x8] sm:$0xff]
        %v5112 = vld [vmem:[%s5109 + $0x10] sm:$0xff]
        %v5113 = vld [vmem:[%s5109 + $0x18] sm:$0xff]
        %v5114 = vld [vmem:[%s5109 + $0x20] sm:$0xff]
        %v5115 = vld [vmem:[%s5109 + $0x28] sm:$0xff]
        %v5116 = vld [vmem:[%s5109 + $0x30] sm:$0xff]
        %v5117 = vld [vmem:[%s5109 + $0x38] sm:$0xff]
        %v5118 = vld [vmem:[%s5109 + $0x40] sm:$0xff]
        %v5119 = vld [vmem:[%s5109 + $0x48] sm:$0xff]
        %v5120 = vld [vmem:[%s5109 + $0x50] sm:$0xff]
        %v5121 = vld [vmem:[%s5109 + $0x58] sm:$0xff]
        %v5122 = vld [vmem:[%s5109 + $0x60] sm:$0xff]
        %v5123 = vld [vmem:[%s5109 + $0x68] sm:$0xff]
        %v5124 = vld [vmem:[%s5109 + $0x70] sm:$0xff]
        %v5125 = vld [vmem:[%s5109 + $0x78] sm:$0xff]
        %v5126 = vld [vmem:[%s5109 + $0x80] sm:$0xff]
        %v5127 = vld [vmem:[%s5109 + $0x88] sm:$0xff]
        %v5128 = vld [vmem:[%s5109 + $0x90] sm:$0xff]
        %v5129 = vld [vmem:[%s5109 + $0x98] sm:$0xff]
        %v5130 = vld [vmem:[%s5109 + $0xa0] sm:$0xff]
        %v5131 = vld [vmem:[%s5109 + $0xa8] sm:$0xff]
        %v5132 = vld [vmem:[%s5109 + $0xb0] sm:$0xff]
        %v5133 = vld [vmem:[%s5109 + $0xb8] sm:$0xff]
        %v5134 = vld [vmem:[%s5109 + $0xc0] sm:$0xff]
        %v5135 = vld [vmem:[%s5109 + $0xc8] sm:$0xff]
        %v5136 = vld [vmem:[%s5109 + $0xd0] sm:$0xff]
        %v5137 = vld [vmem:[%s5109 + $0xd8] sm:$0xff]
        %v5138 = vld [vmem:[%s5109 + $0xe0] sm:$0xff]
        %v5139 = vld [vmem:[%s5109 + $0xe8] sm:$0xff]
        %v5140 = vld [vmem:[%s5109 + $0xf0] sm:$0xff]
        %v5141 = vld [vmem:[%s5109 + $0xf8] sm:$0xff]
        %v5142 = vld [vmem:[%s5109 + $0x100] sm:$0xff]
        %v5143 = vld [vmem:[%s5109 + $0x108] sm:$0xff]
        %v5144 = vld [vmem:[%s5109 + $0x110] sm:$0xff]
        %v5145 = vld [vmem:[%s5109 + $0x118] sm:$0xff]
        %v5146 = vld [vmem:[%s5109 + $0x120] sm:$0xff]
        %v5147 = vld [vmem:[%s5109 + $0x128] sm:$0xff]
        %v5148 = vld [vmem:[%s5109 + $0x130] sm:$0xff]
        %v5149 = vld [vmem:[%s5109 + $0x138] sm:$0xff]
        %v5150 = vld [vmem:[%s5109 + $0x140] sm:$0xff]
        %v5151 = vld [vmem:[%s5109 + $0x148] sm:$0xff]
        %v5152 = vld [vmem:[%s5109 + $0x150] sm:$0xff]
        %v5153 = vld [vmem:[%s5109 + $0x158] sm:$0xff]
        %v5154 = vld [vmem:[%s5109 + $0x160] sm:$0xff]
        %v5155 = vld [vmem:[%s5109 + $0x168] sm:$0xff]
        %v5156 = vld [vmem:[%s5109 + $0x170] sm:$0xff]
        %v5157 = vld [vmem:[%s5109 + $0x178] sm:$0xff]
        %v5158 = vld [vmem:[%s5109 + $0x180] sm:$0xff]
        %v5159 = vld [vmem:[%s5109 + $0x188] sm:$0xff]
        %v5160 = vld [vmem:[%s5109 + $0x190] sm:$0xff]
        %v5161 = vld [vmem:[%s5109 + $0x198] sm:$0xff]
        %v5162 = vld [vmem:[%s5109 + $0x1a0] sm:$0xff]
        %v5163 = vld [vmem:[%s5109 + $0x1a8] sm:$0xff]
        %v5164 = vld [vmem:[%s5109 + $0x1b0] sm:$0xff]
        %v5165 = vld [vmem:[%s5109 + $0x1b8] sm:$0xff]
        %v5166 = vld [vmem:[%s5109 + $0x1c0] sm:$0xff]
        %v5167 = vld [vmem:[%s5109 + $0x1c8] sm:$0xff]
        %v5168 = vld [vmem:[%s5109 + $0x1d0] sm:$0xff]
        %v5169 = vld [vmem:[%s5109 + $0x1d8] sm:$0xff]
        %v5170 = vld [vmem:[%s5109 + $0x1e0] sm:$0xff]
        %v5171 = vld [vmem:[%s5109 + $0x1e8] sm:$0xff]
        %v5172 = vld [vmem:[%s5109 + $0x1f0] sm:$0xff]
        %v5173 = vld [vmem:[%s5109 + $0x1f8] sm:$0xff]
        %v5174 = vld [vmem:[%s5109 + $0x200] sm:$0xff]
        %v5175 = vld [vmem:[%s5109 + $0x208] sm:$0xff]
        %v5176 = vld [vmem:[%s5109 + $0x210] sm:$0xff]
        %v5177 = vld [vmem:[%s5109 + $0x218] sm:$0xff]
        %v5178 = vld [vmem:[%s5109 + $0x220] sm:$0xff]
        %v5179 = vld [vmem:[%s5109 + $0x228] sm:$0xff]
        %v5180 = vld [vmem:[%s5109 + $0x230] sm:$0xff]
        %v5181 = vld [vmem:[%s5109 + $0x238] sm:$0xff]
        %v5182 = vld [vmem:[%s5109 + $0x240] sm:$0xff]
        %v5183 = vld [vmem:[%s5109 + $0x248] sm:$0xff]
        %v5184 = vld [vmem:[%s5109 + $0x250] sm:$0xff]
        %v5185 = vld [vmem:[%s5109 + $0x258] sm:$0xff]
        %v5186 = vld [vmem:[%s5109 + $0x260] sm:$0xff]
        %v5187 = vld [vmem:[%s5109 + $0x268] sm:$0xff]
        %v5188 = vld [vmem:[%s5109 + $0x270] sm:$0xff]
        %v5189 = vld [vmem:[%s5109 + $0x278] sm:$0xff]
        %v5190 = vld [vmem:[%s5109 + $0x280] sm:$0xff]
        %v5191 = vld [vmem:[%s5109 + $0x288] sm:$0xff]
        %v5192 = vld [vmem:[%s5109 + $0x290] sm:$0xff]
        %v5193 = vld [vmem:[%s5109 + $0x298] sm:$0xff]
        %v5194 = vld [vmem:[%s5109 + $0x2a0] sm:$0xff]
        %v5195 = vld [vmem:[%s5109 + $0x2a8] sm:$0xff]
        %v5196 = vld [vmem:[%s5109 + $0x2b0] sm:$0xff]
        %v5197 = vld [vmem:[%s5109 + $0x2b8] sm:$0xff]
        %v5198 = vld [vmem:[%s5109 + $0x2c0] sm:$0xff]
        %v5199 = vld [vmem:[%s5109 + $0x2c8] sm:$0xff]
        %v5200 = vld [vmem:[%s5109 + $0x2d0] sm:$0xff]
        %v5201 = vld [vmem:[%s5109 + $0x2d8] sm:$0xff]
        %v5202 = vld [vmem:[%s5109 + $0x2e0] sm:$0xff]
        %v5203 = vld [vmem:[%s5109 + $0x2e8] sm:$0xff]
        %v5204 = vld [vmem:[%s5109 + $0x2f0] sm:$0xff]
        %v5205 = vld [vmem:[%s5109 + $0x2f8] sm:$0xff]
        %v5206 = vld [vmem:[%s5109 + $0x300] sm:$0xff]
        %v5207 = vld [vmem:[%s5109 + $0x308] sm:$0xff]
        %v5208 = vld [vmem:[%s5109 + $0x310] sm:$0xff]
        %v5209 = vld [vmem:[%s5109 + $0x318] sm:$0xff]
        %v5210 = vld [vmem:[%s5109 + $0x320] sm:$0xff]
        %v5211 = vld [vmem:[%s5109 + $0x328] sm:$0xff]
        %v5212 = vld [vmem:[%s5109 + $0x330] sm:$0xff]
        %v5213 = vld [vmem:[%s5109 + $0x338] sm:$0xff]
        %v5214 = vld [vmem:[%s5109 + $0x340] sm:$0xff]
        %v5215 = vld [vmem:[%s5109 + $0x348] sm:$0xff]
        %v5216 = vld [vmem:[%s5109 + $0x350] sm:$0xff]
        %v5217 = vld [vmem:[%s5109 + $0x358] sm:$0xff]
        %v5218 = vld [vmem:[%s5109 + $0x360] sm:$0xff]
        %v5219 = vld [vmem:[%s5109 + $0x368] sm:$0xff]
        %v5220 = vld [vmem:[%s5109 + $0x370] sm:$0xff]
        %v5221 = vld [vmem:[%s5109 + $0x378] sm:$0xff]
        %v5223 = vsel %vm2923, %v4960, 0
        %v5226 = vsel %vm2923, %v4964, 0
        %5228 = vmatprep.subr.mxu0 %v5111
        %5229 = vmatpush1.msra.mxu0 %v5110
        %5230 = vmatprep.subr.mxu0 %v5113
        %5231 = vmatpush1.msra.mxu0 %v5112
        %5232 = vmatprep.subr.mxu0 %v5115
        %5233 = vmatpush1.msra.mxu0 %v5114
        %5234 = vmatprep.subr.mxu0 %v5117
        %5235 = vmatpush1.msra.mxu0 %v5116
        %5236 = vmatprep.subr.mxu0 %v5119
        %5237 = vmatpush1.msra.mxu0 %v5118
        %5238 = vmatprep.subr.mxu0 %v5121
        %5239 = vmatpush1.msra.mxu0 %v5120
        %5240 = vmatprep.subr.mxu0 %v5123
        %5241 = vmatpush1.msra.mxu0 %v5122
        %5242 = vmatprep.subr.mxu0 %v5125
        %5243 = vmatpush1.msra.mxu0 %v5124
        %5244 = vmatprep.subr.mxu0 %v5127
        %5245 = vmatpush1.msra.mxu0 %v5126
        %5246 = vmatprep.subr.mxu0 %v5129
        %5247 = vmatpush1.msra.mxu0 %v5128
        %5248 = vmatprep.subr.mxu0 %v5131
        %5249 = vmatpush1.msra.mxu0 %v5130
        %5250 = vmatprep.subr.mxu0 %v5133
        %5251 = vmatpush1.msra.mxu0 %v5132
        %5252 = vmatprep.subr.mxu0 %v5135
        %5253 = vmatpush1.msra.mxu0 %v5134
        %5254 = vmatprep.subr.mxu0 %v5137
        %5255 = vmatpush1.msra.mxu0 %v5136
        %5256 = vmatprep.subr.mxu0 %v5139
        %5257 = vmatpush1.msra.mxu0 %v5138
        %5258 = vmatprep.subr.mxu0 %v5141
        %5259 = vmatpush1.msra.mxu0 %v5140
        %5260 = vmatprep.subr.mxu0 %v5143
        %5261 = vmatpush1.msra.mxu0 %v5142
        %5262 = vmatprep.subr.mxu0 %v5145
        %5263 = vmatpush1.msra.mxu0 %v5144
        %5264 = vmatprep.subr.mxu0 %v5147
        %5265 = vmatpush1.msra.mxu0 %v5146
        %5266 = vmatprep.subr.mxu0 %v5149
        %5267 = vmatpush1.msra.mxu0 %v5148
        %5268 = vmatprep.subr.mxu0 %v5151
        %5269 = vmatpush1.msra.mxu0 %v5150
        %5270 = vmatprep.subr.mxu0 %v5153
        %5271 = vmatpush1.msra.mxu0 %v5152
        %5272 = vmatprep.subr.mxu0 %v5155
        %5273 = vmatpush1.msra.mxu0 %v5154
        %5274 = vmatprep.subr.mxu0 %v5157
        %5275 = vmatpush1.msra.mxu0 %v5156
        %5276 = vmatprep.subr.mxu0 %v5159
        %5277 = vmatpush1.msra.mxu0 %v5158
        %5278 = vmatprep.subr.mxu0 %v5161
        %5279 = vmatpush1.msra.mxu0 %v5160
        %5280 = vmatprep.subr.mxu0 %v5163
        %5281 = vmatpush1.msra.mxu0 %v5162
        %5282 = vmatprep.subr.mxu0 %v5165
        %5283 = vmatpush1.msra.mxu0 %v5164
        %5284 = vmatprep.subr.mxu0 %v5167
        %5285 = vmatpush1.msra.mxu0 %v5166
        %5286 = vmatprep.subr.mxu0 %v5169
        %5287 = vmatpush1.msra.mxu0 %v5168
        %5288 = vmatprep.subr.mxu0 %v5171
        %5289 = vmatpush1.msra.mxu0 %v5170
        %5290 = vmatprep.subr.mxu0 %v5173
        %5291 = vmatpush1.msra.mxu0 %v5172
        %5292 = vmatprep.mubr.f32.mxu0 %v4958
        %5293 = vmatmul.mubr.f32.gmra.mrb[0].mxu0 %v4957
        %v5294 = vpop.f32.mrb[0].mxu0
        %v5295 = vadd.f32 0.0, %v5294
        %v5296 = vpop.f32.mrb[0].mxu0
        %v5297 = vadd.f32 0.0, %v5296
        %5298 = vmatprep.mubr.f32.mxu0 %v4962
        %5299 = vmatmul.mubr.f32.gmra.mrb[0].mxu0 %v4961
        %v5300 = vpop.f32.mrb[0].mxu0
        %v5301 = vadd.f32 0.0, %v5300
        %v5302 = vpop.f32.mrb[0].mxu0
        %v5303 = vadd.f32 0.0, %v5302
        %5304 = vdwg.mxu0
        %5305 = vmatprep.subr.mxu0 %v5175
        %5306 = vmatpush1.msra.mxu0 %v5174
        %5307 = vmatprep.subr.mxu0 %v5177
        %5308 = vmatpush1.msra.mxu0 %v5176
        %5309 = vmatprep.subr.mxu0 %v5179
        %5310 = vmatpush1.msra.mxu0 %v5178
        %5311 = vmatprep.subr.mxu0 %v5181
        %5312 = vmatpush1.msra.mxu0 %v5180
        %5313 = vmatprep.subr.mxu0 %v5183
        %5314 = vmatpush1.msra.mxu0 %v5182
        %5315 = vmatprep.subr.mxu0 %v5185
        %5316 = vmatpush1.msra.mxu0 %v5184
        %5317 = vmatprep.subr.mxu0 %v5187
        %5318 = vmatpush1.msra.mxu0 %v5186
        %5319 = vmatprep.subr.mxu0 %v5189
        %5320 = vmatpush1.msra.mxu0 %v5188
        %5321 = vmatprep.subr.mxu0 %v5191
        %5322 = vmatpush1.msra.mxu0 %v5190
        %5323 = vmatprep.subr.mxu0 %v5193
        %5324 = vmatpush1.msra.mxu0 %v5192
        %5325 = vmatprep.subr.mxu0 %v5195
        %5326 = vmatpush1.msra.mxu0 %v5194
        %5327 = vmatprep.subr.mxu0 %v5197
        %5328 = vmatpush1.msra.mxu0 %v5196
        %5329 = vmatprep.subr.mxu0 %v5199
        %5330 = vmatpush1.msra.mxu0 %v5198
        %5331 = vmatprep.subr.mxu0 %v5201
        %5332 = vmatpush1.msra.mxu0 %v5200
        %5333 = vmatprep.subr.mxu0 %v5203
        %5334 = vmatpush1.msra.mxu0 %v5202
        %5335 = vmatprep.subr.mxu0 %v5205
        %5336 = vmatpush1.msra.mxu0 %v5204
        %5337 = vmatprep.subr.mxu0 %v5207
        %5338 = vmatpush1.msra.mxu0 %v5206
        %5339 = vmatprep.subr.mxu0 %v5209
        %5340 = vmatpush1.msra.mxu0 %v5208
        %5341 = vmatprep.subr.mxu0 %v5211
        %5342 = vmatpush1.msra.mxu0 %v5210
        %5343 = vmatprep.subr.mxu0 %v5213
        %5344 = vmatpush1.msra.mxu0 %v5212
        %5345 = vmatprep.subr.mxu0 %v5215
        %5346 = vmatpush1.msra.mxu0 %v5214
        %5347 = vmatprep.subr.mxu0 %v5217
        %5348 = vmatpush1.msra.mxu0 %v5216
        %5349 = vmatprep.subr.mxu0 %v5219
        %5350 = vmatpush1.msra.mxu0 %v5218
        %5351 = vmatprep.subr.mxu0 %v5221
        %5352 = vmatpush1.msra.mxu0 %v5220
        %5353 = vmatprep.subr.mxu0 0.0
        %5354 = vmatpush1.msra.mxu0 0.0
        %5355 = vmatprep.subr.mxu0 0.0
        %5356 = vmatpush1.msra.mxu0 0.0
        %5357 = vmatprep.subr.mxu0 0.0
        %5358 = vmatpush1.msra.mxu0 0.0
        %5359 = vmatprep.subr.mxu0 0.0
        %5360 = vmatpush1.msra.mxu0 0.0
        %5361 = vmatprep.subr.mxu0 0.0
        %5362 = vmatpush1.msra.mxu0 0.0
        %5363 = vmatprep.subr.mxu0 0.0
        %5364 = vmatpush1.msra.mxu0 0.0
        %5365 = vmatprep.subr.mxu0 0.0
        %5366 = vmatpush1.msra.mxu0 0.0
        %5367 = vmatprep.subr.mxu0 0.0
        %5368 = vmatpush1.msra.mxu0 0.0
        %5369 = vmatprep.mubr.f32.mxu0 %v5223
        %5370 = vmatmul.mubr.f32.gmra.mrb[0].mxu0 %v4959
        %v5371 = vpop.f32.mrb[0].mxu0
        %v5372 = vadd.f32 %v5295, %v5371
        %v5373 = vpop.f32.mrb[0].mxu0
        %v5374 = vadd.f32 %v5297, %v5373
        %5375 = vmatprep.mubr.f32.mxu0 %v5226
        %5376 = vmatmul.mubr.f32.gmra.mrb[0].mxu0 %v4963
        %v5377 = vpop.f32.mrb[0].mxu0
        %v5378 = vadd.f32 %v5301, %v5377
        %v5379 = vpop.f32.mrb[0].mxu0
        %v5380 = vadd.f32 %v5303, %v5379
        %5381 = vdwg.mxu0
        %v5383 = vsel %vm2923, %v4952, 0
        %v5386 = vsel %vm2923, %v4956, 0
        %5388 = vmatprep.subr.mxu0 %v4998
        %5389 = vmatpush1.msra.mxu0 %v4997
        %5390 = vmatprep.subr.mxu0 %v5000
        %5391 = vmatpush1.msra.mxu0 %v4999
        %5392 = vmatprep.subr.mxu0 %v5002
        %5393 = vmatpush1.msra.mxu0 %v5001
        %5394 = vmatprep.subr.mxu0 %v5004
        %5395 = vmatpush1.msra.mxu0 %v5003
        %5396 = vmatprep.subr.mxu0 %v5006
        %5397 = vmatpush1.msra.mxu0 %v5005
        %5398 = vmatprep.subr.mxu0 %v5008
        %5399 = vmatpush1.msra.mxu0 %v5007
        %5400 = vmatprep.subr.mxu0 %v5010
        %5401 = vmatpush1.msra.mxu0 %v5009
        %5402 = vmatprep.subr.mxu0 %v5012
        %5403 = vmatpush1.msra.mxu0 %v5011
        %5404 = vmatprep.subr.mxu0 %v5014
        %5405 = vmatpush1.msra.mxu0 %v5013
        %5406 = vmatprep.subr.mxu0 %v5016
        %5407 = vmatpush1.msra.mxu0 %v5015
        %5408 = vmatprep.subr.mxu0 %v5018
        %5409 = vmatpush1.msra.mxu0 %v5017
        %5410 = vmatprep.subr.mxu0 %v5020
        %5411 = vmatpush1.msra.mxu0 %v5019
        %5412 = vmatprep.subr.mxu0 %v5022
        %5413 = vmatpush1.msra.mxu0 %v5021
        %5414 = vmatprep.subr.mxu0 %v5024
        %5415 = vmatpush1.msra.mxu0 %v5023
        %5416 = vmatprep.subr.mxu0 %v5026
        %5417 = vmatpush1.msra.mxu0 %v5025
        %5418 = vmatprep.subr.mxu0 %v5028
        %5419 = vmatpush1.msra.mxu0 %v5027
        %5420 = vmatprep.subr.mxu0 %v5030
        %5421 = vmatpush1.msra.mxu0 %v5029
        %5422 = vmatprep.subr.mxu0 %v5032
        %5423 = vmatpush1.msra.mxu0 %v5031
        %5424 = vmatprep.subr.mxu0 %v5034
        %5425 = vmatpush1.msra.mxu0 %v5033
        %5426 = vmatprep.subr.mxu0 %v5036
        %5427 = vmatpush1.msra.mxu0 %v5035
        %5428 = vmatprep.subr.mxu0 %v5038
        %5429 = vmatpush1.msra.mxu0 %v5037
        %5430 = vmatprep.subr.mxu0 %v5040
        %5431 = vmatpush1.msra.mxu0 %v5039
        %5432 = vmatprep.subr.mxu0 %v5042
        %5433 = vmatpush1.msra.mxu0 %v5041
        %5434 = vmatprep.subr.mxu0 %v5044
        %5435 = vmatpush1.msra.mxu0 %v5043
        %5436 = vmatprep.subr.mxu0 %v5046
        %5437 = vmatpush1.msra.mxu0 %v5045
        %5438 = vmatprep.subr.mxu0 %v5048
        %5439 = vmatpush1.msra.mxu0 %v5047
        %5440 = vmatprep.subr.mxu0 %v5050
        %5441 = vmatpush1.msra.mxu0 %v5049
        %5442 = vmatprep.subr.mxu0 %v5052
        %5443 = vmatpush1.msra.mxu0 %v5051
        %5444 = vmatprep.subr.mxu0 %v5054
        %5445 = vmatpush1.msra.mxu0 %v5053
        %5446 = vmatprep.subr.mxu0 %v5056
        %5447 = vmatpush1.msra.mxu0 %v5055
        %5448 = vmatprep.subr.mxu0 %v5058
        %5449 = vmatpush1.msra.mxu0 %v5057
        %5450 = vmatprep.subr.mxu0 %v5060
        %5451 = vmatpush1.msra.mxu0 %v5059
        %5452 = vmatprep.mubr.f32.mxu0 %v4950
        %5453 = vmatmul.mubr.f32.gmra.mrb[0].mxu0 %v4949
        %v5454 = vpop.f32.mrb[0].mxu0
        %v5455 = vadd.f32 %v5372, %v5454
        %v5456 = vpop.f32.mrb[0].mxu0
        %v5457 = vadd.f32 %v5374, %v5456
        %5458 = vmatprep.mubr.f32.mxu0 %v4954
        %5459 = vmatmul.mubr.f32.gmra.mrb[0].mxu0 %v4953
        %v5460 = vpop.f32.mrb[0].mxu0
        %v5461 = vadd.f32 %v5378, %v5460
        %v5462 = vpop.f32.mrb[0].mxu0
        %v5463 = vadd.f32 %v5380, %v5462
        %5464 = vdwg.mxu0
        %5465 = vmatprep.subr.mxu0 %v5062
        %5466 = vmatpush1.msra.mxu0 %v5061
        %5467 = vmatprep.subr.mxu0 %v5064
        %5468 = vmatpush1.msra.mxu0 %v5063
        %5469 = vmatprep.subr.mxu0 %v5066
        %5470 = vmatpush1.msra.mxu0 %v5065
        %5471 = vmatprep.subr.mxu0 %v5068
        %5472 = vmatpush1.msra.mxu0 %v5067
        %5473 = vmatprep.subr.mxu0 %v5070
        %5474 = vmatpush1.msra.mxu0 %v5069
        %5475 = vmatprep.subr.mxu0 %v5072
        %5476 = vmatpush1.msra.mxu0 %v5071
        %5477 = vmatprep.subr.mxu0 %v5074
        %5478 = vmatpush1.msra.mxu0 %v5073
        %5479 = vmatprep.subr.mxu0 %v5076
        %5480 = vmatpush1.msra.mxu0 %v5075
        %5481 = vmatprep.subr.mxu0 %v5078
        %5482 = vmatpush1.msra.mxu0 %v5077
        %5483 = vmatprep.subr.mxu0 %v5080
        %5484 = vmatpush1.msra.mxu0 %v5079
        %5485 = vmatprep.subr.mxu0 %v5082
        %5486 = vmatpush1.msra.mxu0 %v5081
        %5487 = vmatprep.subr.mxu0 %v5084
        %5488 = vmatpush1.msra.mxu0 %v5083
        %5489 = vmatprep.subr.mxu0 %v5086
        %5490 = vmatpush1.msra.mxu0 %v5085
        %5491 = vmatprep.subr.mxu0 %v5088
        %5492 = vmatpush1.msra.mxu0 %v5087
        %5493 = vmatprep.subr.mxu0 %v5090
        %5494 = vmatpush1.msra.mxu0 %v5089
        %5495 = vmatprep.subr.mxu0 %v5092
        %5496 = vmatpush1.msra.mxu0 %v5091
        %5497 = vmatprep.subr.mxu0 %v5094
        %5498 = vmatpush1.msra.mxu0 %v5093
        %5499 = vmatprep.subr.mxu0 %v5096
        %5500 = vmatpush1.msra.mxu0 %v5095
        %5501 = vmatprep.subr.mxu0 %v5098
        %5502 = vmatpush1.msra.mxu0 %v5097
        %5503 = vmatprep.subr.mxu0 %v5100
        %5504 = vmatpush1.msra.mxu0 %v5099
        %5505 = vmatprep.subr.mxu0 %v5102
        %5506 = vmatpush1.msra.mxu0 %v5101
        %5507 = vmatprep.subr.mxu0 %v5104
        %5508 = vmatpush1.msra.mxu0 %v5103
        %5509 = vmatprep.subr.mxu0 %v5106
        %5510 = vmatpush1.msra.mxu0 %v5105
        %5511 = vmatprep.subr.mxu0 %v5108
        %5512 = vmatpush1.msra.mxu0 %v5107
        %5513 = vmatprep.subr.mxu0 0.0
        %5514 = vmatpush1.msra.mxu0 0.0
        %5515 = vmatprep.subr.mxu0 0.0
        %5516 = vmatpush1.msra.mxu0 0.0
        %5517 = vmatprep.subr.mxu0 0.0
        %5518 = vmatpush1.msra.mxu0 0.0
        %5519 = vmatprep.subr.mxu0 0.0
        %5520 = vmatpush1.msra.mxu0 0.0
        %5521 = vmatprep.subr.mxu0 0.0
        %5522 = vmatpush1.msra.mxu0 0.0
        %5523 = vmatprep.subr.mxu0 0.0
        %5524 = vmatpush1.msra.mxu0 0.0
        %5525 = vmatprep.subr.mxu0 0.0
        %5526 = vmatpush1.msra.mxu0 0.0
        %5527 = vmatprep.subr.mxu0 0.0
        %5528 = vmatpush1.msra.mxu0 0.0
        %5529 = vmatprep.mubr.f32.mxu0 %v5383
        %5530 = vmatmul.mubr.f32.gmra.mrb[0].mxu0 %v4951
        %v5531 = vpop.f32.mrb[0].mxu0
        %v5532 = vadd.f32 %v5455, %v5531
        %v5533 = vpop.f32.mrb[0].mxu0
        %v5534 = vadd.f32 %v5457, %v5533
        %5535 = vmatprep.mubr.f32.mxu0 %v5386
        %5536 = vmatmul.mubr.f32.gmra.mrb[0].mxu0 %v4955
        %v5537 = vpop.f32.mrb[0].mxu0
        %v5538 = vadd.f32 %v5461, %v5537
        %v5539 = vpop.f32.mrb[0].mxu0
        %v5540 = vadd.f32 %v5463, %v5539
        %5541 = vdwg.mxu0
        %s5542 = scalar_lea.vmem [#allocation12], 1792
        %v5543 = vld [vmem:[%s5542] sm:$0xff]
        %v5544 = vld [vmem:[%s5542 + $0x8] sm:$0xff]
        %v5545 = vld [vmem:[%s5542 + $0x10] sm:$0xff]
        %v5546 = vld [vmem:[%s5542 + $0x18] sm:$0xff]
        %v5547 = vld [vmem:[%s5542 + $0x20] sm:$0xff]
        %v5548 = vld [vmem:[%s5542 + $0x28] sm:$0xff]
        %v5549 = vld [vmem:[%s5542 + $0x30] sm:$0xff]
        %v5550 = vld [vmem:[%s5542 + $0x38] sm:$0xff]
        %v5551 = vld [vmem:[%s5542 + $0x40] sm:$0xff]
        %v5552 = vld [vmem:[%s5542 + $0x48] sm:$0xff]
        %v5553 = vld [vmem:[%s5542 + $0x50] sm:$0xff]
        %v5554 = vld [vmem:[%s5542 + $0x58] sm:$0xff]
        %v5555 = vld [vmem:[%s5542 + $0x60] sm:$0xff]
        %v5556 = vld [vmem:[%s5542 + $0x68] sm:$0xff]
        %v5557 = vld [vmem:[%s5542 + $0x70] sm:$0xff]
        %v5558 = vld [vmem:[%s5542 + $0x78] sm:$0xff]
        %v5559 = vld [vmem:[%s5542 + $0x80] sm:$0xff]
        %v5560 = vld [vmem:[%s5542 + $0x88] sm:$0xff]
        %v5561 = vld [vmem:[%s5542 + $0x90] sm:$0xff]
        %v5562 = vld [vmem:[%s5542 + $0x98] sm:$0xff]
        %v5563 = vld [vmem:[%s5542 + $0xa0] sm:$0xff]
        %v5564 = vld [vmem:[%s5542 + $0xa8] sm:$0xff]
        %v5565 = vld [vmem:[%s5542 + $0xb0] sm:$0xff]
        %v5566 = vld [vmem:[%s5542 + $0xb8] sm:$0xff]
        %v5567 = vld [vmem:[%s5542 + $0xc0] sm:$0xff]
        %v5568 = vld [vmem:[%s5542 + $0xc8] sm:$0xff]
        %v5569 = vld [vmem:[%s5542 + $0xd0] sm:$0xff]
        %v5570 = vld [vmem:[%s5542 + $0xd8] sm:$0xff]
        %v5571 = vld [vmem:[%s5542 + $0xe0] sm:$0xff]
        %v5572 = vld [vmem:[%s5542 + $0xe8] sm:$0xff]
        %v5573 = vld [vmem:[%s5542 + $0xf0] sm:$0xff]
        %v5574 = vld [vmem:[%s5542 + $0xf8] sm:$0xff]
        %v5575 = vld [vmem:[%s5542 + $0x100] sm:$0xff]
        %v5576 = vld [vmem:[%s5542 + $0x108] sm:$0xff]
        %v5577 = vld [vmem:[%s5542 + $0x110] sm:$0xff]
        %v5578 = vld [vmem:[%s5542 + $0x118] sm:$0xff]
        %v5579 = vld [vmem:[%s5542 + $0x120] sm:$0xff]
        %v5580 = vld [vmem:[%s5542 + $0x128] sm:$0xff]
        %v5581 = vld [vmem:[%s5542 + $0x130] sm:$0xff]
        %v5582 = vld [vmem:[%s5542 + $0x138] sm:$0xff]
        %v5583 = vld [vmem:[%s5542 + $0x140] sm:$0xff]
        %v5584 = vld [vmem:[%s5542 + $0x148] sm:$0xff]
        %v5585 = vld [vmem:[%s5542 + $0x150] sm:$0xff]
        %v5586 = vld [vmem:[%s5542 + $0x158] sm:$0xff]
        %v5587 = vld [vmem:[%s5542 + $0x160] sm:$0xff]
        %v5588 = vld [vmem:[%s5542 + $0x168] sm:$0xff]
        %v5589 = vld [vmem:[%s5542 + $0x170] sm:$0xff]
        %v5590 = vld [vmem:[%s5542 + $0x178] sm:$0xff]
        %v5591 = vld [vmem:[%s5542 + $0x180] sm:$0xff]
        %v5592 = vld [vmem:[%s5542 + $0x188] sm:$0xff]
        %v5593 = vld [vmem:[%s5542 + $0x190] sm:$0xff]
        %v5594 = vld [vmem:[%s5542 + $0x198] sm:$0xff]
        %v5595 = vld [vmem:[%s5542 + $0x1a0] sm:$0xff]
        %v5596 = vld [vmem:[%s5542 + $0x1a8] sm:$0xff]
        %v5597 = vld [vmem:[%s5542 + $0x1b0] sm:$0xff]
        %v5598 = vld [vmem:[%s5542 + $0x1b8] sm:$0xff]
        %v5599 = vld [vmem:[%s5542 + $0x1c0] sm:$0xff]
        %v5600 = vld [vmem:[%s5542 + $0x1c8] sm:$0xff]
        %v5601 = vld [vmem:[%s5542 + $0x1d0] sm:$0xff]
        %v5602 = vld [vmem:[%s5542 + $0x1d8] sm:$0xff]
        %v5603 = vld [vmem:[%s5542 + $0x1e0] sm:$0xff]
        %v5604 = vld [vmem:[%s5542 + $0x1e8] sm:$0xff]
        %v5605 = vld [vmem:[%s5542 + $0x1f0] sm:$0xff]
        %v5606 = vld [vmem:[%s5542 + $0x1f8] sm:$0xff]
        %v5607 = vld [vmem:[%s5542 + $0x200] sm:$0xff]
        %v5608 = vld [vmem:[%s5542 + $0x208] sm:$0xff]
        %v5609 = vld [vmem:[%s5542 + $0x210] sm:$0xff]
        %v5610 = vld [vmem:[%s5542 + $0x218] sm:$0xff]
        %v5611 = vld [vmem:[%s5542 + $0x220] sm:$0xff]
        %v5612 = vld [vmem:[%s5542 + $0x228] sm:$0xff]
        %v5613 = vld [vmem:[%s5542 + $0x230] sm:$0xff]
        %v5614 = vld [vmem:[%s5542 + $0x238] sm:$0xff]
        %v5615 = vld [vmem:[%s5542 + $0x240] sm:$0xff]
        %v5616 = vld [vmem:[%s5542 + $0x248] sm:$0xff]
        %v5617 = vld [vmem:[%s5542 + $0x250] sm:$0xff]
        %v5618 = vld [vmem:[%s5542 + $0x258] sm:$0xff]
        %v5619 = vld [vmem:[%s5542 + $0x260] sm:$0xff]
        %v5620 = vld [vmem:[%s5542 + $0x268] sm:$0xff]
        %v5621 = vld [vmem:[%s5542 + $0x270] sm:$0xff]
        %v5622 = vld [vmem:[%s5542 + $0x278] sm:$0xff]
        %v5623 = vld [vmem:[%s5542 + $0x280] sm:$0xff]
        %v5624 = vld [vmem:[%s5542 + $0x288] sm:$0xff]
        %v5625 = vld [vmem:[%s5542 + $0x290] sm:$0xff]
        %v5626 = vld [vmem:[%s5542 + $0x298] sm:$0xff]
        %v5627 = vld [vmem:[%s5542 + $0x2a0] sm:$0xff]
        %v5628 = vld [vmem:[%s5542 + $0x2a8] sm:$0xff]
        %v5629 = vld [vmem:[%s5542 + $0x2b0] sm:$0xff]
        %v5630 = vld [vmem:[%s5542 + $0x2b8] sm:$0xff]
        %v5631 = vld [vmem:[%s5542 + $0x2c0] sm:$0xff]
        %v5632 = vld [vmem:[%s5542 + $0x2c8] sm:$0xff]
        %v5633 = vld [vmem:[%s5542 + $0x2d0] sm:$0xff]
        %v5634 = vld [vmem:[%s5542 + $0x2d8] sm:$0xff]
        %v5635 = vld [vmem:[%s5542 + $0x2e0] sm:$0xff]
        %v5636 = vld [vmem:[%s5542 + $0x2e8] sm:$0xff]
        %v5637 = vld [vmem:[%s5542 + $0x2f0] sm:$0xff]
        %v5638 = vld [vmem:[%s5542 + $0x2f8] sm:$0xff]
        %v5639 = vld [vmem:[%s5542 + $0x300] sm:$0xff]
        %v5640 = vld [vmem:[%s5542 + $0x308] sm:$0xff]
        %v5641 = vld [vmem:[%s5542 + $0x310] sm:$0xff]
        %v5642 = vld [vmem:[%s5542 + $0x318] sm:$0xff]
        %v5643 = vld [vmem:[%s5542 + $0x320] sm:$0xff]
        %v5644 = vld [vmem:[%s5542 + $0x328] sm:$0xff]
        %v5645 = vld [vmem:[%s5542 + $0x330] sm:$0xff]
        %v5646 = vld [vmem:[%s5542 + $0x338] sm:$0xff]
        %v5647 = vld [vmem:[%s5542 + $0x340] sm:$0xff]
        %v5648 = vld [vmem:[%s5542 + $0x348] sm:$0xff]
        %v5649 = vld [vmem:[%s5542 + $0x350] sm:$0xff]
        %v5650 = vld [vmem:[%s5542 + $0x358] sm:$0xff]
        %v5651 = vld [vmem:[%s5542 + $0x360] sm:$0xff]
        %v5652 = vld [vmem:[%s5542 + $0x368] sm:$0xff]
        %v5653 = vld [vmem:[%s5542 + $0x370] sm:$0xff]
        %v5654 = vld [vmem:[%s5542 + $0x378] sm:$0xff]
        %v5656 = vsel %vm2923, %v4968, 0
        %v5659 = vsel %vm2923, %v4972, 0
        %5661 = vmatprep.subr.mxu0 %v5544
        %5662 = vmatpush1.msra.mxu0 %v5543
        %5663 = vmatprep.subr.mxu0 %v5546
        %5664 = vmatpush1.msra.mxu0 %v5545
        %5665 = vmatprep.subr.mxu0 %v5548
        %5666 = vmatpush1.msra.mxu0 %v5547
        %5667 = vmatprep.subr.mxu0 %v5550
        %5668 = vmatpush1.msra.mxu0 %v5549
        %5669 = vmatprep.subr.mxu0 %v5552
        %5670 = vmatpush1.msra.mxu0 %v5551
        %5671 = vmatprep.subr.mxu0 %v5554
        %5672 = vmatpush1.msra.mxu0 %v5553
        %5673 = vmatprep.subr.mxu0 %v5556
        %5674 = vmatpush1.msra.mxu0 %v5555
        %5675 = vmatprep.subr.mxu0 %v5558
        %5676 = vmatpush1.msra.mxu0 %v5557
        %5677 = vmatprep.subr.mxu0 %v5560
        %5678 = vmatpush1.msra.mxu0 %v5559
        %5679 = vmatprep.subr.mxu0 %v5562
        %5680 = vmatpush1.msra.mxu0 %v5561
        %5681 = vmatprep.subr.mxu0 %v5564
        %5682 = vmatpush1.msra.mxu0 %v5563
        %5683 = vmatprep.subr.mxu0 %v5566
        %5684 = vmatpush1.msra.mxu0 %v5565
        %5685 = vmatprep.subr.mxu0 %v5568
        %5686 = vmatpush1.msra.mxu0 %v5567
        %5687 = vmatprep.subr.mxu0 %v5570
        %5688 = vmatpush1.msra.mxu0 %v5569
        %5689 = vmatprep.subr.mxu0 %v5572
        %5690 = vmatpush1.msra.mxu0 %v5571
        %5691 = vmatprep.subr.mxu0 %v5574
        %5692 = vmatpush1.msra.mxu0 %v5573
        %5693 = vmatprep.subr.mxu0 %v5576
        %5694 = vmatpush1.msra.mxu0 %v5575
        %5695 = vmatprep.subr.mxu0 %v5578
        %5696 = vmatpush1.msra.mxu0 %v5577
        %5697 = vmatprep.subr.mxu0 %v5580
        %5698 = vmatpush1.msra.mxu0 %v5579
        %5699 = vmatprep.subr.mxu0 %v5582
        %5700 = vmatpush1.msra.mxu0 %v5581
        %5701 = vmatprep.subr.mxu0 %v5584
        %5702 = vmatpush1.msra.mxu0 %v5583
        %5703 = vmatprep.subr.mxu0 %v5586
        %5704 = vmatpush1.msra.mxu0 %v5585
        %5705 = vmatprep.subr.mxu0 %v5588
        %5706 = vmatpush1.msra.mxu0 %v5587
        %5707 = vmatprep.subr.mxu0 %v5590
        %5708 = vmatpush1.msra.mxu0 %v5589
        %5709 = vmatprep.subr.mxu0 %v5592
        %5710 = vmatpush1.msra.mxu0 %v5591
        %5711 = vmatprep.subr.mxu0 %v5594
        %5712 = vmatpush1.msra.mxu0 %v5593
        %5713 = vmatprep.subr.mxu0 %v5596
        %5714 = vmatpush1.msra.mxu0 %v5595
        %5715 = vmatprep.subr.mxu0 %v5598
        %5716 = vmatpush1.msra.mxu0 %v5597
        %5717 = vmatprep.subr.mxu0 %v5600
        %5718 = vmatpush1.msra.mxu0 %v5599
        %5719 = vmatprep.subr.mxu0 %v5602
        %5720 = vmatpush1.msra.mxu0 %v5601
        %5721 = vmatprep.subr.mxu0 %v5604
        %5722 = vmatpush1.msra.mxu0 %v5603
        %5723 = vmatprep.subr.mxu0 %v5606
        %5724 = vmatpush1.msra.mxu0 %v5605
        %5725 = vmatprep.mubr.f32.mxu0 %v4966
        %5726 = vmatmul.mubr.f32.gmra.mrb[0].mxu0 %v4965
        %v5727 = vpop.f32.mrb[0].mxu0
        %v5728 = vadd.f32 0.0, %v5727
        %v5729 = vpop.f32.mrb[0].mxu0
        %v5730 = vadd.f32 0.0, %v5729
        %5731 = vmatprep.mubr.f32.mxu0 %v4970
        %5732 = vmatmul.mubr.f32.gmra.mrb[0].mxu0 %v4969
        %v5733 = vpop.f32.mrb[0].mxu0
        %v5734 = vadd.f32 0.0, %v5733
        %v5735 = vpop.f32.mrb[0].mxu0
        %v5736 = vadd.f32 0.0, %v5735
        %5737 = vdwg.mxu0
        %5738 = vmatprep.subr.mxu0 %v5608
        %5739 = vmatpush1.msra.mxu0 %v5607
        %5740 = vmatprep.subr.mxu0 %v5610
        %5741 = vmatpush1.msra.mxu0 %v5609
        %5742 = vmatprep.subr.mxu0 %v5612
        %5743 = vmatpush1.msra.mxu0 %v5611
        %5744 = vmatprep.subr.mxu0 %v5614
        %5745 = vmatpush1.msra.mxu0 %v5613
        %5746 = vmatprep.subr.mxu0 %v5616
        %5747 = vmatpush1.msra.mxu0 %v5615
        %5748 = vmatprep.subr.mxu0 %v5618
        %5749 = vmatpush1.msra.mxu0 %v5617
        %5750 = vmatprep.subr.mxu0 %v5620
        %5751 = vmatpush1.msra.mxu0 %v5619
        %5752 = vmatprep.subr.mxu0 %v5622
        %5753 = vmatpush1.msra.mxu0 %v5621
        %5754 = vmatprep.subr.mxu0 %v5624
        %5755 = vmatpush1.msra.mxu0 %v5623
        %5756 = vmatprep.subr.mxu0 %v5626
        %5757 = vmatpush1.msra.mxu0 %v5625
        %5758 = vmatprep.subr.mxu0 %v5628
        %5759 = vmatpush1.msra.mxu0 %v5627
        %5760 = vmatprep.subr.mxu0 %v5630
        %5761 = vmatpush1.msra.mxu0 %v5629
        %5762 = vmatprep.subr.mxu0 %v5632
        %5763 = vmatpush1.msra.mxu0 %v5631
        %5764 = vmatprep.subr.mxu0 %v5634
        %5765 = vmatpush1.msra.mxu0 %v5633
        %5766 = vmatprep.subr.mxu0 %v5636
        %5767 = vmatpush1.msra.mxu0 %v5635
        %5768 = vmatprep.subr.mxu0 %v5638
        %5769 = vmatpush1.msra.mxu0 %v5637
        %5770 = vmatprep.subr.mxu0 %v5640
        %5771 = vmatpush1.msra.mxu0 %v5639
        %5772 = vmatprep.subr.mxu0 %v5642
        %5773 = vmatpush1.msra.mxu0 %v5641
        %5774 = vmatprep.subr.mxu0 %v5644
        %5775 = vmatpush1.msra.mxu0 %v5643
        %5776 = vmatprep.subr.mxu0 %v5646
        %5777 = vmatpush1.msra.mxu0 %v5645
        %5778 = vmatprep.subr.mxu0 %v5648
        %5779 = vmatpush1.msra.mxu0 %v5647
        %5780 = vmatprep.subr.mxu0 %v5650
        %5781 = vmatpush1.msra.mxu0 %v5649
        %5782 = vmatprep.subr.mxu0 %v5652
        %5783 = vmatpush1.msra.mxu0 %v5651
        %5784 = vmatprep.subr.mxu0 %v5654
        %5785 = vmatpush1.msra.mxu0 %v5653
        %5786 = vmatprep.subr.mxu0 0.0
        %5787 = vmatpush1.msra.mxu0 0.0
        %5788 = vmatprep.subr.mxu0 0.0
        %5789 = vmatpush1.msra.mxu0 0.0
        %5790 = vmatprep.subr.mxu0 0.0
        %5791 = vmatpush1.msra.mxu0 0.0
        %5792 = vmatprep.subr.mxu0 0.0
        %5793 = vmatpush1.msra.mxu0 0.0
        %5794 = vmatprep.subr.mxu0 0.0
        %5795 = vmatpush1.msra.mxu0 0.0
        %5796 = vmatprep.subr.mxu0 0.0
        %5797 = vmatpush1.msra.mxu0 0.0
        %5798 = vmatprep.subr.mxu0 0.0
        %5799 = vmatpush1.msra.mxu0 0.0
        %5800 = vmatprep.subr.mxu0 0.0
        %5801 = vmatpush1.msra.mxu0 0.0
        %5802 = vmatprep.mubr.f32.mxu0 %v5656
        %5803 = vmatmul.mubr.f32.gmra.mrb[0].mxu0 %v4967
        %v5804 = vpop.f32.mrb[0].mxu0
        %v5805 = vadd.f32 %v5728, %v5804
        %v5806 = vpop.f32.mrb[0].mxu0
        %v5807 = vadd.f32 %v5730, %v5806
        %5808 = vmatprep.mubr.f32.mxu0 %v5659
        %5809 = vmatmul.mubr.f32.gmra.mrb[0].mxu0 %v4971
        %v5810 = vpop.f32.mrb[0].mxu0
        %v5811 = vadd.f32 %v5734, %v5810
        %v5812 = vpop.f32.mrb[0].mxu0
        %v5813 = vadd.f32 %v5736, %v5812
        %5814 = vdwg.mxu0
        %v5815 = vadd.f32 %v5532, %v5805
        %v5816 = vadd.f32 %v5534, %v5807
        %v5817 = vadd.f32 %v5538, %v5811
        %v5818 = vadd.f32 %v5540, %v5813
        %s5819 = scalar_lea.vmem [#allocation12], 2688
        %v5820 = vld [vmem:[%s5819] sm:$0xff]
        %v5821 = vld [vmem:[%s5819 + $0x8] sm:$0xff]
        %v5822 = vld [vmem:[%s5819 + $0x10] sm:$0xff]
        %v5823 = vld [vmem:[%s5819 + $0x18] sm:$0xff]
        %v5824 = vld [vmem:[%s5819 + $0x20] sm:$0xff]
        %v5825 = vld [vmem:[%s5819 + $0x28] sm:$0xff]
        %v5826 = vld [vmem:[%s5819 + $0x30] sm:$0xff]
        %v5827 = vld [vmem:[%s5819 + $0x38] sm:$0xff]
        %v5828 = vld [vmem:[%s5819 + $0x40] sm:$0xff]
        %v5829 = vld [vmem:[%s5819 + $0x48] sm:$0xff]
        %v5830 = vld [vmem:[%s5819 + $0x50] sm:$0xff]
        %v5831 = vld [vmem:[%s5819 + $0x58] sm:$0xff]
        %v5832 = vld [vmem:[%s5819 + $0x60] sm:$0xff]
        %v5833 = vld [vmem:[%s5819 + $0x68] sm:$0xff]
        %v5834 = vld [vmem:[%s5819 + $0x70] sm:$0xff]
        %v5835 = vld [vmem:[%s5819 + $0x78] sm:$0xff]
        %v5836 = vld [vmem:[%s5819 + $0x80] sm:$0xff]
        %v5837 = vld [vmem:[%s5819 + $0x88] sm:$0xff]
        %v5838 = vld [vmem:[%s5819 + $0x90] sm:$0xff]
        %v5839 = vld [vmem:[%s5819 + $0x98] sm:$0xff]
        %v5840 = vld [vmem:[%s5819 + $0xa0] sm:$0xff]
        %v5841 = vld [vmem:[%s5819 + $0xa8] sm:$0xff]
        %v5842 = vld [vmem:[%s5819 + $0xb0] sm:$0xff]
        %v5843 = vld [vmem:[%s5819 + $0xb8] sm:$0xff]
        %v5844 = vld [vmem:[%s5819 + $0xc0] sm:$0xff]
        %v5845 = vld [vmem:[%s5819 + $0xc8] sm:$0xff]
        %v5846 = vld [vmem:[%s5819 + $0xd0] sm:$0xff]
        %v5847 = vld [vmem:[%s5819 + $0xd8] sm:$0xff]
        %v5848 = vld [vmem:[%s5819 + $0xe0] sm:$0xff]
        %v5849 = vld [vmem:[%s5819 + $0xe8] sm:$0xff]
        %v5850 = vld [vmem:[%s5819 + $0xf0] sm:$0xff]
        %v5851 = vld [vmem:[%s5819 + $0xf8] sm:$0xff]
        %v5852 = vld [vmem:[%s5819 + $0x100] sm:$0xff]
        %v5853 = vld [vmem:[%s5819 + $0x108] sm:$0xff]
        %v5854 = vld [vmem:[%s5819 + $0x110] sm:$0xff]
        %v5855 = vld [vmem:[%s5819 + $0x118] sm:$0xff]
        %v5856 = vld [vmem:[%s5819 + $0x120] sm:$0xff]
        %v5857 = vld [vmem:[%s5819 + $0x128] sm:$0xff]
        %v5858 = vld [vmem:[%s5819 + $0x130] sm:$0xff]
        %v5859 = vld [vmem:[%s5819 + $0x138] sm:$0xff]
        %v5860 = vld [vmem:[%s5819 + $0x140] sm:$0xff]
        %v5861 = vld [vmem:[%s5819 + $0x148] sm:$0xff]
        %v5862 = vld [vmem:[%s5819 + $0x150] sm:$0xff]
        %v5863 = vld [vmem:[%s5819 + $0x158] sm:$0xff]
        %v5864 = vld [vmem:[%s5819 + $0x160] sm:$0xff]
        %v5865 = vld [vmem:[%s5819 + $0x168] sm:$0xff]
        %v5866 = vld [vmem:[%s5819 + $0x170] sm:$0xff]
        %v5867 = vld [vmem:[%s5819 + $0x178] sm:$0xff]
        %v5868 = vld [vmem:[%s5819 + $0x180] sm:$0xff]
        %v5869 = vld [vmem:[%s5819 + $0x188] sm:$0xff]
        %v5870 = vld [vmem:[%s5819 + $0x190] sm:$0xff]
        %v5871 = vld [vmem:[%s5819 + $0x198] sm:$0xff]
        %v5872 = vld [vmem:[%s5819 + $0x1a0] sm:$0xff]
        %v5873 = vld [vmem:[%s5819 + $0x1a8] sm:$0xff]
        %v5874 = vld [vmem:[%s5819 + $0x1b0] sm:$0xff]
        %v5875 = vld [vmem:[%s5819 + $0x1b8] sm:$0xff]
        %v5876 = vld [vmem:[%s5819 + $0x1c0] sm:$0xff]
        %v5877 = vld [vmem:[%s5819 + $0x1c8] sm:$0xff]
        %v5878 = vld [vmem:[%s5819 + $0x1d0] sm:$0xff]
        %v5879 = vld [vmem:[%s5819 + $0x1d8] sm:$0xff]
        %v5880 = vld [vmem:[%s5819 + $0x1e0] sm:$0xff]
        %v5881 = vld [vmem:[%s5819 + $0x1e8] sm:$0xff]
        %v5882 = vld [vmem:[%s5819 + $0x1f0] sm:$0xff]
        %v5883 = vld [vmem:[%s5819 + $0x1f8] sm:$0xff]
        %v5884 = vld [vmem:[%s5819 + $0x200] sm:$0xff]
        %v5885 = vld [vmem:[%s5819 + $0x208] sm:$0xff]
        %v5886 = vld [vmem:[%s5819 + $0x210] sm:$0xff]
        %v5887 = vld [vmem:[%s5819 + $0x218] sm:$0xff]
        %v5888 = vld [vmem:[%s5819 + $0x220] sm:$0xff]
        %v5889 = vld [vmem:[%s5819 + $0x228] sm:$0xff]
        %v5890 = vld [vmem:[%s5819 + $0x230] sm:$0xff]
        %v5891 = vld [vmem:[%s5819 + $0x238] sm:$0xff]
        %v5892 = vld [vmem:[%s5819 + $0x240] sm:$0xff]
        %v5893 = vld [vmem:[%s5819 + $0x248] sm:$0xff]
        %v5894 = vld [vmem:[%s5819 + $0x250] sm:$0xff]
        %v5895 = vld [vmem:[%s5819 + $0x258] sm:$0xff]
        %v5896 = vld [vmem:[%s5819 + $0x260] sm:$0xff]
        %v5897 = vld [vmem:[%s5819 + $0x268] sm:$0xff]
        %v5898 = vld [vmem:[%s5819 + $0x270] sm:$0xff]
        %v5899 = vld [vmem:[%s5819 + $0x278] sm:$0xff]
        %v5900 = vld [vmem:[%s5819 + $0x280] sm:$0xff]
        %v5901 = vld [vmem:[%s5819 + $0x288] sm:$0xff]
        %v5902 = vld [vmem:[%s5819 + $0x290] sm:$0xff]
        %v5903 = vld [vmem:[%s5819 + $0x298] sm:$0xff]
        %v5904 = vld [vmem:[%s5819 + $0x2a0] sm:$0xff]
        %v5905 = vld [vmem:[%s5819 + $0x2a8] sm:$0xff]
        %v5906 = vld [vmem:[%s5819 + $0x2b0] sm:$0xff]
        %v5907 = vld [vmem:[%s5819 + $0x2b8] sm:$0xff]
        %v5908 = vld [vmem:[%s5819 + $0x2c0] sm:$0xff]
        %v5909 = vld [vmem:[%s5819 + $0x2c8] sm:$0xff]
        %v5910 = vld [vmem:[%s5819 + $0x2d0] sm:$0xff]
        %v5911 = vld [vmem:[%s5819 + $0x2d8] sm:$0xff]
        %v5912 = vld [vmem:[%s5819 + $0x2e0] sm:$0xff]
        %v5913 = vld [vmem:[%s5819 + $0x2e8] sm:$0xff]
        %v5914 = vld [vmem:[%s5819 + $0x2f0] sm:$0xff]
        %v5915 = vld [vmem:[%s5819 + $0x2f8] sm:$0xff]
        %v5916 = vld [vmem:[%s5819 + $0x300] sm:$0xff]
        %v5917 = vld [vmem:[%s5819 + $0x308] sm:$0xff]
        %v5918 = vld [vmem:[%s5819 + $0x310] sm:$0xff]
        %v5919 = vld [vmem:[%s5819 + $0x318] sm:$0xff]
        %v5920 = vld [vmem:[%s5819 + $0x320] sm:$0xff]
        %v5921 = vld [vmem:[%s5819 + $0x328] sm:$0xff]
        %v5922 = vld [vmem:[%s5819 + $0x330] sm:$0xff]
        %v5923 = vld [vmem:[%s5819 + $0x338] sm:$0xff]
        %v5924 = vld [vmem:[%s5819 + $0x340] sm:$0xff]
        %v5925 = vld [vmem:[%s5819 + $0x348] sm:$0xff]
        %v5926 = vld [vmem:[%s5819 + $0x350] sm:$0xff]
        %v5927 = vld [vmem:[%s5819 + $0x358] sm:$0xff]
        %v5928 = vld [vmem:[%s5819 + $0x360] sm:$0xff]
        %v5929 = vld [vmem:[%s5819 + $0x368] sm:$0xff]
        %v5930 = vld [vmem:[%s5819 + $0x370] sm:$0xff]
        %v5931 = vld [vmem:[%s5819 + $0x378] sm:$0xff]
        %v5933 = vsel %vm2923, %v4976, 0
        %v5936 = vsel %vm2923, %v4980, 0
        %5938 = vmatprep.subr.mxu0 %v5821
        %5939 = vmatpush1.msra.mxu0 %v5820
        %5940 = vmatprep.subr.mxu0 %v5823
        %5941 = vmatpush1.msra.mxu0 %v5822
        %5942 = vmatprep.subr.mxu0 %v5825
        %5943 = vmatpush1.msra.mxu0 %v5824
        %5944 = vmatprep.subr.mxu0 %v5827
        %5945 = vmatpush1.msra.mxu0 %v5826
        %5946 = vmatprep.subr.mxu0 %v5829
        %5947 = vmatpush1.msra.mxu0 %v5828
        %5948 = vmatprep.subr.mxu0 %v5831
        %5949 = vmatpush1.msra.mxu0 %v5830
        %5950 = vmatprep.subr.mxu0 %v5833
        %5951 = vmatpush1.msra.mxu0 %v5832
        %5952 = vmatprep.subr.mxu0 %v5835
        %5953 = vmatpush1.msra.mxu0 %v5834
        %5954 = vmatprep.subr.mxu0 %v5837
        %5955 = vmatpush1.msra.mxu0 %v5836
        %5956 = vmatprep.subr.mxu0 %v5839
        %5957 = vmatpush1.msra.mxu0 %v5838
        %5958 = vmatprep.subr.mxu0 %v5841
        %5959 = vmatpush1.msra.mxu0 %v5840
        %5960 = vmatprep.subr.mxu0 %v5843
        %5961 = vmatpush1.msra.mxu0 %v5842
        %5962 = vmatprep.subr.mxu0 %v5845
        %5963 = vmatpush1.msra.mxu0 %v5844
        %5964 = vmatprep.subr.mxu0 %v5847
        %5965 = vmatpush1.msra.mxu0 %v5846
        %5966 = vmatprep.subr.mxu0 %v5849
        %5967 = vmatpush1.msra.mxu0 %v5848
        %5968 = vmatprep.subr.mxu0 %v5851
        %5969 = vmatpush1.msra.mxu0 %v5850
        %5970 = vmatprep.subr.mxu0 %v5853
        %5971 = vmatpush1.msra.mxu0 %v5852
        %5972 = vmatprep.subr.mxu0 %v5855
        %5973 = vmatpush1.msra.mxu0 %v5854
        %5974 = vmatprep.subr.mxu0 %v5857
        %5975 = vmatpush1.msra.mxu0 %v5856
        %5976 = vmatprep.subr.mxu0 %v5859
        %5977 = vmatpush1.msra.mxu0 %v5858
        %5978 = vmatprep.subr.mxu0 %v5861
        %5979 = vmatpush1.msra.mxu0 %v5860
        %5980 = vmatprep.subr.mxu0 %v5863
        %5981 = vmatpush1.msra.mxu0 %v5862
        %5982 = vmatprep.subr.mxu0 %v5865
        %5983 = vmatpush1.msra.mxu0 %v5864
        %5984 = vmatprep.subr.mxu0 %v5867
        %5985 = vmatpush1.msra.mxu0 %v5866
        %5986 = vmatprep.subr.mxu0 %v5869
        %5987 = vmatpush1.msra.mxu0 %v5868
        %5988 = vmatprep.subr.mxu0 %v5871
        %5989 = vmatpush1.msra.mxu0 %v5870
        %5990 = vmatprep.subr.mxu0 %v5873
        %5991 = vmatpush1.msra.mxu0 %v5872
        %5992 = vmatprep.subr.mxu0 %v5875
        %5993 = vmatpush1.msra.mxu0 %v5874
        %5994 = vmatprep.subr.mxu0 %v5877
        %5995 = vmatpush1.msra.mxu0 %v5876
        %5996 = vmatprep.subr.mxu0 %v5879
        %5997 = vmatpush1.msra.mxu0 %v5878
        %5998 = vmatprep.subr.mxu0 %v5881
        %5999 = vmatpush1.msra.mxu0 %v5880
        %6000 = vmatprep.subr.mxu0 %v5883
        %6001 = vmatpush1.msra.mxu0 %v5882
        %6002 = vmatprep.mubr.f32.mxu0 %v4974
        %6003 = vmatmul.mubr.f32.gmra.mrb[0].mxu0 %v4973
        %v6004 = vpop.f32.mrb[0].mxu0
        %v6005 = vadd.f32 0.0, %v6004
        %v6006 = vpop.f32.mrb[0].mxu0
        %v6007 = vadd.f32 0.0, %v6006
        %6008 = vmatprep.mubr.f32.mxu0 %v4978
        %6009 = vmatmul.mubr.f32.gmra.mrb[0].mxu0 %v4977
        %v6010 = vpop.f32.mrb[0].mxu0
        %v6011 = vadd.f32 0.0, %v6010
        %v6012 = vpop.f32.mrb[0].mxu0
        %v6013 = vadd.f32 0.0, %v6012
        %6014 = vdwg.mxu0
        %6015 = vmatprep.subr.mxu0 %v5885
        %6016 = vmatpush1.msra.mxu0 %v5884
        %6017 = vmatprep.subr.mxu0 %v5887
        %6018 = vmatpush1.msra.mxu0 %v5886
        %6019 = vmatprep.subr.mxu0 %v5889
        %6020 = vmatpush1.msra.mxu0 %v5888
        %6021 = vmatprep.subr.mxu0 %v5891
        %6022 = vmatpush1.msra.mxu0 %v5890
        %6023 = vmatprep.subr.mxu0 %v5893
        %6024 = vmatpush1.msra.mxu0 %v5892
        %6025 = vmatprep.subr.mxu0 %v5895
        %6026 = vmatpush1.msra.mxu0 %v5894
        %6027 = vmatprep.subr.mxu0 %v5897
        %6028 = vmatpush1.msra.mxu0 %v5896
        %6029 = vmatprep.subr.mxu0 %v5899
        %6030 = vmatpush1.msra.mxu0 %v5898
        %6031 = vmatprep.subr.mxu0 %v5901
        %6032 = vmatpush1.msra.mxu0 %v5900
        %6033 = vmatprep.subr.mxu0 %v5903
        %6034 = vmatpush1.msra.mxu0 %v5902
        %6035 = vmatprep.subr.mxu0 %v5905
        %6036 = vmatpush1.msra.mxu0 %v5904
        %6037 = vmatprep.subr.mxu0 %v5907
        %6038 = vmatpush1.msra.mxu0 %v5906
        %6039 = vmatprep.subr.mxu0 %v5909
        %6040 = vmatpush1.msra.mxu0 %v5908
        %6041 = vmatprep.subr.mxu0 %v5911
        %6042 = vmatpush1.msra.mxu0 %v5910
        %6043 = vmatprep.subr.mxu0 %v5913
        %6044 = vmatpush1.msra.mxu0 %v5912
        %6045 = vmatprep.subr.mxu0 %v5915
        %6046 = vmatpush1.msra.mxu0 %v5914
        %6047 = vmatprep.subr.mxu0 %v5917
        %6048 = vmatpush1.msra.mxu0 %v5916
        %6049 = vmatprep.subr.mxu0 %v5919
        %6050 = vmatpush1.msra.mxu0 %v5918
        %6051 = vmatprep.subr.mxu0 %v5921
        %6052 = vmatpush1.msra.mxu0 %v5920
        %6053 = vmatprep.subr.mxu0 %v5923
        %6054 = vmatpush1.msra.mxu0 %v5922
        %6055 = vmatprep.subr.mxu0 %v5925
        %6056 = vmatpush1.msra.mxu0 %v5924
        %6057 = vmatprep.subr.mxu0 %v5927
        %6058 = vmatpush1.msra.mxu0 %v5926
        %6059 = vmatprep.subr.mxu0 %v5929
        %6060 = vmatpush1.msra.mxu0 %v5928
        %6061 = vmatprep.subr.mxu0 %v5931
        %6062 = vmatpush1.msra.mxu0 %v5930
        %6063 = vmatprep.subr.mxu0 0.0
        %6064 = vmatpush1.msra.mxu0 0.0
        %6065 = vmatprep.subr.mxu0 0.0
        %6066 = vmatpush1.msra.mxu0 0.0
        %6067 = vmatprep.subr.mxu0 0.0
        %6068 = vmatpush1.msra.mxu0 0.0
        %6069 = vmatprep.subr.mxu0 0.0
        %6070 = vmatpush1.msra.mxu0 0.0
        %6071 = vmatprep.subr.mxu0 0.0
        %6072 = vmatpush1.msra.mxu0 0.0
        %6073 = vmatprep.subr.mxu0 0.0
        %6074 = vmatpush1.msra.mxu0 0.0
        %6075 = vmatprep.subr.mxu0 0.0
        %6076 = vmatpush1.msra.mxu0 0.0
        %6077 = vmatprep.subr.mxu0 0.0
        %6078 = vmatpush1.msra.mxu0 0.0
        %6079 = vmatprep.mubr.f32.mxu0 %v5933
        %6080 = vmatmul.mubr.f32.gmra.mrb[0].mxu0 %v4975
        %v6081 = vpop.f32.mrb[0].mxu0
        %v6082 = vadd.f32 %v6005, %v6081
        %v6083 = vpop.f32.mrb[0].mxu0
        %v6084 = vadd.f32 %v6007, %v6083
        %6085 = vmatprep.mubr.f32.mxu0 %v5936
        %6086 = vmatmul.mubr.f32.gmra.mrb[0].mxu0 %v4979
        %v6087 = vpop.f32.mrb[0].mxu0
        %v6088 = vadd.f32 %v6011, %v6087
        %v6089 = vpop.f32.mrb[0].mxu0
        %v6090 = vadd.f32 %v6013, %v6089
        %6091 = vdwg.mxu0
        %v6092 = vadd.f32 %v5815, %v6082
        %v6093 = vadd.f32 %v5816, %v6084
        %v6094 = vadd.f32 %v5817, %v6088
        %v6095 = vadd.f32 %v5818, %v6090
        %s6096 = scalar_lea.vmem [#allocation12], 3584
        %v6097 = vld [vmem:[%s6096] sm:$0xff]
        %v6098 = vld [vmem:[%s6096 + $0x8] sm:$0xff]
        %v6099 = vld [vmem:[%s6096 + $0x10] sm:$0xff]
        %v6100 = vld [vmem:[%s6096 + $0x18] sm:$0xff]
        %v6101 = vld [vmem:[%s6096 + $0x20] sm:$0xff]
        %v6102 = vld [vmem:[%s6096 + $0x28] sm:$0xff]
        %v6103 = vld [vmem:[%s6096 + $0x30] sm:$0xff]
        %v6104 = vld [vmem:[%s6096 + $0x38] sm:$0xff]
        %v6105 = vld [vmem:[%s6096 + $0x40] sm:$0xff]
        %v6106 = vld [vmem:[%s6096 + $0x48] sm:$0xff]
        %v6107 = vld [vmem:[%s6096 + $0x50] sm:$0xff]
        %v6108 = vld [vmem:[%s6096 + $0x58] sm:$0xff]
        %v6109 = vld [vmem:[%s6096 + $0x60] sm:$0xff]
        %v6110 = vld [vmem:[%s6096 + $0x68] sm:$0xff]
        %v6111 = vld [vmem:[%s6096 + $0x70] sm:$0xff]
        %v6112 = vld [vmem:[%s6096 + $0x78] sm:$0xff]
        %v6113 = vld [vmem:[%s6096 + $0x80] sm:$0xff]
        %v6114 = vld [vmem:[%s6096 + $0x88] sm:$0xff]
        %v6115 = vld [vmem:[%s6096 + $0x90] sm:$0xff]
        %v6116 = vld [vmem:[%s6096 + $0x98] sm:$0xff]
        %v6117 = vld [vmem:[%s6096 + $0xa0] sm:$0xff]
        %v6118 = vld [vmem:[%s6096 + $0xa8] sm:$0xff]
        %v6119 = vld [vmem:[%s6096 + $0xb0] sm:$0xff]
        %v6120 = vld [vmem:[%s6096 + $0xb8] sm:$0xff]
        %v6121 = vld [vmem:[%s6096 + $0xc0] sm:$0xff]
        %v6122 = vld [vmem:[%s6096 + $0xc8] sm:$0xff]
        %v6123 = vld [vmem:[%s6096 + $0xd0] sm:$0xff]
        %v6124 = vld [vmem:[%s6096 + $0xd8] sm:$0xff]
        %v6125 = vld [vmem:[%s6096 + $0xe0] sm:$0xff]
        %v6126 = vld [vmem:[%s6096 + $0xe8] sm:$0xff]
        %v6127 = vld [vmem:[%s6096 + $0xf0] sm:$0xff]
        %v6128 = vld [vmem:[%s6096 + $0xf8] sm:$0xff]
        %v6129 = vld [vmem:[%s6096 + $0x100] sm:$0xff]
        %v6130 = vld [vmem:[%s6096 + $0x108] sm:$0xff]
        %v6131 = vld [vmem:[%s6096 + $0x110] sm:$0xff]
        %v6132 = vld [vmem:[%s6096 + $0x118] sm:$0xff]
        %v6133 = vld [vmem:[%s6096 + $0x120] sm:$0xff]
        %v6134 = vld [vmem:[%s6096 + $0x128] sm:$0xff]
        %v6135 = vld [vmem:[%s6096 + $0x130] sm:$0xff]
        %v6136 = vld [vmem:[%s6096 + $0x138] sm:$0xff]
        %v6137 = vld [vmem:[%s6096 + $0x140] sm:$0xff]
        %v6138 = vld [vmem:[%s6096 + $0x148] sm:$0xff]
        %v6139 = vld [vmem:[%s6096 + $0x150] sm:$0xff]
        %v6140 = vld [vmem:[%s6096 + $0x158] sm:$0xff]
        %v6141 = vld [vmem:[%s6096 + $0x160] sm:$0xff]
        %v6142 = vld [vmem:[%s6096 + $0x168] sm:$0xff]
        %v6143 = vld [vmem:[%s6096 + $0x170] sm:$0xff]
        %v6144 = vld [vmem:[%s6096 + $0x178] sm:$0xff]
        %v6145 = vld [vmem:[%s6096 + $0x180] sm:$0xff]
        %v6146 = vld [vmem:[%s6096 + $0x188] sm:$0xff]
        %v6147 = vld [vmem:[%s6096 + $0x190] sm:$0xff]
        %v6148 = vld [vmem:[%s6096 + $0x198] sm:$0xff]
        %v6149 = vld [vmem:[%s6096 + $0x1a0] sm:$0xff]
        %v6150 = vld [vmem:[%s6096 + $0x1a8] sm:$0xff]
        %v6151 = vld [vmem:[%s6096 + $0x1b0] sm:$0xff]
        %v6152 = vld [vmem:[%s6096 + $0x1b8] sm:$0xff]
        %v6153 = vld [vmem:[%s6096 + $0x1c0] sm:$0xff]
        %v6154 = vld [vmem:[%s6096 + $0x1c8] sm:$0xff]
        %v6155 = vld [vmem:[%s6096 + $0x1d0] sm:$0xff]
        %v6156 = vld [vmem:[%s6096 + $0x1d8] sm:$0xff]
        %v6157 = vld [vmem:[%s6096 + $0x1e0] sm:$0xff]
        %v6158 = vld [vmem:[%s6096 + $0x1e8] sm:$0xff]
        %v6159 = vld [vmem:[%s6096 + $0x1f0] sm:$0xff]
        %v6160 = vld [vmem:[%s6096 + $0x1f8] sm:$0xff]
        %v6161 = vld [vmem:[%s6096 + $0x200] sm:$0xff]
        %v6162 = vld [vmem:[%s6096 + $0x208] sm:$0xff]
        %v6163 = vld [vmem:[%s6096 + $0x210] sm:$0xff]
        %v6164 = vld [vmem:[%s6096 + $0x218] sm:$0xff]
        %v6165 = vld [vmem:[%s6096 + $0x220] sm:$0xff]
        %v6166 = vld [vmem:[%s6096 + $0x228] sm:$0xff]
        %v6167 = vld [vmem:[%s6096 + $0x230] sm:$0xff]
        %v6168 = vld [vmem:[%s6096 + $0x238] sm:$0xff]
        %v6169 = vld [vmem:[%s6096 + $0x240] sm:$0xff]
        %v6170 = vld [vmem:[%s6096 + $0x248] sm:$0xff]
        %v6171 = vld [vmem:[%s6096 + $0x250] sm:$0xff]
        %v6172 = vld [vmem:[%s6096 + $0x258] sm:$0xff]
        %v6173 = vld [vmem:[%s6096 + $0x260] sm:$0xff]
        %v6174 = vld [vmem:[%s6096 + $0x268] sm:$0xff]
        %v6175 = vld [vmem:[%s6096 + $0x270] sm:$0xff]
        %v6176 = vld [vmem:[%s6096 + $0x278] sm:$0xff]
        %v6177 = vld [vmem:[%s6096 + $0x280] sm:$0xff]
        %v6178 = vld [vmem:[%s6096 + $0x288] sm:$0xff]
        %v6179 = vld [vmem:[%s6096 + $0x290] sm:$0xff]
        %v6180 = vld [vmem:[%s6096 + $0x298] sm:$0xff]
        %v6181 = vld [vmem:[%s6096 + $0x2a0] sm:$0xff]
        %v6182 = vld [vmem:[%s6096 + $0x2a8] sm:$0xff]
        %v6183 = vld [vmem:[%s6096 + $0x2b0] sm:$0xff]
        %v6184 = vld [vmem:[%s6096 + $0x2b8] sm:$0xff]
        %v6185 = vld [vmem:[%s6096 + $0x2c0] sm:$0xff]
        %v6186 = vld [vmem:[%s6096 + $0x2c8] sm:$0xff]
        %v6187 = vld [vmem:[%s6096 + $0x2d0] sm:$0xff]
        %v6188 = vld [vmem:[%s6096 + $0x2d8] sm:$0xff]
        %v6189 = vld [vmem:[%s6096 + $0x2e0] sm:$0xff]
        %v6190 = vld [vmem:[%s6096 + $0x2e8] sm:$0xff]
        %v6191 = vld [vmem:[%s6096 + $0x2f0] sm:$0xff]
        %v6192 = vld [vmem:[%s6096 + $0x2f8] sm:$0xff]
        %v6193 = vld [vmem:[%s6096 + $0x300] sm:$0xff]
        %v6194 = vld [vmem:[%s6096 + $0x308] sm:$0xff]
        %v6195 = vld [vmem:[%s6096 + $0x310] sm:$0xff]
        %v6196 = vld [vmem:[%s6096 + $0x318] sm:$0xff]
        %v6197 = vld [vmem:[%s6096 + $0x320] sm:$0xff]
        %v6198 = vld [vmem:[%s6096 + $0x328] sm:$0xff]
        %v6199 = vld [vmem:[%s6096 + $0x330] sm:$0xff]
        %v6200 = vld [vmem:[%s6096 + $0x338] sm:$0xff]
        %v6201 = vld [vmem:[%s6096 + $0x340] sm:$0xff]
        %v6202 = vld [vmem:[%s6096 + $0x348] sm:$0xff]
        %v6203 = vld [vmem:[%s6096 + $0x350] sm:$0xff]
        %v6204 = vld [vmem:[%s6096 + $0x358] sm:$0xff]
        %v6205 = vld [vmem:[%s6096 + $0x360] sm:$0xff]
        %v6206 = vld [vmem:[%s6096 + $0x368] sm:$0xff]
        %v6207 = vld [vmem:[%s6096 + $0x370] sm:$0xff]
        %v6208 = vld [vmem:[%s6096 + $0x378] sm:$0xff]
        %v6210 = vsel %vm2923, %v4984, 0
        %v6213 = vsel %vm2923, %v4988, 0
        %6215 = vmatprep.subr.mxu0 %v6098
        %6216 = vmatpush1.msra.mxu0 %v6097
        %6217 = vmatprep.subr.mxu0 %v6100
        %6218 = vmatpush1.msra.mxu0 %v6099
        %6219 = vmatprep.subr.mxu0 %v6102
        %6220 = vmatpush1.msra.mxu0 %v6101
        %6221 = vmatprep.subr.mxu0 %v6104
        %6222 = vmatpush1.msra.mxu0 %v6103
        %6223 = vmatprep.subr.mxu0 %v6106
        %6224 = vmatpush1.msra.mxu0 %v6105
        %6225 = vmatprep.subr.mxu0 %v6108
        %6226 = vmatpush1.msra.mxu0 %v6107
        %6227 = vmatprep.subr.mxu0 %v6110
        %6228 = vmatpush1.msra.mxu0 %v6109
        %6229 = vmatprep.subr.mxu0 %v6112
        %6230 = vmatpush1.msra.mxu0 %v6111
        %6231 = vmatprep.subr.mxu0 %v6114
        %6232 = vmatpush1.msra.mxu0 %v6113
        %6233 = vmatprep.subr.mxu0 %v6116
        %6234 = vmatpush1.msra.mxu0 %v6115
        %6235 = vmatprep.subr.mxu0 %v6118
        %6236 = vmatpush1.msra.mxu0 %v6117
        %6237 = vmatprep.subr.mxu0 %v6120
        %6238 = vmatpush1.msra.mxu0 %v6119
        %6239 = vmatprep.subr.mxu0 %v6122
        %6240 = vmatpush1.msra.mxu0 %v6121
        %6241 = vmatprep.subr.mxu0 %v6124
        %6242 = vmatpush1.msra.mxu0 %v6123
        %6243 = vmatprep.subr.mxu0 %v6126
        %6244 = vmatpush1.msra.mxu0 %v6125
        %6245 = vmatprep.subr.mxu0 %v6128
        %6246 = vmatpush1.msra.mxu0 %v6127
        %6247 = vmatprep.subr.mxu0 %v6130
        %6248 = vmatpush1.msra.mxu0 %v6129
        %6249 = vmatprep.subr.mxu0 %v6132
        %6250 = vmatpush1.msra.mxu0 %v6131
        %6251 = vmatprep.subr.mxu0 %v6134
        %6252 = vmatpush1.msra.mxu0 %v6133
        %6253 = vmatprep.subr.mxu0 %v6136
        %6254 = vmatpush1.msra.mxu0 %v6135
        %6255 = vmatprep.subr.mxu0 %v6138
        %6256 = vmatpush1.msra.mxu0 %v6137
        %6257 = vmatprep.subr.mxu0 %v6140
        %6258 = vmatpush1.msra.mxu0 %v6139
        %6259 = vmatprep.subr.mxu0 %v6142
        %6260 = vmatpush1.msra.mxu0 %v6141
        %6261 = vmatprep.subr.mxu0 %v6144
        %6262 = vmatpush1.msra.mxu0 %v6143
        %6263 = vmatprep.subr.mxu0 %v6146
        %6264 = vmatpush1.msra.mxu0 %v6145
        %6265 = vmatprep.subr.mxu0 %v6148
        %6266 = vmatpush1.msra.mxu0 %v6147
        %6267 = vmatprep.subr.mxu0 %v6150
        %6268 = vmatpush1.msra.mxu0 %v6149
        %6269 = vmatprep.subr.mxu0 %v6152
        %6270 = vmatpush1.msra.mxu0 %v6151
        %6271 = vmatprep.subr.mxu0 %v6154
        %6272 = vmatpush1.msra.mxu0 %v6153
        %6273 = vmatprep.subr.mxu0 %v6156
        %6274 = vmatpush1.msra.mxu0 %v6155
        %6275 = vmatprep.subr.mxu0 %v6158
        %6276 = vmatpush1.msra.mxu0 %v6157
        %6277 = vmatprep.subr.mxu0 %v6160
        %6278 = vmatpush1.msra.mxu0 %v6159
        %6279 = vmatprep.mubr.f32.mxu0 %v4982
        %6280 = vmatmul.mubr.f32.gmra.mrb[0].mxu0 %v4981
        %v6281 = vpop.f32.mrb[0].mxu0
        %v6282 = vadd.f32 0.0, %v6281
        %v6283 = vpop.f32.mrb[0].mxu0
        %v6284 = vadd.f32 0.0, %v6283
        %6285 = vmatprep.mubr.f32.mxu0 %v4986
        %6286 = vmatmul.mubr.f32.gmra.mrb[0].mxu0 %v4985
        %v6287 = vpop.f32.mrb[0].mxu0
        %v6288 = vadd.f32 0.0, %v6287
        %v6289 = vpop.f32.mrb[0].mxu0
        %v6290 = vadd.f32 0.0, %v6289
        %6291 = vdwg.mxu0
        %6292 = vmatprep.subr.mxu0 %v6162
        %6293 = vmatpush1.msra.mxu0 %v6161
        %6294 = vmatprep.subr.mxu0 %v6164
        %6295 = vmatpush1.msra.mxu0 %v6163
        %6296 = vmatprep.subr.mxu0 %v6166
        %6297 = vmatpush1.msra.mxu0 %v6165
        %6298 = vmatprep.subr.mxu0 %v6168
        %6299 = vmatpush1.msra.mxu0 %v6167
        %6300 = vmatprep.subr.mxu0 %v6170
        %6301 = vmatpush1.msra.mxu0 %v6169
        %6302 = vmatprep.subr.mxu0 %v6172
        %6303 = vmatpush1.msra.mxu0 %v6171
        %6304 = vmatprep.subr.mxu0 %v6174
        %6305 = vmatpush1.msra.mxu0 %v6173
        %6306 = vmatprep.subr.mxu0 %v6176
        %6307 = vmatpush1.msra.mxu0 %v6175
        %6308 = vmatprep.subr.mxu0 %v6178
        %6309 = vmatpush1.msra.mxu0 %v6177
        %6310 = vmatprep.subr.mxu0 %v6180
        %6311 = vmatpush1.msra.mxu0 %v6179
        %6312 = vmatprep.subr.mxu0 %v6182
        %6313 = vmatpush1.msra.mxu0 %v6181
        %6314 = vmatprep.subr.mxu0 %v6184
        %6315 = vmatpush1.msra.mxu0 %v6183
        %6316 = vmatprep.subr.mxu0 %v6186
        %6317 = vmatpush1.msra.mxu0 %v6185
        %6318 = vmatprep.subr.mxu0 %v6188
        %6319 = vmatpush1.msra.mxu0 %v6187
        %6320 = vmatprep.subr.mxu0 %v6190
        %6321 = vmatpush1.msra.mxu0 %v6189
        %6322 = vmatprep.subr.mxu0 %v6192
        %6323 = vmatpush1.msra.mxu0 %v6191
        %6324 = vmatprep.subr.mxu0 %v6194
        %6325 = vmatpush1.msra.mxu0 %v6193
        %6326 = vmatprep.subr.mxu0 %v6196
        %6327 = vmatpush1.msra.mxu0 %v6195
        %6328 = vmatprep.subr.mxu0 %v6198
        %6329 = vmatpush1.msra.mxu0 %v6197
        %6330 = vmatprep.subr.mxu0 %v6200
        %6331 = vmatpush1.msra.mxu0 %v6199
        %6332 = vmatprep.subr.mxu0 %v6202
        %6333 = vmatpush1.msra.mxu0 %v6201
        %6334 = vmatprep.subr.mxu0 %v6204
        %6335 = vmatpush1.msra.mxu0 %v6203
        %6336 = vmatprep.subr.mxu0 %v6206
        %6337 = vmatpush1.msra.mxu0 %v6205
        %6338 = vmatprep.subr.mxu0 %v6208
        %6339 = vmatpush1.msra.mxu0 %v6207
        %6340 = vmatprep.subr.mxu0 0.0
        %6341 = vmatpush1.msra.mxu0 0.0
        %6342 = vmatprep.subr.mxu0 0.0
        %6343 = vmatpush1.msra.mxu0 0.0
        %6344 = vmatprep.subr.mxu0 0.0
        %6345 = vmatpush1.msra.mxu0 0.0
        %6346 = vmatprep.subr.mxu0 0.0
        %6347 = vmatpush1.msra.mxu0 0.0
        %6348 = vmatprep.subr.mxu0 0.0
        %6349 = vmatpush1.msra.mxu0 0.0
        %6350 = vmatprep.subr.mxu0 0.0
        %6351 = vmatpush1.msra.mxu0 0.0
        %6352 = vmatprep.subr.mxu0 0.0
        %6353 = vmatpush1.msra.mxu0 0.0
        %6354 = vmatprep.subr.mxu0 0.0
        %6355 = vmatpush1.msra.mxu0 0.0
        %6356 = vmatprep.mubr.f32.mxu0 %v6210
        %6357 = vmatmul.mubr.f32.gmra.mrb[0].mxu0 %v4983
        %v6358 = vpop.f32.mrb[0].mxu0
        %v6359 = vadd.f32 %v6282, %v6358
        %v6360 = vpop.f32.mrb[0].mxu0
        %v6361 = vadd.f32 %v6284, %v6360
        %6362 = vmatprep.mubr.f32.mxu0 %v6213
        %6363 = vmatmul.mubr.f32.gmra.mrb[0].mxu0 %v4987
        %v6364 = vpop.f32.mrb[0].mxu0
        %v6365 = vadd.f32 %v6288, %v6364
        %v6366 = vpop.f32.mrb[0].mxu0
        %v6367 = vadd.f32 %v6290, %v6366
        %6368 = vdwg.mxu0
        %v6369 = vadd.f32 %v6092, %v6359
        %v6370 = vadd.f32 %v6093, %v6361
        %v6371 = vadd.f32 %v6094, %v6365
        %v6372 = vadd.f32 %v6095, %v6367
        %s6373 = scalar_lea.vmem [#allocation12], 4480
        %v6374 = vld [vmem:[%s6373] sm:$0xff]
        %v6375 = vld [vmem:[%s6373 + $0x8] sm:$0xff]
        %v6376 = vld [vmem:[%s6373 + $0x10] sm:$0xff]
        %v6377 = vld [vmem:[%s6373 + $0x18] sm:$0xff]
        %v6378 = vld [vmem:[%s6373 + $0x20] sm:$0xff]
        %v6379 = vld [vmem:[%s6373 + $0x28] sm:$0xff]
        %v6380 = vld [vmem:[%s6373 + $0x30] sm:$0xff]
        %v6381 = vld [vmem:[%s6373 + $0x38] sm:$0xff]
        %v6382 = vld [vmem:[%s6373 + $0x40] sm:$0xff]
        %v6383 = vld [vmem:[%s6373 + $0x48] sm:$0xff]
        %v6384 = vld [vmem:[%s6373 + $0x50] sm:$0xff]
        %v6385 = vld [vmem:[%s6373 + $0x58] sm:$0xff]
        %v6386 = vld [vmem:[%s6373 + $0x60] sm:$0xff]
        %v6387 = vld [vmem:[%s6373 + $0x68] sm:$0xff]
        %v6388 = vld [vmem:[%s6373 + $0x70] sm:$0xff]
        %v6389 = vld [vmem:[%s6373 + $0x78] sm:$0xff]
        %v6390 = vld [vmem:[%s6373 + $0x80] sm:$0xff]
        %v6391 = vld [vmem:[%s6373 + $0x88] sm:$0xff]
        %v6392 = vld [vmem:[%s6373 + $0x90] sm:$0xff]
        %v6393 = vld [vmem:[%s6373 + $0x98] sm:$0xff]
        %v6394 = vld [vmem:[%s6373 + $0xa0] sm:$0xff]
        %v6395 = vld [vmem:[%s6373 + $0xa8] sm:$0xff]
        %v6396 = vld [vmem:[%s6373 + $0xb0] sm:$0xff]
        %v6397 = vld [vmem:[%s6373 + $0xb8] sm:$0xff]
        %v6398 = vld [vmem:[%s6373 + $0xc0] sm:$0xff]
        %v6399 = vld [vmem:[%s6373 + $0xc8] sm:$0xff]
        %v6400 = vld [vmem:[%s6373 + $0xd0] sm:$0xff]
        %v6401 = vld [vmem:[%s6373 + $0xd8] sm:$0xff]
        %v6402 = vld [vmem:[%s6373 + $0xe0] sm:$0xff]
        %v6403 = vld [vmem:[%s6373 + $0xe8] sm:$0xff]
        %v6404 = vld [vmem:[%s6373 + $0xf0] sm:$0xff]
        %v6405 = vld [vmem:[%s6373 + $0xf8] sm:$0xff]
        %v6406 = vld [vmem:[%s6373 + $0x100] sm:$0xff]
        %v6407 = vld [vmem:[%s6373 + $0x108] sm:$0xff]
        %v6408 = vld [vmem:[%s6373 + $0x110] sm:$0xff]
        %v6409 = vld [vmem:[%s6373 + $0x118] sm:$0xff]
        %v6410 = vld [vmem:[%s6373 + $0x120] sm:$0xff]
        %v6411 = vld [vmem:[%s6373 + $0x128] sm:$0xff]
        %v6412 = vld [vmem:[%s6373 + $0x130] sm:$0xff]
        %v6413 = vld [vmem:[%s6373 + $0x138] sm:$0xff]
        %v6414 = vld [vmem:[%s6373 + $0x140] sm:$0xff]
        %v6415 = vld [vmem:[%s6373 + $0x148] sm:$0xff]
        %v6416 = vld [vmem:[%s6373 + $0x150] sm:$0xff]
        %v6417 = vld [vmem:[%s6373 + $0x158] sm:$0xff]
        %v6418 = vld [vmem:[%s6373 + $0x160] sm:$0xff]
        %v6419 = vld [vmem:[%s6373 + $0x168] sm:$0xff]
        %v6420 = vld [vmem:[%s6373 + $0x170] sm:$0xff]
        %v6421 = vld [vmem:[%s6373 + $0x178] sm:$0xff]
        %v6422 = vld [vmem:[%s6373 + $0x180] sm:$0xff]
        %v6423 = vld [vmem:[%s6373 + $0x188] sm:$0xff]
        %v6424 = vld [vmem:[%s6373 + $0x190] sm:$0xff]
        %v6425 = vld [vmem:[%s6373 + $0x198] sm:$0xff]
        %v6426 = vld [vmem:[%s6373 + $0x1a0] sm:$0xff]
        %v6427 = vld [vmem:[%s6373 + $0x1a8] sm:$0xff]
        %v6428 = vld [vmem:[%s6373 + $0x1b0] sm:$0xff]
        %v6429 = vld [vmem:[%s6373 + $0x1b8] sm:$0xff]
        %v6430 = vld [vmem:[%s6373 + $0x1c0] sm:$0xff]
        %v6431 = vld [vmem:[%s6373 + $0x1c8] sm:$0xff]
        %v6432 = vld [vmem:[%s6373 + $0x1d0] sm:$0xff]
        %v6433 = vld [vmem:[%s6373 + $0x1d8] sm:$0xff]
        %v6434 = vld [vmem:[%s6373 + $0x1e0] sm:$0xff]
        %v6435 = vld [vmem:[%s6373 + $0x1e8] sm:$0xff]
        %v6436 = vld [vmem:[%s6373 + $0x1f0] sm:$0xff]
        %v6437 = vld [vmem:[%s6373 + $0x1f8] sm:$0xff]
        %v6438 = vld [vmem:[%s6373 + $0x200] sm:$0xff]
        %v6439 = vld [vmem:[%s6373 + $0x208] sm:$0xff]
        %v6440 = vld [vmem:[%s6373 + $0x210] sm:$0xff]
        %v6441 = vld [vmem:[%s6373 + $0x218] sm:$0xff]
        %v6442 = vld [vmem:[%s6373 + $0x220] sm:$0xff]
        %v6443 = vld [vmem:[%s6373 + $0x228] sm:$0xff]
        %v6444 = vld [vmem:[%s6373 + $0x230] sm:$0xff]
        %v6445 = vld [vmem:[%s6373 + $0x238] sm:$0xff]
        %v6446 = vld [vmem:[%s6373 + $0x240] sm:$0xff]
        %v6447 = vld [vmem:[%s6373 + $0x248] sm:$0xff]
        %v6448 = vld [vmem:[%s6373 + $0x250] sm:$0xff]
        %v6449 = vld [vmem:[%s6373 + $0x258] sm:$0xff]
        %v6450 = vld [vmem:[%s6373 + $0x260] sm:$0xff]
        %v6451 = vld [vmem:[%s6373 + $0x268] sm:$0xff]
        %v6452 = vld [vmem:[%s6373 + $0x270] sm:$0xff]
        %v6453 = vld [vmem:[%s6373 + $0x278] sm:$0xff]
        %v6454 = vld [vmem:[%s6373 + $0x280] sm:$0xff]
        %v6455 = vld [vmem:[%s6373 + $0x288] sm:$0xff]
        %v6456 = vld [vmem:[%s6373 + $0x290] sm:$0xff]
        %v6457 = vld [vmem:[%s6373 + $0x298] sm:$0xff]
        %v6458 = vld [vmem:[%s6373 + $0x2a0] sm:$0xff]
        %v6459 = vld [vmem:[%s6373 + $0x2a8] sm:$0xff]
        %v6460 = vld [vmem:[%s6373 + $0x2b0] sm:$0xff]
        %v6461 = vld [vmem:[%s6373 + $0x2b8] sm:$0xff]
        %v6462 = vld [vmem:[%s6373 + $0x2c0] sm:$0xff]
        %v6463 = vld [vmem:[%s6373 + $0x2c8] sm:$0xff]
        %v6464 = vld [vmem:[%s6373 + $0x2d0] sm:$0xff]
        %v6465 = vld [vmem:[%s6373 + $0x2d8] sm:$0xff]
        %v6466 = vld [vmem:[%s6373 + $0x2e0] sm:$0xff]
        %v6467 = vld [vmem:[%s6373 + $0x2e8] sm:$0xff]
        %v6468 = vld [vmem:[%s6373 + $0x2f0] sm:$0xff]
        %v6469 = vld [vmem:[%s6373 + $0x2f8] sm:$0xff]
        %v6470 = vld [vmem:[%s6373 + $0x300] sm:$0xff]
        %v6471 = vld [vmem:[%s6373 + $0x308] sm:$0xff]
        %v6472 = vld [vmem:[%s6373 + $0x310] sm:$0xff]
        %v6473 = vld [vmem:[%s6373 + $0x318] sm:$0xff]
        %v6474 = vld [vmem:[%s6373 + $0x320] sm:$0xff]
        %v6475 = vld [vmem:[%s6373 + $0x328] sm:$0xff]
        %v6476 = vld [vmem:[%s6373 + $0x330] sm:$0xff]
        %v6477 = vld [vmem:[%s6373 + $0x338] sm:$0xff]
        %v6478 = vld [vmem:[%s6373 + $0x340] sm:$0xff]
        %v6479 = vld [vmem:[%s6373 + $0x348] sm:$0xff]
        %v6480 = vld [vmem:[%s6373 + $0x350] sm:$0xff]
        %v6481 = vld [vmem:[%s6373 + $0x358] sm:$0xff]
        %v6482 = vld [vmem:[%s6373 + $0x360] sm:$0xff]
        %v6483 = vld [vmem:[%s6373 + $0x368] sm:$0xff]
        %v6484 = vld [vmem:[%s6373 + $0x370] sm:$0xff]
        %v6485 = vld [vmem:[%s6373 + $0x378] sm:$0xff]
        %v6487 = vsel %vm2923, %v4992, 0
        %v6490 = vsel %vm2923, %v4996, 0
        %6492 = vmatprep.subr.mxu0 %v6375
        %6493 = vmatpush1.msra.mxu0 %v6374
        %6494 = vmatprep.subr.mxu0 %v6377
        %6495 = vmatpush1.msra.mxu0 %v6376
        %6496 = vmatprep.subr.mxu0 %v6379
        %6497 = vmatpush1.msra.mxu0 %v6378
        %6498 = vmatprep.subr.mxu0 %v6381
        %6499 = vmatpush1.msra.mxu0 %v6380
        %6500 = vmatprep.subr.mxu0 %v6383
        %6501 = vmatpush1.msra.mxu0 %v6382
        %6502 = vmatprep.subr.mxu0 %v6385
        %6503 = vmatpush1.msra.mxu0 %v6384
        %6504 = vmatprep.subr.mxu0 %v6387
        %6505 = vmatpush1.msra.mxu0 %v6386
        %6506 = vmatprep.subr.mxu0 %v6389
        %6507 = vmatpush1.msra.mxu0 %v6388
        %6508 = vmatprep.subr.mxu0 %v6391
        %6509 = vmatpush1.msra.mxu0 %v6390
        %6510 = vmatprep.subr.mxu0 %v6393
        %6511 = vmatpush1.msra.mxu0 %v6392
        %6512 = vmatprep.subr.mxu0 %v6395
        %6513 = vmatpush1.msra.mxu0 %v6394
        %6514 = vmatprep.subr.mxu0 %v6397
        %6515 = vmatpush1.msra.mxu0 %v6396
        %6516 = vmatprep.subr.mxu0 %v6399
        %6517 = vmatpush1.msra.mxu0 %v6398
        %6518 = vmatprep.subr.mxu0 %v6401
        %6519 = vmatpush1.msra.mxu0 %v6400
        %6520 = vmatprep.subr.mxu0 %v6403
        %6521 = vmatpush1.msra.mxu0 %v6402
        %6522 = vmatprep.subr.mxu0 %v6405
        %6523 = vmatpush1.msra.mxu0 %v6404
        %6524 = vmatprep.subr.mxu0 %v6407
        %6525 = vmatpush1.msra.mxu0 %v6406
        %6526 = vmatprep.subr.mxu0 %v6409
        %6527 = vmatpush1.msra.mxu0 %v6408
        %6528 = vmatprep.subr.mxu0 %v6411
        %6529 = vmatpush1.msra.mxu0 %v6410
        %6530 = vmatprep.subr.mxu0 %v6413
        %6531 = vmatpush1.msra.mxu0 %v6412
        %6532 = vmatprep.subr.mxu0 %v6415
        %6533 = vmatpush1.msra.mxu0 %v6414
        %6534 = vmatprep.subr.mxu0 %v6417
        %6535 = vmatpush1.msra.mxu0 %v6416
        %6536 = vmatprep.subr.mxu0 %v6419
        %6537 = vmatpush1.msra.mxu0 %v6418
        %6538 = vmatprep.subr.mxu0 %v6421
        %6539 = vmatpush1.msra.mxu0 %v6420
        %6540 = vmatprep.subr.mxu0 %v6423
        %6541 = vmatpush1.msra.mxu0 %v6422
        %6542 = vmatprep.subr.mxu0 %v6425
        %6543 = vmatpush1.msra.mxu0 %v6424
        %6544 = vmatprep.subr.mxu0 %v6427
        %6545 = vmatpush1.msra.mxu0 %v6426
        %6546 = vmatprep.subr.mxu0 %v6429
        %6547 = vmatpush1.msra.mxu0 %v6428
        %6548 = vmatprep.subr.mxu0 %v6431
        %6549 = vmatpush1.msra.mxu0 %v6430
        %6550 = vmatprep.subr.mxu0 %v6433
        %6551 = vmatpush1.msra.mxu0 %v6432
        %6552 = vmatprep.subr.mxu0 %v6435
        %6553 = vmatpush1.msra.mxu0 %v6434
        %6554 = vmatprep.subr.mxu0 %v6437
        %6555 = vmatpush1.msra.mxu0 %v6436
        %6556 = vmatprep.mubr.f32.mxu0 %v4990
        %6557 = vmatmul.mubr.f32.gmra.mrb[0].mxu0 %v4989
        %v6558 = vpop.f32.mrb[0].mxu0
        %v6559 = vadd.f32 0.0, %v6558
        %v6560 = vpop.f32.mrb[0].mxu0
        %v6561 = vadd.f32 0.0, %v6560
        %6562 = vmatprep.mubr.f32.mxu0 %v4994
        %6563 = vmatmul.mubr.f32.gmra.mrb[0].mxu0 %v4993
        %v6564 = vpop.f32.mrb[0].mxu0
        %v6565 = vadd.f32 0.0, %v6564
        %v6566 = vpop.f32.mrb[0].mxu0
        %v6567 = vadd.f32 0.0, %v6566
        %6568 = vdwg.mxu0
        %6569 = vmatprep.subr.mxu0 %v6439
        %6570 = vmatpush1.msra.mxu0 %v6438
        %6571 = vmatprep.subr.mxu0 %v6441
        %6572 = vmatpush1.msra.mxu0 %v6440
        %6573 = vmatprep.subr.mxu0 %v6443
        %6574 = vmatpush1.msra.mxu0 %v6442
        %6575 = vmatprep.subr.mxu0 %v6445
        %6576 = vmatpush1.msra.mxu0 %v6444
        %6577 = vmatprep.subr.mxu0 %v6447
        %6578 = vmatpush1.msra.mxu0 %v6446
        %6579 = vmatprep.subr.mxu0 %v6449
        %6580 = vmatpush1.msra.mxu0 %v6448
        %6581 = vmatprep.subr.mxu0 %v6451
        %6582 = vmatpush1.msra.mxu0 %v6450
        %6583 = vmatprep.subr.mxu0 %v6453
        %6584 = vmatpush1.msra.mxu0 %v6452
        %6585 = vmatprep.subr.mxu0 %v6455
        %6586 = vmatpush1.msra.mxu0 %v6454
        %6587 = vmatprep.subr.mxu0 %v6457
        %6588 = vmatpush1.msra.mxu0 %v6456
        %6589 = vmatprep.subr.mxu0 %v6459
        %6590 = vmatpush1.msra.mxu0 %v6458
        %6591 = vmatprep.subr.mxu0 %v6461
        %6592 = vmatpush1.msra.mxu0 %v6460
        %6593 = vmatprep.subr.mxu0 %v6463
        %6594 = vmatpush1.msra.mxu0 %v6462
        %6595 = vmatprep.subr.mxu0 %v6465
        %6596 = vmatpush1.msra.mxu0 %v6464
        %6597 = vmatprep.subr.mxu0 %v6467
        %6598 = vmatpush1.msra.mxu0 %v6466
        %6599 = vmatprep.subr.mxu0 %v6469
        %6600 = vmatpush1.msra.mxu0 %v6468
        %6601 = vmatprep.subr.mxu0 %v6471
        %6602 = vmatpush1.msra.mxu0 %v6470
        %6603 = vmatprep.subr.mxu0 %v6473
        %6604 = vmatpush1.msra.mxu0 %v6472
        %6605 = vmatprep.subr.mxu0 %v6475
        %6606 = vmatpush1.msra.mxu0 %v6474
        %6607 = vmatprep.subr.mxu0 %v6477
        %6608 = vmatpush1.msra.mxu0 %v6476
        %6609 = vmatprep.subr.mxu0 %v6479
        %6610 = vmatpush1.msra.mxu0 %v6478
        %6611 = vmatprep.subr.mxu0 %v6481
        %6612 = vmatpush1.msra.mxu0 %v6480
        %6613 = vmatprep.subr.mxu0 %v6483
        %6614 = vmatpush1.msra.mxu0 %v6482
        %6615 = vmatprep.subr.mxu0 %v6485
        %6616 = vmatpush1.msra.mxu0 %v6484
        %6617 = vmatprep.subr.mxu0 0.0
        %6618 = vmatpush1.msra.mxu0 0.0
        %6619 = vmatprep.subr.mxu0 0.0
        %6620 = vmatpush1.msra.mxu0 0.0
        %6621 = vmatprep.subr.mxu0 0.0
        %6622 = vmatpush1.msra.mxu0 0.0
        %6623 = vmatprep.subr.mxu0 0.0
        %6624 = vmatpush1.msra.mxu0 0.0
        %6625 = vmatprep.subr.mxu0 0.0
        %6626 = vmatpush1.msra.mxu0 0.0
        %6627 = vmatprep.subr.mxu0 0.0
        %6628 = vmatpush1.msra.mxu0 0.0
        %6629 = vmatprep.subr.mxu0 0.0
        %6630 = vmatpush1.msra.mxu0 0.0
        %6631 = vmatprep.subr.mxu0 0.0
        %6632 = vmatpush1.msra.mxu0 0.0
        %6633 = vmatprep.mubr.f32.mxu0 %v6487
        %6634 = vmatmul.mubr.f32.gmra.mrb[0].mxu0 %v4991
        %v6635 = vpop.f32.mrb[0].mxu0
        %v6636 = vadd.f32 %v6559, %v6635
        %v6637 = vpop.f32.mrb[0].mxu0
        %v6638 = vadd.f32 %v6561, %v6637
        %6639 = vmatprep.mubr.f32.mxu0 %v6490
        %6640 = vmatmul.mubr.f32.gmra.mrb[0].mxu0 %v4995
        %v6641 = vpop.f32.mrb[0].mxu0
        %v6642 = vadd.f32 %v6565, %v6641
        %v6643 = vpop.f32.mrb[0].mxu0
        %v6644 = vadd.f32 %v6567, %v6643
        %6645 = vdwg.mxu0
        %v6646 = vadd.f32 %v6369, %v6636
        %v6647 = vadd.f32 %v6370, %v6638
        %v6648 = vadd.f32 %v6371, %v6642
        %v6649 = vadd.f32 %v6372, %v6644
        %v6650 = vld [vmem:[#allocation13] sm:$0x3]
        %v6652 = vlaneseq
        %v6653 = vshrl.u32 %v6652, 7
        %v6654 = vsub.s32 0, %v6653
        %v6655 = vrot.slane %v6650, %v6654
        %v6656 = vlaneseq
        %v6657 = vshrl.u32 %v6656, 7
        %v6658 = vsub.s32 1, %v6657
        %v6659 = vrot.slane %v6650, %v6658
        %v6662 = vadd.f32 %v6646, %v6655
        %v6663 = vadd.f32 %v6647, %v6659
        %v6664 = vadd.f32 %v6648, %v6655
        %v6665 = vadd.f32 %v6649, %v6659
        %v6666 = vmax.f32 %v6662, 0.0
        %v6667 = vmax.f32 %v6663, 0.0
        %v6668 = vmax.f32 %v6664, 0.0
        %v6669 = vmax.f32 %v6665, 0.0
        %v6670 = vld [vmem:[#allocation15] sm:$0xff]
        %v6671 = vld [vmem:[#allocation15 + $0x8] sm:$0xff]
        %v6672 = vld [vmem:[#allocation15 + $0x10] sm:$0xff]
        %v6673 = vld [vmem:[#allocation15 + $0x18] sm:$0xff]
        %v6674 = vld [vmem:[#allocation15 + $0x20] sm:$0xff]
        %v6675 = vld [vmem:[#allocation15 + $0x28] sm:$0xff]
        %v6676 = vld [vmem:[#allocation15 + $0x30] sm:$0xff]
        %v6677 = vld [vmem:[#allocation15 + $0x38] sm:$0xff]
        %v6678 = vld [vmem:[#allocation15 + $0x40] sm:$0xff]
        %v6679 = vld [vmem:[#allocation15 + $0x48] sm:$0xff]
        %v6680 = vld [vmem:[#allocation15 + $0x50] sm:$0xff]
        %v6681 = vld [vmem:[#allocation15 + $0x58] sm:$0xff]
        %v6682 = vld [vmem:[#allocation15 + $0x60] sm:$0xff]
        %v6683 = vld [vmem:[#allocation15 + $0x68] sm:$0xff]
        %v6684 = vld [vmem:[#allocation15 + $0x70] sm:$0xff]
        %v6685 = vld [vmem:[#allocation15 + $0x78] sm:$0xff]
        %v6686 = vld [vmem:[#allocation15 + $0x80] sm:$0xff]
        %v6687 = vld [vmem:[#allocation15 + $0x88] sm:$0xff]
        %v6688 = vld [vmem:[#allocation15 + $0x90] sm:$0xff]
        %v6689 = vld [vmem:[#allocation15 + $0x98] sm:$0xff]
        %v6690 = vld [vmem:[#allocation15 + $0xa0] sm:$0xff]
        %v6691 = vld [vmem:[#allocation15 + $0xa8] sm:$0xff]
        %v6692 = vld [vmem:[#allocation15 + $0xb0] sm:$0xff]
        %v6693 = vld [vmem:[#allocation15 + $0xb8] sm:$0xff]
        %v6694 = vld [vmem:[#allocation15 + $0xc0] sm:$0xff]
        %v6695 = vld [vmem:[#allocation15 + $0xc8] sm:$0xff]
        %v6696 = vld [vmem:[#allocation15 + $0xd0] sm:$0xff]
        %v6697 = vld [vmem:[#allocation15 + $0xd8] sm:$0xff]
        %v6698 = vld [vmem:[#allocation15 + $0xe0] sm:$0xff]
        %v6699 = vld [vmem:[#allocation15 + $0xe8] sm:$0xff]
        %v6700 = vld [vmem:[#allocation15 + $0xf0] sm:$0xff]
        %v6701 = vld [vmem:[#allocation15 + $0xf8] sm:$0xff]
        %v6702 = vld [vmem:[#allocation16] sm:$0x1]
        %v6704 = vlaneseq
        %v6705 = vshrl.u32 %v6704, 7
        %v6706 = vsub.s32 0, %v6705
        %v6707 = vrot.slane %v6702, %v6706
        %6709 = vmatprep.subr.mxu0 0.0
        %6710 = vmatpush1.msra.mxu0 %v6670
        %6711 = vmatprep.subr.mxu0 0.0
        %6712 = vmatpush1.msra.mxu0 %v6671
        %6713 = vmatprep.subr.mxu0 0.0
        %6714 = vmatpush1.msra.mxu0 %v6672
        %6715 = vmatprep.subr.mxu0 0.0
        %6716 = vmatpush1.msra.mxu0 %v6673
        %6717 = vmatprep.subr.mxu0 0.0
        %6718 = vmatpush1.msra.mxu0 %v6674
        %6719 = vmatprep.subr.mxu0 0.0
        %6720 = vmatpush1.msra.mxu0 %v6675
        %6721 = vmatprep.subr.mxu0 0.0
        %6722 = vmatpush1.msra.mxu0 %v6676
        %6723 = vmatprep.subr.mxu0 0.0
        %6724 = vmatpush1.msra.mxu0 %v6677
        %6725 = vmatprep.subr.mxu0 0.0
        %6726 = vmatpush1.msra.mxu0 %v6678
        %6727 = vmatprep.subr.mxu0 0.0
        %6728 = vmatpush1.msra.mxu0 %v6679
        %6729 = vmatprep.subr.mxu0 0.0
        %6730 = vmatpush1.msra.mxu0 %v6680
        %6731 = vmatprep.subr.mxu0 0.0
        %6732 = vmatpush1.msra.mxu0 %v6681
        %6733 = vmatprep.subr.mxu0 0.0
        %6734 = vmatpush1.msra.mxu0 %v6682
        %6735 = vmatprep.subr.mxu0 0.0
        %6736 = vmatpush1.msra.mxu0 %v6683
        %6737 = vmatprep.subr.mxu0 0.0
        %6738 = vmatpush1.msra.mxu0 %v6684
        %6739 = vmatprep.subr.mxu0 0.0
        %6740 = vmatpush1.msra.mxu0 %v6685
        %6741 = vmatprep.subr.mxu0 0.0
        %6742 = vmatpush1.msra.mxu0 %v6686
        %6743 = vmatprep.subr.mxu0 0.0
        %6744 = vmatpush1.msra.mxu0 %v6687
        %6745 = vmatprep.subr.mxu0 0.0
        %6746 = vmatpush1.msra.mxu0 %v6688
        %6747 = vmatprep.subr.mxu0 0.0
        %6748 = vmatpush1.msra.mxu0 %v6689
        %6749 = vmatprep.subr.mxu0 0.0
        %6750 = vmatpush1.msra.mxu0 %v6690
        %6751 = vmatprep.subr.mxu0 0.0
        %6752 = vmatpush1.msra.mxu0 %v6691
        %6753 = vmatprep.subr.mxu0 0.0
        %6754 = vmatpush1.msra.mxu0 %v6692
        %6755 = vmatprep.subr.mxu0 0.0
        %6756 = vmatpush1.msra.mxu0 %v6693
        %6757 = vmatprep.subr.mxu0 0.0
        %6758 = vmatpush1.msra.mxu0 %v6694
        %6759 = vmatprep.subr.mxu0 0.0
        %6760 = vmatpush1.msra.mxu0 %v6695
        %6761 = vmatprep.subr.mxu0 0.0
        %6762 = vmatpush1.msra.mxu0 %v6696
        %6763 = vmatprep.subr.mxu0 0.0
        %6764 = vmatpush1.msra.mxu0 %v6697
        %6765 = vmatprep.subr.mxu0 0.0
        %6766 = vmatpush1.msra.mxu0 %v6698
        %6767 = vmatprep.subr.mxu0 0.0
        %6768 = vmatpush1.msra.mxu0 %v6699
        %6769 = vmatprep.subr.mxu0 0.0
        %6770 = vmatpush1.msra.mxu0 %v6700
        %6771 = vmatprep.subr.mxu0 0.0
        %6772 = vmatpush1.msra.mxu0 %v6701
        %6773 = vmatprep.mubr.f32.mxu0 %v6667
        %6774 = vmatmul.mubr.f32.gmra.mrb[0].mxu0 %v6666
        %v6775 = vpop.f32.mrb[0].mxu0
        %v6776 = vadd.f32 %v6707, %v6775
        %v6777 = vpop.f32.mrb[0].mxu0
        %6778 = vmatprep.mubr.f32.mxu0 %v6669
        %6779 = vmatmul.mubr.f32.gmra.mrb[0].mxu0 %v6668
        %v6780 = vpop.f32.mrb[0].mxu0
        %v6781 = vadd.f32 %v6707, %v6780
        %v6782 = vpop.f32.mrb[0].mxu0
        %6783 = vdwg.mxu0
        %v6784 = vlaneseq
        %v6785 = vand.u32 %v6784, 127
        %vm6786 = vcmp.lt.s32.totalorder %v6785, 7
        %v6787 = vsel %vm6786, %v6776, -inf
        %v6788 = vsel %vm6786, %v6781, -inf
        %6789 = vmax.xlane.f32.xlu0 %v6787
        %v6790 = vpop.xlane.xlu0 %6789
        %6791 = vmax.xlane.f32.xlu0 %v6788
        %v6792 = vpop.xlane.xlu0 %6791
        %v6793 = vsub.f32 %v6787, %v6790
        %v6794 = vsub.f32 %v6788, %v6792
        %v6795 = vmul.f32 %v6793, 1.442695
        %v6796 = vpow.pop %v6795
        %v6797 = vmul.f32 %v6794, 1.442695
        %v6798 = vpow.pop %v6797
        %6799 = vadd.xlane.f32.xlu0 %v6796
        %v6800 = vpop.xlane.xlu0 %6799
        %6801 = vadd.xlane.f32.xlu0 %v6798
        %v6802 = vpop.xlane.xlu0 %6801
        %v6803 = vrcp.pop %v6800
        %v6804 = vrcp.pop %v6802
        %v6805 = vmul.f32 %v6796, %v6803
        %v6806 = vmul.f32 %v6798, %v6804
        %vm6807 = vcmp.eq.s32.totalorder %v6785, 7
        %v6808 = vtanh.pop %v6776
        %v6809 = vtanh.pop %v6781
        %v6810 = vsel %vm6807, %v6808, %v6805
        %v6811 = vsel %vm6807, %v6809, %v6806
        %6812 = vst [vmem:[%s522] sm:$0xff] %v6810
        %6813 = vst [vmem:[%s522 + $0x8] sm:$0xff] %v6811
        %p6814 = scmp.lt.s32.totalorder %s28, 1
        %s6815 = scalar_select %p6814, %s28, 1
        %s6816 = smul.addr %s6815, 2
        %s6817 = smul.addr %s6816, 8
        %s6818 = scalar_lea.vmem %s11, %s6817
        // Predicated region
        $region105: #{pallas_forward.1} parent=63 // pred_check
          %p6819 = pneg %p282
        $region106: #{pallas_forward.1} parent=63 // pred_check_branch
          %6821 = sbr.rel (%p6819) target = $region108
        $region107: #{pallas_forward.1} parent=63 // pred_region
          _
        $region108: #{pallas_forward.1} parent=63 // pred_fallthru
          _
      $region64: #{pallas_forward.1} parent=5 // pred_fallthru
        _
      %p6822 = scmp.le.s32.totalorder 2, %s23
      // Predicated region
      $region109: #{pallas_forward.1} parent=5 // pred_check
        %p6823 = pneg %p6822
      $region110: #{pallas_forward.1} parent=5 // pred_check_branch
        %6825 = sbr.rel (%p6823) target = $region112
      $region111: #{pallas_forward.1} parent=5 // pred_region
        %s6826 = ssub.s32 %s23, 2
        // Predicated region
        $region113: #{pallas_forward.1} parent=111 // pred_check
          %p6827 = pneg %p288
        $region114: #{pallas_forward.1} parent=111 // pred_check_branch
          %6829 = sbr.rel (%p6827) target = $region116
        $region115: #{pallas_forward.1} parent=111 // pred_region
          %p6830 = scmp.lt.s32.totalorder %s29, 1
          %s6831 = scalar_select %p6830, %s29, 1
          %s6832 = smul.addr %s6831, 2
          %s6833 = smul.addr %s6832, 8
          %s6834 = scalar_lea.vmem %s11, %s6833
        $region116: #{pallas_forward.1} parent=111 // pred_fallthru
          _
      $region112: #{pallas_forward.1} parent=5 // pred_fallthru
        _
    $region6: #{pallas_forward.1} parent=1 // loop_footer
      %s27 = sadd.s32 1, %s23
    $region7: #{pallas_forward.1} parent=1 // loop_footer_branch
      %22 = sbr.rel target = $region3
    $region8: #{pallas_forward.1} parent=1 // loop_exit
      _
    %6835 = vsyncpa [#allocation3], 1
    %s6836 = scalar_lea.sflag [#allocation3], 1
    %6837 = vsyncpa %s6836, 1
    %6838 = vsyncpa [#allocation5], 1
    %6839 = vsyncpa [#allocation8], 1
    %6840 = vsyncpa [#allocation11], 1
    %6841 = vsyncpa [#allocation14], 1
    %6842 = vsyncpa [#allocation17], 1

</llo_original>
